<compile_context>
chip_gen: v6e
topology: v6e:2x2x1
jax: 0.10.0
libtpu: 0.0.40
codegen_flags: <defaults>
</compile_context>

<pallas_src>
import functools

import jax
import jax.numpy as jnp
from jax.experimental import pallas as pl
from jax.experimental.pallas import tpu as pltpu

WIDTH = 32
HEIGHT = 32
FIRST_KERNEL_SIZE = 5
SECOND_KERNEL_SIZE = 3

# ----- derived static sizes -------------------------------------------------
C0E, C1E, C2E = 3, 6, 16                 # per-eye channels: input, conv1 out, conv2 out
C0, C1, C2 = 2 * C0E, 2 * C1E, 2 * C2E   # merged channels (left | right stacked)
O1 = WIDTH - FIRST_KERNEL_SIZE + 1       # 28   conv1 spatial
P1 = O1 // 2                             # 14   pool1 spatial
O2 = P1 - SECOND_KERNEL_SIZE + 1         # 12   conv2 spatial
P2 = O2 // 2                             # 6    pool2 spatial
FC_IN_E = C2E * P2 * P2                  # 576  per-eye flatten size

LANES_X = WIDTH * C0                     # 192
LANES_C1 = O1 * C1                       # 336
LANES_C1P = LANES_C1 + C1                # 348 (extra zero channel-group for lane-shift max)
LANES_P1 = P1 * C1                       # 168
LANES_C2 = O2 * C2                       # 384
LANES_C2P = LANES_C2 + C2                # 416
LANES_P2 = P2 * C2                       # 192

HID1, HID2, OUT = 256, 32, 3
N_X0 = 9

# Zero rows appended to each image row-tile.  The conv1 shift-matmul row overhang
# needs >= 8; 16 keeps per-tile row counts a multiple of the bf16 sublane tile.
IMG_PAD = 16
ROW_TILE = 16    # row padding granularity for the small x0 / output tiles


def _round_up(x, m):
    return -(-x // m) * m


# ---------------------------------------------------------------------------
# The single fused Pallas kernel (one batch tile per grid step)
# ---------------------------------------------------------------------------
def _net_kernel(x0_ref, ximg_ref, m1_ref, b1_ref, m2_ref, b2_ref,
                s1_ref, r1_ref, s2_ref, r2_ref,
                wfcl_ref, bfcl_ref, wfcr_ref, bfcr_ref,
                wa_ref, wbl_ref, wbr_ref, bf1_ref,
                w2_ref, bf2_ref, w3_ref, bf3_ref,
                out_ref, *, tile_b, rt):
    f32 = jnp.float32
    bf16 = jnp.bfloat16
    TB = tile_b
    dot = functools.partial(jnp.dot, preferred_element_type=f32)

    # Activations are sliced in f32 (arbitrary sublane offsets are cheap/safe there)
    # and cast to bf16 right before each MXU dot; accumulation stays f32.
    ximg = ximg_ref[...].astype(f32)                            # (TB*32 + IMG_PAD, 192)

    # ---- conv1 + bias + ReLU (banded shift-matmul over kh) ----
    # NOTE: rows >= TB*32 of c1 mix data across batch images / zero padding; they
    # are only safe because the s1 selector never reads them (rows built with
    # src < 0 are all-zero).  Keep IMG_PAD, the +4/+2 overhangs and s1/s2 in sync.
    n1 = TB * HEIGHT + 4
    acc = dot(ximg[0:n1, :].astype(bf16), m1_ref[0])
    for kh in range(1, FIRST_KERNEL_SIZE):
        acc = acc + dot(ximg[kh:kh + n1, :].astype(bf16), m1_ref[kh])
    c1 = jnp.maximum(acc + b1_ref[...], 0.0)                    # f32 (TB*32+4, 348)

    # ---- maxpool1 2x2: shift-max + selection matmuls ----
    t1 = jnp.maximum(c1[0:TB * HEIGHT, :], c1[1:TB * HEIGHT + 1, :])
    t2 = jnp.maximum(t1[:, 0:LANES_C1], t1[:, C1:LANES_C1P]).astype(bf16)   # (TB*32, 336)
    u1 = dot(s1_ref[...], t2)                                   # (TB*14+4, 336) f32
    p1 = dot(u1.astype(bf16), r1_ref[...])                      # (TB*14+4, 168) f32

    # ---- conv2 + bias + ReLU ----
    n2 = TB * P1 + 2
    acc2 = dot(p1[0:n2, :].astype(bf16), m2_ref[0])
    for kh in range(1, SECOND_KERNEL_SIZE):
        acc2 = acc2 + dot(p1[kh:kh + n2, :].astype(bf16), m2_ref[kh])
    c2 = jnp.maximum(acc2 + b2_ref[...], 0.0)                   # f32 (TB*14+2, 416)

    # ---- maxpool2 2x2 ----
    t1b = jnp.maximum(c2[0:TB * P1, :], c2[1:TB * P1 + 1, :])
    t2b = jnp.maximum(t1b[:, 0:LANES_C2], t1b[:, C2:LANES_C2P]).astype(bf16)  # (TB*14, 384)
    u2 = dot(s2_ref[...], t2b)
    p2 = dot(u2.astype(bf16), r2_ref[...])                      # (6*TB, 192) f32, rows = h2*TB + b

    # ---- per-eye fc (flatten folded into per-row-block accumulation) ----
    half = P2 * C2E                                             # 96
    blk = p2[0:TB, :]
    fl = dot(blk[:, 0:half].astype(bf16), wfcl_ref[0])
    fr = dot(blk[:, half:2 * half].astype(bf16), wfcr_ref[0])
    for h in range(1, P2):
        blk = p2[h * TB:(h + 1) * TB, :]
        fl = fl + dot(blk[:, 0:half].astype(bf16), wfcl_ref[h])
        fr = fr + dot(blk[:, half:2 * half].astype(bf16), wfcr_ref[h])
    fl = jnp.maximum(fl + bfcl_ref[...], 0.0)                   # (TB, 256) left features f32
    fr = jnp.maximum(fr + bfcr_ref[...], 0.0)                   # (TB, 256) right features f32

    # ---- final MLP (cat folded into three accumulated dots) ----
    h1 = (dot(x0_ref[0:TB, :], wa_ref[...])
          + dot(fl.astype(bf16), wbl_ref[...])
          + dot(fr.astype(bf16), wbr_ref[...]))
    h1 = jnp.maximum(h1 + bf1_ref[...], 0.0)                    # (TB, 256)
    h2 = jnp.maximum(dot(h1.astype(bf16), w2_ref[...]) + bf2_ref[...], 0.0)   # (TB, 32)
    res = dot(h2.astype(bf16), w3_ref[...]) + bf3_ref[...]      # (TB, 3) f32
    out_ref[0:TB, :] = res
    if rt > TB:                                                 # zero the padded rows
        out_ref[TB:rt, :] = jnp.zeros((rt - TB, OUT), f32)


# ---------------------------------------------------------------------------
# One-time parameter packing (hoisted out of the forward path)
# ---------------------------------------------------------------------------
def _merged_tap_weights(wl, wr):
    """Two OIHW conv weights -> taps[kh, kw, cin_merged, cout_merged] (block-diag over eyes)."""
    cout_e, cin_e, _, _ = wl.shape
    kh_sz, kw_sz = wl.shape[2], wl.shape[3]
    taps = jnp.zeros((kh_sz, kw_sz, 2 * cin_e, 2 * cout_e), jnp.float32)
    taps = taps.at[:, :, :cin_e, :cout_e].set(jnp.transpose(wl, (2, 3, 1, 0)))
    taps = taps.at[:, :, cin_e:, cout_e:].set(jnp.transpose(wr, (2, 3, 1, 0)))
    return taps


def _banded_matrix(taps_kh, w_in, o_w, pad_cols):
    """taps_kh: (KW, Cin, Cout) -> banded (w_in*Cin, o_w*Cout + pad_cols) matrix so that
    conv over width == rows @ M  (M[w*Cin+c, ow*Cout+co] = taps[w-ow, c, co] in-band)."""
    kw_sz, cin, cout = taps_kh.shape
    w_idx = jnp.arange(w_in)[:, None]
    ow_idx = jnp.arange(o_w)[None, :]
    kw = w_idx - ow_idx
    valid = (kw >= 0) & (kw < kw_sz)
    blocks = taps_kh[jnp.clip(kw, 0, kw_sz - 1)]                # (w_in, o_w, Cin, Cout)
    blocks = jnp.where(valid[:, :, None, None], blocks, 0.0)
    m = jnp.transpose(blocks, (0, 2, 1, 3)).reshape(w_in * cin, o_w * cout)
    return jnp.pad(m, ((0, 0), (0, pad_cols)))


def _selection(n_rows, n_cols, src_cols):
    """0/1 matrix S with S[r, src_cols[r]] = 1 (rows with src_cols < 0 stay all-zero)."""
    del n_rows
    return (jnp.arange(n_cols)[None, :] == src_cols[:, None]).astype(jnp.float32)


def prepare_params(params, batch_tile):
    """Pack weights for a per-grid-step batch tile of `batch_tile` samples.

    NOTE: s1/s2 selector shapes depend on batch_tile; net_forward_pallas re-derives
    the tile size from those shapes and requires B % batch_tile == 0.
    Keep batch_tile <= ~32 so a tile (plus double-buffered bf16 weights) stays well
    inside the 16/32 MiB scoped-VMEM defaults on v5e / v6e / v7x.
    """
    TB = batch_tile
    bf16 = jnp.bfloat16
    pL, pR = params["left"], params["right"]

    # banded conv-as-matmul weights (both eyes merged block-diagonally on channels)
    taps1 = _merged_tap_weights(pL["conv1_w"], pR["conv1_w"])           # (5,5,6,12)
    m1 = jnp.stack([_banded_matrix(taps1[kh], WIDTH, O1, C1)
                    for kh in range(FIRST_KERNEL_SIZE)])                # (5, 192, 348)
    b1 = jnp.pad(jnp.tile(jnp.concatenate([pL["conv1_b"], pR["conv1_b"]]), O1),
                 (0, C1))[None, :]                                      # (1, 348) f32

    taps2 = _merged_tap_weights(pL["conv2_w"], pR["conv2_w"])           # (3,3,12,32)
    m2 = jnp.stack([_banded_matrix(taps2[kh], P1, O2, C2)
                    for kh in range(SECOND_KERNEL_SIZE)])               # (3, 168, 416)
    b2 = jnp.pad(jnp.tile(jnp.concatenate([pL["conv2_b"], pR["conv2_b"]]), O2),
                 (0, C2))[None, :]                                      # (1, 416) f32

    # pool-1 selectors: rows (b*14+oh2) <- row 32*b + 2*oh2 ; the +4 overhang rows
    # (needed by the conv2 shift-matmul) map to src=-1 and therefore stay all-zero.
    p = jnp.arange(TB * P1 + 4)
    s1 = _selection(TB * P1 + 4, TB * HEIGHT,
                    jnp.where(p < TB * P1, HEIGHT * (p // P1) + 2 * (p % P1), -1))
    q = jnp.arange(LANES_P1)
    r1 = _selection(LANES_P1, LANES_C1, 2 * C1 * (q // C1) + (q % C1)).T    # (336, 168)

    # pool-2 selectors: rows (h2*TB+b) <- row 14*b + 2*h2 ; lanes de-interleave eyes:
    #   [left (w2,c<16) block of 96 | right (w2,c) block of 96] <- 64*w2 + co
    r = jnp.arange(P2 * TB)
    s2 = _selection(P2 * TB, TB * P1, P1 * (r % TB) + 2 * (r // TB))        # (6*TB, TB*14)
    q = jnp.arange(LANES_P2)
    left = q < P2 * C2E
    w2i = jnp.where(left, q // C2E, (q - P2 * C2E) // C2E)
    ci = jnp.where(left, q % C2E, C2E + (q - P2 * C2E) % C2E)
    r2 = _selection(LANES_P2, LANES_C2, 2 * C2 * w2i + ci).T                # (384, 192)

    # per-eye fc weights, permuted from PyTorch (out, C*H*W) to h2-blocked (w2*16 + c) rows
    def fc_img(w):
        w4 = w.reshape(HID1, C2E, P2, P2)           # [o, c, h, w]
        w4 = jnp.transpose(w4, (2, 3, 1, 0))        # [h, w, c, o]
        return w4.reshape(P2, P2 * C2E, HID1)       # (6, 96, 256)

    w1t = params["fs_w1"].T                         # (521, 256)

    # All weight matrices / selectors in bf16 (halves DMA, native-bf16 MXU path);
    # 0/1 selectors and the banded-matrix structural zeros are exact in bf16.
    # Biases stay f32 (tiny, added to the f32 accumulators).
    return dict(
        m1=m1.astype(bf16), b1=b1,
        m2=m2.astype(bf16), b2=b2,
        s1=s1.astype(bf16), r1=r1.astype(bf16),
        s2=s2.astype(bf16), r2=r2.astype(bf16),
        wfcl=fc_img(pL["fc_w"]).astype(bf16), bfcl=pL["fc_b"][None, :],
        wfcr=fc_img(pR["fc_w"]).astype(bf16), bfcr=pR["fc_b"][None, :],
        wa=w1t[:N_X0].astype(bf16),
        wbl=w1t[N_X0:N_X0 + HID1].astype(bf16),
        wbr=w1t[N_X0 + HID1:].astype(bf16),
        bf1=params["fs_b1"][None, :],
        w2=params["fs_w2"].T.astype(bf16), bf2=params["fs_b2"][None, :],
        w3=params["fs_w3"].T.astype(bf16), bf3=params["fs_b3"][None, :],
    )


# ---------------------------------------------------------------------------
# Forward (thin JAX glue + single pallas_call with a batch-tile grid)
# ---------------------------------------------------------------------------
def _pack_images(x_left, x_right, tile_b):
    """NCHW (B,3,H,W) x2 -> (nt*(tile_b*H + IMG_PAD), W*6) bf16 slab, tiles contiguous."""
    B = x_left.shape[0]
    nt = B // tile_b
    x = jnp.concatenate([jnp.transpose(x_left, (0, 2, 3, 1)),
                         jnp.transpose(x_right, (0, 2, 3, 1))], axis=-1)    # (B,H,W,6)
    x = x.reshape(nt, tile_b * HEIGHT, WIDTH * C0)
    x = jnp.pad(x, ((0, 0), (0, IMG_PAD), (0, 0)))
    return x.reshape(nt * (tile_b * HEIGHT + IMG_PAD), WIDTH * C0).astype(jnp.bfloat16)


def _pack_x0(x0, tile_b, rt):
    B = x0.shape[0]
    nt = B // tile_b
    xp = x0.reshape(nt, tile_b, N_X0)
    xp = jnp.pad(xp, ((0, 0), (0, rt - tile_b), (0, 0)))
    return xp.reshape(nt * rt, N_X0).astype(jnp.bfloat16)


def _flops_per_tile(tb):
    n1 = tb * HEIGHT + 4
    n2 = tb * P1 + 2
    f = 2 * FIRST_KERNEL_SIZE * n1 * LANES_X * LANES_C1P             # conv1
    f += 2 * (tb * P1 + 4) * (tb * HEIGHT) * LANES_C1                # pool1 row select
    f += 2 * (tb * P1 + 4) * LANES_C1 * LANES_P1                     # pool1 lane select
    f += 2 * SECOND_KERNEL_SIZE * n2 * LANES_P1 * LANES_C2P          # conv2
    f += 2 * (P2 * tb) * (tb * P1) * LANES_C2                        # pool2 row select
    f += 2 * (P2 * tb) * LANES_C2 * LANES_P2                         # pool2 lane select
    f += 2 * 2 * P2 * tb * (P2 * C2E) * HID1                         # per-eye fc (both eyes)
    f += 2 * tb * (N_X0 + 2 * HID1) * HID1                           # final fc1
    f += 2 * tb * HID1 * HID2 + 2 * tb * HID2 * OUT                  # final fc2, fc3
    return f


def net_forward_pallas(x0, x_left, x_right, packed):
    B = x0.shape[0]
    # tile size is baked into the s1/s2 selectors -> derive it and check consistency.
    tile_b = packed["s2"].shape[0] // P2
    assert packed["s2"].shape == (P2 * tile_b, tile_b * P1), "packed selectors inconsistent"
    assert packed["s1"].shape == (tile_b * P1 + 4, tile_b * HEIGHT), "packed selectors inconsistent"
    assert B % tile_b == 0, (
        f"batch {B} must be a multiple of the packed batch tile {tile_b}; "
        "re-run prepare_params with a compatible batch_tile")
    nt = B // tile_b
    rt = _round_up(tile_b, ROW_TILE)
    img_rows = tile_b * HEIGHT + IMG_PAD

    ximg = _pack_images(x_left.astype(jnp.float32), x_right.astype(jnp.float32), tile_b)
    x0p = _pack_x0(x0.astype(jnp.float32), tile_b, rt)

    w_names = ["m1", "b1", "m2", "b2", "s1", "r1", "s2", "r2",
               "wfcl", "bfcl", "wfcr", "bfcr", "wa", "wbl", "wbr", "bf1",
               "w2", "bf2", "w3", "bf3"]
    w_args = [packed[k] for k in w_names]

    def const_spec(a):
        nd = a.ndim
        return pl.BlockSpec(tuple(a.shape), lambda i, _nd=nd: (0,) * _nd)

    in_specs = ([pl.BlockSpec((rt, N_X0), lambda i: (i, 0)),
                 pl.BlockSpec((img_rows, LANES_X), lambda i: (i, 0))]
                + [const_spec(a) for a in w_args])
    out_spec = pl.BlockSpec((rt, OUT), lambda i: (i, 0))

    const_bytes = sum(int(a.size) * a.dtype.itemsize for a in w_args)
    act_bytes = (int(x0p.size) * x0p.dtype.itemsize + int(ximg.size) * ximg.dtype.itemsize
                 + nt * rt * OUT * 4)
    cost = pl.CostEstimate(flops=int(nt * _flops_per_tile(tile_b)),
                           transcendentals=0,
                           bytes_accessed=int(const_bytes + act_bytes))

    kernel = functools.partial(_net_kernel, tile_b=tile_b, rt=rt)
    out = pl.pallas_call(
        kernel,
        out_shape=jax.ShapeDtypeStruct((nt * rt, OUT), jnp.float32),
        grid=(nt,),
        in_specs=in_specs,
        out_specs=out_spec,
        compiler_params=pltpu.CompilerParams(
            dimension_semantics=("parallel",),            # shard tiles across v7x's 2 TCs
            vmem_limit_bytes=32 * 1024 * 1024),           # explicit cap: safe on v5e/v6e/v7x
        cost_estimate=cost,
    )(x0p, ximg, *w_args)
    return out.reshape(nt, rt, OUT)[:, :tile_b].reshape(B, OUT)


# ---------------------------------------------------------------------------
# Parameters (PyTorch-shaped) and pure-JAX reference for validation
# ---------------------------------------------------------------------------
def _init_img_stack(key):
    k = jax.random.split(key, 6)
    return {
        "conv1_w": 0.05 * jax.random.normal(k[0], (C1E, C0E, FIRST_KERNEL_SIZE, FIRST_KERNEL_SIZE), jnp.float32),
        "conv1_b": 0.01 * jax.random.normal(k[1], (C1E,), jnp.float32),
        "conv2_w": 0.05 * jax.random.normal(k[2], (C2E, C1E, SECOND_KERNEL_SIZE, SECOND_KERNEL_SIZE), jnp.float32),
        "conv2_b": 0.01 * jax.random.normal(k[3], (C2E,), jnp.float32),
        "fc_w":    0.05 * jax.random.normal(k[4], (HID1, FC_IN_E), jnp.float32),   # PyTorch (out, in)
        "fc_b":    0.01 * jax.random.normal(k[5], (HID1,), jnp.float32),
    }


def init_params(key):
    k = jax.random.split(key, 8)
    return {
        "left": _init_img_stack(k[0]),
        "right": _init_img_stack(k[1]),
        "fs_w1": 0.05 * jax.random.normal(k[2], (HID1, N_X0 + 2 * HID1), jnp.float32),
        "fs_b1": 0.01 * jax.random.normal(k[3], (HID1,), jnp.float32),
        "fs_w2": 0.05 * jax.random.normal(k[4], (HID2, HID1), jnp.float32),
        "fs_b2": 0.01 * jax.random.normal(k[5], (HID2,), jnp.float32),
        "fs_w3": 0.05 * jax.random.normal(k[6], (OUT, HID2), jnp.float32),
        "fs_b3": 0.01 * jax.random.normal(k[7], (OUT,), jnp.float32),
    }


def net_forward_reference(x0, x_left, x_right, params):
    def conv_relu(x, w, b):
        cout, cin, kh_sz, kw_sz = w.shape
        bsz, h, wd, _ = x.shape
        oh, ow = h - kh_sz + 1, wd - kw_sz + 1
        cols = [x[:, i:i + oh, j:j + ow, :] for i in range(kh_sz) for j in range(kw_sz)]
        patches = jnp.concatenate(cols, axis=-1).reshape(bsz * oh * ow, kh_sz * kw_sz * cin)
        wcol = jnp.transpose(w, (2, 3, 1, 0)).reshape(kh_sz * kw_sz * cin, cout)
        y = patches @ wcol + b
        return jnp.maximum(y, 0.0).reshape(bsz, oh, ow, cout)

    def pool(x):
        bsz, h, wd, c = x.shape
        return x.reshape(bsz, h // 2, 2, wd // 2, 2, c).max(axis=(2, 4))

    def img_stack(x_nchw, p):
        x = jnp.transpose(x_nchw, (0, 2, 3, 1))
        x = pool(conv_relu(x, p["conv1_w"], p["conv1_b"]))
        x = pool(conv_relu(x, p["conv2_w"], p["conv2_b"]))
        flat = jnp.transpose(x, (0, 3, 1, 2)).reshape(x.shape[0], -1)   # NCHW flatten (PyTorch)
        return jnp.maximum(flat @ p["fc_w"].T + p["fc_b"], 0.0)

    fl = img_stack(x_left, params["left"])
    fr = img_stack(x_right, params["right"])
    h = jnp.concatenate([x0, fl, fr], axis=1)
    h = jnp.maximum(h @ params["fs_w1"].T + params["fs_b1"], 0.0)
    h = jnp.maximum(h @ params["fs_w2"].T + params["fs_b2"], 0.0)
    return h @ params["fs_w3"].T + params["fs_b3"]


if __name__ == "__main__":
    B = 2
    key = jax.random.PRNGKey(0)
    k0, k1, k2 = jax.random.split(key, 3)
    x0 = jax.random.normal(k0, (B, N_X0), jnp.float32)
    x_left = jax.random.normal(k1, (B, 3, HEIGHT, WIDTH), jnp.float32)   # NCHW like PyTorch
    x_right = jax.random.normal(k2, (B, 3, HEIGHT, WIDTH), jnp.float32)

    params = init_params(jax.random.PRNGKey(1))
    packed = prepare_params(params, batch_tile=B)   # one-time weight repacking (not in forward path)

    fwd = jax.jit(net_forward_pallas)
    out = jax.block_until_ready(fwd(x0, x_left, x_right, packed))

    ref = jax.block_until_ready(jax.jit(net_forward_reference)(x0, x_left, x_right, params))

    assert out.shape == (B, OUT), out.shape
    assert bool(jnp.all(jnp.isfinite(out)))
    max_err = float(jnp.max(jnp.abs(out - ref)))
    # bf16 weights/activations with f32 accumulation vs f32 reference.
    assert max_err < 2e-2, f"mismatch vs reference: max|diff|={max_err}"
    print("KERNEL_OK")
</pallas_src>

<mosaic_0001>
module attributes {stable_mosaic.version = 11 : i64} {
  func.func @_net_kernel(%arg0: i32, %arg1: memref<16x9xbf16, #tpu.memory_space<vmem>>, %arg2: memref<80x192xbf16, #tpu.memory_space<vmem>>, %arg3: memref<5x192x348xbf16, #tpu.memory_space<vmem>>, %arg4: memref<1x348xf32, #tpu.memory_space<vmem>>, %arg5: memref<3x168x416xbf16, #tpu.memory_space<vmem>>, %arg6: memref<1x416xf32, #tpu.memory_space<vmem>>, %arg7: memref<32x64xbf16, #tpu.memory_space<vmem>>, %arg8: memref<336x168xbf16, #tpu.memory_space<vmem>>, %arg9: memref<12x28xbf16, #tpu.memory_space<vmem>>, %arg10: memref<384x192xbf16, #tpu.memory_space<vmem>>, %arg11: memref<6x96x256xbf16, #tpu.memory_space<vmem>>, %arg12: memref<1x256xf32, #tpu.memory_space<vmem>>, %arg13: memref<6x96x256xbf16, #tpu.memory_space<vmem>>, %arg14: memref<1x256xf32, #tpu.memory_space<vmem>>, %arg15: memref<9x256xbf16, #tpu.memory_space<vmem>>, %arg16: memref<256x256xbf16, #tpu.memory_space<vmem>>, %arg17: memref<256x256xbf16, #tpu.memory_space<vmem>>, %arg18: memref<1x256xf32, #tpu.memory_space<vmem>>, %arg19: memref<256x32xbf16, #tpu.memory_space<vmem>>, %arg20: memref<1x32xf32, #tpu.memory_space<vmem>>, %arg21: memref<32x3xbf16, #tpu.memory_space<vmem>>, %arg22: memref<1x3xf32, #tpu.memory_space<vmem>>, %arg23: memref<16x3xf32, #tpu.memory_space<vmem>>) attributes {dimension_semantics = [#tpu.dimension_semantics<parallel>], iteration_bounds = array<i64: 1>, scalar_prefetch = 0 : i64, scratch_operands = 0 : i64, tpu.core_type = #tpu.core_type<tc>, window_params = [{transform_indices = @transform_0, window_bounds = array<i64: 16, 9>}, {transform_indices = @transform_1, window_bounds = array<i64: 80, 192>}, {pipeline_mode = #tpu.pipeline_mode<synchronous>, transform_indices = @transform_2, window_bounds = array<i64: 5, 192, 348>}, {pipeline_mode = #tpu.pipeline_mode<synchronous>, transform_indices = @transform_3, window_bounds = array<i64: 1, 348>}, {pipeline_mode = #tpu.pipeline_mode<synchronous>, transform_indices = @transform_4, window_bounds = array<i64: 3, 168, 416>}, {pipeline_mode = #tpu.pipeline_mode<synchronous>, transform_indices = @transform_5, window_bounds = array<i64: 1, 416>}, {pipeline_mode = #tpu.pipeline_mode<synchronous>, transform_indices = @transform_6, window_bounds = array<i64: 32, 64>}, {pipeline_mode = #tpu.pipeline_mode<synchronous>, transform_indices = @transform_7, window_bounds = array<i64: 336, 168>}, {pipeline_mode = #tpu.pipeline_mode<synchronous>, transform_indices = @transform_8, window_bounds = array<i64: 12, 28>}, {pipeline_mode = #tpu.pipeline_mode<synchronous>, transform_indices = @transform_9, window_bounds = array<i64: 384, 192>}, {pipeline_mode = #tpu.pipeline_mode<synchronous>, transform_indices = @transform_10, window_bounds = array<i64: 6, 96, 256>}, {pipeline_mode = #tpu.pipeline_mode<synchronous>, transform_indices = @transform_11, window_bounds = array<i64: 1, 256>}, {pipeline_mode = #tpu.pipeline_mode<synchronous>, transform_indices = @transform_12, window_bounds = array<i64: 6, 96, 256>}, {pipeline_mode = #tpu.pipeline_mode<synchronous>, transform_indices = @transform_13, window_bounds = array<i64: 1, 256>}, {pipeline_mode = #tpu.pipeline_mode<synchronous>, transform_indices = @transform_14, window_bounds = array<i64: 9, 256>}, {pipeline_mode = #tpu.pipeline_mode<synchronous>, transform_indices = @transform_15, window_bounds = array<i64: 256, 256>}, {pipeline_mode = #tpu.pipeline_mode<synchronous>, transform_indices = @transform_16, window_bounds = array<i64: 256, 256>}, {pipeline_mode = #tpu.pipeline_mode<synchronous>, transform_indices = @transform_17, window_bounds = array<i64: 1, 256>}, {pipeline_mode = #tpu.pipeline_mode<synchronous>, transform_indices = @transform_18, window_bounds = array<i64: 256, 32>}, {pipeline_mode = #tpu.pipeline_mode<synchronous>, transform_indices = @transform_19, window_bounds = array<i64: 1, 32>}, {pipeline_mode = #tpu.pipeline_mode<synchronous>, transform_indices = @transform_20, window_bounds = array<i64: 32, 3>}, {pipeline_mode = #tpu.pipeline_mode<synchronous>, transform_indices = @transform_21, window_bounds = array<i64: 1, 3>}, {transform_indices = @transform_22, window_bounds = array<i64: 16, 3>}]} {
    %c0 = arith.constant 0 : index
    %c0_0 = arith.constant 0 : index
    %0 = vector.load %arg2[%c0, %c0_0] : memref<80x192xbf16, #tpu.memory_space<vmem>>, vector<80x192xbf16>
    %1 = arith.extf %0 : vector<80x192xbf16> to vector<80x192xf32>
    %2 = vector.extract_strided_slice %1 {offsets = [0, 0], sizes = [68, 192], strides = [1, 1]} : vector<80x192xf32> to vector<68x192xf32>
    %3 = arith.truncf %2 : vector<68x192xf32> to vector<68x192xbf16>
    %c0_1 = arith.constant 0 : index
    %c0_2 = arith.constant 0 : index
    %c0_3 = arith.constant 0 : index
    %4 = vector.load %arg3[%c0_1, %c0_2, %c0_3] : memref<5x192x348xbf16, #tpu.memory_space<vmem>>, vector<1x192x348xbf16>
    %5 = vector.shape_cast %4 : vector<1x192x348xbf16> to vector<192x348xbf16>
    %cst = arith.constant dense<0.000000e+00> : vector<68x348xf32>
    %6 = tpu.matmul %3, %5, %cst {dimension_numbers = #tpu.dot_dimension_numbers<[1], [0], [0], [1], [0, 0, 1, 1], [], []>} : vector<68x192xbf16>, vector<192x348xbf16>, vector<68x348xf32> -> vector<68x348xf32>
    %7 = vector.extract_strided_slice %1 {offsets = [1, 0], sizes = [68, 192], strides = [1, 1]} : vector<80x192xf32> to vector<68x192xf32>
    %8 = arith.truncf %7 : vector<68x192xf32> to vector<68x192xbf16>
    %c1 = arith.constant 1 : index
    %c0_4 = arith.constant 0 : index
    %c0_5 = arith.constant 0 : index
    %9 = vector.load %arg3[%c1, %c0_4, %c0_5] : memref<5x192x348xbf16, #tpu.memory_space<vmem>>, vector<1x192x348xbf16>
    %10 = vector.shape_cast %9 : vector<1x192x348xbf16> to vector<192x348xbf16>
    %cst_6 = arith.constant dense<0.000000e+00> : vector<68x348xf32>
    %11 = tpu.matmul %8, %10, %cst_6 {dimension_numbers = #tpu.dot_dimension_numbers<[1], [0], [0], [1], [0, 0, 1, 1], [], []>} : vector<68x192xbf16>, vector<192x348xbf16>, vector<68x348xf32> -> vector<68x348xf32>
    %12 = arith.addf %6, %11 : vector<68x348xf32>
    %13 = vector.extract_strided_slice %1 {offsets = [2, 0], sizes = [68, 192], strides = [1, 1]} : vector<80x192xf32> to vector<68x192xf32>
    %14 = arith.truncf %13 : vector<68x192xf32> to vector<68x192xbf16>
    %c2 = arith.constant 2 : index
    %c0_7 = arith.constant 0 : index
    %c0_8 = arith.constant 0 : index
    %15 = vector.load %arg3[%c2, %c0_7, %c0_8] : memref<5x192x348xbf16, #tpu.memory_space<vmem>>, vector<1x192x348xbf16>
    %16 = vector.shape_cast %15 : vector<1x192x348xbf16> to vector<192x348xbf16>
    %cst_9 = arith.constant dense<0.000000e+00> : vector<68x348xf32>
    %17 = tpu.matmul %14, %16, %cst_9 {dimension_numbers = #tpu.dot_dimension_numbers<[1], [0], [0], [1], [0, 0, 1, 1], [], []>} : vector<68x192xbf16>, vector<192x348xbf16>, vector<68x348xf32> -> vector<68x348xf32>
    %18 = arith.addf %12, %17 : vector<68x348xf32>
    %19 = vector.extract_strided_slice %1 {offsets = [3, 0], sizes = [68, 192], strides = [1, 1]} : vector<80x192xf32> to vector<68x192xf32>
    %20 = arith.truncf %19 : vector<68x192xf32> to vector<68x192xbf16>
    %c3 = arith.constant 3 : index
    %c0_10 = arith.constant 0 : index
    %c0_11 = arith.constant 0 : index
    %21 = vector.load %arg3[%c3, %c0_10, %c0_11] : memref<5x192x348xbf16, #tpu.memory_space<vmem>>, vector<1x192x348xbf16>
    %22 = vector.shape_cast %21 : vector<1x192x348xbf16> to vector<192x348xbf16>
    %cst_12 = arith.constant dense<0.000000e+00> : vector<68x348xf32>
    %23 = tpu.matmul %20, %22, %cst_12 {dimension_numbers = #tpu.dot_dimension_numbers<[1], [0], [0], [1], [0, 0, 1, 1], [], []>} : vector<68x192xbf16>, vector<192x348xbf16>, vector<68x348xf32> -> vector<68x348xf32>
    %24 = arith.addf %18, %23 : vector<68x348xf32>
    %25 = vector.extract_strided_slice %1 {offsets = [4, 0], sizes = [68, 192], strides = [1, 1]} : vector<80x192xf32> to vector<68x192xf32>
    %26 = arith.truncf %25 : vector<68x192xf32> to vector<68x192xbf16>
    %c4 = arith.constant 4 : index
    %c0_13 = arith.constant 0 : index
    %c0_14 = arith.constant 0 : index
    %27 = vector.load %arg3[%c4, %c0_13, %c0_14] : memref<5x192x348xbf16, #tpu.memory_space<vmem>>, vector<1x192x348xbf16>
    %28 = vector.shape_cast %27 : vector<1x192x348xbf16> to vector<192x348xbf16>
    %cst_15 = arith.constant dense<0.000000e+00> : vector<68x348xf32>
    %29 = tpu.matmul %26, %28, %cst_15 {dimension_numbers = #tpu.dot_dimension_numbers<[1], [0], [0], [1], [0, 0, 1, 1], [], []>} : vector<68x192xbf16>, vector<192x348xbf16>, vector<68x348xf32> -> vector<68x348xf32>
    %30 = arith.addf %24, %29 : vector<68x348xf32>
    %c0_16 = arith.constant 0 : index
    %c0_17 = arith.constant 0 : index
    %31 = vector.load %arg4[%c0_16, %c0_17] : memref<1x348xf32, #tpu.memory_space<vmem>>, vector<1x348xf32>
    %32 = vector.broadcast %31 : vector<1x348xf32> to vector<68x348xf32>
    %33 = arith.addf %30, %32 : vector<68x348xf32>
    %cst_18 = arith.constant 0.000000e+00 : f32
    %34 = vector.broadcast %cst_18 : f32 to vector<68x348xf32>
    %35 = arith.maximumf %33, %34 : vector<68x348xf32>
    %36 = vector.extract_strided_slice %35 {offsets = [0, 0], sizes = [64, 348], strides = [1, 1]} : vector<68x348xf32> to vector<64x348xf32>
    %37 = vector.extract_strided_slice %35 {offsets = [1, 0], sizes = [64, 348], strides = [1, 1]} : vector<68x348xf32> to vector<64x348xf32>
    %38 = arith.maximumf %36, %37 : vector<64x348xf32>
    %39 = vector.extract_strided_slice %38 {offsets = [0, 0], sizes = [64, 336], strides = [1, 1]} : vector<64x348xf32> to vector<64x336xf32>
    %40 = vector.extract_strided_slice %38 {offsets = [0, 12], sizes = [64, 336], strides = [1, 1]} : vector<64x348xf32> to vector<64x336xf32>
    %41 = arith.maximumf %39, %40 : vector<64x336xf32>
    %42 = arith.truncf %41 : vector<64x336xf32> to vector<64x336xbf16>
    %c0_19 = arith.constant 0 : index
    %c0_20 = arith.constant 0 : index
    %43 = vector.load %arg7[%c0_19, %c0_20] : memref<32x64xbf16, #tpu.memory_space<vmem>>, vector<32x64xbf16>
    %cst_21 = arith.constant dense<0.000000e+00> : vector<32x336xf32>
    %44 = tpu.matmul %43, %42, %cst_21 {dimension_numbers = #tpu.dot_dimension_numbers<[1], [0], [0], [1], [0, 0, 1, 1], [], []>} : vector<32x64xbf16>, vector<64x336xbf16>, vector<32x336xf32> -> vector<32x336xf32>
    %45 = arith.truncf %44 : vector<32x336xf32> to vector<32x336xbf16>
    %c0_22 = arith.constant 0 : index
    %c0_23 = arith.constant 0 : index
    %46 = vector.load %arg8[%c0_22, %c0_23] : memref<336x168xbf16, #tpu.memory_space<vmem>>, vector<336x168xbf16>
    %cst_24 = arith.constant dense<0.000000e+00> : vector<32x168xf32>
    %47 = tpu.matmul %45, %46, %cst_24 {dimension_numbers = #tpu.dot_dimension_numbers<[1], [0], [0], [1], [0, 0, 1, 1], [], []>} : vector<32x336xbf16>, vector<336x168xbf16>, vector<32x168xf32> -> vector<32x168xf32>
    %48 = vector.extract_strided_slice %47 {offsets = [0, 0], sizes = [30, 168], strides = [1, 1]} : vector<32x168xf32> to vector<30x168xf32>
    %49 = arith.truncf %48 : vector<30x168xf32> to vector<30x168xbf16>
    %c0_25 = arith.constant 0 : index
    %c0_26 = arith.constant 0 : index
    %c0_27 = arith.constant 0 : index
    %50 = vector.load %arg5[%c0_25, %c0_26, %c0_27] : memref<3x168x416xbf16, #tpu.memory_space<vmem>>, vector<1x168x416xbf16>
    %51 = vector.shape_cast %50 : vector<1x168x416xbf16> to vector<168x416xbf16>
    %cst_28 = arith.constant dense<0.000000e+00> : vector<30x416xf32>
    %52 = tpu.matmul %49, %51, %cst_28 {dimension_numbers = #tpu.dot_dimension_numbers<[1], [0], [0], [1], [0, 0, 1, 1], [], []>} : vector<30x168xbf16>, vector<168x416xbf16>, vector<30x416xf32> -> vector<30x416xf32>
    %53 = vector.extract_strided_slice %47 {offsets = [1, 0], sizes = [30, 168], strides = [1, 1]} : vector<32x168xf32> to vector<30x168xf32>
    %54 = arith.truncf %53 : vector<30x168xf32> to vector<30x168xbf16>
    %c1_29 = arith.constant 1 : index
    %c0_30 = arith.constant 0 : index
    %c0_31 = arith.constant 0 : index
    %55 = vector.load %arg5[%c1_29, %c0_30, %c0_31] : memref<3x168x416xbf16, #tpu.memory_space<vmem>>, vector<1x168x416xbf16>
    %56 = vector.shape_cast %55 : vector<1x168x416xbf16> to vector<168x416xbf16>
    %cst_32 = arith.constant dense<0.000000e+00> : vector<30x416xf32>
    %57 = tpu.matmul %54, %56, %cst_32 {dimension_numbers = #tpu.dot_dimension_numbers<[1], [0], [0], [1], [0, 0, 1, 1], [], []>} : vector<30x168xbf16>, vector<168x416xbf16>, vector<30x416xf32> -> vector<30x416xf32>
    %58 = arith.addf %52, %57 : vector<30x416xf32>
    %59 = vector.extract_strided_slice %47 {offsets = [2, 0], sizes = [30, 168], strides = [1, 1]} : vector<32x168xf32> to vector<30x168xf32>
    %60 = arith.truncf %59 : vector<30x168xf32> to vector<30x168xbf16>
    %c2_33 = arith.constant 2 : index
    %c0_34 = arith.constant 0 : index
    %c0_35 = arith.constant 0 : index
    %61 = vector.load %arg5[%c2_33, %c0_34, %c0_35] : memref<3x168x416xbf16, #tpu.memory_space<vmem>>, vector<1x168x416xbf16>
    %62 = vector.shape_cast %61 : vector<1x168x416xbf16> to vector<168x416xbf16>
    %cst_36 = arith.constant dense<0.000000e+00> : vector<30x416xf32>
    %63 = tpu.matmul %60, %62, %cst_36 {dimension_numbers = #tpu.dot_dimension_numbers<[1], [0], [0], [1], [0, 0, 1, 1], [], []>} : vector<30x168xbf16>, vector<168x416xbf16>, vector<30x416xf32> -> vector<30x416xf32>
    %64 = arith.addf %58, %63 : vector<30x416xf32>
    %c0_37 = arith.constant 0 : index
    %c0_38 = arith.constant 0 : index
    %65 = vector.load %arg6[%c0_37, %c0_38] : memref<1x416xf32, #tpu.memory_space<vmem>>, vector<1x416xf32>
    %66 = vector.broadcast %65 : vector<1x416xf32> to vector<30x416xf32>
    %67 = arith.addf %64, %66 : vector<30x416xf32>
    %cst_39 = arith.constant 0.000000e+00 : f32
    %68 = vector.broadcast %cst_39 : f32 to vector<30x416xf32>
    %69 = arith.maximumf %67, %68 : vector<30x416xf32>
    %70 = vector.extract_strided_slice %69 {offsets = [0, 0], sizes = [28, 416], strides = [1, 1]} : vector<30x416xf32> to vector<28x416xf32>
    %71 = vector.extract_strided_slice %69 {offsets = [1, 0], sizes = [28, 416], strides = [1, 1]} : vector<30x416xf32> to vector<28x416xf32>
    %72 = arith.maximumf %70, %71 : vector<28x416xf32>
    %73 = vector.extract_strided_slice %72 {offsets = [0, 0], sizes = [28, 384], strides = [1, 1]} : vector<28x416xf32> to vector<28x384xf32>
    %74 = vector.extract_strided_slice %72 {offsets = [0, 32], sizes = [28, 384], strides = [1, 1]} : vector<28x416xf32> to vector<28x384xf32>
    %75 = arith.maximumf %73, %74 : vector<28x384xf32>
    %76 = arith.truncf %75 : vector<28x384xf32> to vector<28x384xbf16>
    %c0_40 = arith.constant 0 : index
    %c0_41 = arith.constant 0 : index
    %77 = vector.load %arg9[%c0_40, %c0_41] : memref<12x28xbf16, #tpu.memory_space<vmem>>, vector<12x28xbf16>
    %cst_42 = arith.constant dense<0.000000e+00> : vector<12x384xf32>
    %78 = tpu.matmul %77, %76, %cst_42 {dimension_numbers = #tpu.dot_dimension_numbers<[1], [0], [0], [1], [0, 0, 1, 1], [], []>} : vector<12x28xbf16>, vector<28x384xbf16>, vector<12x384xf32> -> vector<12x384xf32>
    %79 = arith.truncf %78 : vector<12x384xf32> to vector<12x384xbf16>
    %c0_43 = arith.constant 0 : index
    %c0_44 = arith.constant 0 : index
    %80 = vector.load %arg10[%c0_43, %c0_44] : memref<384x192xbf16, #tpu.memory_space<vmem>>, vector<384x192xbf16>
    %cst_45 = arith.constant dense<0.000000e+00> : vector<12x192xf32>
    %81 = tpu.matmul %79, %80, %cst_45 {dimension_numbers = #tpu.dot_dimension_numbers<[1], [0], [0], [1], [0, 0, 1, 1], [], []>} : vector<12x384xbf16>, vector<384x192xbf16>, vector<12x192xf32> -> vector<12x192xf32>
    %82 = vector.extract_strided_slice %81 {offsets = [0, 0], sizes = [2, 192], strides = [1, 1]} : vector<12x192xf32> to vector<2x192xf32>
    %83 = vector.extract_strided_slice %82 {offsets = [0, 0], sizes = [2, 96], strides = [1, 1]} : vector<2x192xf32> to vector<2x96xf32>
    %84 = arith.truncf %83 : vector<2x96xf32> to vector<2x96xbf16>
    %c0_46 = arith.constant 0 : index
    %c0_47 = arith.constant 0 : index
    %c0_48 = arith.constant 0 : index
    %85 = vector.load %arg11[%c0_46, %c0_47, %c0_48] : memref<6x96x256xbf16, #tpu.memory_space<vmem>>, vector<1x96x256xbf16>
    %86 = vector.shape_cast %85 : vector<1x96x256xbf16> to vector<96x256xbf16>
    %cst_49 = arith.constant dense<0.000000e+00> : vector<2x256xf32>
    %87 = tpu.matmul %84, %86, %cst_49 {dimension_numbers = #tpu.dot_dimension_numbers<[1], [0], [0], [1], [0, 0, 1, 1], [], []>} : vector<2x96xbf16>, vector<96x256xbf16>, vector<2x256xf32> -> vector<2x256xf32>
    %88 = vector.extract_strided_slice %82 {offsets = [0, 96], sizes = [2, 96], strides = [1, 1]} : vector<2x192xf32> to vector<2x96xf32>
    %89 = arith.truncf %88 : vector<2x96xf32> to vector<2x96xbf16>
    %c0_50 = arith.constant 0 : index
    %c0_51 = arith.constant 0 : index
    %c0_52 = arith.constant 0 : index
    %90 = vector.load %arg13[%c0_50, %c0_51, %c0_52] : memref<6x96x256xbf16, #tpu.memory_space<vmem>>, vector<1x96x256xbf16>
    %91 = vector.shape_cast %90 : vector<1x96x256xbf16> to vector<96x256xbf16>
    %cst_53 = arith.constant dense<0.000000e+00> : vector<2x256xf32>
    %92 = tpu.matmul %89, %91, %cst_53 {dimension_numbers = #tpu.dot_dimension_numbers<[1], [0], [0], [1], [0, 0, 1, 1], [], []>} : vector<2x96xbf16>, vector<96x256xbf16>, vector<2x256xf32> -> vector<2x256xf32>
    %93 = vector.extract_strided_slice %81 {offsets = [2, 0], sizes = [2, 192], strides = [1, 1]} : vector<12x192xf32> to vector<2x192xf32>
    %94 = vector.extract_strided_slice %93 {offsets = [0, 0], sizes = [2, 96], strides = [1, 1]} : vector<2x192xf32> to vector<2x96xf32>
    %95 = arith.truncf %94 : vector<2x96xf32> to vector<2x96xbf16>
    %c1_54 = arith.constant 1 : index
    %c0_55 = arith.constant 0 : index
    %c0_56 = arith.constant 0 : index
    %96 = vector.load %arg11[%c1_54, %c0_55, %c0_56] : memref<6x96x256xbf16, #tpu.memory_space<vmem>>, vector<1x96x256xbf16>
    %97 = vector.shape_cast %96 : vector<1x96x256xbf16> to vector<96x256xbf16>
    %cst_57 = arith.constant dense<0.000000e+00> : vector<2x256xf32>
    %98 = tpu.matmul %95, %97, %cst_57 {dimension_numbers = #tpu.dot_dimension_numbers<[1], [0], [0], [1], [0, 0, 1, 1], [], []>} : vector<2x96xbf16>, vector<96x256xbf16>, vector<2x256xf32> -> vector<2x256xf32>
    %99 = arith.addf %87, %98 : vector<2x256xf32>
    %100 = vector.extract_strided_slice %93 {offsets = [0, 96], sizes = [2, 96], strides = [1, 1]} : vector<2x192xf32> to vector<2x96xf32>
    %101 = arith.truncf %100 : vector<2x96xf32> to vector<2x96xbf16>
    %c1_58 = arith.constant 1 : index
    %c0_59 = arith.constant 0 : index
    %c0_60 = arith.constant 0 : index
    %102 = vector.load %arg13[%c1_58, %c0_59, %c0_60] : memref<6x96x256xbf16, #tpu.memory_space<vmem>>, vector<1x96x256xbf16>
    %103 = vector.shape_cast %102 : vector<1x96x256xbf16> to vector<96x256xbf16>
    %cst_61 = arith.constant dense<0.000000e+00> : vector<2x256xf32>
    %104 = tpu.matmul %101, %103, %cst_61 {dimension_numbers = #tpu.dot_dimension_numbers<[1], [0], [0], [1], [0, 0, 1, 1], [], []>} : vector<2x96xbf16>, vector<96x256xbf16>, vector<2x256xf32> -> vector<2x256xf32>
    %105 = arith.addf %92, %104 : vector<2x256xf32>
    %106 = vector.extract_strided_slice %81 {offsets = [4, 0], sizes = [2, 192], strides = [1, 1]} : vector<12x192xf32> to vector<2x192xf32>
    %107 = vector.extract_strided_slice %106 {offsets = [0, 0], sizes = [2, 96], strides = [1, 1]} : vector<2x192xf32> to vector<2x96xf32>
    %108 = arith.truncf %107 : vector<2x96xf32> to vector<2x96xbf16>
    %c2_62 = arith.constant 2 : index
    %c0_63 = arith.constant 0 : index
    %c0_64 = arith.constant 0 : index
    %109 = vector.load %arg11[%c2_62, %c0_63, %c0_64] : memref<6x96x256xbf16, #tpu.memory_space<vmem>>, vector<1x96x256xbf16>
    %110 = vector.shape_cast %109 : vector<1x96x256xbf16> to vector<96x256xbf16>
    %cst_65 = arith.constant dense<0.000000e+00> : vector<2x256xf32>
    %111 = tpu.matmul %108, %110, %cst_65 {dimension_numbers = #tpu.dot_dimension_numbers<[1], [0], [0], [1], [0, 0, 1, 1], [], []>} : vector<2x96xbf16>, vector<96x256xbf16>, vector<2x256xf32> -> vector<2x256xf32>
    %112 = arith.addf %99, %111 : vector<2x256xf32>
    %113 = vector.extract_strided_slice %106 {offsets = [0, 96], sizes = [2, 96], strides = [1, 1]} : vector<2x192xf32> to vector<2x96xf32>
    %114 = arith.truncf %113 : vector<2x96xf32> to vector<2x96xbf16>
    %c2_66 = arith.constant 2 : index
    %c0_67 = arith.constant 0 : index
    %c0_68 = arith.constant 0 : index
    %115 = vector.load %arg13[%c2_66, %c0_67, %c0_68] : memref<6x96x256xbf16, #tpu.memory_space<vmem>>, vector<1x96x256xbf16>
    %116 = vector.shape_cast %115 : vector<1x96x256xbf16> to vector<96x256xbf16>
    %cst_69 = arith.constant dense<0.000000e+00> : vector<2x256xf32>
    %117 = tpu.matmul %114, %116, %cst_69 {dimension_numbers = #tpu.dot_dimension_numbers<[1], [0], [0], [1], [0, 0, 1, 1], [], []>} : vector<2x96xbf16>, vector<96x256xbf16>, vector<2x256xf32> -> vector<2x256xf32>
    %118 = arith.addf %105, %117 : vector<2x256xf32>
    %119 = vector.extract_strided_slice %81 {offsets = [6, 0], sizes = [2, 192], strides = [1, 1]} : vector<12x192xf32> to vector<2x192xf32>
    %120 = vector.extract_strided_slice %119 {offsets = [0, 0], sizes = [2, 96], strides = [1, 1]} : vector<2x192xf32> to vector<2x96xf32>
    %121 = arith.truncf %120 : vector<2x96xf32> to vector<2x96xbf16>
    %c3_70 = arith.constant 3 : index
    %c0_71 = arith.constant 0 : index
    %c0_72 = arith.constant 0 : index
    %122 = vector.load %arg11[%c3_70, %c0_71, %c0_72] : memref<6x96x256xbf16, #tpu.memory_space<vmem>>, vector<1x96x256xbf16>
    %123 = vector.shape_cast %122 : vector<1x96x256xbf16> to vector<96x256xbf16>
    %cst_73 = arith.constant dense<0.000000e+00> : vector<2x256xf32>
    %124 = tpu.matmul %121, %123, %cst_73 {dimension_numbers = #tpu.dot_dimension_numbers<[1], [0], [0], [1], [0, 0, 1, 1], [], []>} : vector<2x96xbf16>, vector<96x256xbf16>, vector<2x256xf32> -> vector<2x256xf32>
    %125 = arith.addf %112, %124 : vector<2x256xf32>
    %126 = vector.extract_strided_slice %119 {offsets = [0, 96], sizes = [2, 96], strides = [1, 1]} : vector<2x192xf32> to vector<2x96xf32>
    %127 = arith.truncf %126 : vector<2x96xf32> to vector<2x96xbf16>
    %c3_74 = arith.constant 3 : index
    %c0_75 = arith.constant 0 : index
    %c0_76 = arith.constant 0 : index
    %128 = vector.load %arg13[%c3_74, %c0_75, %c0_76] : memref<6x96x256xbf16, #tpu.memory_space<vmem>>, vector<1x96x256xbf16>
    %129 = vector.shape_cast %128 : vector<1x96x256xbf16> to vector<96x256xbf16>
    %cst_77 = arith.constant dense<0.000000e+00> : vector<2x256xf32>
    %130 = tpu.matmul %127, %129, %cst_77 {dimension_numbers = #tpu.dot_dimension_numbers<[1], [0], [0], [1], [0, 0, 1, 1], [], []>} : vector<2x96xbf16>, vector<96x256xbf16>, vector<2x256xf32> -> vector<2x256xf32>
    %131 = arith.addf %118, %130 : vector<2x256xf32>
    %132 = vector.extract_strided_slice %81 {offsets = [8, 0], sizes = [2, 192], strides = [1, 1]} : vector<12x192xf32> to vector<2x192xf32>
    %133 = vector.extract_strided_slice %132 {offsets = [0, 0], sizes = [2, 96], strides = [1, 1]} : vector<2x192xf32> to vector<2x96xf32>
    %134 = arith.truncf %133 : vector<2x96xf32> to vector<2x96xbf16>
    %c4_78 = arith.constant 4 : index
    %c0_79 = arith.constant 0 : index
    %c0_80 = arith.constant 0 : index
    %135 = vector.load %arg11[%c4_78, %c0_79, %c0_80] : memref<6x96x256xbf16, #tpu.memory_space<vmem>>, vector<1x96x256xbf16>
    %136 = vector.shape_cast %135 : vector<1x96x256xbf16> to vector<96x256xbf16>
    %cst_81 = arith.constant dense<0.000000e+00> : vector<2x256xf32>
    %137 = tpu.matmul %134, %136, %cst_81 {dimension_numbers = #tpu.dot_dimension_numbers<[1], [0], [0], [1], [0, 0, 1, 1], [], []>} : vector<2x96xbf16>, vector<96x256xbf16>, vector<2x256xf32> -> vector<2x256xf32>
    %138 = arith.addf %125, %137 : vector<2x256xf32>
    %139 = vector.extract_strided_slice %132 {offsets = [0, 96], sizes = [2, 96], strides = [1, 1]} : vector<2x192xf32> to vector<2x96xf32>
    %140 = arith.truncf %139 : vector<2x96xf32> to vector<2x96xbf16>
    %c4_82 = arith.constant 4 : index
    %c0_83 = arith.constant 0 : index
    %c0_84 = arith.constant 0 : index
    %141 = vector.load %arg13[%c4_82, %c0_83, %c0_84] : memref<6x96x256xbf16, #tpu.memory_space<vmem>>, vector<1x96x256xbf16>
    %142 = vector.shape_cast %141 : vector<1x96x256xbf16> to vector<96x256xbf16>
    %cst_85 = arith.constant dense<0.000000e+00> : vector<2x256xf32>
    %143 = tpu.matmul %140, %142, %cst_85 {dimension_numbers = #tpu.dot_dimension_numbers<[1], [0], [0], [1], [0, 0, 1, 1], [], []>} : vector<2x96xbf16>, vector<96x256xbf16>, vector<2x256xf32> -> vector<2x256xf32>
    %144 = arith.addf %131, %143 : vector<2x256xf32>
    %145 = vector.extract_strided_slice %81 {offsets = [10, 0], sizes = [2, 192], strides = [1, 1]} : vector<12x192xf32> to vector<2x192xf32>
    %146 = vector.extract_strided_slice %145 {offsets = [0, 0], sizes = [2, 96], strides = [1, 1]} : vector<2x192xf32> to vector<2x96xf32>
    %147 = arith.truncf %146 : vector<2x96xf32> to vector<2x96xbf16>
    %c5 = arith.constant 5 : index
    %c0_86 = arith.constant 0 : index
    %c0_87 = arith.constant 0 : index
    %148 = vector.load %arg11[%c5, %c0_86, %c0_87] : memref<6x96x256xbf16, #tpu.memory_space<vmem>>, vector<1x96x256xbf16>
    %149 = vector.shape_cast %148 : vector<1x96x256xbf16> to vector<96x256xbf16>
    %cst_88 = arith.constant dense<0.000000e+00> : vector<2x256xf32>
    %150 = tpu.matmul %147, %149, %cst_88 {dimension_numbers = #tpu.dot_dimension_numbers<[1], [0], [0], [1], [0, 0, 1, 1], [], []>} : vector<2x96xbf16>, vector<96x256xbf16>, vector<2x256xf32> -> vector<2x256xf32>
    %151 = arith.addf %138, %150 : vector<2x256xf32>
    %152 = vector.extract_strided_slice %145 {offsets = [0, 96], sizes = [2, 96], strides = [1, 1]} : vector<2x192xf32> to vector<2x96xf32>
    %153 = arith.truncf %152 : vector<2x96xf32> to vector<2x96xbf16>
    %c5_89 = arith.constant 5 : index
    %c0_90 = arith.constant 0 : index
    %c0_91 = arith.constant 0 : index
    %154 = vector.load %arg13[%c5_89, %c0_90, %c0_91] : memref<6x96x256xbf16, #tpu.memory_space<vmem>>, vector<1x96x256xbf16>
    %155 = vector.shape_cast %154 : vector<1x96x256xbf16> to vector<96x256xbf16>
    %cst_92 = arith.constant dense<0.000000e+00> : vector<2x256xf32>
    %156 = tpu.matmul %153, %155, %cst_92 {dimension_numbers = #tpu.dot_dimension_numbers<[1], [0], [0], [1], [0, 0, 1, 1], [], []>} : vector<2x96xbf16>, vector<96x256xbf16>, vector<2x256xf32> -> vector<2x256xf32>
    %157 = arith.addf %144, %156 : vector<2x256xf32>
    %c0_93 = arith.constant 0 : index
    %c0_94 = arith.constant 0 : index
    %158 = vector.load %arg12[%c0_93, %c0_94] : memref<1x256xf32, #tpu.memory_space<vmem>>, vector<1x256xf32>
    %159 = vector.broadcast %158 : vector<1x256xf32> to vector<2x256xf32>
    %160 = arith.addf %151, %159 : vector<2x256xf32>
    %cst_95 = arith.constant 0.000000e+00 : f32
    %161 = vector.broadcast %cst_95 : f32 to vector<2x256xf32>
    %162 = arith.maximumf %160, %161 : vector<2x256xf32>
    %c0_96 = arith.constant 0 : index
    %c0_97 = arith.constant 0 : index
    %163 = vector.load %arg14[%c0_96, %c0_97] : memref<1x256xf32, #tpu.memory_space<vmem>>, vector<1x256xf32>
    %164 = vector.broadcast %163 : vector<1x256xf32> to vector<2x256xf32>
    %165 = arith.addf %157, %164 : vector<2x256xf32>
    %cst_98 = arith.constant 0.000000e+00 : f32
    %166 = vector.broadcast %cst_98 : f32 to vector<2x256xf32>
    %167 = arith.maximumf %165, %166 : vector<2x256xf32>
    %c0_99 = arith.constant 0 : index
    %c0_100 = arith.constant 0 : index
    %168 = vector.load %arg1[%c0_99, %c0_100] : memref<16x9xbf16, #tpu.memory_space<vmem>>, vector<2x9xbf16>
    %c0_101 = arith.constant 0 : index
    %c0_102 = arith.constant 0 : index
    %169 = vector.load %arg15[%c0_101, %c0_102] : memref<9x256xbf16, #tpu.memory_space<vmem>>, vector<9x256xbf16>
    %cst_103 = arith.constant dense<0.000000e+00> : vector<2x256xf32>
    %170 = tpu.matmul %168, %169, %cst_103 {dimension_numbers = #tpu.dot_dimension_numbers<[1], [0], [0], [1], [0, 0, 1, 1], [], []>} : vector<2x9xbf16>, vector<9x256xbf16>, vector<2x256xf32> -> vector<2x256xf32>
    %171 = arith.truncf %162 : vector<2x256xf32> to vector<2x256xbf16>
    %c0_104 = arith.constant 0 : index
    %c0_105 = arith.constant 0 : index
    %172 = vector.load %arg16[%c0_104, %c0_105] : memref<256x256xbf16, #tpu.memory_space<vmem>>, vector<256x256xbf16>
    %cst_106 = arith.constant dense<0.000000e+00> : vector<2x256xf32>
    %173 = tpu.matmul %171, %172, %cst_106 {dimension_numbers = #tpu.dot_dimension_numbers<[1], [0], [0], [1], [0, 0, 1, 1], [], []>} : vector<2x256xbf16>, vector<256x256xbf16>, vector<2x256xf32> -> vector<2x256xf32>
    %174 = arith.addf %170, %173 : vector<2x256xf32>
    %175 = arith.truncf %167 : vector<2x256xf32> to vector<2x256xbf16>
    %c0_107 = arith.constant 0 : index
    %c0_108 = arith.constant 0 : index
    %176 = vector.load %arg17[%c0_107, %c0_108] : memref<256x256xbf16, #tpu.memory_space<vmem>>, vector<256x256xbf16>
    %cst_109 = arith.constant dense<0.000000e+00> : vector<2x256xf32>
    %177 = tpu.matmul %175, %176, %cst_109 {dimension_numbers = #tpu.dot_dimension_numbers<[1], [0], [0], [1], [0, 0, 1, 1], [], []>} : vector<2x256xbf16>, vector<256x256xbf16>, vector<2x256xf32> -> vector<2x256xf32>
    %178 = arith.addf %174, %177 : vector<2x256xf32>
    %c0_110 = arith.constant 0 : index
    %c0_111 = arith.constant 0 : index
    %179 = vector.load %arg18[%c0_110, %c0_111] : memref<1x256xf32, #tpu.memory_space<vmem>>, vector<1x256xf32>
    %180 = vector.broadcast %179 : vector<1x256xf32> to vector<2x256xf32>
    %181 = arith.addf %178, %180 : vector<2x256xf32>
    %cst_112 = arith.constant 0.000000e+00 : f32
    %182 = vector.broadcast %cst_112 : f32 to vector<2x256xf32>
    %183 = arith.maximumf %181, %182 : vector<2x256xf32>
    %184 = arith.truncf %183 : vector<2x256xf32> to vector<2x256xbf16>
    %c0_113 = arith.constant 0 : index
    %c0_114 = arith.constant 0 : index
    %185 = vector.load %arg19[%c0_113, %c0_114] : memref<256x32xbf16, #tpu.memory_space<vmem>>, vector<256x32xbf16>
    %cst_115 = arith.constant dense<0.000000e+00> : vector<2x32xf32>
    %186 = tpu.matmul %184, %185, %cst_115 {dimension_numbers = #tpu.dot_dimension_numbers<[1], [0], [0], [1], [0, 0, 1, 1], [], []>} : vector<2x256xbf16>, vector<256x32xbf16>, vector<2x32xf32> -> vector<2x32xf32>
    %c0_116 = arith.constant 0 : index
    %c0_117 = arith.constant 0 : index
    %187 = vector.load %arg20[%c0_116, %c0_117] : memref<1x32xf32, #tpu.memory_space<vmem>>, vector<1x32xf32>
    %188 = vector.broadcast %187 : vector<1x32xf32> to vector<2x32xf32>
    %189 = arith.addf %186, %188 : vector<2x32xf32>
    %cst_118 = arith.constant 0.000000e+00 : f32
    %190 = vector.broadcast %cst_118 : f32 to vector<2x32xf32>
    %191 = arith.maximumf %189, %190 : vector<2x32xf32>
    %192 = arith.truncf %191 : vector<2x32xf32> to vector<2x32xbf16>
    %c0_119 = arith.constant 0 : index
    %c0_120 = arith.constant 0 : index
    %193 = vector.load %arg21[%c0_119, %c0_120] : memref<32x3xbf16, #tpu.memory_space<vmem>>, vector<32x3xbf16>
    %cst_121 = arith.constant dense<0.000000e+00> : vector<2x3xf32>
    %194 = tpu.matmul %192, %193, %cst_121 {dimension_numbers = #tpu.dot_dimension_numbers<[1], [0], [0], [1], [0, 0, 1, 1], [], []>} : vector<2x32xbf16>, vector<32x3xbf16>, vector<2x3xf32> -> vector<2x3xf32>
    %c0_122 = arith.constant 0 : index
    %c0_123 = arith.constant 0 : index
    %195 = vector.load %arg22[%c0_122, %c0_123] : memref<1x3xf32, #tpu.memory_space<vmem>>, vector<1x3xf32>
    %196 = vector.broadcast %195 : vector<1x3xf32> to vector<2x3xf32>
    %197 = arith.addf %194, %196 : vector<2x3xf32>
    %c0_124 = arith.constant 0 : index
    %c0_125 = arith.constant 0 : index
    %198 = vector.load %arg23[%c0_124, %c0_125] : memref<16x3xf32, #tpu.memory_space<vmem>>, vector<2x3xf32>
    tpu.vector_store %arg23[%c0_124, %c0_125], %197 {strides = array<i32>} : memref<16x3xf32, #tpu.memory_space<vmem>>, vector<2x3xf32>,
    %cst_126 = arith.constant 0.000000e+00 : f32
    %199 = vector.broadcast %cst_126 : f32 to vector<14x3xf32>
    %c2_127 = arith.constant 2 : index
    %c0_128 = arith.constant 0 : index
    %200 = vector.load %arg23[%c2_127, %c0_128] : memref<16x3xf32, #tpu.memory_space<vmem>>, vector<14x3xf32>
    tpu.vector_store %arg23[%c2_127, %c0_128], %199 {strides = array<i32>} : memref<16x3xf32, #tpu.memory_space<vmem>>, vector<14x3xf32>,
    return
  }
  func.func @transform_0(%arg0: i32) -> (i32, i32) {
    %c0_i32 = arith.constant 0 : i32
    %c0_i32_0 = arith.constant 0 : i32
    return %arg0, %c0_i32 : i32, i32
  }
  func.func @transform_1(%arg0: i32) -> (i32, i32) {
    %c0_i32 = arith.constant 0 : i32
    %c0_i32_0 = arith.constant 0 : i32
    return %arg0, %c0_i32 : i32, i32
  }
  func.func @transform_2(%arg0: i32) -> (i32, i32, i32) {
    %c0_i32 = arith.constant 0 : i32
    %c0_i32_0 = arith.constant 0 : i32
    %c0_i32_1 = arith.constant 0 : i32
    %c0_i32_2 = arith.constant 0 : i32
    return %c0_i32, %c0_i32_0, %c0_i32_1 : i32, i32, i32
  }
  func.func @transform_3(%arg0: i32) -> (i32, i32) {
    %c0_i32 = arith.constant 0 : i32
    %c0_i32_0 = arith.constant 0 : i32
    %c0_i32_1 = arith.constant 0 : i32
    return %c0_i32, %c0_i32_0 : i32, i32
  }
  func.func @transform_4(%arg0: i32) -> (i32, i32, i32) {
    %c0_i32 = arith.constant 0 : i32
    %c0_i32_0 = arith.constant 0 : i32
    %c0_i32_1 = arith.constant 0 : i32
    %c0_i32_2 = arith.constant 0 : i32
    return %c0_i32, %c0_i32_0, %c0_i32_1 : i32, i32, i32
  }
  func.func @transform_5(%arg0: i32) -> (i32, i32) {
    %c0_i32 = arith.constant 0 : i32
    %c0_i32_0 = arith.constant 0 : i32
    %c0_i32_1 = arith.constant 0 : i32
    return %c0_i32, %c0_i32_0 : i32, i32
  }
  func.func @transform_6(%arg0: i32) -> (i32, i32) {
    %c0_i32 = arith.constant 0 : i32
    %c0_i32_0 = arith.constant 0 : i32
    %c0_i32_1 = arith.constant 0 : i32
    return %c0_i32, %c0_i32_0 : i32, i32
  }
  func.func @transform_7(%arg0: i32) -> (i32, i32) {
    %c0_i32 = arith.constant 0 : i32
    %c0_i32_0 = arith.constant 0 : i32
    %c0_i32_1 = arith.constant 0 : i32
    return %c0_i32, %c0_i32_0 : i32, i32
  }
  func.func @transform_8(%arg0: i32) -> (i32, i32) {
    %c0_i32 = arith.constant 0 : i32
    %c0_i32_0 = arith.constant 0 : i32
    %c0_i32_1 = arith.constant 0 : i32
    return %c0_i32, %c0_i32_0 : i32, i32
  }
  func.func @transform_9(%arg0: i32) -> (i32, i32) {
    %c0_i32 = arith.constant 0 : i32
    %c0_i32_0 = arith.constant 0 : i32
    %c0_i32_1 = arith.constant 0 : i32
    return %c0_i32, %c0_i32_0 : i32, i32
  }
  func.func @transform_10(%arg0: i32) -> (i32, i32, i32) {
    %c0_i32 = arith.constant 0 : i32
    %c0_i32_0 = arith.constant 0 : i32
    %c0_i32_1 = arith.constant 0 : i32
    %c0_i32_2 = arith.constant 0 : i32
    return %c0_i32, %c0_i32_0, %c0_i32_1 : i32, i32, i32
  }
  func.func @transform_11(%arg0: i32) -> (i32, i32) {
    %c0_i32 = arith.constant 0 : i32
    %c0_i32_0 = arith.constant 0 : i32
    %c0_i32_1 = arith.constant 0 : i32
    return %c0_i32, %c0_i32_0 : i32, i32
  }
  func.func @transform_12(%arg0: i32) -> (i32, i32, i32) {
    %c0_i32 = arith.constant 0 : i32
    %c0_i32_0 = arith.constant 0 : i32
    %c0_i32_1 = arith.constant 0 : i32
    %c0_i32_2 = arith.constant 0 : i32
    return %c0_i32, %c0_i32_0, %c0_i32_1 : i32, i32, i32
  }
  func.func @transform_13(%arg0: i32) -> (i32, i32) {
    %c0_i32 = arith.constant 0 : i32
    %c0_i32_0 = arith.constant 0 : i32
    %c0_i32_1 = arith.constant 0 : i32
    return %c0_i32, %c0_i32_0 : i32, i32
  }
  func.func @transform_14(%arg0: i32) -> (i32, i32) {
    %c0_i32 = arith.constant 0 : i32
    %c0_i32_0 = arith.constant 0 : i32
    %c0_i32_1 = arith.constant 0 : i32
    return %c0_i32, %c0_i32_0 : i32, i32
  }
  func.func @transform_15(%arg0: i32) -> (i32, i32) {
    %c0_i32 = arith.constant 0 : i32
    %c0_i32_0 = arith.constant 0 : i32
    %c0_i32_1 = arith.constant 0 : i32
    return %c0_i32, %c0_i32_0 : i32, i32
  }
  func.func @transform_16(%arg0: i32) -> (i32, i32) {
    %c0_i32 = arith.constant 0 : i32
    %c0_i32_0 = arith.constant 0 : i32
    %c0_i32_1 = arith.constant 0 : i32
    return %c0_i32, %c0_i32_0 : i32, i32
  }
  func.func @transform_17(%arg0: i32) -> (i32, i32) {
    %c0_i32 = arith.constant 0 : i32
    %c0_i32_0 = arith.constant 0 : i32
    %c0_i32_1 = arith.constant 0 : i32
    return %c0_i32, %c0_i32_0 : i32, i32
  }
  func.func @transform_18(%arg0: i32) -> (i32, i32) {
    %c0_i32 = arith.constant 0 : i32
    %c0_i32_0 = arith.constant 0 : i32
    %c0_i32_1 = arith.constant 0 : i32
    return %c0_i32, %c0_i32_0 : i32, i32
  }
  func.func @transform_19(%arg0: i32) -> (i32, i32) {
    %c0_i32 = arith.constant 0 : i32
    %c0_i32_0 = arith.constant 0 : i32
    %c0_i32_1 = arith.constant 0 : i32
    return %c0_i32, %c0_i32_0 : i32, i32
  }
  func.func @transform_20(%arg0: i32) -> (i32, i32) {
    %c0_i32 = arith.constant 0 : i32
    %c0_i32_0 = arith.constant 0 : i32
    %c0_i32_1 = arith.constant 0 : i32
    return %c0_i32, %c0_i32_0 : i32, i32
  }
  func.func @transform_21(%arg0: i32) -> (i32, i32) {
    %c0_i32 = arith.constant 0 : i32
    %c0_i32_0 = arith.constant 0 : i32
    %c0_i32_1 = arith.constant 0 : i32
    return %c0_i32, %c0_i32_0 : i32, i32
  }
  func.func @transform_22(%arg0: i32) -> (i32, i32) {
    %c0_i32 = arith.constant 0 : i32
    %c0_i32_0 = arith.constant 0 : i32
    return %arg0, %c0_i32 : i32, i32
  }
}

</mosaic_0001>

<llo_original>
// kernel: net_forward_pallas.1
$region0: #{net_forward_pallas.1}
  #allocation0 [shape = 'u32[]', space=smem, size = 0x4, offset = 0x4, fixed_abs, tag = 'smem constant byte address 0x4 - core index']
  #allocation1 [shape = 'u32[144,128]{1,0:T(1,128)}', space=vmem, size = 0x12000, scoped, tag = 'internal scratch']
  %s0 = inlined_call_operand.vmem [shape: bf16[16,9], index: 0, kind: input, shape index: {}]
  %s1 = inlined_call_operand.vmem [shape: bf16[80,192], index: 1, kind: input, shape index: {}]
  %s2 = inlined_call_operand.vmem [shape: bf16[5,192,348], index: 2, kind: input, shape index: {}]
  %s3 = inlined_call_operand.vmem [shape: f32[1,348], index: 3, kind: input, shape index: {}]
  %s4 = inlined_call_operand.vmem [shape: bf16[3,168,416], index: 4, kind: input, shape index: {}]
  %s5 = inlined_call_operand.vmem [shape: f32[1,416], index: 5, kind: input, shape index: {}]
  %s6 = inlined_call_operand.vmem [shape: bf16[32,64], index: 6, kind: input, shape index: {}]
  %s7 = inlined_call_operand.vmem [shape: bf16[336,168], index: 7, kind: input, shape index: {}]
  %s8 = inlined_call_operand.vmem [shape: bf16[12,28], index: 8, kind: input, shape index: {}]
  %s9 = inlined_call_operand.vmem [shape: bf16[384,192], index: 9, kind: input, shape index: {}]
  %s10 = inlined_call_operand.vmem [shape: bf16[6,96,256], index: 10, kind: input, shape index: {}]
  %s11 = inlined_call_operand.vmem [shape: f32[1,256], index: 11, kind: input, shape index: {}]
  %s12 = inlined_call_operand.hbm [shape: bf16[6,96,256], index: 12, kind: input, shape index: {}]
  %s13 = inlined_call_operand.vmem [shape: f32[1,256], index: 13, kind: input, shape index: {}]
  %s14 = inlined_call_operand.vmem [shape: bf16[9,256], index: 14, kind: input, shape index: {}]
  %s15 = inlined_call_operand.hbm [shape: bf16[256,256], index: 15, kind: input, shape index: {}]
  %s16 = inlined_call_operand.hbm [shape: bf16[256,256], index: 16, kind: input, shape index: {}]
  %s17 = inlined_call_operand.vmem [shape: f32[1,256], index: 17, kind: input, shape index: {}]
  %s18 = inlined_call_operand.vmem [shape: bf16[256,32], index: 18, kind: input, shape index: {}]
  %s19 = inlined_call_operand.vmem [shape: f32[1,32], index: 19, kind: input, shape index: {}]
  %s20 = inlined_call_operand.vmem [shape: bf16[32,3], index: 20, kind: input, shape index: {}]
  %s21 = inlined_call_operand.hbm [shape: f32[1,3], index: 21, kind: input, shape index: {}]
  %s22 = inlined_call_operand.vmem [shape: f32[16,3], index: 22, kind: output, shape index: {}]
  %s23 = sld [smem:[#allocation0]]
  $region114: #{net_forward_pallas.1} parent=0
    _
  %s25 = ssub.s32 1, %s23
  %s26 = scalar_select 0, %s25, %s23
  $region1: #{net_forward_pallas.1} parent=0
    #allocation2 [shape = 'u8[294912]{0}', space=vmem, size = 0x48000, scoped, tag = 'input window, operand 12, single buffered']
    #allocation3 [shape = 's32[1]{0}', space=sflag, size = 0x4, scoped, tag = 'scoped memory for net_forward_pallas.1']
    #allocation4 [shape = 'u8[131072]{0}', space=vmem, size = 0x20000, scoped, tag = 'input window, operand 15, single buffered']
    #allocation5 [shape = 's32[1]{0}', space=sflag, size = 0x4, scoped, tag = 'scoped memory for net_forward_pallas.1']
    #allocation6 [shape = 'u8[131072]{0}', space=vmem, size = 0x20000, scoped, tag = 'input window, operand 16, single buffered']
    #allocation7 [shape = 'u8[512]{0}', space=vmem, size = 0x400, scoped, tag = 'input window, operand 21, single buffered']
    #allocation8 [shape = 's32[1]{0}', space=sflag, size = 0x4, scoped, tag = 'scoped memory for net_forward_pallas.1']
    %27 = vsyncpa [#allocation3], 0
    %28 = vsyncpa [#allocation5], 0
    %29 = vsyncpa [#allocation8], 0
    // Predicated region
    $region2: #{net_forward_pallas.1} parent=1 // pred_check
      _
    $region3: #{net_forward_pallas.1} parent=1 // pred_check_branch
      %31 = sbr.rel (0) target = $region5
    $region4: #{net_forward_pallas.1} parent=1 // pred_region
      _
    $region5: #{net_forward_pallas.1} parent=1 // pred_fallthru
      _
    // Predicated region
    $region6: #{net_forward_pallas.1} parent=1 // pred_check
      _
    $region7: #{net_forward_pallas.1} parent=1 // pred_check_branch
      %33 = sbr.rel (0) target = $region9
    $region8: #{net_forward_pallas.1} parent=1 // pred_region
      _
    $region9: #{net_forward_pallas.1} parent=1 // pred_fallthru
      _
    // Predicated region
    $region10: #{net_forward_pallas.1} parent=1 // pred_check
      _
    $region11: #{net_forward_pallas.1} parent=1 // pred_check_branch
      %35 = sbr.rel (0) target = $region13
    $region12: #{net_forward_pallas.1} parent=1 // pred_region
      _
    $region13: #{net_forward_pallas.1} parent=1 // pred_fallthru
      _
    // Predicated region
    $region14: #{net_forward_pallas.1} parent=1 // pred_check
      _
    $region15: #{net_forward_pallas.1} parent=1 // pred_check_branch
      %37 = sbr.rel (0) target = $region17
    $region16: #{net_forward_pallas.1} parent=1 // pred_region
      _
    $region17: #{net_forward_pallas.1} parent=1 // pred_fallthru
      _
    // Predicated region
    $region18: #{net_forward_pallas.1} parent=1 // pred_check
      _
    $region19: #{net_forward_pallas.1} parent=1 // pred_check_branch
      %39 = sbr.rel (0) target = $region21
    $region20: #{net_forward_pallas.1} parent=1 // pred_region
      _
    $region21: #{net_forward_pallas.1} parent=1 // pred_fallthru
      _
    // Predicated region
    $region22: #{net_forward_pallas.1} parent=1 // pred_check
      _
    $region23: #{net_forward_pallas.1} parent=1 // pred_check_branch
      %41 = sbr.rel (0) target = $region25
    $region24: #{net_forward_pallas.1} parent=1 // pred_region
      _
    $region25: #{net_forward_pallas.1} parent=1 // pred_fallthru
      _
    // Predicated region
    $region26: #{net_forward_pallas.1} parent=1 // pred_check
      _
    $region27: #{net_forward_pallas.1} parent=1 // pred_check_branch
      %43 = sbr.rel (0) target = $region29
    $region28: #{net_forward_pallas.1} parent=1 // pred_region
      _
    $region29: #{net_forward_pallas.1} parent=1 // pred_fallthru
      _
    // Predicated region
    $region30: #{net_forward_pallas.1} parent=1 // pred_check
      _
    $region31: #{net_forward_pallas.1} parent=1 // pred_check_branch
      %45 = sbr.rel (0) target = $region33
    $region32: #{net_forward_pallas.1} parent=1 // pred_region
      _
    $region33: #{net_forward_pallas.1} parent=1 // pred_fallthru
      _
    // Predicated region
    $region34: #{net_forward_pallas.1} parent=1 // pred_check
      _
    $region35: #{net_forward_pallas.1} parent=1 // pred_check_branch
      %47 = sbr.rel (0) target = $region37
    $region36: #{net_forward_pallas.1} parent=1 // pred_region
      _
    $region37: #{net_forward_pallas.1} parent=1 // pred_fallthru
      _
    // Predicated region
    $region38: #{net_forward_pallas.1} parent=1 // pred_check
      _
    $region39: #{net_forward_pallas.1} parent=1 // pred_check_branch
      %49 = sbr.rel (0) target = $region41
    $region40: #{net_forward_pallas.1} parent=1 // pred_region
      _
    $region41: #{net_forward_pallas.1} parent=1 // pred_fallthru
      _
    // Predicated region
    $region42: #{net_forward_pallas.1} parent=1 // pred_check
      _
    $region43: #{net_forward_pallas.1} parent=1 // pred_check_branch
      %51 = sbr.rel (0) target = $region45
    $region44: #{net_forward_pallas.1} parent=1 // pred_region
      _
    $region45: #{net_forward_pallas.1} parent=1 // pred_fallthru
      _
    // Predicated region
    $region46: #{net_forward_pallas.1} parent=1 // pred_check
      _
    $region47: #{net_forward_pallas.1} parent=1 // pred_check_branch
      %53 = sbr.rel (0) target = $region49
    $region48: #{net_forward_pallas.1} parent=1 // pred_region
      _
    $region49: #{net_forward_pallas.1} parent=1 // pred_fallthru
      _
    // Predicated region
    $region50: #{net_forward_pallas.1} parent=1 // pred_check
      _
    $region51: #{net_forward_pallas.1} parent=1 // pred_check_branch
      %55 = sbr.rel (0) target = $region53
    $region52: #{net_forward_pallas.1} parent=1 // pred_region
      %s57 = ssub.s32 9216, 9216
      %58 = vsyncadd [#allocation3], %s57
      %s59 = sshll.u32 [#allocation2], 4
      %s60 = int_to_ptr.vmem [resolvable:$true] %s59
      %65 = dma.hbm_to_vmem [thread:$0]  %s12, 9216, %s60, [#allocation3], 128, 128, 8
    $region53: #{net_forward_pallas.1} parent=1 // pred_fallthru
      _
    // Predicated region
    $region54: #{net_forward_pallas.1} parent=1 // pred_check
      _
    $region55: #{net_forward_pallas.1} parent=1 // pred_check_branch
      %67 = sbr.rel (0) target = $region57
    $region56: #{net_forward_pallas.1} parent=1 // pred_region
      _
    $region57: #{net_forward_pallas.1} parent=1 // pred_fallthru
      _
    // Predicated region
    $region58: #{net_forward_pallas.1} parent=1 // pred_check
      _
    $region59: #{net_forward_pallas.1} parent=1 // pred_check_branch
      %69 = sbr.rel (0) target = $region61
    $region60: #{net_forward_pallas.1} parent=1 // pred_region
      _
    $region61: #{net_forward_pallas.1} parent=1 // pred_fallthru
      _
    // Predicated region
    $region62: #{net_forward_pallas.1} parent=1 // pred_check
      _
    $region63: #{net_forward_pallas.1} parent=1 // pred_check_branch
      %71 = sbr.rel (0) target = $region65
    $region64: #{net_forward_pallas.1} parent=1 // pred_region
      %s73 = ssub.s32 4096, 4096
      %74 = vsyncadd [#allocation5], %s73
      %s75 = sshll.u32 [#allocation4], 4
      %s76 = int_to_ptr.vmem [resolvable:$true] %s75
      %81 = dma.hbm_to_vmem [thread:$0]  %s15, 4096, %s76, [#allocation5], 128, 128, 8
    $region65: #{net_forward_pallas.1} parent=1 // pred_fallthru
      _
    // Predicated region
    $region66: #{net_forward_pallas.1} parent=1 // pred_check
      _
    $region67: #{net_forward_pallas.1} parent=1 // pred_check_branch
      %83 = sbr.rel (0) target = $region69
    $region68: #{net_forward_pallas.1} parent=1 // pred_region
      %s85 = ssub.s32 4096, 4096
      %86 = vsyncadd [#allocation5], %s85
      %s87 = sshll.u32 [#allocation6], 4
      %s88 = int_to_ptr.vmem [resolvable:$true] %s87
      %93 = dma.hbm_to_vmem [thread:$0]  %s16, 4096, %s88, [#allocation5], 128, 128, 8
    $region69: #{net_forward_pallas.1} parent=1 // pred_fallthru
      _
    // Predicated region
    $region70: #{net_forward_pallas.1} parent=1 // pred_check
      _
    $region71: #{net_forward_pallas.1} parent=1 // pred_check_branch
      %95 = sbr.rel (0) target = $region73
    $region72: #{net_forward_pallas.1} parent=1 // pred_region
      _
    $region73: #{net_forward_pallas.1} parent=1 // pred_fallthru
      _
    // Predicated region
    $region74: #{net_forward_pallas.1} parent=1 // pred_check
      _
    $region75: #{net_forward_pallas.1} parent=1 // pred_check_branch
      %97 = sbr.rel (0) target = $region77
    $region76: #{net_forward_pallas.1} parent=1 // pred_region
      _
    $region77: #{net_forward_pallas.1} parent=1 // pred_fallthru
      _
    // Predicated region
    $region78: #{net_forward_pallas.1} parent=1 // pred_check
      _
    $region79: #{net_forward_pallas.1} parent=1 // pred_check_branch
      %99 = sbr.rel (0) target = $region81
    $region80: #{net_forward_pallas.1} parent=1 // pred_region
      _
    $region81: #{net_forward_pallas.1} parent=1 // pred_fallthru
      _
    // Predicated region
    $region82: #{net_forward_pallas.1} parent=1 // pred_check
      _
    $region83: #{net_forward_pallas.1} parent=1 // pred_check_branch
      %101 = sbr.rel (0) target = $region85
    $region84: #{net_forward_pallas.1} parent=1 // pred_region
      _
    $region85: #{net_forward_pallas.1} parent=1 // pred_fallthru
      _
    // Predicated region
    $region86: #{net_forward_pallas.1} parent=1 // pred_check
      _
    $region87: #{net_forward_pallas.1} parent=1 // pred_check_branch
      %103 = sbr.rel (0) target = $region89
    $region88: #{net_forward_pallas.1} parent=1 // pred_region
      %s105 = ssub.s32 16, 16
      %106 = vsyncadd [#allocation8], %s105
      %s108 = sshll.u32 [#allocation7], 4
      %s109 = int_to_ptr.vmem [resolvable:$true] %s108
      %111 = dma.hbm_to_vmem [thread:$0]  %s21, 16, %s109, [#allocation8]
    $region89: #{net_forward_pallas.1} parent=1 // pred_fallthru
      _
    // Predicated region
    $region90: #{net_forward_pallas.1} parent=1 // pred_check
      _
    $region91: #{net_forward_pallas.1} parent=1 // pred_check_branch
      %113 = sbr.rel (0) target = $region93
    $region92: #{net_forward_pallas.1} parent=1 // pred_region
      %114 = dma.done [#allocation3], 9216
    $region93: #{net_forward_pallas.1} parent=1 // pred_fallthru
      _
    // Predicated region
    $region94: #{net_forward_pallas.1} parent=1 // pred_check
      _
    $region95: #{net_forward_pallas.1} parent=1 // pred_check_branch
      %116 = sbr.rel (0) target = $region97
    $region96: #{net_forward_pallas.1} parent=1 // pred_region
      %117 = dma.done [#allocation5], 4096
    $region97: #{net_forward_pallas.1} parent=1 // pred_fallthru
      _
    // Predicated region
    $region98: #{net_forward_pallas.1} parent=1 // pred_check
      _
    $region99: #{net_forward_pallas.1} parent=1 // pred_check_branch
      %119 = sbr.rel (0) target = $region101
    $region100: #{net_forward_pallas.1} parent=1 // pred_region
      %120 = dma.done [#allocation5], 4096
    $region101: #{net_forward_pallas.1} parent=1 // pred_fallthru
      _
    // Predicated region
    $region102: #{net_forward_pallas.1} parent=1 // pred_check
      _
    $region103: #{net_forward_pallas.1} parent=1 // pred_check_branch
      %122 = sbr.rel (0) target = $region105
    $region104: #{net_forward_pallas.1} parent=1 // pred_region
      %123 = dma.done [#allocation8], 16
    $region105: #{net_forward_pallas.1} parent=1 // pred_fallthru
      _
    %v125 = vld [vmem:[%s1] sm:$0xff]
    %v126 = vld [vmem:[%s1 + $0x8] sm:$0xff]
    %v127 = vld [vmem:[%s1 + $0x10] sm:$0xff]
    %v128 = vld [vmem:[%s1 + $0x18] sm:$0xff]
    %v129 = vld [vmem:[%s1 + $0x20] sm:$0xff]
    %v130 = vld [vmem:[%s1 + $0x28] sm:$0xff]
    %v131 = vld [vmem:[%s1 + $0x30] sm:$0xff]
    %v132 = vld [vmem:[%s1 + $0x38] sm:$0xff]
    %v133 = vld [vmem:[%s1 + $0x40] sm:$0xff]
    %v134 = vunpack.c.l.bf16 %v125
    %v135 = vunpack.c.h.bf16 %v125
    %v136 = vunpack.c.l.bf16 %v126
    %v137 = vunpack.c.h.bf16 %v126
    %v138 = vunpack.c.l.bf16 %v127
    %v139 = vunpack.c.h.bf16 %v127
    %v140 = vunpack.c.l.bf16 %v128
    %v141 = vunpack.c.h.bf16 %v128
    %v142 = vunpack.c.l.bf16 %v129
    %v143 = vunpack.c.h.bf16 %v129
    %v144 = vunpack.c.l.bf16 %v130
    %v145 = vunpack.c.h.bf16 %v130
    %v146 = vunpack.c.l.bf16 %v131
    %v147 = vunpack.c.h.bf16 %v131
    %v148 = vunpack.c.l.bf16 %v132
    %v149 = vunpack.c.h.bf16 %v132
    %v150 = vunpack.c.l.bf16 %v133
    %v151 = vunpack.c.h.bf16 %v133
    %v152 = vpack.c.bf16 %v136, %v134
    %v153 = vpack.c.bf16 %v137, %v135
    %v154 = vpack.c.bf16 %v140, %v138
    %v155 = vpack.c.bf16 %v141, %v139
    %v156 = vpack.c.bf16 %v144, %v142
    %v157 = vpack.c.bf16 %v145, %v143
    %v158 = vpack.c.bf16 %v148, %v146
    %v159 = vpack.c.bf16 %v149, %v147
    %v160 = vpack.c.bf16 %v150, %v150
    %v161 = vpack.c.bf16 %v151, %v151
    %v162 = vld [vmem:[%s2] sm:$0xff]
    %v163 = vld [vmem:[%s2 + $0x8] sm:$0xf]
    %v164 = vld [vmem:[%s2 + $0xc] sm:$0xff]
    %v165 = vld [vmem:[%s2 + $0x14] sm:$0xf]
    %v166 = vld [vmem:[%s2 + $0x18] sm:$0xff]
    %v167 = vld [vmem:[%s2 + $0x20] sm:$0xf]
    %v168 = vld [vmem:[%s2 + $0x24] sm:$0xff]
    %v169 = vld [vmem:[%s2 + $0x2c] sm:$0xf]
    %v170 = vld [vmem:[%s2 + $0x30] sm:$0xff]
    %v171 = vld [vmem:[%s2 + $0x38] sm:$0xf]
    %v172 = vld [vmem:[%s2 + $0x3c] sm:$0xff]
    %v173 = vld [vmem:[%s2 + $0x44] sm:$0xf]
    %v174 = vld [vmem:[%s2 + $0x48] sm:$0xff]
    %v175 = vld [vmem:[%s2 + $0x50] sm:$0xf]
    %v176 = vld [vmem:[%s2 + $0x54] sm:$0xff]
    %v177 = vld [vmem:[%s2 + $0x5c] sm:$0xf]
    %v178 = vld [vmem:[%s2 + $0x60] sm:$0xff]
    %v179 = vld [vmem:[%s2 + $0x68] sm:$0xf]
    %v180 = vld [vmem:[%s2 + $0x6c] sm:$0xff]
    %v181 = vld [vmem:[%s2 + $0x74] sm:$0xf]
    %v182 = vld [vmem:[%s2 + $0x78] sm:$0xff]
    %v183 = vld [vmem:[%s2 + $0x80] sm:$0xf]
    %v184 = vld [vmem:[%s2 + $0x84] sm:$0xff]
    %v185 = vld [vmem:[%s2 + $0x8c] sm:$0xf]
    %v186 = vld [vmem:[%s2 + $0x90] sm:$0xff]
    %v187 = vld [vmem:[%s2 + $0x98] sm:$0xf]
    %v188 = vld [vmem:[%s2 + $0x9c] sm:$0xff]
    %v189 = vld [vmem:[%s2 + $0xa4] sm:$0xf]
    %v190 = vld [vmem:[%s2 + $0xa8] sm:$0xff]
    %v191 = vld [vmem:[%s2 + $0xb0] sm:$0xf]
    %v192 = vld [vmem:[%s2 + $0xb4] sm:$0xff]
    %v193 = vld [vmem:[%s2 + $0xbc] sm:$0xf]
    %v194 = vld [vmem:[%s2 + $0xc0] sm:$0xff]
    %v195 = vld [vmem:[%s2 + $0xc8] sm:$0xf]
    %v196 = vld [vmem:[%s2 + $0xcc] sm:$0xff]
    %v197 = vld [vmem:[%s2 + $0xd4] sm:$0xf]
    %v198 = vld [vmem:[%s2 + $0xd8] sm:$0xff]
    %v199 = vld [vmem:[%s2 + $0xe0] sm:$0xf]
    %v200 = vld [vmem:[%s2 + $0xe4] sm:$0xff]
    %v201 = vld [vmem:[%s2 + $0xec] sm:$0xf]
    %v202 = vld [vmem:[%s2 + $0xf0] sm:$0xff]
    %v203 = vld [vmem:[%s2 + $0xf8] sm:$0xf]
    %v204 = vld [vmem:[%s2 + $0xfc] sm:$0xff]
    %v205 = vld [vmem:[%s2 + $0x104] sm:$0xf]
    %v206 = vld [vmem:[%s2 + $0x108] sm:$0xff]
    %v207 = vld [vmem:[%s2 + $0x110] sm:$0xf]
    %v208 = vld [vmem:[%s2 + $0x114] sm:$0xff]
    %v209 = vld [vmem:[%s2 + $0x11c] sm:$0xf]
    %s210 = scalar_lea.vmem %s2, 288
    %v211 = vld [vmem:[%s210] sm:$0xff]
    %v212 = vld [vmem:[%s210 + $0x8] sm:$0xf]
    %v213 = vld [vmem:[%s210 + $0xc] sm:$0xff]
    %v214 = vld [vmem:[%s210 + $0x14] sm:$0xf]
    %v215 = vld [vmem:[%s210 + $0x18] sm:$0xff]
    %v216 = vld [vmem:[%s210 + $0x20] sm:$0xf]
    %v217 = vld [vmem:[%s210 + $0x24] sm:$0xff]
    %v218 = vld [vmem:[%s210 + $0x2c] sm:$0xf]
    %v219 = vld [vmem:[%s210 + $0x30] sm:$0xff]
    %v220 = vld [vmem:[%s210 + $0x38] sm:$0xf]
    %v221 = vld [vmem:[%s210 + $0x3c] sm:$0xff]
    %v222 = vld [vmem:[%s210 + $0x44] sm:$0xf]
    %v223 = vld [vmem:[%s210 + $0x48] sm:$0xff]
    %v224 = vld [vmem:[%s210 + $0x50] sm:$0xf]
    %v225 = vld [vmem:[%s210 + $0x54] sm:$0xff]
    %v226 = vld [vmem:[%s210 + $0x5c] sm:$0xf]
    %v227 = vld [vmem:[%s210 + $0x60] sm:$0xff]
    %v228 = vld [vmem:[%s210 + $0x68] sm:$0xf]
    %v229 = vld [vmem:[%s210 + $0x6c] sm:$0xff]
    %v230 = vld [vmem:[%s210 + $0x74] sm:$0xf]
    %v231 = vld [vmem:[%s210 + $0x78] sm:$0xff]
    %v232 = vld [vmem:[%s210 + $0x80] sm:$0xf]
    %v233 = vld [vmem:[%s210 + $0x84] sm:$0xff]
    %v234 = vld [vmem:[%s210 + $0x8c] sm:$0xf]
    %v235 = vld [vmem:[%s210 + $0x90] sm:$0xff]
    %v236 = vld [vmem:[%s210 + $0x98] sm:$0xf]
    %v237 = vld [vmem:[%s210 + $0x9c] sm:$0xff]
    %v238 = vld [vmem:[%s210 + $0xa4] sm:$0xf]
    %v239 = vld [vmem:[%s210 + $0xa8] sm:$0xff]
    %v240 = vld [vmem:[%s210 + $0xb0] sm:$0xf]
    %v241 = vld [vmem:[%s210 + $0xb4] sm:$0xff]
    %v242 = vld [vmem:[%s210 + $0xbc] sm:$0xf]
    %v243 = vld [vmem:[%s210 + $0xc0] sm:$0xff]
    %v244 = vld [vmem:[%s210 + $0xc8] sm:$0xf]
    %v245 = vld [vmem:[%s210 + $0xcc] sm:$0xff]
    %v246 = vld [vmem:[%s210 + $0xd4] sm:$0xf]
    %v247 = vld [vmem:[%s210 + $0xd8] sm:$0xff]
    %v248 = vld [vmem:[%s210 + $0xe0] sm:$0xf]
    %v249 = vld [vmem:[%s210 + $0xe4] sm:$0xff]
    %v250 = vld [vmem:[%s210 + $0xec] sm:$0xf]
    %v251 = vld [vmem:[%s210 + $0xf0] sm:$0xff]
    %v252 = vld [vmem:[%s210 + $0xf8] sm:$0xf]
    %v253 = vld [vmem:[%s210 + $0xfc] sm:$0xff]
    %v254 = vld [vmem:[%s210 + $0x104] sm:$0xf]
    %v255 = vld [vmem:[%s210 + $0x108] sm:$0xff]
    %v256 = vld [vmem:[%s210 + $0x110] sm:$0xf]
    %v257 = vld [vmem:[%s210 + $0x114] sm:$0xff]
    %v258 = vld [vmem:[%s210 + $0x11c] sm:$0xf]
    %vm259 = vsmask.f32 7424
    %v261 = vshrl.u32 %v152, 16
    %v263 = vshll.u32 %v152, 16
    %v265 = vrot.slane %v263, 1
    %v266 = vor.u32 %v261, %v265
    %v268 = vshll.u32 %v154, 16
    %v270 = vrot.slane %v268, 1
    %v271 = vsel %vm259, %v266, %v270
    %v273 = vshrl.u32 %v153, 16
    %v275 = vshll.u32 %v153, 16
    %v277 = vrot.slane %v275, 1
    %v278 = vor.u32 %v273, %v277
    %v280 = vshll.u32 %v155, 16
    %v282 = vrot.slane %v280, 1
    %v283 = vsel %vm259, %v278, %v282
    %v284 = vshrl.u32 %v154, 16
    %v286 = vor.u32 %v284, %v270
    %v288 = vshll.u32 %v156, 16
    %v290 = vrot.slane %v288, 1
    %v291 = vsel %vm259, %v286, %v290
    %v292 = vshrl.u32 %v155, 16
    %v294 = vor.u32 %v292, %v282
    %v296 = vshll.u32 %v157, 16
    %v298 = vrot.slane %v296, 1
    %v299 = vsel %vm259, %v294, %v298
    %v300 = vshrl.u32 %v156, 16
    %v302 = vor.u32 %v300, %v290
    %v304 = vshll.u32 %v158, 16
    %v306 = vrot.slane %v304, 1
    %v307 = vsel %vm259, %v302, %v306
    %v308 = vshrl.u32 %v157, 16
    %v310 = vor.u32 %v308, %v298
    %v312 = vshll.u32 %v159, 16
    %v314 = vrot.slane %v312, 1
    %v315 = vsel %vm259, %v310, %v314
    %v316 = vshrl.u32 %v158, 16
    %v318 = vor.u32 %v316, %v306
    %v320 = vshll.u32 %v160, 16
    %v322 = vrot.slane %v320, 1
    %v323 = vsel %vm259, %v318, %v322
    %v324 = vshrl.u32 %v159, 16
    %v326 = vor.u32 %v324, %v314
    %v328 = vshll.u32 %v161, 16
    %v330 = vrot.slane %v328, 1
    %v331 = vsel %vm259, %v326, %v330
    %v332 = vshrl.u32 %v160, 16
    %v334 = vor.u32 %v332, %v322
    %v335 = vshrl.u32 %v161, 16
    %v337 = vor.u32 %v335, %v330
    %v391 = vunpack.c.l.b16 %v211
    %v392 = vunpack.c.h.b16 %v211
    %v393 = vunpack.c.l.b16 %v212
    %v394 = vunpack.c.l.b16 %v213
    %v395 = vunpack.c.h.b16 %v213
    %v396 = vunpack.c.l.b16 %v214
    %v397 = vunpack.c.l.b16 %v215
    %v398 = vunpack.c.h.b16 %v215
    %v399 = vunpack.c.l.b16 %v216
    %v400 = vunpack.c.l.b16 %v217
    %v401 = vunpack.c.h.b16 %v217
    %v402 = vunpack.c.l.b16 %v218
    %v403 = vunpack.c.l.b16 %v219
    %v404 = vunpack.c.h.b16 %v219
    %v405 = vunpack.c.l.b16 %v220
    %v406 = vunpack.c.l.b16 %v221
    %v407 = vunpack.c.h.b16 %v221
    %v408 = vunpack.c.l.b16 %v222
    %v409 = vunpack.c.l.b16 %v223
    %v410 = vunpack.c.h.b16 %v223
    %v411 = vunpack.c.l.b16 %v224
    %v412 = vunpack.c.l.b16 %v225
    %v413 = vunpack.c.h.b16 %v225
    %v414 = vunpack.c.l.b16 %v226
    %v415 = vunpack.c.l.b16 %v227
    %v416 = vunpack.c.h.b16 %v227
    %v417 = vunpack.c.l.b16 %v228
    %v418 = vunpack.c.l.b16 %v229
    %v419 = vunpack.c.h.b16 %v229
    %v420 = vunpack.c.l.b16 %v230
    %v421 = vunpack.c.l.b16 %v231
    %v422 = vunpack.c.h.b16 %v231
    %v423 = vunpack.c.l.b16 %v232
    %v424 = vunpack.c.l.b16 %v233
    %v425 = vunpack.c.h.b16 %v233
    %v426 = vunpack.c.l.b16 %v234
    %v427 = vunpack.c.l.b16 %v235
    %v428 = vunpack.c.h.b16 %v235
    %v429 = vunpack.c.l.b16 %v236
    %v430 = vunpack.c.l.b16 %v237
    %v431 = vunpack.c.h.b16 %v237
    %v432 = vunpack.c.l.b16 %v238
    %v433 = vunpack.c.l.b16 %v239
    %v434 = vunpack.c.h.b16 %v239
    %v435 = vunpack.c.l.b16 %v240
    %v436 = vunpack.c.l.b16 %v241
    %v437 = vunpack.c.h.b16 %v241
    %v438 = vunpack.c.l.b16 %v242
    %v439 = vunpack.c.l.b16 %v243
    %v440 = vunpack.c.h.b16 %v243
    %v441 = vunpack.c.l.b16 %v244
    %v442 = vunpack.c.l.b16 %v245
    %v443 = vunpack.c.h.b16 %v245
    %v444 = vunpack.c.l.b16 %v246
    %v445 = vunpack.c.l.b16 %v247
    %v446 = vunpack.c.h.b16 %v247
    %v447 = vunpack.c.l.b16 %v248
    %v448 = vunpack.c.l.b16 %v249
    %v449 = vunpack.c.h.b16 %v249
    %v450 = vunpack.c.l.b16 %v250
    %v451 = vunpack.c.l.b16 %v251
    %v452 = vunpack.c.h.b16 %v251
    %v453 = vunpack.c.l.b16 %v252
    %v454 = vunpack.c.l.b16 %v253
    %v455 = vunpack.c.h.b16 %v253
    %v456 = vunpack.c.l.b16 %v254
    %v457 = vunpack.c.l.b16 %v255
    %v458 = vunpack.c.h.b16 %v255
    %v459 = vunpack.c.l.b16 %v256
    %v460 = vunpack.c.l.b16 %v257
    %v461 = vunpack.c.h.b16 %v257
    %v462 = vunpack.c.l.b16 %v258
    %v463 = vpack.c.b16 %v394, %v391
    %v464 = vpack.c.b16 %v395, %v392
    %v465 = vpack.c.b16 %v396, %v393
    %v466 = vpack.c.b16 %v400, %v397
    %v467 = vpack.c.b16 %v401, %v398
    %v468 = vpack.c.b16 %v402, %v399
    %v469 = vpack.c.b16 %v406, %v403
    %v470 = vpack.c.b16 %v407, %v404
    %v471 = vpack.c.b16 %v408, %v405
    %v472 = vpack.c.b16 %v412, %v409
    %v473 = vpack.c.b16 %v413, %v410
    %v474 = vpack.c.b16 %v414, %v411
    %v475 = vpack.c.b16 %v418, %v415
    %v476 = vpack.c.b16 %v419, %v416
    %v477 = vpack.c.b16 %v420, %v417
    %v478 = vpack.c.b16 %v424, %v421
    %v479 = vpack.c.b16 %v425, %v422
    %v480 = vpack.c.b16 %v426, %v423
    %v481 = vpack.c.b16 %v430, %v427
    %v482 = vpack.c.b16 %v431, %v428
    %v483 = vpack.c.b16 %v432, %v429
    %v484 = vpack.c.b16 %v436, %v433
    %v485 = vpack.c.b16 %v437, %v434
    %v486 = vpack.c.b16 %v438, %v435
    %v487 = vpack.c.b16 %v442, %v439
    %v488 = vpack.c.b16 %v443, %v440
    %v489 = vpack.c.b16 %v444, %v441
    %v490 = vpack.c.b16 %v448, %v445
    %v491 = vpack.c.b16 %v449, %v446
    %v492 = vpack.c.b16 %v450, %v447
    %v493 = vpack.c.b16 %v454, %v451
    %v494 = vpack.c.b16 %v455, %v452
    %v495 = vpack.c.b16 %v456, %v453
    %v496 = vpack.c.b16 %v460, %v457
    %v497 = vpack.c.b16 %v461, %v458
    %v498 = vpack.c.b16 %v462, %v459
    %vm535 = vcmask 523264
    %v537 = vsel %vm535, %v283, 0
    %v540 = vsel %vm535, %v299, 0
    %v543 = vsel %vm535, %v315, 0
    %v546 = vsel %vm535, %v331, 0
    %v549 = vsel %vm535, %v337, 0
    %551 = vmatprep.subr.bf16.mxu0 %v485
    %552 = vmatpush1.bf16.msra.mxu0 %v484
    %553 = vmatprep.subr.bf16.mxu0 %v482
    %554 = vmatpush1.bf16.msra.mxu0 %v481
    %555 = vmatprep.subr.bf16.mxu0 %v479
    %556 = vmatpush1.bf16.msra.mxu0 %v478
    %557 = vmatprep.subr.bf16.mxu0 %v476
    %558 = vmatpush1.bf16.msra.mxu0 %v475
    %559 = vmatprep.subr.bf16.mxu0 %v473
    %560 = vmatpush1.bf16.msra.mxu0 %v472
    %561 = vmatprep.subr.bf16.mxu0 %v470
    %562 = vmatpush1.bf16.msra.mxu0 %v469
    %563 = vmatprep.subr.bf16.mxu0 %v467
    %564 = vmatpush1.bf16.msra.mxu0 %v466
    %565 = vmatprep.subr.bf16.mxu0 %v464
    %566 = vmatpush1.bf16.msra.mxu0 %v463
    %567 = vmatprep.subr.bf16.mxu0 0
    %568 = vmatpush2.bf16.msra.mxu0 0
    %569 = vmatprep.subr.bf16.mxu0 0
    %570 = vmatpush2.bf16.msra.mxu0 0
    %571 = vmatprep.subr.bf16.mxu0 0
    %572 = vmatpush2.bf16.msra.mxu0 0
    %573 = vmatprep.subr.bf16.mxu0 0
    %574 = vmatpush2.bf16.msra.mxu0 0
    %575 = vmatprep.subr.bf16.mxu0 %v497
    %576 = vmatpush2.bf16.msra.mxu0 %v496
    %577 = vmatprep.subr.bf16.mxu0 %v494
    %578 = vmatpush2.bf16.msra.mxu0 %v493
    %579 = vmatprep.subr.bf16.mxu0 %v491
    %580 = vmatpush2.bf16.msra.mxu0 %v490
    %581 = vmatprep.subr.bf16.mxu0 %v488
    %582 = vmatpush2.bf16.msra.mxu0 %v487
    %583 = vmatprep.mubr.bf16.mxu0 %v537
    %584 = vmatmul.mubr.bf16.gmra.mxu0 %v271
    %v585 = vpop.f32.mrf.mxu0
    %v586 = vadd.f32 0.0, %v585
    %v587 = vpop.f32.mrf.mxu0
    %v588 = vadd.f32 0.0, %v587
    %v589 = vpop.f32.mrf.mxu0
    %v590 = vadd.f32 0.0, %v589
    %v591 = vpop.f32.mrf.mxu0
    %v592 = vadd.f32 0.0, %v591
    %593 = vmatprep.mubr.bf16.mxu0 %v540
    %594 = vmatmul.mubr.bf16.gmra.mxu0 %v291
    %v595 = vpop.f32.mrf.mxu0
    %v596 = vadd.f32 0.0, %v595
    %v597 = vpop.f32.mrf.mxu0
    %v598 = vadd.f32 0.0, %v597
    %v599 = vpop.f32.mrf.mxu0
    %v600 = vadd.f32 0.0, %v599
    %v601 = vpop.f32.mrf.mxu0
    %v602 = vadd.f32 0.0, %v601
    %603 = vmatprep.mubr.bf16.mxu0 %v543
    %604 = vmatmul.mubr.bf16.gmra.mxu0 %v307
    %v605 = vpop.f32.mrf.mxu0
    %v606 = vadd.f32 0.0, %v605
    %v607 = vpop.f32.mrf.mxu0
    %v608 = vadd.f32 0.0, %v607
    %v609 = vpop.f32.mrf.mxu0
    %v610 = vadd.f32 0.0, %v609
    %v611 = vpop.f32.mrf.mxu0
    %v612 = vadd.f32 0.0, %v611
    %613 = vmatprep.mubr.bf16.mxu0 %v546
    %614 = vmatmul.mubr.bf16.gmra.mxu0 %v323
    %v615 = vpop.f32.mrf.mxu0
    %v616 = vadd.f32 0.0, %v615
    %v617 = vpop.f32.mrf.mxu0
    %v618 = vadd.f32 0.0, %v617
    %v619 = vpop.f32.mrf.mxu0
    %v620 = vadd.f32 0.0, %v619
    %v621 = vpop.f32.mrf.mxu0
    %v622 = vadd.f32 0.0, %v621
    %623 = vmatprep.mubr.bf16.mxu0 %v549
    %624 = vmatmul.mubr.bf16.gmra.mxu0 %v334
    %v625 = vpop.f32.mrf.mxu0
    %v626 = vadd.f32 0.0, %v625
    %v627 = vpop.f32.mrf.mxu0
    %v628 = vadd.f32 0.0, %v627
    %v629 = vpop.f32.mrf.mxu0
    %v630 = vpop.f32.mrf.mxu0
    %631 = vdwg.mxu0
    %632 = vmatprep.subr.bf16.mxu0 0
    %633 = vmatpush1.bf16.msra.mxu0 %v486
    %634 = vmatprep.subr.bf16.mxu0 0
    %635 = vmatpush1.bf16.msra.mxu0 %v483
    %636 = vmatprep.subr.bf16.mxu0 0
    %637 = vmatpush1.bf16.msra.mxu0 %v480
    %638 = vmatprep.subr.bf16.mxu0 0
    %639 = vmatpush1.bf16.msra.mxu0 %v477
    %640 = vmatprep.subr.bf16.mxu0 0
    %641 = vmatpush1.bf16.msra.mxu0 %v474
    %642 = vmatprep.subr.bf16.mxu0 0
    %643 = vmatpush1.bf16.msra.mxu0 %v471
    %644 = vmatprep.subr.bf16.mxu0 0
    %645 = vmatpush1.bf16.msra.mxu0 %v468
    %646 = vmatprep.subr.bf16.mxu0 0
    %647 = vmatpush1.bf16.msra.mxu0 %v465
    %648 = vmatprep.subr.bf16.mxu0 0
    %649 = vmatpush2.bf16.msra.mxu0 0
    %650 = vmatprep.subr.bf16.mxu0 0
    %651 = vmatpush2.bf16.msra.mxu0 0
    %652 = vmatprep.subr.bf16.mxu0 0
    %653 = vmatpush2.bf16.msra.mxu0 0
    %654 = vmatprep.subr.bf16.mxu0 0
    %655 = vmatpush2.bf16.msra.mxu0 0
    %656 = vmatprep.subr.bf16.mxu0 0
    %657 = vmatpush2.bf16.msra.mxu0 %v498
    %658 = vmatprep.subr.bf16.mxu0 0
    %659 = vmatpush2.bf16.msra.mxu0 %v495
    %660 = vmatprep.subr.bf16.mxu0 0
    %661 = vmatpush2.bf16.msra.mxu0 %v492
    %662 = vmatprep.subr.bf16.mxu0 0
    %663 = vmatpush2.bf16.msra.mxu0 %v489
    %664 = vmatprep.mubr.bf16.mxu0 %v537
    %665 = vmatmul.mubr.bf16.gmra.mxu0 %v271
    %v666 = vpop.f32.mrf.mxu0
    %v667 = vadd.f32 0.0, %v666
    %v668 = vpop.f32.mrf.mxu0
    %v669 = vpop.f32.mrf.mxu0
    %v670 = vadd.f32 0.0, %v669
    %v671 = vpop.f32.mrf.mxu0
    %672 = vmatprep.mubr.bf16.mxu0 %v540
    %673 = vmatmul.mubr.bf16.gmra.mxu0 %v291
    %v674 = vpop.f32.mrf.mxu0
    %v675 = vadd.f32 0.0, %v674
    %v676 = vpop.f32.mrf.mxu0
    %v677 = vpop.f32.mrf.mxu0
    %v678 = vadd.f32 0.0, %v677
    %v679 = vpop.f32.mrf.mxu0
    %680 = vmatprep.mubr.bf16.mxu0 %v543
    %681 = vmatmul.mubr.bf16.gmra.mxu0 %v307
    %v682 = vpop.f32.mrf.mxu0
    %v683 = vadd.f32 0.0, %v682
    %v684 = vpop.f32.mrf.mxu0
    %v685 = vpop.f32.mrf.mxu0
    %v686 = vadd.f32 0.0, %v685
    %v687 = vpop.f32.mrf.mxu0
    %688 = vmatprep.mubr.bf16.mxu0 %v546
    %689 = vmatmul.mubr.bf16.gmra.mxu0 %v323
    %v690 = vpop.f32.mrf.mxu0
    %v691 = vadd.f32 0.0, %v690
    %v692 = vpop.f32.mrf.mxu0
    %v693 = vpop.f32.mrf.mxu0
    %v694 = vadd.f32 0.0, %v693
    %v695 = vpop.f32.mrf.mxu0
    %696 = vmatprep.mubr.bf16.mxu0 %v549
    %697 = vmatmul.mubr.bf16.gmra.mxu0 %v334
    %v698 = vpop.f32.mrf.mxu0
    %v699 = vadd.f32 0.0, %v698
    %v700 = vpop.f32.mrf.mxu0
    %v701 = vpop.f32.mrf.mxu0
    %v702 = vpop.f32.mrf.mxu0
    %703 = vdwg.mxu0
    %v752 = vunpack.c.l.b16 %v162
    %v753 = vunpack.c.h.b16 %v162
    %v754 = vunpack.c.l.b16 %v163
    %v755 = vunpack.c.l.b16 %v164
    %v756 = vunpack.c.h.b16 %v164
    %v757 = vunpack.c.l.b16 %v165
    %v758 = vunpack.c.l.b16 %v166
    %v759 = vunpack.c.h.b16 %v166
    %v760 = vunpack.c.l.b16 %v167
    %v761 = vunpack.c.l.b16 %v168
    %v762 = vunpack.c.h.b16 %v168
    %v763 = vunpack.c.l.b16 %v169
    %v764 = vunpack.c.l.b16 %v170
    %v765 = vunpack.c.h.b16 %v170
    %v766 = vunpack.c.l.b16 %v171
    %v767 = vunpack.c.l.b16 %v172
    %v768 = vunpack.c.h.b16 %v172
    %v769 = vunpack.c.l.b16 %v173
    %v770 = vunpack.c.l.b16 %v174
    %v771 = vunpack.c.h.b16 %v174
    %v772 = vunpack.c.l.b16 %v175
    %v773 = vunpack.c.l.b16 %v176
    %v774 = vunpack.c.h.b16 %v176
    %v775 = vunpack.c.l.b16 %v177
    %v776 = vunpack.c.l.b16 %v178
    %v777 = vunpack.c.h.b16 %v178
    %v778 = vunpack.c.l.b16 %v179
    %v779 = vunpack.c.l.b16 %v180
    %v780 = vunpack.c.h.b16 %v180
    %v781 = vunpack.c.l.b16 %v181
    %v782 = vunpack.c.l.b16 %v182
    %v783 = vunpack.c.h.b16 %v182
    %v784 = vunpack.c.l.b16 %v183
    %v785 = vunpack.c.l.b16 %v184
    %v786 = vunpack.c.h.b16 %v184
    %v787 = vunpack.c.l.b16 %v185
    %v788 = vunpack.c.l.b16 %v186
    %v789 = vunpack.c.h.b16 %v186
    %v790 = vunpack.c.l.b16 %v187
    %v791 = vunpack.c.l.b16 %v188
    %v792 = vunpack.c.h.b16 %v188
    %v793 = vunpack.c.l.b16 %v189
    %v794 = vunpack.c.l.b16 %v190
    %v795 = vunpack.c.h.b16 %v190
    %v796 = vunpack.c.l.b16 %v191
    %v797 = vunpack.c.l.b16 %v192
    %v798 = vunpack.c.h.b16 %v192
    %v799 = vunpack.c.l.b16 %v193
    %v800 = vunpack.c.l.b16 %v194
    %v801 = vunpack.c.h.b16 %v194
    %v802 = vunpack.c.l.b16 %v195
    %v803 = vunpack.c.l.b16 %v196
    %v804 = vunpack.c.h.b16 %v196
    %v805 = vunpack.c.l.b16 %v197
    %v806 = vunpack.c.l.b16 %v198
    %v807 = vunpack.c.h.b16 %v198
    %v808 = vunpack.c.l.b16 %v199
    %v809 = vunpack.c.l.b16 %v200
    %v810 = vunpack.c.h.b16 %v200
    %v811 = vunpack.c.l.b16 %v201
    %v812 = vunpack.c.l.b16 %v202
    %v813 = vunpack.c.h.b16 %v202
    %v814 = vunpack.c.l.b16 %v203
    %v815 = vunpack.c.l.b16 %v204
    %v816 = vunpack.c.h.b16 %v204
    %v817 = vunpack.c.l.b16 %v205
    %v818 = vunpack.c.l.b16 %v206
    %v819 = vunpack.c.h.b16 %v206
    %v820 = vunpack.c.l.b16 %v207
    %v821 = vunpack.c.l.b16 %v208
    %v822 = vunpack.c.h.b16 %v208
    %v823 = vunpack.c.l.b16 %v209
    %v824 = vpack.c.b16 %v755, %v752
    %v825 = vpack.c.b16 %v756, %v753
    %v826 = vpack.c.b16 %v757, %v754
    %v827 = vpack.c.b16 %v761, %v758
    %v828 = vpack.c.b16 %v762, %v759
    %v829 = vpack.c.b16 %v763, %v760
    %v830 = vpack.c.b16 %v767, %v764
    %v831 = vpack.c.b16 %v768, %v765
    %v832 = vpack.c.b16 %v769, %v766
    %v833 = vpack.c.b16 %v773, %v770
    %v834 = vpack.c.b16 %v774, %v771
    %v835 = vpack.c.b16 %v775, %v772
    %v836 = vpack.c.b16 %v779, %v776
    %v837 = vpack.c.b16 %v780, %v777
    %v838 = vpack.c.b16 %v781, %v778
    %v839 = vpack.c.b16 %v785, %v782
    %v840 = vpack.c.b16 %v786, %v783
    %v841 = vpack.c.b16 %v787, %v784
    %v842 = vpack.c.b16 %v791, %v788
    %v843 = vpack.c.b16 %v792, %v789
    %v844 = vpack.c.b16 %v793, %v790
    %v845 = vpack.c.b16 %v797, %v794
    %v846 = vpack.c.b16 %v798, %v795
    %v847 = vpack.c.b16 %v799, %v796
    %v848 = vpack.c.b16 %v803, %v800
    %v849 = vpack.c.b16 %v804, %v801
    %v850 = vpack.c.b16 %v805, %v802
    %v851 = vpack.c.b16 %v809, %v806
    %v852 = vpack.c.b16 %v810, %v807
    %v853 = vpack.c.b16 %v811, %v808
    %v854 = vpack.c.b16 %v815, %v812
    %v855 = vpack.c.b16 %v816, %v813
    %v856 = vpack.c.b16 %v817, %v814
    %v857 = vpack.c.b16 %v821, %v818
    %v858 = vpack.c.b16 %v822, %v819
    %v859 = vpack.c.b16 %v823, %v820
    %v896 = vsel %vm535, %v153, 0
    %v898 = vsel %vm535, %v155, 0
    %v900 = vsel %vm535, %v157, 0
    %v902 = vsel %vm535, %v159, 0
    %v904 = vsel %vm535, %v161, 0
    %906 = vmatprep.subr.bf16.mxu0 %v846
    %907 = vmatpush1.bf16.msra.mxu0 %v845
    %908 = vmatprep.subr.bf16.mxu0 %v843
    %909 = vmatpush1.bf16.msra.mxu0 %v842
    %910 = vmatprep.subr.bf16.mxu0 %v840
    %911 = vmatpush1.bf16.msra.mxu0 %v839
    %912 = vmatprep.subr.bf16.mxu0 %v837
    %913 = vmatpush1.bf16.msra.mxu0 %v836
    %914 = vmatprep.subr.bf16.mxu0 %v834
    %915 = vmatpush1.bf16.msra.mxu0 %v833
    %916 = vmatprep.subr.bf16.mxu0 %v831
    %917 = vmatpush1.bf16.msra.mxu0 %v830
    %918 = vmatprep.subr.bf16.mxu0 %v828
    %919 = vmatpush1.bf16.msra.mxu0 %v827
    %920 = vmatprep.subr.bf16.mxu0 %v825
    %921 = vmatpush1.bf16.msra.mxu0 %v824
    %922 = vmatprep.subr.bf16.mxu0 0
    %923 = vmatpush2.bf16.msra.mxu0 0
    %924 = vmatprep.subr.bf16.mxu0 0
    %925 = vmatpush2.bf16.msra.mxu0 0
    %926 = vmatprep.subr.bf16.mxu0 0
    %927 = vmatpush2.bf16.msra.mxu0 0
    %928 = vmatprep.subr.bf16.mxu0 0
    %929 = vmatpush2.bf16.msra.mxu0 0
    %930 = vmatprep.subr.bf16.mxu0 %v858
    %931 = vmatpush2.bf16.msra.mxu0 %v857
    %932 = vmatprep.subr.bf16.mxu0 %v855
    %933 = vmatpush2.bf16.msra.mxu0 %v854
    %934 = vmatprep.subr.bf16.mxu0 %v852
    %935 = vmatpush2.bf16.msra.mxu0 %v851
    %936 = vmatprep.subr.bf16.mxu0 %v849
    %937 = vmatpush2.bf16.msra.mxu0 %v848
    %938 = vmatprep.mubr.bf16.mxu0 %v896
    %939 = vmatmul.mubr.bf16.gmra.mxu0 %v152
    %v940 = vpop.f32.mrf.mxu0
    %v941 = vadd.f32 %v586, %v940
    %v942 = vpop.f32.mrf.mxu0
    %v943 = vadd.f32 %v588, %v942
    %v944 = vpop.f32.mrf.mxu0
    %v945 = vadd.f32 %v590, %v944
    %v946 = vpop.f32.mrf.mxu0
    %v947 = vadd.f32 %v592, %v946
    %948 = vmatprep.mubr.bf16.mxu0 %v898
    %949 = vmatmul.mubr.bf16.gmra.mxu0 %v154
    %v950 = vpop.f32.mrf.mxu0
    %v951 = vadd.f32 %v596, %v950
    %v952 = vpop.f32.mrf.mxu0
    %v953 = vadd.f32 %v598, %v952
    %v954 = vpop.f32.mrf.mxu0
    %v955 = vadd.f32 %v600, %v954
    %v956 = vpop.f32.mrf.mxu0
    %v957 = vadd.f32 %v602, %v956
    %958 = vmatprep.mubr.bf16.mxu0 %v900
    %959 = vmatmul.mubr.bf16.gmra.mxu0 %v156
    %v960 = vpop.f32.mrf.mxu0
    %v961 = vadd.f32 %v606, %v960
    %v962 = vpop.f32.mrf.mxu0
    %v963 = vadd.f32 %v608, %v962
    %v964 = vpop.f32.mrf.mxu0
    %v965 = vadd.f32 %v610, %v964
    %v966 = vpop.f32.mrf.mxu0
    %v967 = vadd.f32 %v612, %v966
    %968 = vmatprep.mubr.bf16.mxu0 %v902
    %969 = vmatmul.mubr.bf16.gmra.mxu0 %v158
    %v970 = vpop.f32.mrf.mxu0
    %v971 = vadd.f32 %v616, %v970
    %v972 = vpop.f32.mrf.mxu0
    %v973 = vadd.f32 %v618, %v972
    %v974 = vpop.f32.mrf.mxu0
    %v975 = vadd.f32 %v620, %v974
    %v976 = vpop.f32.mrf.mxu0
    %v977 = vadd.f32 %v622, %v976
    %978 = vmatprep.mubr.bf16.mxu0 %v904
    %979 = vmatmul.mubr.bf16.gmra.mxu0 %v160
    %v980 = vpop.f32.mrf.mxu0
    %v981 = vadd.f32 %v626, %v980
    %v982 = vpop.f32.mrf.mxu0
    %v983 = vadd.f32 %v628, %v982
    %v984 = vpop.f32.mrf.mxu0
    %v985 = vpop.f32.mrf.mxu0
    %986 = vdwg.mxu0
    %987 = vmatprep.subr.bf16.mxu0 0
    %988 = vmatpush1.bf16.msra.mxu0 %v847
    %989 = vmatprep.subr.bf16.mxu0 0
    %990 = vmatpush1.bf16.msra.mxu0 %v844
    %991 = vmatprep.subr.bf16.mxu0 0
    %992 = vmatpush1.bf16.msra.mxu0 %v841
    %993 = vmatprep.subr.bf16.mxu0 0
    %994 = vmatpush1.bf16.msra.mxu0 %v838
    %995 = vmatprep.subr.bf16.mxu0 0
    %996 = vmatpush1.bf16.msra.mxu0 %v835
    %997 = vmatprep.subr.bf16.mxu0 0
    %998 = vmatpush1.bf16.msra.mxu0 %v832
    %999 = vmatprep.subr.bf16.mxu0 0
    %1000 = vmatpush1.bf16.msra.mxu0 %v829
    %1001 = vmatprep.subr.bf16.mxu0 0
    %1002 = vmatpush1.bf16.msra.mxu0 %v826
    %1003 = vmatprep.subr.bf16.mxu0 0
    %1004 = vmatpush2.bf16.msra.mxu0 0
    %1005 = vmatprep.subr.bf16.mxu0 0
    %1006 = vmatpush2.bf16.msra.mxu0 0
    %1007 = vmatprep.subr.bf16.mxu0 0
    %1008 = vmatpush2.bf16.msra.mxu0 0
    %1009 = vmatprep.subr.bf16.mxu0 0
    %1010 = vmatpush2.bf16.msra.mxu0 0
    %1011 = vmatprep.subr.bf16.mxu0 0
    %1012 = vmatpush2.bf16.msra.mxu0 %v859
    %1013 = vmatprep.subr.bf16.mxu0 0
    %1014 = vmatpush2.bf16.msra.mxu0 %v856
    %1015 = vmatprep.subr.bf16.mxu0 0
    %1016 = vmatpush2.bf16.msra.mxu0 %v853
    %1017 = vmatprep.subr.bf16.mxu0 0
    %1018 = vmatpush2.bf16.msra.mxu0 %v850
    %1019 = vmatprep.mubr.bf16.mxu0 %v896
    %1020 = vmatmul.mubr.bf16.gmra.mxu0 %v152
    %v1021 = vpop.f32.mrf.mxu0
    %v1022 = vadd.f32 %v667, %v1021
    %v1023 = vpop.f32.mrf.mxu0
    %v1024 = vpop.f32.mrf.mxu0
    %v1025 = vadd.f32 %v670, %v1024
    %v1026 = vpop.f32.mrf.mxu0
    %1027 = vmatprep.mubr.bf16.mxu0 %v898
    %1028 = vmatmul.mubr.bf16.gmra.mxu0 %v154
    %v1029 = vpop.f32.mrf.mxu0
    %v1030 = vadd.f32 %v675, %v1029
    %v1031 = vpop.f32.mrf.mxu0
    %v1032 = vpop.f32.mrf.mxu0
    %v1033 = vadd.f32 %v678, %v1032
    %v1034 = vpop.f32.mrf.mxu0
    %1035 = vmatprep.mubr.bf16.mxu0 %v900
    %1036 = vmatmul.mubr.bf16.gmra.mxu0 %v156
    %v1037 = vpop.f32.mrf.mxu0
    %v1038 = vadd.f32 %v683, %v1037
    %v1039 = vpop.f32.mrf.mxu0
    %v1040 = vpop.f32.mrf.mxu0
    %v1041 = vadd.f32 %v686, %v1040
    %v1042 = vpop.f32.mrf.mxu0
    %1043 = vmatprep.mubr.bf16.mxu0 %v902
    %1044 = vmatmul.mubr.bf16.gmra.mxu0 %v158
    %v1045 = vpop.f32.mrf.mxu0
    %v1046 = vadd.f32 %v691, %v1045
    %v1047 = vpop.f32.mrf.mxu0
    %v1048 = vpop.f32.mrf.mxu0
    %v1049 = vadd.f32 %v694, %v1048
    %v1050 = vpop.f32.mrf.mxu0
    %1051 = vmatprep.mubr.bf16.mxu0 %v904
    %1052 = vmatmul.mubr.bf16.gmra.mxu0 %v160
    %v1053 = vpop.f32.mrf.mxu0
    %v1054 = vadd.f32 %v699, %v1053
    %v1055 = vpop.f32.mrf.mxu0
    %v1056 = vpop.f32.mrf.mxu0
    %v1057 = vpop.f32.mrf.mxu0
    %1058 = vdwg.mxu0
    %s1059 = scalar_lea.vmem %s2, 576
    %v1060 = vld [vmem:[%s1059] sm:$0xff]
    %v1061 = vld [vmem:[%s1059 + $0x8] sm:$0xf]
    %v1062 = vld [vmem:[%s1059 + $0xc] sm:$0xff]
    %v1063 = vld [vmem:[%s1059 + $0x14] sm:$0xf]
    %v1064 = vld [vmem:[%s1059 + $0x18] sm:$0xff]
    %v1065 = vld [vmem:[%s1059 + $0x20] sm:$0xf]
    %v1066 = vld [vmem:[%s1059 + $0x24] sm:$0xff]
    %v1067 = vld [vmem:[%s1059 + $0x2c] sm:$0xf]
    %v1068 = vld [vmem:[%s1059 + $0x30] sm:$0xff]
    %v1069 = vld [vmem:[%s1059 + $0x38] sm:$0xf]
    %v1070 = vld [vmem:[%s1059 + $0x3c] sm:$0xff]
    %v1071 = vld [vmem:[%s1059 + $0x44] sm:$0xf]
    %v1072 = vld [vmem:[%s1059 + $0x48] sm:$0xff]
    %v1073 = vld [vmem:[%s1059 + $0x50] sm:$0xf]
    %v1074 = vld [vmem:[%s1059 + $0x54] sm:$0xff]
    %v1075 = vld [vmem:[%s1059 + $0x5c] sm:$0xf]
    %v1076 = vld [vmem:[%s1059 + $0x60] sm:$0xff]
    %v1077 = vld [vmem:[%s1059 + $0x68] sm:$0xf]
    %v1078 = vld [vmem:[%s1059 + $0x6c] sm:$0xff]
    %v1079 = vld [vmem:[%s1059 + $0x74] sm:$0xf]
    %v1080 = vld [vmem:[%s1059 + $0x78] sm:$0xff]
    %v1081 = vld [vmem:[%s1059 + $0x80] sm:$0xf]
    %v1082 = vld [vmem:[%s1059 + $0x84] sm:$0xff]
    %v1083 = vld [vmem:[%s1059 + $0x8c] sm:$0xf]
    %v1084 = vld [vmem:[%s1059 + $0x90] sm:$0xff]
    %v1085 = vld [vmem:[%s1059 + $0x98] sm:$0xf]
    %v1086 = vld [vmem:[%s1059 + $0x9c] sm:$0xff]
    %v1087 = vld [vmem:[%s1059 + $0xa4] sm:$0xf]
    %v1088 = vld [vmem:[%s1059 + $0xa8] sm:$0xff]
    %v1089 = vld [vmem:[%s1059 + $0xb0] sm:$0xf]
    %v1090 = vld [vmem:[%s1059 + $0xb4] sm:$0xff]
    %v1091 = vld [vmem:[%s1059 + $0xbc] sm:$0xf]
    %v1092 = vld [vmem:[%s1059 + $0xc0] sm:$0xff]
    %v1093 = vld [vmem:[%s1059 + $0xc8] sm:$0xf]
    %v1094 = vld [vmem:[%s1059 + $0xcc] sm:$0xff]
    %v1095 = vld [vmem:[%s1059 + $0xd4] sm:$0xf]
    %v1096 = vld [vmem:[%s1059 + $0xd8] sm:$0xff]
    %v1097 = vld [vmem:[%s1059 + $0xe0] sm:$0xf]
    %v1098 = vld [vmem:[%s1059 + $0xe4] sm:$0xff]
    %v1099 = vld [vmem:[%s1059 + $0xec] sm:$0xf]
    %v1100 = vld [vmem:[%s1059 + $0xf0] sm:$0xff]
    %v1101 = vld [vmem:[%s1059 + $0xf8] sm:$0xf]
    %v1102 = vld [vmem:[%s1059 + $0xfc] sm:$0xff]
    %v1103 = vld [vmem:[%s1059 + $0x104] sm:$0xf]
    %v1104 = vld [vmem:[%s1059 + $0x108] sm:$0xff]
    %v1105 = vld [vmem:[%s1059 + $0x110] sm:$0xf]
    %v1106 = vld [vmem:[%s1059 + $0x114] sm:$0xff]
    %v1107 = vld [vmem:[%s1059 + $0x11c] sm:$0xf]
    %vm1118 = vcmask 1046528
    %v1119 = vrot.slane %v152, 1
    %v1120 = vrot.slane %v154, 1
    %v1121 = vsel %vm1118, %v1119, %v1120
    %v1122 = vrot.slane %v153, 1
    %v1123 = vrot.slane %v155, 1
    %v1124 = vsel %vm1118, %v1122, %v1123
    %v1125 = vrot.slane %v156, 1
    %v1126 = vsel %vm1118, %v1120, %v1125
    %v1127 = vrot.slane %v157, 1
    %v1128 = vsel %vm1118, %v1123, %v1127
    %v1129 = vrot.slane %v158, 1
    %v1130 = vsel %vm1118, %v1125, %v1129
    %v1131 = vrot.slane %v159, 1
    %v1132 = vsel %vm1118, %v1127, %v1131
    %v1133 = vrot.slane %v160, 1
    %v1134 = vsel %vm1118, %v1129, %v1133
    %v1135 = vrot.slane %v161, 1
    %v1136 = vsel %vm1118, %v1131, %v1135
    %v1190 = vunpack.c.l.b16 %v1060
    %v1191 = vunpack.c.h.b16 %v1060
    %v1192 = vunpack.c.l.b16 %v1061
    %v1193 = vunpack.c.l.b16 %v1062
    %v1194 = vunpack.c.h.b16 %v1062
    %v1195 = vunpack.c.l.b16 %v1063
    %v1196 = vunpack.c.l.b16 %v1064
    %v1197 = vunpack.c.h.b16 %v1064
    %v1198 = vunpack.c.l.b16 %v1065
    %v1199 = vunpack.c.l.b16 %v1066
    %v1200 = vunpack.c.h.b16 %v1066
    %v1201 = vunpack.c.l.b16 %v1067
    %v1202 = vunpack.c.l.b16 %v1068
    %v1203 = vunpack.c.h.b16 %v1068
    %v1204 = vunpack.c.l.b16 %v1069
    %v1205 = vunpack.c.l.b16 %v1070
    %v1206 = vunpack.c.h.b16 %v1070
    %v1207 = vunpack.c.l.b16 %v1071
    %v1208 = vunpack.c.l.b16 %v1072
    %v1209 = vunpack.c.h.b16 %v1072
    %v1210 = vunpack.c.l.b16 %v1073
    %v1211 = vunpack.c.l.b16 %v1074
    %v1212 = vunpack.c.h.b16 %v1074
    %v1213 = vunpack.c.l.b16 %v1075
    %v1214 = vunpack.c.l.b16 %v1076
    %v1215 = vunpack.c.h.b16 %v1076
    %v1216 = vunpack.c.l.b16 %v1077
    %v1217 = vunpack.c.l.b16 %v1078
    %v1218 = vunpack.c.h.b16 %v1078
    %v1219 = vunpack.c.l.b16 %v1079
    %v1220 = vunpack.c.l.b16 %v1080
    %v1221 = vunpack.c.h.b16 %v1080
    %v1222 = vunpack.c.l.b16 %v1081
    %v1223 = vunpack.c.l.b16 %v1082
    %v1224 = vunpack.c.h.b16 %v1082
    %v1225 = vunpack.c.l.b16 %v1083
    %v1226 = vunpack.c.l.b16 %v1084
    %v1227 = vunpack.c.h.b16 %v1084
    %v1228 = vunpack.c.l.b16 %v1085
    %v1229 = vunpack.c.l.b16 %v1086
    %v1230 = vunpack.c.h.b16 %v1086
    %v1231 = vunpack.c.l.b16 %v1087
    %v1232 = vunpack.c.l.b16 %v1088
    %v1233 = vunpack.c.h.b16 %v1088
    %v1234 = vunpack.c.l.b16 %v1089
    %v1235 = vunpack.c.l.b16 %v1090
    %v1236 = vunpack.c.h.b16 %v1090
    %v1237 = vunpack.c.l.b16 %v1091
    %v1238 = vunpack.c.l.b16 %v1092
    %v1239 = vunpack.c.h.b16 %v1092
    %v1240 = vunpack.c.l.b16 %v1093
    %v1241 = vunpack.c.l.b16 %v1094
    %v1242 = vunpack.c.h.b16 %v1094
    %v1243 = vunpack.c.l.b16 %v1095
    %v1244 = vunpack.c.l.b16 %v1096
    %v1245 = vunpack.c.h.b16 %v1096
    %v1246 = vunpack.c.l.b16 %v1097
    %v1247 = vunpack.c.l.b16 %v1098
    %v1248 = vunpack.c.h.b16 %v1098
    %v1249 = vunpack.c.l.b16 %v1099
    %v1250 = vunpack.c.l.b16 %v1100
    %v1251 = vunpack.c.h.b16 %v1100
    %v1252 = vunpack.c.l.b16 %v1101
    %v1253 = vunpack.c.l.b16 %v1102
    %v1254 = vunpack.c.h.b16 %v1102
    %v1255 = vunpack.c.l.b16 %v1103
    %v1256 = vunpack.c.l.b16 %v1104
    %v1257 = vunpack.c.h.b16 %v1104
    %v1258 = vunpack.c.l.b16 %v1105
    %v1259 = vunpack.c.l.b16 %v1106
    %v1260 = vunpack.c.h.b16 %v1106
    %v1261 = vunpack.c.l.b16 %v1107
    %v1262 = vpack.c.b16 %v1193, %v1190
    %v1263 = vpack.c.b16 %v1194, %v1191
    %v1264 = vpack.c.b16 %v1195, %v1192
    %v1265 = vpack.c.b16 %v1199, %v1196
    %v1266 = vpack.c.b16 %v1200, %v1197
    %v1267 = vpack.c.b16 %v1201, %v1198
    %v1268 = vpack.c.b16 %v1205, %v1202
    %v1269 = vpack.c.b16 %v1206, %v1203
    %v1270 = vpack.c.b16 %v1207, %v1204
    %v1271 = vpack.c.b16 %v1211, %v1208
    %v1272 = vpack.c.b16 %v1212, %v1209
    %v1273 = vpack.c.b16 %v1213, %v1210
    %v1274 = vpack.c.b16 %v1217, %v1214
    %v1275 = vpack.c.b16 %v1218, %v1215
    %v1276 = vpack.c.b16 %v1219, %v1216
    %v1277 = vpack.c.b16 %v1223, %v1220
    %v1278 = vpack.c.b16 %v1224, %v1221
    %v1279 = vpack.c.b16 %v1225, %v1222
    %v1280 = vpack.c.b16 %v1229, %v1226
    %v1281 = vpack.c.b16 %v1230, %v1227
    %v1282 = vpack.c.b16 %v1231, %v1228
    %v1283 = vpack.c.b16 %v1235, %v1232
    %v1284 = vpack.c.b16 %v1236, %v1233
    %v1285 = vpack.c.b16 %v1237, %v1234
    %v1286 = vpack.c.b16 %v1241, %v1238
    %v1287 = vpack.c.b16 %v1242, %v1239
    %v1288 = vpack.c.b16 %v1243, %v1240
    %v1289 = vpack.c.b16 %v1247, %v1244
    %v1290 = vpack.c.b16 %v1248, %v1245
    %v1291 = vpack.c.b16 %v1249, %v1246
    %v1292 = vpack.c.b16 %v1253, %v1250
    %v1293 = vpack.c.b16 %v1254, %v1251
    %v1294 = vpack.c.b16 %v1255, %v1252
    %v1295 = vpack.c.b16 %v1259, %v1256
    %v1296 = vpack.c.b16 %v1260, %v1257
    %v1297 = vpack.c.b16 %v1261, %v1258
    %v1335 = vsel %vm535, %v1124, 0
    %v1338 = vsel %vm535, %v1128, 0
    %v1341 = vsel %vm535, %v1132, 0
    %v1344 = vsel %vm535, %v1136, 0
    %v1347 = vsel %vm535, %v1135, 0
    %1349 = vmatprep.subr.bf16.mxu0 %v1284
    %1350 = vmatpush1.bf16.msra.mxu0 %v1283
    %1351 = vmatprep.subr.bf16.mxu0 %v1281
    %1352 = vmatpush1.bf16.msra.mxu0 %v1280
    %1353 = vmatprep.subr.bf16.mxu0 %v1278
    %1354 = vmatpush1.bf16.msra.mxu0 %v1277
    %1355 = vmatprep.subr.bf16.mxu0 %v1275
    %1356 = vmatpush1.bf16.msra.mxu0 %v1274
    %1357 = vmatprep.subr.bf16.mxu0 %v1272
    %1358 = vmatpush1.bf16.msra.mxu0 %v1271
    %1359 = vmatprep.subr.bf16.mxu0 %v1269
    %1360 = vmatpush1.bf16.msra.mxu0 %v1268
    %1361 = vmatprep.subr.bf16.mxu0 %v1266
    %1362 = vmatpush1.bf16.msra.mxu0 %v1265
    %1363 = vmatprep.subr.bf16.mxu0 %v1263
    %1364 = vmatpush1.bf16.msra.mxu0 %v1262
    %1365 = vmatprep.subr.bf16.mxu0 0
    %1366 = vmatpush2.bf16.msra.mxu0 0
    %1367 = vmatprep.subr.bf16.mxu0 0
    %1368 = vmatpush2.bf16.msra.mxu0 0
    %1369 = vmatprep.subr.bf16.mxu0 0
    %1370 = vmatpush2.bf16.msra.mxu0 0
    %1371 = vmatprep.subr.bf16.mxu0 0
    %1372 = vmatpush2.bf16.msra.mxu0 0
    %1373 = vmatprep.subr.bf16.mxu0 %v1296
    %1374 = vmatpush2.bf16.msra.mxu0 %v1295
    %1375 = vmatprep.subr.bf16.mxu0 %v1293
    %1376 = vmatpush2.bf16.msra.mxu0 %v1292
    %1377 = vmatprep.subr.bf16.mxu0 %v1290
    %1378 = vmatpush2.bf16.msra.mxu0 %v1289
    %1379 = vmatprep.subr.bf16.mxu0 %v1287
    %1380 = vmatpush2.bf16.msra.mxu0 %v1286
    %1381 = vmatprep.mubr.bf16.mxu0 %v1335
    %1382 = vmatmul.mubr.bf16.gmra.mxu0 %v1121
    %v1383 = vpop.f32.mrf.mxu0
    %v1384 = vadd.f32 0.0, %v1383
    %v1385 = vpop.f32.mrf.mxu0
    %v1386 = vadd.f32 0.0, %v1385
    %v1387 = vpop.f32.mrf.mxu0
    %v1388 = vadd.f32 0.0, %v1387
    %v1389 = vpop.f32.mrf.mxu0
    %v1390 = vadd.f32 0.0, %v1389
    %1391 = vmatprep.mubr.bf16.mxu0 %v1338
    %1392 = vmatmul.mubr.bf16.gmra.mxu0 %v1126
    %v1393 = vpop.f32.mrf.mxu0
    %v1394 = vadd.f32 0.0, %v1393
    %v1395 = vpop.f32.mrf.mxu0
    %v1396 = vadd.f32 0.0, %v1395
    %v1397 = vpop.f32.mrf.mxu0
    %v1398 = vadd.f32 0.0, %v1397
    %v1399 = vpop.f32.mrf.mxu0
    %v1400 = vadd.f32 0.0, %v1399
    %1401 = vmatprep.mubr.bf16.mxu0 %v1341
    %1402 = vmatmul.mubr.bf16.gmra.mxu0 %v1130
    %v1403 = vpop.f32.mrf.mxu0
    %v1404 = vadd.f32 0.0, %v1403
    %v1405 = vpop.f32.mrf.mxu0
    %v1406 = vadd.f32 0.0, %v1405
    %v1407 = vpop.f32.mrf.mxu0
    %v1408 = vadd.f32 0.0, %v1407
    %v1409 = vpop.f32.mrf.mxu0
    %v1410 = vadd.f32 0.0, %v1409
    %1411 = vmatprep.mubr.bf16.mxu0 %v1344
    %1412 = vmatmul.mubr.bf16.gmra.mxu0 %v1134
    %v1413 = vpop.f32.mrf.mxu0
    %v1414 = vadd.f32 0.0, %v1413
    %v1415 = vpop.f32.mrf.mxu0
    %v1416 = vadd.f32 0.0, %v1415
    %v1417 = vpop.f32.mrf.mxu0
    %v1418 = vadd.f32 0.0, %v1417
    %v1419 = vpop.f32.mrf.mxu0
    %v1420 = vadd.f32 0.0, %v1419
    %1421 = vmatprep.mubr.bf16.mxu0 %v1347
    %1422 = vmatmul.mubr.bf16.gmra.mxu0 %v1133
    %v1423 = vpop.f32.mrf.mxu0
    %v1424 = vadd.f32 0.0, %v1423
    %v1425 = vpop.f32.mrf.mxu0
    %v1426 = vadd.f32 0.0, %v1425
    %v1427 = vpop.f32.mrf.mxu0
    %v1428 = vpop.f32.mrf.mxu0
    %1429 = vdwg.mxu0
    %1430 = vmatprep.subr.bf16.mxu0 0
    %1431 = vmatpush1.bf16.msra.mxu0 %v1285
    %1432 = vmatprep.subr.bf16.mxu0 0
    %1433 = vmatpush1.bf16.msra.mxu0 %v1282
    %1434 = vmatprep.subr.bf16.mxu0 0
    %1435 = vmatpush1.bf16.msra.mxu0 %v1279
    %1436 = vmatprep.subr.bf16.mxu0 0
    %1437 = vmatpush1.bf16.msra.mxu0 %v1276
    %1438 = vmatprep.subr.bf16.mxu0 0
    %1439 = vmatpush1.bf16.msra.mxu0 %v1273
    %1440 = vmatprep.subr.bf16.mxu0 0
    %1441 = vmatpush1.bf16.msra.mxu0 %v1270
    %1442 = vmatprep.subr.bf16.mxu0 0
    %1443 = vmatpush1.bf16.msra.mxu0 %v1267
    %1444 = vmatprep.subr.bf16.mxu0 0
    %1445 = vmatpush1.bf16.msra.mxu0 %v1264
    %1446 = vmatprep.subr.bf16.mxu0 0
    %1447 = vmatpush2.bf16.msra.mxu0 0
    %1448 = vmatprep.subr.bf16.mxu0 0
    %1449 = vmatpush2.bf16.msra.mxu0 0
    %1450 = vmatprep.subr.bf16.mxu0 0
    %1451 = vmatpush2.bf16.msra.mxu0 0
    %1452 = vmatprep.subr.bf16.mxu0 0
    %1453 = vmatpush2.bf16.msra.mxu0 0
    %1454 = vmatprep.subr.bf16.mxu0 0
    %1455 = vmatpush2.bf16.msra.mxu0 %v1297
    %1456 = vmatprep.subr.bf16.mxu0 0
    %1457 = vmatpush2.bf16.msra.mxu0 %v1294
    %1458 = vmatprep.subr.bf16.mxu0 0
    %1459 = vmatpush2.bf16.msra.mxu0 %v1291
    %1460 = vmatprep.subr.bf16.mxu0 0
    %1461 = vmatpush2.bf16.msra.mxu0 %v1288
    %1462 = vmatprep.mubr.bf16.mxu0 %v1335
    %1463 = vmatmul.mubr.bf16.gmra.mxu0 %v1121
    %v1464 = vpop.f32.mrf.mxu0
    %v1465 = vadd.f32 0.0, %v1464
    %v1466 = vpop.f32.mrf.mxu0
    %v1467 = vpop.f32.mrf.mxu0
    %v1468 = vadd.f32 0.0, %v1467
    %v1469 = vpop.f32.mrf.mxu0
    %1470 = vmatprep.mubr.bf16.mxu0 %v1338
    %1471 = vmatmul.mubr.bf16.gmra.mxu0 %v1126
    %v1472 = vpop.f32.mrf.mxu0
    %v1473 = vadd.f32 0.0, %v1472
    %v1474 = vpop.f32.mrf.mxu0
    %v1475 = vpop.f32.mrf.mxu0
    %v1476 = vadd.f32 0.0, %v1475
    %v1477 = vpop.f32.mrf.mxu0
    %1478 = vmatprep.mubr.bf16.mxu0 %v1341
    %1479 = vmatmul.mubr.bf16.gmra.mxu0 %v1130
    %v1480 = vpop.f32.mrf.mxu0
    %v1481 = vadd.f32 0.0, %v1480
    %v1482 = vpop.f32.mrf.mxu0
    %v1483 = vpop.f32.mrf.mxu0
    %v1484 = vadd.f32 0.0, %v1483
    %v1485 = vpop.f32.mrf.mxu0
    %1486 = vmatprep.mubr.bf16.mxu0 %v1344
    %1487 = vmatmul.mubr.bf16.gmra.mxu0 %v1134
    %v1488 = vpop.f32.mrf.mxu0
    %v1489 = vadd.f32 0.0, %v1488
    %v1490 = vpop.f32.mrf.mxu0
    %v1491 = vpop.f32.mrf.mxu0
    %v1492 = vadd.f32 0.0, %v1491
    %v1493 = vpop.f32.mrf.mxu0
    %1494 = vmatprep.mubr.bf16.mxu0 %v1347
    %1495 = vmatmul.mubr.bf16.gmra.mxu0 %v1133
    %v1496 = vpop.f32.mrf.mxu0
    %v1497 = vadd.f32 0.0, %v1496
    %v1498 = vpop.f32.mrf.mxu0
    %v1499 = vpop.f32.mrf.mxu0
    %v1500 = vpop.f32.mrf.mxu0
    %1501 = vdwg.mxu0
    %v1502 = vadd.f32 %v941, %v1384
    %v1503 = vadd.f32 %v943, %v1386
    %v1504 = vadd.f32 %v1022, %v1465
    %v1505 = vadd.f32 %v945, %v1388
    %v1506 = vadd.f32 %v947, %v1390
    %v1507 = vadd.f32 %v1025, %v1468
    %v1508 = vadd.f32 %v951, %v1394
    %v1509 = vadd.f32 %v953, %v1396
    %v1510 = vadd.f32 %v1030, %v1473
    %v1511 = vadd.f32 %v955, %v1398
    %v1512 = vadd.f32 %v957, %v1400
    %v1513 = vadd.f32 %v1033, %v1476
    %v1514 = vadd.f32 %v961, %v1404
    %v1515 = vadd.f32 %v963, %v1406
    %v1516 = vadd.f32 %v1038, %v1481
    %v1517 = vadd.f32 %v965, %v1408
    %v1518 = vadd.f32 %v967, %v1410
    %v1519 = vadd.f32 %v1041, %v1484
    %v1520 = vadd.f32 %v971, %v1414
    %v1521 = vadd.f32 %v973, %v1416
    %v1522 = vadd.f32 %v1046, %v1489
    %v1523 = vadd.f32 %v975, %v1418
    %v1524 = vadd.f32 %v977, %v1420
    %v1525 = vadd.f32 %v1049, %v1492
    %v1526 = vadd.f32 %v981, %v1424
    %v1527 = vadd.f32 %v983, %v1426
    %v1528 = vadd.f32 %v1054, %v1497
    %s1529 = scalar_lea.vmem %s2, 864
    %v1530 = vld [vmem:[%s1529] sm:$0xff]
    %v1531 = vld [vmem:[%s1529 + $0x8] sm:$0xf]
    %v1532 = vld [vmem:[%s1529 + $0xc] sm:$0xff]
    %v1533 = vld [vmem:[%s1529 + $0x14] sm:$0xf]
    %v1534 = vld [vmem:[%s1529 + $0x18] sm:$0xff]
    %v1535 = vld [vmem:[%s1529 + $0x20] sm:$0xf]
    %v1536 = vld [vmem:[%s1529 + $0x24] sm:$0xff]
    %v1537 = vld [vmem:[%s1529 + $0x2c] sm:$0xf]
    %v1538 = vld [vmem:[%s1529 + $0x30] sm:$0xff]
    %v1539 = vld [vmem:[%s1529 + $0x38] sm:$0xf]
    %v1540 = vld [vmem:[%s1529 + $0x3c] sm:$0xff]
    %v1541 = vld [vmem:[%s1529 + $0x44] sm:$0xf]
    %v1542 = vld [vmem:[%s1529 + $0x48] sm:$0xff]
    %v1543 = vld [vmem:[%s1529 + $0x50] sm:$0xf]
    %v1544 = vld [vmem:[%s1529 + $0x54] sm:$0xff]
    %v1545 = vld [vmem:[%s1529 + $0x5c] sm:$0xf]
    %v1546 = vld [vmem:[%s1529 + $0x60] sm:$0xff]
    %v1547 = vld [vmem:[%s1529 + $0x68] sm:$0xf]
    %v1548 = vld [vmem:[%s1529 + $0x6c] sm:$0xff]
    %v1549 = vld [vmem:[%s1529 + $0x74] sm:$0xf]
    %v1550 = vld [vmem:[%s1529 + $0x78] sm:$0xff]
    %v1551 = vld [vmem:[%s1529 + $0x80] sm:$0xf]
    %v1552 = vld [vmem:[%s1529 + $0x84] sm:$0xff]
    %v1553 = vld [vmem:[%s1529 + $0x8c] sm:$0xf]
    %v1554 = vld [vmem:[%s1529 + $0x90] sm:$0xff]
    %v1555 = vld [vmem:[%s1529 + $0x98] sm:$0xf]
    %v1556 = vld [vmem:[%s1529 + $0x9c] sm:$0xff]
    %v1557 = vld [vmem:[%s1529 + $0xa4] sm:$0xf]
    %v1558 = vld [vmem:[%s1529 + $0xa8] sm:$0xff]
    %v1559 = vld [vmem:[%s1529 + $0xb0] sm:$0xf]
    %v1560 = vld [vmem:[%s1529 + $0xb4] sm:$0xff]
    %v1561 = vld [vmem:[%s1529 + $0xbc] sm:$0xf]
    %v1562 = vld [vmem:[%s1529 + $0xc0] sm:$0xff]
    %v1563 = vld [vmem:[%s1529 + $0xc8] sm:$0xf]
    %v1564 = vld [vmem:[%s1529 + $0xcc] sm:$0xff]
    %v1565 = vld [vmem:[%s1529 + $0xd4] sm:$0xf]
    %v1566 = vld [vmem:[%s1529 + $0xd8] sm:$0xff]
    %v1567 = vld [vmem:[%s1529 + $0xe0] sm:$0xf]
    %v1568 = vld [vmem:[%s1529 + $0xe4] sm:$0xff]
    %v1569 = vld [vmem:[%s1529 + $0xec] sm:$0xf]
    %v1570 = vld [vmem:[%s1529 + $0xf0] sm:$0xff]
    %v1571 = vld [vmem:[%s1529 + $0xf8] sm:$0xf]
    %v1572 = vld [vmem:[%s1529 + $0xfc] sm:$0xff]
    %v1573 = vld [vmem:[%s1529 + $0x104] sm:$0xf]
    %v1574 = vld [vmem:[%s1529 + $0x108] sm:$0xff]
    %v1575 = vld [vmem:[%s1529 + $0x110] sm:$0xf]
    %v1576 = vld [vmem:[%s1529 + $0x114] sm:$0xff]
    %v1577 = vld [vmem:[%s1529 + $0x11c] sm:$0xf]
    %vm1578 = vsmask.f32 6400
    %v1579 = vrot.slane %v261, 1
    %v1580 = vrot.slane %v263, 2
    %v1581 = vor.u32 %v1579, %v1580
    %v1582 = vrot.slane %v284, 1
    %v1583 = vrot.slane %v268, 2
    %v1584 = vor.u32 %v1582, %v1583
    %v1585 = vsel %vm1578, %v1581, %v1584
    %v1586 = vrot.slane %v273, 1
    %v1587 = vrot.slane %v275, 2
    %v1588 = vor.u32 %v1586, %v1587
    %v1589 = vrot.slane %v292, 1
    %v1590 = vrot.slane %v280, 2
    %v1591 = vor.u32 %v1589, %v1590
    %v1592 = vsel %vm1578, %v1588, %v1591
    %v1593 = vrot.slane %v300, 1
    %v1594 = vrot.slane %v288, 2
    %v1595 = vor.u32 %v1593, %v1594
    %v1596 = vsel %vm1578, %v1584, %v1595
    %v1597 = vrot.slane %v308, 1
    %v1598 = vrot.slane %v296, 2
    %v1599 = vor.u32 %v1597, %v1598
    %v1600 = vsel %vm1578, %v1591, %v1599
    %v1601 = vrot.slane %v316, 1
    %v1602 = vrot.slane %v304, 2
    %v1603 = vor.u32 %v1601, %v1602
    %v1604 = vsel %vm1578, %v1595, %v1603
    %v1605 = vrot.slane %v324, 1
    %v1606 = vrot.slane %v312, 2
    %v1607 = vor.u32 %v1605, %v1606
    %v1608 = vsel %vm1578, %v1599, %v1607
    %v1609 = vrot.slane %v332, 1
    %v1610 = vrot.slane %v320, 2
    %v1611 = vor.u32 %v1609, %v1610
    %v1612 = vsel %vm1578, %v1603, %v1611
    %v1613 = vrot.slane %v335, 1
    %v1614 = vrot.slane %v328, 2
    %v1615 = vor.u32 %v1613, %v1614
    %v1616 = vsel %vm1578, %v1607, %v1615
    %v1670 = vunpack.c.l.b16 %v1530
    %v1671 = vunpack.c.h.b16 %v1530
    %v1672 = vunpack.c.l.b16 %v1531
    %v1673 = vunpack.c.l.b16 %v1532
    %v1674 = vunpack.c.h.b16 %v1532
    %v1675 = vunpack.c.l.b16 %v1533
    %v1676 = vunpack.c.l.b16 %v1534
    %v1677 = vunpack.c.h.b16 %v1534
    %v1678 = vunpack.c.l.b16 %v1535
    %v1679 = vunpack.c.l.b16 %v1536
    %v1680 = vunpack.c.h.b16 %v1536
    %v1681 = vunpack.c.l.b16 %v1537
    %v1682 = vunpack.c.l.b16 %v1538
    %v1683 = vunpack.c.h.b16 %v1538
    %v1684 = vunpack.c.l.b16 %v1539
    %v1685 = vunpack.c.l.b16 %v1540
    %v1686 = vunpack.c.h.b16 %v1540
    %v1687 = vunpack.c.l.b16 %v1541
    %v1688 = vunpack.c.l.b16 %v1542
    %v1689 = vunpack.c.h.b16 %v1542
    %v1690 = vunpack.c.l.b16 %v1543
    %v1691 = vunpack.c.l.b16 %v1544
    %v1692 = vunpack.c.h.b16 %v1544
    %v1693 = vunpack.c.l.b16 %v1545
    %v1694 = vunpack.c.l.b16 %v1546
    %v1695 = vunpack.c.h.b16 %v1546
    %v1696 = vunpack.c.l.b16 %v1547
    %v1697 = vunpack.c.l.b16 %v1548
    %v1698 = vunpack.c.h.b16 %v1548
    %v1699 = vunpack.c.l.b16 %v1549
    %v1700 = vunpack.c.l.b16 %v1550
    %v1701 = vunpack.c.h.b16 %v1550
    %v1702 = vunpack.c.l.b16 %v1551
    %v1703 = vunpack.c.l.b16 %v1552
    %v1704 = vunpack.c.h.b16 %v1552
    %v1705 = vunpack.c.l.b16 %v1553
    %v1706 = vunpack.c.l.b16 %v1554
    %v1707 = vunpack.c.h.b16 %v1554
    %v1708 = vunpack.c.l.b16 %v1555
    %v1709 = vunpack.c.l.b16 %v1556
    %v1710 = vunpack.c.h.b16 %v1556
    %v1711 = vunpack.c.l.b16 %v1557
    %v1712 = vunpack.c.l.b16 %v1558
    %v1713 = vunpack.c.h.b16 %v1558
    %v1714 = vunpack.c.l.b16 %v1559
    %v1715 = vunpack.c.l.b16 %v1560
    %v1716 = vunpack.c.h.b16 %v1560
    %v1717 = vunpack.c.l.b16 %v1561
    %v1718 = vunpack.c.l.b16 %v1562
    %v1719 = vunpack.c.h.b16 %v1562
    %v1720 = vunpack.c.l.b16 %v1563
    %v1721 = vunpack.c.l.b16 %v1564
    %v1722 = vunpack.c.h.b16 %v1564
    %v1723 = vunpack.c.l.b16 %v1565
    %v1724 = vunpack.c.l.b16 %v1566
    %v1725 = vunpack.c.h.b16 %v1566
    %v1726 = vunpack.c.l.b16 %v1567
    %v1727 = vunpack.c.l.b16 %v1568
    %v1728 = vunpack.c.h.b16 %v1568
    %v1729 = vunpack.c.l.b16 %v1569
    %v1730 = vunpack.c.l.b16 %v1570
    %v1731 = vunpack.c.h.b16 %v1570
    %v1732 = vunpack.c.l.b16 %v1571
    %v1733 = vunpack.c.l.b16 %v1572
    %v1734 = vunpack.c.h.b16 %v1572
    %v1735 = vunpack.c.l.b16 %v1573
    %v1736 = vunpack.c.l.b16 %v1574
    %v1737 = vunpack.c.h.b16 %v1574
    %v1738 = vunpack.c.l.b16 %v1575
    %v1739 = vunpack.c.l.b16 %v1576
    %v1740 = vunpack.c.h.b16 %v1576
    %v1741 = vunpack.c.l.b16 %v1577
    %v1742 = vpack.c.b16 %v1673, %v1670
    %v1743 = vpack.c.b16 %v1674, %v1671
    %v1744 = vpack.c.b16 %v1675, %v1672
    %v1745 = vpack.c.b16 %v1679, %v1676
    %v1746 = vpack.c.b16 %v1680, %v1677
    %v1747 = vpack.c.b16 %v1681, %v1678
    %v1748 = vpack.c.b16 %v1685, %v1682
    %v1749 = vpack.c.b16 %v1686, %v1683
    %v1750 = vpack.c.b16 %v1687, %v1684
    %v1751 = vpack.c.b16 %v1691, %v1688
    %v1752 = vpack.c.b16 %v1692, %v1689
    %v1753 = vpack.c.b16 %v1693, %v1690
    %v1754 = vpack.c.b16 %v1697, %v1694
    %v1755 = vpack.c.b16 %v1698, %v1695
    %v1756 = vpack.c.b16 %v1699, %v1696
    %v1757 = vpack.c.b16 %v1703, %v1700
    %v1758 = vpack.c.b16 %v1704, %v1701
    %v1759 = vpack.c.b16 %v1705, %v1702
    %v1760 = vpack.c.b16 %v1709, %v1706
    %v1761 = vpack.c.b16 %v1710, %v1707
    %v1762 = vpack.c.b16 %v1711, %v1708
    %v1763 = vpack.c.b16 %v1715, %v1712
    %v1764 = vpack.c.b16 %v1716, %v1713
    %v1765 = vpack.c.b16 %v1717, %v1714
    %v1766 = vpack.c.b16 %v1721, %v1718
    %v1767 = vpack.c.b16 %v1722, %v1719
    %v1768 = vpack.c.b16 %v1723, %v1720
    %v1769 = vpack.c.b16 %v1727, %v1724
    %v1770 = vpack.c.b16 %v1728, %v1725
    %v1771 = vpack.c.b16 %v1729, %v1726
    %v1772 = vpack.c.b16 %v1733, %v1730
    %v1773 = vpack.c.b16 %v1734, %v1731
    %v1774 = vpack.c.b16 %v1735, %v1732
    %v1775 = vpack.c.b16 %v1739, %v1736
    %v1776 = vpack.c.b16 %v1740, %v1737
    %v1777 = vpack.c.b16 %v1741, %v1738
    %v1815 = vsel %vm535, %v1592, 0
    %v1818 = vsel %vm535, %v1600, 0
    %v1821 = vsel %vm535, %v1608, 0
    %v1824 = vsel %vm535, %v1616, 0
    %v1827 = vsel %vm535, %v1615, 0
    %1829 = vmatprep.subr.bf16.mxu0 %v1764
    %1830 = vmatpush1.bf16.msra.mxu0 %v1763
    %1831 = vmatprep.subr.bf16.mxu0 %v1761
    %1832 = vmatpush1.bf16.msra.mxu0 %v1760
    %1833 = vmatprep.subr.bf16.mxu0 %v1758
    %1834 = vmatpush1.bf16.msra.mxu0 %v1757
    %1835 = vmatprep.subr.bf16.mxu0 %v1755
    %1836 = vmatpush1.bf16.msra.mxu0 %v1754
    %1837 = vmatprep.subr.bf16.mxu0 %v1752
    %1838 = vmatpush1.bf16.msra.mxu0 %v1751
    %1839 = vmatprep.subr.bf16.mxu0 %v1749
    %1840 = vmatpush1.bf16.msra.mxu0 %v1748
    %1841 = vmatprep.subr.bf16.mxu0 %v1746
    %1842 = vmatpush1.bf16.msra.mxu0 %v1745
    %1843 = vmatprep.subr.bf16.mxu0 %v1743
    %1844 = vmatpush1.bf16.msra.mxu0 %v1742
    %1845 = vmatprep.subr.bf16.mxu0 0
    %1846 = vmatpush2.bf16.msra.mxu0 0
    %1847 = vmatprep.subr.bf16.mxu0 0
    %1848 = vmatpush2.bf16.msra.mxu0 0
    %1849 = vmatprep.subr.bf16.mxu0 0
    %1850 = vmatpush2.bf16.msra.mxu0 0
    %1851 = vmatprep.subr.bf16.mxu0 0
    %1852 = vmatpush2.bf16.msra.mxu0 0
    %1853 = vmatprep.subr.bf16.mxu0 %v1776
    %1854 = vmatpush2.bf16.msra.mxu0 %v1775
    %1855 = vmatprep.subr.bf16.mxu0 %v1773
    %1856 = vmatpush2.bf16.msra.mxu0 %v1772
    %1857 = vmatprep.subr.bf16.mxu0 %v1770
    %1858 = vmatpush2.bf16.msra.mxu0 %v1769
    %1859 = vmatprep.subr.bf16.mxu0 %v1767
    %1860 = vmatpush2.bf16.msra.mxu0 %v1766
    %1861 = vmatprep.mubr.bf16.mxu0 %v1815
    %1862 = vmatmul.mubr.bf16.gmra.mxu0 %v1585
    %v1863 = vpop.f32.mrf.mxu0
    %v1864 = vadd.f32 0.0, %v1863
    %v1865 = vpop.f32.mrf.mxu0
    %v1866 = vadd.f32 0.0, %v1865
    %v1867 = vpop.f32.mrf.mxu0
    %v1868 = vadd.f32 0.0, %v1867
    %v1869 = vpop.f32.mrf.mxu0
    %v1870 = vadd.f32 0.0, %v1869
    %1871 = vmatprep.mubr.bf16.mxu0 %v1818
    %1872 = vmatmul.mubr.bf16.gmra.mxu0 %v1596
    %v1873 = vpop.f32.mrf.mxu0
    %v1874 = vadd.f32 0.0, %v1873
    %v1875 = vpop.f32.mrf.mxu0
    %v1876 = vadd.f32 0.0, %v1875
    %v1877 = vpop.f32.mrf.mxu0
    %v1878 = vadd.f32 0.0, %v1877
    %v1879 = vpop.f32.mrf.mxu0
    %v1880 = vadd.f32 0.0, %v1879
    %1881 = vmatprep.mubr.bf16.mxu0 %v1821
    %1882 = vmatmul.mubr.bf16.gmra.mxu0 %v1604
    %v1883 = vpop.f32.mrf.mxu0
    %v1884 = vadd.f32 0.0, %v1883
    %v1885 = vpop.f32.mrf.mxu0
    %v1886 = vadd.f32 0.0, %v1885
    %v1887 = vpop.f32.mrf.mxu0
    %v1888 = vadd.f32 0.0, %v1887
    %v1889 = vpop.f32.mrf.mxu0
    %v1890 = vadd.f32 0.0, %v1889
    %1891 = vmatprep.mubr.bf16.mxu0 %v1824
    %1892 = vmatmul.mubr.bf16.gmra.mxu0 %v1612
    %v1893 = vpop.f32.mrf.mxu0
    %v1894 = vadd.f32 0.0, %v1893
    %v1895 = vpop.f32.mrf.mxu0
    %v1896 = vadd.f32 0.0, %v1895
    %v1897 = vpop.f32.mrf.mxu0
    %v1898 = vadd.f32 0.0, %v1897
    %v1899 = vpop.f32.mrf.mxu0
    %v1900 = vadd.f32 0.0, %v1899
    %1901 = vmatprep.mubr.bf16.mxu0 %v1827
    %1902 = vmatmul.mubr.bf16.gmra.mxu0 %v1611
    %v1903 = vpop.f32.mrf.mxu0
    %v1904 = vadd.f32 0.0, %v1903
    %v1905 = vpop.f32.mrf.mxu0
    %v1906 = vadd.f32 0.0, %v1905
    %v1907 = vpop.f32.mrf.mxu0
    %v1908 = vpop.f32.mrf.mxu0
    %1909 = vdwg.mxu0
    %1910 = vmatprep.subr.bf16.mxu0 0
    %1911 = vmatpush1.bf16.msra.mxu0 %v1765
    %1912 = vmatprep.subr.bf16.mxu0 0
    %1913 = vmatpush1.bf16.msra.mxu0 %v1762
    %1914 = vmatprep.subr.bf16.mxu0 0
    %1915 = vmatpush1.bf16.msra.mxu0 %v1759
    %1916 = vmatprep.subr.bf16.mxu0 0
    %1917 = vmatpush1.bf16.msra.mxu0 %v1756
    %1918 = vmatprep.subr.bf16.mxu0 0
    %1919 = vmatpush1.bf16.msra.mxu0 %v1753
    %1920 = vmatprep.subr.bf16.mxu0 0
    %1921 = vmatpush1.bf16.msra.mxu0 %v1750
    %1922 = vmatprep.subr.bf16.mxu0 0
    %1923 = vmatpush1.bf16.msra.mxu0 %v1747
    %1924 = vmatprep.subr.bf16.mxu0 0
    %1925 = vmatpush1.bf16.msra.mxu0 %v1744
    %1926 = vmatprep.subr.bf16.mxu0 0
    %1927 = vmatpush2.bf16.msra.mxu0 0
    %1928 = vmatprep.subr.bf16.mxu0 0
    %1929 = vmatpush2.bf16.msra.mxu0 0
    %1930 = vmatprep.subr.bf16.mxu0 0
    %1931 = vmatpush2.bf16.msra.mxu0 0
    %1932 = vmatprep.subr.bf16.mxu0 0
    %1933 = vmatpush2.bf16.msra.mxu0 0
    %1934 = vmatprep.subr.bf16.mxu0 0
    %1935 = vmatpush2.bf16.msra.mxu0 %v1777
    %1936 = vmatprep.subr.bf16.mxu0 0
    %1937 = vmatpush2.bf16.msra.mxu0 %v1774
    %1938 = vmatprep.subr.bf16.mxu0 0
    %1939 = vmatpush2.bf16.msra.mxu0 %v1771
    %1940 = vmatprep.subr.bf16.mxu0 0
    %1941 = vmatpush2.bf16.msra.mxu0 %v1768
    %1942 = vmatprep.mubr.bf16.mxu0 %v1815
    %1943 = vmatmul.mubr.bf16.gmra.mxu0 %v1585
    %v1944 = vpop.f32.mrf.mxu0
    %v1945 = vadd.f32 0.0, %v1944
    %v1946 = vpop.f32.mrf.mxu0
    %v1947 = vpop.f32.mrf.mxu0
    %v1948 = vadd.f32 0.0, %v1947
    %v1949 = vpop.f32.mrf.mxu0
    %1950 = vmatprep.mubr.bf16.mxu0 %v1818
    %1951 = vmatmul.mubr.bf16.gmra.mxu0 %v1596
    %v1952 = vpop.f32.mrf.mxu0
    %v1953 = vadd.f32 0.0, %v1952
    %v1954 = vpop.f32.mrf.mxu0
    %v1955 = vpop.f32.mrf.mxu0
    %v1956 = vadd.f32 0.0, %v1955
    %v1957 = vpop.f32.mrf.mxu0
    %1958 = vmatprep.mubr.bf16.mxu0 %v1821
    %1959 = vmatmul.mubr.bf16.gmra.mxu0 %v1604
    %v1960 = vpop.f32.mrf.mxu0
    %v1961 = vadd.f32 0.0, %v1960
    %v1962 = vpop.f32.mrf.mxu0
    %v1963 = vpop.f32.mrf.mxu0
    %v1964 = vadd.f32 0.0, %v1963
    %v1965 = vpop.f32.mrf.mxu0
    %1966 = vmatprep.mubr.bf16.mxu0 %v1824
    %1967 = vmatmul.mubr.bf16.gmra.mxu0 %v1612
    %v1968 = vpop.f32.mrf.mxu0
    %v1969 = vadd.f32 0.0, %v1968
    %v1970 = vpop.f32.mrf.mxu0
    %v1971 = vpop.f32.mrf.mxu0
    %v1972 = vadd.f32 0.0, %v1971
    %v1973 = vpop.f32.mrf.mxu0
    %1974 = vmatprep.mubr.bf16.mxu0 %v1827
    %1975 = vmatmul.mubr.bf16.gmra.mxu0 %v1611
    %v1976 = vpop.f32.mrf.mxu0
    %v1977 = vadd.f32 0.0, %v1976
    %v1978 = vpop.f32.mrf.mxu0
    %v1979 = vpop.f32.mrf.mxu0
    %v1980 = vpop.f32.mrf.mxu0
    %1981 = vdwg.mxu0
    %v1982 = vadd.f32 %v1502, %v1864
    %v1983 = vadd.f32 %v1503, %v1866
    %v1984 = vadd.f32 %v1504, %v1945
    %v1985 = vadd.f32 %v1505, %v1868
    %v1986 = vadd.f32 %v1506, %v1870
    %v1987 = vadd.f32 %v1507, %v1948
    %v1988 = vadd.f32 %v1508, %v1874
    %v1989 = vadd.f32 %v1509, %v1876
    %v1990 = vadd.f32 %v1510, %v1953
    %v1991 = vadd.f32 %v1511, %v1878
    %v1992 = vadd.f32 %v1512, %v1880
    %v1993 = vadd.f32 %v1513, %v1956
    %v1994 = vadd.f32 %v1514, %v1884
    %v1995 = vadd.f32 %v1515, %v1886
    %v1996 = vadd.f32 %v1516, %v1961
    %v1997 = vadd.f32 %v1517, %v1888
    %v1998 = vadd.f32 %v1518, %v1890
    %v1999 = vadd.f32 %v1519, %v1964
    %v2000 = vadd.f32 %v1520, %v1894
    %v2001 = vadd.f32 %v1521, %v1896
    %v2002 = vadd.f32 %v1522, %v1969
    %v2003 = vadd.f32 %v1523, %v1898
    %v2004 = vadd.f32 %v1524, %v1900
    %v2005 = vadd.f32 %v1525, %v1972
    %v2006 = vadd.f32 %v1526, %v1904
    %v2007 = vadd.f32 %v1527, %v1906
    %v2008 = vadd.f32 %v1528, %v1977
    %s2009 = scalar_lea.vmem %s2, 1152
    %v2010 = vld [vmem:[%s2009] sm:$0xff]
    %v2011 = vld [vmem:[%s2009 + $0x8] sm:$0xf]
    %v2012 = vld [vmem:[%s2009 + $0xc] sm:$0xff]
    %v2013 = vld [vmem:[%s2009 + $0x14] sm:$0xf]
    %v2014 = vld [vmem:[%s2009 + $0x18] sm:$0xff]
    %v2015 = vld [vmem:[%s2009 + $0x20] sm:$0xf]
    %v2016 = vld [vmem:[%s2009 + $0x24] sm:$0xff]
    %v2017 = vld [vmem:[%s2009 + $0x2c] sm:$0xf]
    %v2018 = vld [vmem:[%s2009 + $0x30] sm:$0xff]
    %v2019 = vld [vmem:[%s2009 + $0x38] sm:$0xf]
    %v2020 = vld [vmem:[%s2009 + $0x3c] sm:$0xff]
    %v2021 = vld [vmem:[%s2009 + $0x44] sm:$0xf]
    %v2022 = vld [vmem:[%s2009 + $0x48] sm:$0xff]
    %v2023 = vld [vmem:[%s2009 + $0x50] sm:$0xf]
    %v2024 = vld [vmem:[%s2009 + $0x54] sm:$0xff]
    %v2025 = vld [vmem:[%s2009 + $0x5c] sm:$0xf]
    %v2026 = vld [vmem:[%s2009 + $0x60] sm:$0xff]
    %v2027 = vld [vmem:[%s2009 + $0x68] sm:$0xf]
    %v2028 = vld [vmem:[%s2009 + $0x6c] sm:$0xff]
    %v2029 = vld [vmem:[%s2009 + $0x74] sm:$0xf]
    %v2030 = vld [vmem:[%s2009 + $0x78] sm:$0xff]
    %v2031 = vld [vmem:[%s2009 + $0x80] sm:$0xf]
    %v2032 = vld [vmem:[%s2009 + $0x84] sm:$0xff]
    %v2033 = vld [vmem:[%s2009 + $0x8c] sm:$0xf]
    %v2034 = vld [vmem:[%s2009 + $0x90] sm:$0xff]
    %v2035 = vld [vmem:[%s2009 + $0x98] sm:$0xf]
    %v2036 = vld [vmem:[%s2009 + $0x9c] sm:$0xff]
    %v2037 = vld [vmem:[%s2009 + $0xa4] sm:$0xf]
    %v2038 = vld [vmem:[%s2009 + $0xa8] sm:$0xff]
    %v2039 = vld [vmem:[%s2009 + $0xb0] sm:$0xf]
    %v2040 = vld [vmem:[%s2009 + $0xb4] sm:$0xff]
    %v2041 = vld [vmem:[%s2009 + $0xbc] sm:$0xf]
    %v2042 = vld [vmem:[%s2009 + $0xc0] sm:$0xff]
    %v2043 = vld [vmem:[%s2009 + $0xc8] sm:$0xf]
    %v2044 = vld [vmem:[%s2009 + $0xcc] sm:$0xff]
    %v2045 = vld [vmem:[%s2009 + $0xd4] sm:$0xf]
    %v2046 = vld [vmem:[%s2009 + $0xd8] sm:$0xff]
    %v2047 = vld [vmem:[%s2009 + $0xe0] sm:$0xf]
    %v2048 = vld [vmem:[%s2009 + $0xe4] sm:$0xff]
    %v2049 = vld [vmem:[%s2009 + $0xec] sm:$0xf]
    %v2050 = vld [vmem:[%s2009 + $0xf0] sm:$0xff]
    %v2051 = vld [vmem:[%s2009 + $0xf8] sm:$0xf]
    %v2052 = vld [vmem:[%s2009 + $0xfc] sm:$0xff]
    %v2053 = vld [vmem:[%s2009 + $0x104] sm:$0xf]
    %v2054 = vld [vmem:[%s2009 + $0x108] sm:$0xff]
    %v2055 = vld [vmem:[%s2009 + $0x110] sm:$0xf]
    %v2056 = vld [vmem:[%s2009 + $0x114] sm:$0xff]
    %v2057 = vld [vmem:[%s2009 + $0x11c] sm:$0xf]
    %vm2058 = vcmask 1045504
    %v2059 = vrot.slane %v152, 2
    %v2060 = vrot.slane %v154, 2
    %v2061 = vsel %vm2058, %v2059, %v2060
    %v2062 = vrot.slane %v153, 2
    %v2063 = vrot.slane %v155, 2
    %v2064 = vsel %vm2058, %v2062, %v2063
    %v2065 = vrot.slane %v156, 2
    %v2066 = vsel %vm2058, %v2060, %v2065
    %v2067 = vrot.slane %v157, 2
    %v2068 = vsel %vm2058, %v2063, %v2067
    %v2069 = vrot.slane %v158, 2
    %v2070 = vsel %vm2058, %v2065, %v2069
    %v2071 = vrot.slane %v159, 2
    %v2072 = vsel %vm2058, %v2067, %v2071
    %v2073 = vrot.slane %v160, 2
    %v2074 = vsel %vm2058, %v2069, %v2073
    %v2075 = vrot.slane %v161, 2
    %v2076 = vsel %vm2058, %v2071, %v2075
    %v2130 = vunpack.c.l.b16 %v2010
    %v2131 = vunpack.c.h.b16 %v2010
    %v2132 = vunpack.c.l.b16 %v2011
    %v2133 = vunpack.c.l.b16 %v2012
    %v2134 = vunpack.c.h.b16 %v2012
    %v2135 = vunpack.c.l.b16 %v2013
    %v2136 = vunpack.c.l.b16 %v2014
    %v2137 = vunpack.c.h.b16 %v2014
    %v2138 = vunpack.c.l.b16 %v2015
    %v2139 = vunpack.c.l.b16 %v2016
    %v2140 = vunpack.c.h.b16 %v2016
    %v2141 = vunpack.c.l.b16 %v2017
    %v2142 = vunpack.c.l.b16 %v2018
    %v2143 = vunpack.c.h.b16 %v2018
    %v2144 = vunpack.c.l.b16 %v2019
    %v2145 = vunpack.c.l.b16 %v2020
    %v2146 = vunpack.c.h.b16 %v2020
    %v2147 = vunpack.c.l.b16 %v2021
    %v2148 = vunpack.c.l.b16 %v2022
    %v2149 = vunpack.c.h.b16 %v2022
    %v2150 = vunpack.c.l.b16 %v2023
    %v2151 = vunpack.c.l.b16 %v2024
    %v2152 = vunpack.c.h.b16 %v2024
    %v2153 = vunpack.c.l.b16 %v2025
    %v2154 = vunpack.c.l.b16 %v2026
    %v2155 = vunpack.c.h.b16 %v2026
    %v2156 = vunpack.c.l.b16 %v2027
    %v2157 = vunpack.c.l.b16 %v2028
    %v2158 = vunpack.c.h.b16 %v2028
    %v2159 = vunpack.c.l.b16 %v2029
    %v2160 = vunpack.c.l.b16 %v2030
    %v2161 = vunpack.c.h.b16 %v2030
    %v2162 = vunpack.c.l.b16 %v2031
    %v2163 = vunpack.c.l.b16 %v2032
    %v2164 = vunpack.c.h.b16 %v2032
    %v2165 = vunpack.c.l.b16 %v2033
    %v2166 = vunpack.c.l.b16 %v2034
    %v2167 = vunpack.c.h.b16 %v2034
    %v2168 = vunpack.c.l.b16 %v2035
    %v2169 = vunpack.c.l.b16 %v2036
    %v2170 = vunpack.c.h.b16 %v2036
    %v2171 = vunpack.c.l.b16 %v2037
    %v2172 = vunpack.c.l.b16 %v2038
    %v2173 = vunpack.c.h.b16 %v2038
    %v2174 = vunpack.c.l.b16 %v2039
    %v2175 = vunpack.c.l.b16 %v2040
    %v2176 = vunpack.c.h.b16 %v2040
    %v2177 = vunpack.c.l.b16 %v2041
    %v2178 = vunpack.c.l.b16 %v2042
    %v2179 = vunpack.c.h.b16 %v2042
    %v2180 = vunpack.c.l.b16 %v2043
    %v2181 = vunpack.c.l.b16 %v2044
    %v2182 = vunpack.c.h.b16 %v2044
    %v2183 = vunpack.c.l.b16 %v2045
    %v2184 = vunpack.c.l.b16 %v2046
    %v2185 = vunpack.c.h.b16 %v2046
    %v2186 = vunpack.c.l.b16 %v2047
    %v2187 = vunpack.c.l.b16 %v2048
    %v2188 = vunpack.c.h.b16 %v2048
    %v2189 = vunpack.c.l.b16 %v2049
    %v2190 = vunpack.c.l.b16 %v2050
    %v2191 = vunpack.c.h.b16 %v2050
    %v2192 = vunpack.c.l.b16 %v2051
    %v2193 = vunpack.c.l.b16 %v2052
    %v2194 = vunpack.c.h.b16 %v2052
    %v2195 = vunpack.c.l.b16 %v2053
    %v2196 = vunpack.c.l.b16 %v2054
    %v2197 = vunpack.c.h.b16 %v2054
    %v2198 = vunpack.c.l.b16 %v2055
    %v2199 = vunpack.c.l.b16 %v2056
    %v2200 = vunpack.c.h.b16 %v2056
    %v2201 = vunpack.c.l.b16 %v2057
    %v2202 = vpack.c.b16 %v2133, %v2130
    %v2203 = vpack.c.b16 %v2134, %v2131
    %v2204 = vpack.c.b16 %v2135, %v2132
    %v2205 = vpack.c.b16 %v2139, %v2136
    %v2206 = vpack.c.b16 %v2140, %v2137
    %v2207 = vpack.c.b16 %v2141, %v2138
    %v2208 = vpack.c.b16 %v2145, %v2142
    %v2209 = vpack.c.b16 %v2146, %v2143
    %v2210 = vpack.c.b16 %v2147, %v2144
    %v2211 = vpack.c.b16 %v2151, %v2148
    %v2212 = vpack.c.b16 %v2152, %v2149
    %v2213 = vpack.c.b16 %v2153, %v2150
    %v2214 = vpack.c.b16 %v2157, %v2154
    %v2215 = vpack.c.b16 %v2158, %v2155
    %v2216 = vpack.c.b16 %v2159, %v2156
    %v2217 = vpack.c.b16 %v2163, %v2160
    %v2218 = vpack.c.b16 %v2164, %v2161
    %v2219 = vpack.c.b16 %v2165, %v2162
    %v2220 = vpack.c.b16 %v2169, %v2166
    %v2221 = vpack.c.b16 %v2170, %v2167
    %v2222 = vpack.c.b16 %v2171, %v2168
    %v2223 = vpack.c.b16 %v2175, %v2172
    %v2224 = vpack.c.b16 %v2176, %v2173
    %v2225 = vpack.c.b16 %v2177, %v2174
    %v2226 = vpack.c.b16 %v2181, %v2178
    %v2227 = vpack.c.b16 %v2182, %v2179
    %v2228 = vpack.c.b16 %v2183, %v2180
    %v2229 = vpack.c.b16 %v2187, %v2184
    %v2230 = vpack.c.b16 %v2188, %v2185
    %v2231 = vpack.c.b16 %v2189, %v2186
    %v2232 = vpack.c.b16 %v2193, %v2190
    %v2233 = vpack.c.b16 %v2194, %v2191
    %v2234 = vpack.c.b16 %v2195, %v2192
    %v2235 = vpack.c.b16 %v2199, %v2196
    %v2236 = vpack.c.b16 %v2200, %v2197
    %v2237 = vpack.c.b16 %v2201, %v2198
    %v2275 = vsel %vm535, %v2064, 0
    %v2278 = vsel %vm535, %v2068, 0
    %v2281 = vsel %vm535, %v2072, 0
    %v2284 = vsel %vm535, %v2076, 0
    %v2287 = vsel %vm535, %v2075, 0
    %2289 = vmatprep.subr.bf16.mxu0 %v2224
    %2290 = vmatpush1.bf16.msra.mxu0 %v2223
    %2291 = vmatprep.subr.bf16.mxu0 %v2221
    %2292 = vmatpush1.bf16.msra.mxu0 %v2220
    %2293 = vmatprep.subr.bf16.mxu0 %v2218
    %2294 = vmatpush1.bf16.msra.mxu0 %v2217
    %2295 = vmatprep.subr.bf16.mxu0 %v2215
    %2296 = vmatpush1.bf16.msra.mxu0 %v2214
    %2297 = vmatprep.subr.bf16.mxu0 %v2212
    %2298 = vmatpush1.bf16.msra.mxu0 %v2211
    %2299 = vmatprep.subr.bf16.mxu0 %v2209
    %2300 = vmatpush1.bf16.msra.mxu0 %v2208
    %2301 = vmatprep.subr.bf16.mxu0 %v2206
    %2302 = vmatpush1.bf16.msra.mxu0 %v2205
    %2303 = vmatprep.subr.bf16.mxu0 %v2203
    %2304 = vmatpush1.bf16.msra.mxu0 %v2202
    %2305 = vmatprep.subr.bf16.mxu0 0
    %2306 = vmatpush2.bf16.msra.mxu0 0
    %2307 = vmatprep.subr.bf16.mxu0 0
    %2308 = vmatpush2.bf16.msra.mxu0 0
    %2309 = vmatprep.subr.bf16.mxu0 0
    %2310 = vmatpush2.bf16.msra.mxu0 0
    %2311 = vmatprep.subr.bf16.mxu0 0
    %2312 = vmatpush2.bf16.msra.mxu0 0
    %2313 = vmatprep.subr.bf16.mxu0 %v2236
    %2314 = vmatpush2.bf16.msra.mxu0 %v2235
    %2315 = vmatprep.subr.bf16.mxu0 %v2233
    %2316 = vmatpush2.bf16.msra.mxu0 %v2232
    %2317 = vmatprep.subr.bf16.mxu0 %v2230
    %2318 = vmatpush2.bf16.msra.mxu0 %v2229
    %2319 = vmatprep.subr.bf16.mxu0 %v2227
    %2320 = vmatpush2.bf16.msra.mxu0 %v2226
    %2321 = vmatprep.mubr.bf16.mxu0 %v2275
    %2322 = vmatmul.mubr.bf16.gmra.mxu0 %v2061
    %v2323 = vpop.f32.mrf.mxu0
    %v2324 = vadd.f32 0.0, %v2323
    %v2325 = vpop.f32.mrf.mxu0
    %v2326 = vadd.f32 0.0, %v2325
    %v2327 = vpop.f32.mrf.mxu0
    %v2328 = vadd.f32 0.0, %v2327
    %v2329 = vpop.f32.mrf.mxu0
    %v2330 = vadd.f32 0.0, %v2329
    %2331 = vmatprep.mubr.bf16.mxu0 %v2278
    %2332 = vmatmul.mubr.bf16.gmra.mxu0 %v2066
    %v2333 = vpop.f32.mrf.mxu0
    %v2334 = vadd.f32 0.0, %v2333
    %v2335 = vpop.f32.mrf.mxu0
    %v2336 = vadd.f32 0.0, %v2335
    %v2337 = vpop.f32.mrf.mxu0
    %v2338 = vadd.f32 0.0, %v2337
    %v2339 = vpop.f32.mrf.mxu0
    %v2340 = vadd.f32 0.0, %v2339
    %2341 = vmatprep.mubr.bf16.mxu0 %v2281
    %2342 = vmatmul.mubr.bf16.gmra.mxu0 %v2070
    %v2343 = vpop.f32.mrf.mxu0
    %v2344 = vadd.f32 0.0, %v2343
    %v2345 = vpop.f32.mrf.mxu0
    %v2346 = vadd.f32 0.0, %v2345
    %v2347 = vpop.f32.mrf.mxu0
    %v2348 = vadd.f32 0.0, %v2347
    %v2349 = vpop.f32.mrf.mxu0
    %v2350 = vadd.f32 0.0, %v2349
    %2351 = vmatprep.mubr.bf16.mxu0 %v2284
    %2352 = vmatmul.mubr.bf16.gmra.mxu0 %v2074
    %v2353 = vpop.f32.mrf.mxu0
    %v2354 = vadd.f32 0.0, %v2353
    %v2355 = vpop.f32.mrf.mxu0
    %v2356 = vadd.f32 0.0, %v2355
    %v2357 = vpop.f32.mrf.mxu0
    %v2358 = vadd.f32 0.0, %v2357
    %v2359 = vpop.f32.mrf.mxu0
    %v2360 = vadd.f32 0.0, %v2359
    %2361 = vmatprep.mubr.bf16.mxu0 %v2287
    %2362 = vmatmul.mubr.bf16.gmra.mxu0 %v2073
    %v2363 = vpop.f32.mrf.mxu0
    %v2364 = vadd.f32 0.0, %v2363
    %v2365 = vpop.f32.mrf.mxu0
    %v2366 = vadd.f32 0.0, %v2365
    %v2367 = vpop.f32.mrf.mxu0
    %v2368 = vpop.f32.mrf.mxu0
    %2369 = vdwg.mxu0
    %2370 = vmatprep.subr.bf16.mxu0 0
    %2371 = vmatpush1.bf16.msra.mxu0 %v2225
    %2372 = vmatprep.subr.bf16.mxu0 0
    %2373 = vmatpush1.bf16.msra.mxu0 %v2222
    %2374 = vmatprep.subr.bf16.mxu0 0
    %2375 = vmatpush1.bf16.msra.mxu0 %v2219
    %2376 = vmatprep.subr.bf16.mxu0 0
    %2377 = vmatpush1.bf16.msra.mxu0 %v2216
    %2378 = vmatprep.subr.bf16.mxu0 0
    %2379 = vmatpush1.bf16.msra.mxu0 %v2213
    %2380 = vmatprep.subr.bf16.mxu0 0
    %2381 = vmatpush1.bf16.msra.mxu0 %v2210
    %2382 = vmatprep.subr.bf16.mxu0 0
    %2383 = vmatpush1.bf16.msra.mxu0 %v2207
    %2384 = vmatprep.subr.bf16.mxu0 0
    %2385 = vmatpush1.bf16.msra.mxu0 %v2204
    %2386 = vmatprep.subr.bf16.mxu0 0
    %2387 = vmatpush2.bf16.msra.mxu0 0
    %2388 = vmatprep.subr.bf16.mxu0 0
    %2389 = vmatpush2.bf16.msra.mxu0 0
    %2390 = vmatprep.subr.bf16.mxu0 0
    %2391 = vmatpush2.bf16.msra.mxu0 0
    %2392 = vmatprep.subr.bf16.mxu0 0
    %2393 = vmatpush2.bf16.msra.mxu0 0
    %2394 = vmatprep.subr.bf16.mxu0 0
    %2395 = vmatpush2.bf16.msra.mxu0 %v2237
    %2396 = vmatprep.subr.bf16.mxu0 0
    %2397 = vmatpush2.bf16.msra.mxu0 %v2234
    %2398 = vmatprep.subr.bf16.mxu0 0
    %2399 = vmatpush2.bf16.msra.mxu0 %v2231
    %2400 = vmatprep.subr.bf16.mxu0 0
    %2401 = vmatpush2.bf16.msra.mxu0 %v2228
    %2402 = vmatprep.mubr.bf16.mxu0 %v2275
    %2403 = vmatmul.mubr.bf16.gmra.mxu0 %v2061
    %v2404 = vpop.f32.mrf.mxu0
    %v2405 = vadd.f32 0.0, %v2404
    %v2406 = vpop.f32.mrf.mxu0
    %v2407 = vpop.f32.mrf.mxu0
    %v2408 = vadd.f32 0.0, %v2407
    %v2409 = vpop.f32.mrf.mxu0
    %2410 = vmatprep.mubr.bf16.mxu0 %v2278
    %2411 = vmatmul.mubr.bf16.gmra.mxu0 %v2066
    %v2412 = vpop.f32.mrf.mxu0
    %v2413 = vadd.f32 0.0, %v2412
    %v2414 = vpop.f32.mrf.mxu0
    %v2415 = vpop.f32.mrf.mxu0
    %v2416 = vadd.f32 0.0, %v2415
    %v2417 = vpop.f32.mrf.mxu0
    %2418 = vmatprep.mubr.bf16.mxu0 %v2281
    %2419 = vmatmul.mubr.bf16.gmra.mxu0 %v2070
    %v2420 = vpop.f32.mrf.mxu0
    %v2421 = vadd.f32 0.0, %v2420
    %v2422 = vpop.f32.mrf.mxu0
    %v2423 = vpop.f32.mrf.mxu0
    %v2424 = vadd.f32 0.0, %v2423
    %v2425 = vpop.f32.mrf.mxu0
    %2426 = vmatprep.mubr.bf16.mxu0 %v2284
    %2427 = vmatmul.mubr.bf16.gmra.mxu0 %v2074
    %v2428 = vpop.f32.mrf.mxu0
    %v2429 = vadd.f32 0.0, %v2428
    %v2430 = vpop.f32.mrf.mxu0
    %v2431 = vpop.f32.mrf.mxu0
    %v2432 = vadd.f32 0.0, %v2431
    %v2433 = vpop.f32.mrf.mxu0
    %2434 = vmatprep.mubr.bf16.mxu0 %v2287
    %2435 = vmatmul.mubr.bf16.gmra.mxu0 %v2073
    %v2436 = vpop.f32.mrf.mxu0
    %v2437 = vadd.f32 0.0, %v2436
    %v2438 = vpop.f32.mrf.mxu0
    %v2439 = vpop.f32.mrf.mxu0
    %v2440 = vpop.f32.mrf.mxu0
    %2441 = vdwg.mxu0
    %v2442 = vadd.f32 %v1982, %v2324
    %v2443 = vadd.f32 %v1983, %v2326
    %v2444 = vadd.f32 %v1984, %v2405
    %v2445 = vadd.f32 %v1985, %v2328
    %v2446 = vadd.f32 %v1986, %v2330
    %v2447 = vadd.f32 %v1987, %v2408
    %v2448 = vadd.f32 %v1988, %v2334
    %v2449 = vadd.f32 %v1989, %v2336
    %v2450 = vadd.f32 %v1990, %v2413
    %v2451 = vadd.f32 %v1991, %v2338
    %v2452 = vadd.f32 %v1992, %v2340
    %v2453 = vadd.f32 %v1993, %v2416
    %v2454 = vadd.f32 %v1994, %v2344
    %v2455 = vadd.f32 %v1995, %v2346
    %v2456 = vadd.f32 %v1996, %v2421
    %v2457 = vadd.f32 %v1997, %v2348
    %v2458 = vadd.f32 %v1998, %v2350
    %v2459 = vadd.f32 %v1999, %v2424
    %v2460 = vadd.f32 %v2000, %v2354
    %v2461 = vadd.f32 %v2001, %v2356
    %v2462 = vadd.f32 %v2002, %v2429
    %v2463 = vadd.f32 %v2003, %v2358
    %v2464 = vadd.f32 %v2004, %v2360
    %v2465 = vadd.f32 %v2005, %v2432
    %v2466 = vadd.f32 %v2006, %v2364
    %v2467 = vadd.f32 %v2007, %v2366
    %v2468 = vadd.f32 %v2008, %v2437
    %v2469 = vld [vmem:[%s3] sm:$0x7]
    %v2471 = vlaneseq
    %v2472 = vshrl.u32 %v2471, 7
    %v2473 = vsub.s32 0, %v2472
    %v2474 = vrot.slane %v2469, %v2473
    %v2475 = vlaneseq
    %v2476 = vshrl.u32 %v2475, 7
    %v2477 = vsub.s32 1, %v2476
    %v2478 = vrot.slane %v2469, %v2477
    %v2479 = vlaneseq
    %v2480 = vshrl.u32 %v2479, 7
    %v2481 = vsub.s32 2, %v2480
    %v2482 = vrot.slane %v2469, %v2481
    %v2486 = vadd.f32 %v2442, %v2474
    %v2487 = vadd.f32 %v2443, %v2478
    %v2488 = vadd.f32 %v2444, %v2482
    %v2489 = vadd.f32 %v2445, %v2474
    %v2490 = vadd.f32 %v2446, %v2478
    %v2491 = vadd.f32 %v2447, %v2482
    %v2492 = vadd.f32 %v2448, %v2474
    %v2493 = vadd.f32 %v2449, %v2478
    %v2494 = vadd.f32 %v2450, %v2482
    %v2495 = vadd.f32 %v2451, %v2474
    %v2496 = vadd.f32 %v2452, %v2478
    %v2497 = vadd.f32 %v2453, %v2482
    %v2498 = vadd.f32 %v2454, %v2474
    %v2499 = vadd.f32 %v2455, %v2478
    %v2500 = vadd.f32 %v2456, %v2482
    %v2501 = vadd.f32 %v2457, %v2474
    %v2502 = vadd.f32 %v2458, %v2478
    %v2503 = vadd.f32 %v2459, %v2482
    %v2504 = vadd.f32 %v2460, %v2474
    %v2505 = vadd.f32 %v2461, %v2478
    %v2506 = vadd.f32 %v2462, %v2482
    %v2507 = vadd.f32 %v2463, %v2474
    %v2508 = vadd.f32 %v2464, %v2478
    %v2509 = vadd.f32 %v2465, %v2482
    %v2510 = vadd.f32 %v2466, %v2474
    %v2511 = vadd.f32 %v2467, %v2478
    %v2512 = vadd.f32 %v2468, %v2482
    %v2513 = vmax.f32 %v2486, 0.0
    %v2514 = vmax.f32 %v2487, 0.0
    %v2515 = vmax.f32 %v2488, 0.0
    %v2516 = vmax.f32 %v2489, 0.0
    %v2517 = vmax.f32 %v2490, 0.0
    %v2518 = vmax.f32 %v2491, 0.0
    %v2519 = vmax.f32 %v2492, 0.0
    %v2520 = vmax.f32 %v2493, 0.0
    %v2521 = vmax.f32 %v2494, 0.0
    %v2522 = vmax.f32 %v2495, 0.0
    %v2523 = vmax.f32 %v2496, 0.0
    %v2524 = vmax.f32 %v2497, 0.0
    %v2525 = vmax.f32 %v2498, 0.0
    %v2526 = vmax.f32 %v2499, 0.0
    %v2527 = vmax.f32 %v2500, 0.0
    %v2528 = vmax.f32 %v2501, 0.0
    %v2529 = vmax.f32 %v2502, 0.0
    %v2530 = vmax.f32 %v2503, 0.0
    %v2531 = vmax.f32 %v2504, 0.0
    %v2532 = vmax.f32 %v2505, 0.0
    %v2533 = vmax.f32 %v2506, 0.0
    %v2534 = vmax.f32 %v2507, 0.0
    %v2535 = vmax.f32 %v2508, 0.0
    %v2536 = vmax.f32 %v2509, 0.0
    %v2537 = vmax.f32 %v2510, 0.0
    %v2538 = vmax.f32 %v2511, 0.0
    %v2539 = vmax.f32 %v2512, 0.0
    %vm2567 = vcmask 1046528
    %v2568 = vrot.slane %v2513, 1
    %v2569 = vrot.slane %v2516, 1
    %v2570 = vsel %vm2567, %v2568, %v2569
    %v2571 = vrot.slane %v2514, 1
    %v2572 = vrot.slane %v2517, 1
    %v2573 = vsel %vm2567, %v2571, %v2572
    %v2574 = vrot.slane %v2515, 1
    %v2575 = vrot.slane %v2518, 1
    %v2576 = vsel %vm2567, %v2574, %v2575
    %v2577 = vrot.slane %v2519, 1
    %v2578 = vsel %vm2567, %v2569, %v2577
    %v2579 = vrot.slane %v2520, 1
    %v2580 = vsel %vm2567, %v2572, %v2579
    %v2581 = vrot.slane %v2521, 1
    %v2582 = vsel %vm2567, %v2575, %v2581
    %v2583 = vrot.slane %v2522, 1
    %v2584 = vsel %vm2567, %v2577, %v2583
    %v2585 = vrot.slane %v2523, 1
    %v2586 = vsel %vm2567, %v2579, %v2585
    %v2587 = vrot.slane %v2524, 1
    %v2588 = vsel %vm2567, %v2581, %v2587
    %v2589 = vrot.slane %v2525, 1
    %v2590 = vsel %vm2567, %v2583, %v2589
    %v2591 = vrot.slane %v2526, 1
    %v2592 = vsel %vm2567, %v2585, %v2591
    %v2593 = vrot.slane %v2527, 1
    %v2594 = vsel %vm2567, %v2587, %v2593
    %v2595 = vrot.slane %v2528, 1
    %v2596 = vsel %vm2567, %v2589, %v2595
    %v2597 = vrot.slane %v2529, 1
    %v2598 = vsel %vm2567, %v2591, %v2597
    %v2599 = vrot.slane %v2530, 1
    %v2600 = vsel %vm2567, %v2593, %v2599
    %v2601 = vrot.slane %v2531, 1
    %v2602 = vsel %vm2567, %v2595, %v2601
    %v2603 = vrot.slane %v2532, 1
    %v2604 = vsel %vm2567, %v2597, %v2603
    %v2605 = vrot.slane %v2533, 1
    %v2606 = vsel %vm2567, %v2599, %v2605
    %v2607 = vrot.slane %v2534, 1
    %v2608 = vsel %vm2567, %v2601, %v2607
    %v2609 = vrot.slane %v2535, 1
    %v2610 = vsel %vm2567, %v2603, %v2609
    %v2611 = vrot.slane %v2536, 1
    %v2612 = vsel %vm2567, %v2605, %v2611
    %v2613 = vrot.slane %v2537, 1
    %v2614 = vsel %vm2567, %v2607, %v2613
    %v2615 = vrot.slane %v2538, 1
    %v2616 = vsel %vm2567, %v2609, %v2615
    %v2617 = vrot.slane %v2539, 1
    %v2618 = vsel %vm2567, %v2611, %v2617
    %v2643 = vmax.f32 %v2513, %v2570
    %v2644 = vmax.f32 %v2514, %v2573
    %v2645 = vmax.f32 %v2515, %v2576
    %v2646 = vmax.f32 %v2516, %v2578
    %v2647 = vmax.f32 %v2517, %v2580
    %v2648 = vmax.f32 %v2518, %v2582
    %v2649 = vmax.f32 %v2519, %v2584
    %v2650 = vmax.f32 %v2520, %v2586
    %v2651 = vmax.f32 %v2521, %v2588
    %v2652 = vmax.f32 %v2522, %v2590
    %v2653 = vmax.f32 %v2523, %v2592
    %v2654 = vmax.f32 %v2524, %v2594
    %v2655 = vmax.f32 %v2525, %v2596
    %v2656 = vmax.f32 %v2526, %v2598
    %v2657 = vmax.f32 %v2527, %v2600
    %v2658 = vmax.f32 %v2528, %v2602
    %v2659 = vmax.f32 %v2529, %v2604
    %v2660 = vmax.f32 %v2530, %v2606
    %v2661 = vmax.f32 %v2531, %v2608
    %v2662 = vmax.f32 %v2532, %v2610
    %v2663 = vmax.f32 %v2533, %v2612
    %v2664 = vmax.f32 %v2534, %v2614
    %v2665 = vmax.f32 %v2535, %v2616
    %v2666 = vmax.f32 %v2536, %v2618
    %2691 = vrot.lane.b32.xlu0 %v2643, 116
    %v2692 = vpop.permute.xlu0 %2691
    %2693 = vrot.lane.b32.xlu0 %v2644, 116
    %v2694 = vpop.permute.xlu0 %2693
    %2695 = vrot.lane.b32.xlu0 %v2645, 116
    %v2696 = vpop.permute.xlu0 %2695
    %2697 = vrot.lane.b32.xlu0 %v2646, 116
    %v2698 = vpop.permute.xlu0 %2697
    %2699 = vrot.lane.b32.xlu0 %v2647, 116
    %v2700 = vpop.permute.xlu0 %2699
    %2701 = vrot.lane.b32.xlu0 %v2648, 116
    %v2702 = vpop.permute.xlu0 %2701
    %2703 = vrot.lane.b32.xlu0 %v2649, 116
    %v2704 = vpop.permute.xlu0 %2703
    %2705 = vrot.lane.b32.xlu0 %v2650, 116
    %v2706 = vpop.permute.xlu0 %2705
    %2707 = vrot.lane.b32.xlu0 %v2651, 116
    %v2708 = vpop.permute.xlu0 %2707
    %2709 = vrot.lane.b32.xlu0 %v2652, 116
    %v2710 = vpop.permute.xlu0 %2709
    %2711 = vrot.lane.b32.xlu0 %v2653, 116
    %v2712 = vpop.permute.xlu0 %2711
    %2713 = vrot.lane.b32.xlu0 %v2654, 116
    %v2714 = vpop.permute.xlu0 %2713
    %2715 = vrot.lane.b32.xlu0 %v2655, 116
    %v2716 = vpop.permute.xlu0 %2715
    %2717 = vrot.lane.b32.xlu0 %v2656, 116
    %v2718 = vpop.permute.xlu0 %2717
    %2719 = vrot.lane.b32.xlu0 %v2657, 116
    %v2720 = vpop.permute.xlu0 %2719
    %2721 = vrot.lane.b32.xlu0 %v2658, 116
    %v2722 = vpop.permute.xlu0 %2721
    %2723 = vrot.lane.b32.xlu0 %v2659, 116
    %v2724 = vpop.permute.xlu0 %2723
    %2725 = vrot.lane.b32.xlu0 %v2660, 116
    %v2726 = vpop.permute.xlu0 %2725
    %2727 = vrot.lane.b32.xlu0 %v2661, 116
    %v2728 = vpop.permute.xlu0 %2727
    %2729 = vrot.lane.b32.xlu0 %v2662, 116
    %v2730 = vpop.permute.xlu0 %2729
    %2731 = vrot.lane.b32.xlu0 %v2663, 116
    %v2732 = vpop.permute.xlu0 %2731
    %2733 = vrot.lane.b32.xlu0 %v2664, 116
    %v2734 = vpop.permute.xlu0 %2733
    %2735 = vrot.lane.b32.xlu0 %v2665, 116
    %v2736 = vpop.permute.xlu0 %2735
    %2737 = vrot.lane.b32.xlu0 %v2666, 116
    %v2738 = vpop.permute.xlu0 %2737
    %vm2739 = vcmask 949248
    %v2740 = vsel %vm2739, %v2692, %v2694
    %v2741 = vsel %vm2739, %v2694, %v2696
    %v2742 = vsel %vm2739, %v2698, %v2700
    %v2743 = vsel %vm2739, %v2700, %v2702
    %v2744 = vsel %vm2739, %v2704, %v2706
    %v2745 = vsel %vm2739, %v2706, %v2708
    %v2746 = vsel %vm2739, %v2710, %v2712
    %v2747 = vsel %vm2739, %v2712, %v2714
    %v2748 = vsel %vm2739, %v2716, %v2718
    %v2749 = vsel %vm2739, %v2718, %v2720
    %v2750 = vsel %vm2739, %v2722, %v2724
    %v2751 = vsel %vm2739, %v2724, %v2726
    %v2752 = vsel %vm2739, %v2728, %v2730
    %v2753 = vsel %vm2739, %v2730, %v2732
    %v2754 = vsel %vm2739, %v2734, %v2736
    %v2755 = vsel %vm2739, %v2736, %v2738
    %v2780 = vmax.f32 %v2643, %v2740
    %v2781 = vmax.f32 %v2644, %v2741
    %v2782 = vmax.f32 %v2645, %v2696
    %v2783 = vmax.f32 %v2646, %v2742
    %v2784 = vmax.f32 %v2647, %v2743
    %v2785 = vmax.f32 %v2648, %v2702
    %v2786 = vmax.f32 %v2649, %v2744
    %v2787 = vmax.f32 %v2650, %v2745
    %v2788 = vmax.f32 %v2651, %v2708
    %v2789 = vmax.f32 %v2652, %v2746
    %v2790 = vmax.f32 %v2653, %v2747
    %v2791 = vmax.f32 %v2654, %v2714
    %v2792 = vmax.f32 %v2655, %v2748
    %v2793 = vmax.f32 %v2656, %v2749
    %v2794 = vmax.f32 %v2657, %v2720
    %v2795 = vmax.f32 %v2658, %v2750
    %v2796 = vmax.f32 %v2659, %v2751
    %v2797 = vmax.f32 %v2660, %v2726
    %v2798 = vmax.f32 %v2661, %v2752
    %v2799 = vmax.f32 %v2662, %v2753
    %v2800 = vmax.f32 %v2663, %v2732
    %v2801 = vmax.f32 %v2664, %v2754
    %v2802 = vmax.f32 %v2665, %v2755
    %v2803 = vmax.f32 %v2666, %v2738
    %v2804 = vpack.c.bf16 %v2783, %v2780
    %v2805 = vpack.c.bf16 %v2784, %v2781
    %v2806 = vpack.c.bf16 %v2785, %v2782
    %v2807 = vpack.c.bf16 %v2789, %v2786
    %v2808 = vpack.c.bf16 %v2790, %v2787
    %v2809 = vpack.c.bf16 %v2791, %v2788
    %v2810 = vpack.c.bf16 %v2795, %v2792
    %v2811 = vpack.c.bf16 %v2796, %v2793
    %v2812 = vpack.c.bf16 %v2797, %v2794
    %v2813 = vpack.c.bf16 %v2801, %v2798
    %v2814 = vpack.c.bf16 %v2802, %v2799
    %v2815 = vpack.c.bf16 %v2803, %v2800
    %v2816 = vld [vmem:[%s6] sm:$0xf]
    %v2817 = vld [vmem:[%s6 + $0x4] sm:$0xf]
    %v2818 = vld [vmem:[%s6 + $0x8] sm:$0xf]
    %v2819 = vld [vmem:[%s6 + $0xc] sm:$0xf]
    %v2824 = vunpack.c.l.b16 %v2816
    %v2825 = vunpack.c.l.b16 %v2817
    %v2826 = vunpack.c.l.b16 %v2818
    %v2827 = vunpack.c.l.b16 %v2819
    %v2828 = vpack.c.b16 %v2825, %v2824
    %v2829 = vpack.c.b16 %v2827, %v2826
    %v2831 = vsel %vm535, %v2828, 0
    %v2834 = vsel %vm535, %v2829, 0
    %2836 = vmatprep.subr.bf16.mxu0 0
    %2837 = vmatpush1.bf16.msra.mxu0 0
    %2838 = vmatprep.subr.bf16.mxu0 0
    %2839 = vmatpush1.bf16.msra.mxu0 0
    %2840 = vmatprep.subr.bf16.mxu0 0
    %2841 = vmatpush1.bf16.msra.mxu0 0
    %2842 = vmatprep.subr.bf16.mxu0 0
    %2843 = vmatpush1.bf16.msra.mxu0 0
    %2844 = vmatprep.subr.bf16.mxu0 %v2814
    %2845 = vmatpush1.bf16.msra.mxu0 %v2813
    %2846 = vmatprep.subr.bf16.mxu0 %v2811
    %2847 = vmatpush1.bf16.msra.mxu0 %v2810
    %2848 = vmatprep.subr.bf16.mxu0 %v2808
    %2849 = vmatpush1.bf16.msra.mxu0 %v2807
    %2850 = vmatprep.subr.bf16.mxu0 %v2805
    %2851 = vmatpush1.bf16.msra.mxu0 %v2804
    %2852 = vmatprep.subr.bf16.mxu0 0
    %2853 = vmatpush2.bf16.msra.mxu0 0
    %2854 = vmatprep.subr.bf16.mxu0 0
    %2855 = vmatpush2.bf16.msra.mxu0 0
    %2856 = vmatprep.subr.bf16.mxu0 0
    %2857 = vmatpush2.bf16.msra.mxu0 0
    %2858 = vmatprep.subr.bf16.mxu0 0
    %2859 = vmatpush2.bf16.msra.mxu0 0
    %2860 = vmatprep.subr.bf16.mxu0 0
    %2861 = vmatpush2.bf16.msra.mxu0 0
    %2862 = vmatprep.subr.bf16.mxu0 0
    %2863 = vmatpush2.bf16.msra.mxu0 0
    %2864 = vmatprep.subr.bf16.mxu0 0
    %2865 = vmatpush2.bf16.msra.mxu0 0
    %2866 = vmatprep.subr.bf16.mxu0 0
    %2867 = vmatpush2.bf16.msra.mxu0 0
    %2868 = vmatprep.mubr.bf16.mxu0 0
    %2869 = vmatmul.mubr.bf16.gmra.mxu0 %v2831
    %v2870 = vpop.f32.mrf.mxu0
    %v2871 = vadd.f32 0.0, %v2870
    %v2872 = vpop.f32.mrf.mxu0
    %v2873 = vadd.f32 0.0, %v2872
    %v2874 = vpop.f32.mrf.mxu0
    %v2875 = vadd.f32 0.0, %v2874
    %v2876 = vpop.f32.mrf.mxu0
    %v2877 = vadd.f32 0.0, %v2876
    %2878 = vmatprep.mubr.bf16.mxu0 0
    %2879 = vmatmul.mubr.bf16.gmra.mxu0 %v2834
    %v2880 = vpop.f32.mrf.mxu0
    %v2881 = vadd.f32 0.0, %v2880
    %v2882 = vpop.f32.mrf.mxu0
    %v2883 = vadd.f32 0.0, %v2882
    %v2884 = vpop.f32.mrf.mxu0
    %v2885 = vadd.f32 0.0, %v2884
    %v2886 = vpop.f32.mrf.mxu0
    %v2887 = vadd.f32 0.0, %v2886
    %2888 = vdwg.mxu0
    %2889 = vmatprep.subr.bf16.mxu0 0
    %2890 = vmatpush1.bf16.msra.mxu0 0
    %2891 = vmatprep.subr.bf16.mxu0 0
    %2892 = vmatpush1.bf16.msra.mxu0 0
    %2893 = vmatprep.subr.bf16.mxu0 0
    %2894 = vmatpush1.bf16.msra.mxu0 0
    %2895 = vmatprep.subr.bf16.mxu0 0
    %2896 = vmatpush1.bf16.msra.mxu0 0
    %2897 = vmatprep.subr.bf16.mxu0 0
    %2898 = vmatpush1.bf16.msra.mxu0 %v2815
    %2899 = vmatprep.subr.bf16.mxu0 0
    %2900 = vmatpush1.bf16.msra.mxu0 %v2812
    %2901 = vmatprep.subr.bf16.mxu0 0
    %2902 = vmatpush1.bf16.msra.mxu0 %v2809
    %2903 = vmatprep.subr.bf16.mxu0 0
    %2904 = vmatpush1.bf16.msra.mxu0 %v2806
    %2905 = vmatprep.subr.bf16.mxu0 0
    %2906 = vmatpush2.bf16.msra.mxu0 0
    %2907 = vmatprep.subr.bf16.mxu0 0
    %2908 = vmatpush2.bf16.msra.mxu0 0
    %2909 = vmatprep.subr.bf16.mxu0 0
    %2910 = vmatpush2.bf16.msra.mxu0 0
    %2911 = vmatprep.subr.bf16.mxu0 0
    %2912 = vmatpush2.bf16.msra.mxu0 0
    %2913 = vmatprep.subr.bf16.mxu0 0
    %2914 = vmatpush2.bf16.msra.mxu0 0
    %2915 = vmatprep.subr.bf16.mxu0 0
    %2916 = vmatpush2.bf16.msra.mxu0 0
    %2917 = vmatprep.subr.bf16.mxu0 0
    %2918 = vmatpush2.bf16.msra.mxu0 0
    %2919 = vmatprep.subr.bf16.mxu0 0
    %2920 = vmatpush2.bf16.msra.mxu0 0
    %2921 = vmatprep.mubr.bf16.mxu0 0
    %2922 = vmatmul.mubr.bf16.gmra.mxu0 %v2831
    %v2923 = vpop.f32.mrf.mxu0
    %v2924 = vadd.f32 0.0, %v2923
    %v2925 = vpop.f32.mrf.mxu0
    %v2926 = vpop.f32.mrf.mxu0
    %v2927 = vadd.f32 0.0, %v2926
    %v2928 = vpop.f32.mrf.mxu0
    %2929 = vmatprep.mubr.bf16.mxu0 0
    %2930 = vmatmul.mubr.bf16.gmra.mxu0 %v2834
    %v2931 = vpop.f32.mrf.mxu0
    %v2932 = vadd.f32 0.0, %v2931
    %v2933 = vpop.f32.mrf.mxu0
    %v2934 = vpop.f32.mrf.mxu0
    %v2935 = vadd.f32 0.0, %v2934
    %v2936 = vpop.f32.mrf.mxu0
    %2937 = vdwg.mxu0
    %v2938 = vpack.c.bf16 %v2875, %v2871
    %v2939 = vpack.c.bf16 %v2877, %v2873
    %v2940 = vpack.c.bf16 %v2927, %v2924
    %v2941 = vpack.c.bf16 %v2885, %v2881
    %v2942 = vpack.c.bf16 %v2887, %v2883
    %v2943 = vpack.c.bf16 %v2935, %v2932
    %v2944 = vld [vmem:[%s7] sm:$0xff]
    %v2945 = vld [vmem:[%s7 + $0x8] sm:$0xff]
    %v2946 = vld [vmem:[%s7 + $0x10] sm:$0xff]
    %v2947 = vld [vmem:[%s7 + $0x18] sm:$0xff]
    %v2948 = vld [vmem:[%s7 + $0x20] sm:$0xff]
    %v2949 = vld [vmem:[%s7 + $0x28] sm:$0xff]
    %v2950 = vld [vmem:[%s7 + $0x30] sm:$0xff]
    %v2951 = vld [vmem:[%s7 + $0x38] sm:$0xff]
    %v2952 = vld [vmem:[%s7 + $0x40] sm:$0xff]
    %v2953 = vld [vmem:[%s7 + $0x48] sm:$0xff]
    %v2954 = vld [vmem:[%s7 + $0x50] sm:$0xff]
    %v2955 = vld [vmem:[%s7 + $0x58] sm:$0xff]
    %v2956 = vld [vmem:[%s7 + $0x60] sm:$0xff]
    %v2957 = vld [vmem:[%s7 + $0x68] sm:$0xff]
    %v2958 = vld [vmem:[%s7 + $0x70] sm:$0xff]
    %v2959 = vld [vmem:[%s7 + $0x78] sm:$0xff]
    %v2960 = vld [vmem:[%s7 + $0x80] sm:$0xff]
    %v2961 = vld [vmem:[%s7 + $0x88] sm:$0xff]
    %v2962 = vld [vmem:[%s7 + $0x90] sm:$0xff]
    %v2963 = vld [vmem:[%s7 + $0x98] sm:$0xff]
    %v2964 = vld [vmem:[%s7 + $0xa0] sm:$0xff]
    %v2965 = vld [vmem:[%s7 + $0xa8] sm:$0xff]
    %v2966 = vld [vmem:[%s7 + $0xb0] sm:$0xff]
    %v2967 = vld [vmem:[%s7 + $0xb8] sm:$0xff]
    %v2968 = vld [vmem:[%s7 + $0xc0] sm:$0xff]
    %v2969 = vld [vmem:[%s7 + $0xc8] sm:$0xff]
    %v2970 = vld [vmem:[%s7 + $0xd0] sm:$0xff]
    %v2971 = vld [vmem:[%s7 + $0xd8] sm:$0xff]
    %v2972 = vld [vmem:[%s7 + $0xe0] sm:$0xff]
    %v2973 = vld [vmem:[%s7 + $0xe8] sm:$0xff]
    %v2974 = vld [vmem:[%s7 + $0xf0] sm:$0xff]
    %v2975 = vld [vmem:[%s7 + $0xf8] sm:$0xff]
    %v2976 = vld [vmem:[%s7 + $0x100] sm:$0xff]
    %v2977 = vld [vmem:[%s7 + $0x108] sm:$0xff]
    %v2978 = vld [vmem:[%s7 + $0x110] sm:$0xff]
    %v2979 = vld [vmem:[%s7 + $0x118] sm:$0xff]
    %v2980 = vld [vmem:[%s7 + $0x120] sm:$0xff]
    %v2981 = vld [vmem:[%s7 + $0x128] sm:$0xff]
    %v2982 = vld [vmem:[%s7 + $0x130] sm:$0xff]
    %v2983 = vld [vmem:[%s7 + $0x138] sm:$0xff]
    %v2984 = vld [vmem:[%s7 + $0x140] sm:$0xff]
    %v2985 = vld [vmem:[%s7 + $0x148] sm:$0xff]
    %v3028 = vunpack.c.l.b16 %v2944
    %v3029 = vunpack.c.h.b16 %v2944
    %v3030 = vunpack.c.l.b16 %v2945
    %v3031 = vunpack.c.h.b16 %v2945
    %v3032 = vunpack.c.l.b16 %v2946
    %v3033 = vunpack.c.h.b16 %v2946
    %v3034 = vunpack.c.l.b16 %v2947
    %v3035 = vunpack.c.h.b16 %v2947
    %v3036 = vunpack.c.l.b16 %v2948
    %v3037 = vunpack.c.h.b16 %v2948
    %v3038 = vunpack.c.l.b16 %v2949
    %v3039 = vunpack.c.h.b16 %v2949
    %v3040 = vunpack.c.l.b16 %v2950
    %v3041 = vunpack.c.h.b16 %v2950
    %v3042 = vunpack.c.l.b16 %v2951
    %v3043 = vunpack.c.h.b16 %v2951
    %v3044 = vunpack.c.l.b16 %v2952
    %v3045 = vunpack.c.h.b16 %v2952
    %v3046 = vunpack.c.l.b16 %v2953
    %v3047 = vunpack.c.h.b16 %v2953
    %v3048 = vunpack.c.l.b16 %v2954
    %v3049 = vunpack.c.h.b16 %v2954
    %v3050 = vunpack.c.l.b16 %v2955
    %v3051 = vunpack.c.h.b16 %v2955
    %v3052 = vunpack.c.l.b16 %v2956
    %v3053 = vunpack.c.h.b16 %v2956
    %v3054 = vunpack.c.l.b16 %v2957
    %v3055 = vunpack.c.h.b16 %v2957
    %v3056 = vunpack.c.l.b16 %v2958
    %v3057 = vunpack.c.h.b16 %v2958
    %v3058 = vunpack.c.l.b16 %v2959
    %v3059 = vunpack.c.h.b16 %v2959
    %v3060 = vunpack.c.l.b16 %v2960
    %v3061 = vunpack.c.h.b16 %v2960
    %v3062 = vunpack.c.l.b16 %v2961
    %v3063 = vunpack.c.h.b16 %v2961
    %v3064 = vunpack.c.l.b16 %v2962
    %v3065 = vunpack.c.h.b16 %v2962
    %v3066 = vunpack.c.l.b16 %v2963
    %v3067 = vunpack.c.h.b16 %v2963
    %v3068 = vunpack.c.l.b16 %v2964
    %v3069 = vunpack.c.h.b16 %v2964
    %v3070 = vunpack.c.l.b16 %v2965
    %v3071 = vunpack.c.h.b16 %v2965
    %v3072 = vunpack.c.l.b16 %v2966
    %v3073 = vunpack.c.h.b16 %v2966
    %v3074 = vunpack.c.l.b16 %v2967
    %v3075 = vunpack.c.h.b16 %v2967
    %v3076 = vunpack.c.l.b16 %v2968
    %v3077 = vunpack.c.h.b16 %v2968
    %v3078 = vunpack.c.l.b16 %v2969
    %v3079 = vunpack.c.h.b16 %v2969
    %v3080 = vunpack.c.l.b16 %v2970
    %v3081 = vunpack.c.h.b16 %v2970
    %v3082 = vunpack.c.l.b16 %v2971
    %v3083 = vunpack.c.h.b16 %v2971
    %v3084 = vunpack.c.l.b16 %v2972
    %v3085 = vunpack.c.h.b16 %v2972
    %v3086 = vunpack.c.l.b16 %v2973
    %v3087 = vunpack.c.h.b16 %v2973
    %v3088 = vunpack.c.l.b16 %v2974
    %v3089 = vunpack.c.h.b16 %v2974
    %v3090 = vunpack.c.l.b16 %v2975
    %v3091 = vunpack.c.h.b16 %v2975
    %v3092 = vunpack.c.l.b16 %v2976
    %v3093 = vunpack.c.h.b16 %v2976
    %v3094 = vunpack.c.l.b16 %v2977
    %v3095 = vunpack.c.h.b16 %v2977
    %v3096 = vunpack.c.l.b16 %v2978
    %v3097 = vunpack.c.h.b16 %v2978
    %v3098 = vunpack.c.l.b16 %v2979
    %v3099 = vunpack.c.h.b16 %v2979
    %v3100 = vunpack.c.l.b16 %v2980
    %v3101 = vunpack.c.h.b16 %v2980
    %v3102 = vunpack.c.l.b16 %v2981
    %v3103 = vunpack.c.h.b16 %v2981
    %v3104 = vunpack.c.l.b16 %v2982
    %v3105 = vunpack.c.h.b16 %v2982
    %v3106 = vunpack.c.l.b16 %v2983
    %v3107 = vunpack.c.h.b16 %v2983
    %v3108 = vunpack.c.l.b16 %v2984
    %v3109 = vunpack.c.h.b16 %v2984
    %v3110 = vunpack.c.l.b16 %v2985
    %v3111 = vunpack.c.h.b16 %v2985
    %v3112 = vpack.c.b16 %v3030, %v3028
    %v3113 = vpack.c.b16 %v3031, %v3029
    %v3114 = vpack.c.b16 %v3034, %v3032
    %v3115 = vpack.c.b16 %v3035, %v3033
    %v3116 = vpack.c.b16 %v3038, %v3036
    %v3117 = vpack.c.b16 %v3039, %v3037
    %v3118 = vpack.c.b16 %v3042, %v3040
    %v3119 = vpack.c.b16 %v3043, %v3041
    %v3120 = vpack.c.b16 %v3046, %v3044
    %v3121 = vpack.c.b16 %v3047, %v3045
    %v3122 = vpack.c.b16 %v3050, %v3048
    %v3123 = vpack.c.b16 %v3051, %v3049
    %v3124 = vpack.c.b16 %v3054, %v3052
    %v3125 = vpack.c.b16 %v3055, %v3053
    %v3126 = vpack.c.b16 %v3058, %v3056
    %v3127 = vpack.c.b16 %v3059, %v3057
    %v3128 = vpack.c.b16 %v3062, %v3060
    %v3129 = vpack.c.b16 %v3063, %v3061
    %v3130 = vpack.c.b16 %v3066, %v3064
    %v3131 = vpack.c.b16 %v3067, %v3065
    %v3132 = vpack.c.b16 %v3070, %v3068
    %v3133 = vpack.c.b16 %v3071, %v3069
    %v3134 = vpack.c.b16 %v3074, %v3072
    %v3135 = vpack.c.b16 %v3075, %v3073
    %v3136 = vpack.c.b16 %v3078, %v3076
    %v3137 = vpack.c.b16 %v3079, %v3077
    %v3138 = vpack.c.b16 %v3082, %v3080
    %v3139 = vpack.c.b16 %v3083, %v3081
    %v3140 = vpack.c.b16 %v3086, %v3084
    %v3141 = vpack.c.b16 %v3087, %v3085
    %v3142 = vpack.c.b16 %v3090, %v3088
    %v3143 = vpack.c.b16 %v3091, %v3089
    %v3144 = vpack.c.b16 %v3094, %v3092
    %v3145 = vpack.c.b16 %v3095, %v3093
    %v3146 = vpack.c.b16 %v3098, %v3096
    %v3147 = vpack.c.b16 %v3099, %v3097
    %v3148 = vpack.c.b16 %v3102, %v3100
    %v3149 = vpack.c.b16 %v3103, %v3101
    %v3150 = vpack.c.b16 %v3106, %v3104
    %v3151 = vpack.c.b16 %v3107, %v3105
    %v3152 = vpack.c.b16 %v3110, %v3108
    %v3153 = vpack.c.b16 %v3111, %v3109
    %vm3196 = vcmask 654336
    %v3198 = vsel %vm3196, %v2940, 0
    %v3201 = vsel %vm3196, %v2943, 0
    %3203 = vmatprep.subr.bf16.mxu0 %v3127
    %3204 = vmatpush1.bf16.msra.mxu0 %v3126
    %3205 = vmatprep.subr.bf16.mxu0 %v3125
    %3206 = vmatpush1.bf16.msra.mxu0 %v3124
    %3207 = vmatprep.subr.bf16.mxu0 %v3123
    %3208 = vmatpush1.bf16.msra.mxu0 %v3122
    %3209 = vmatprep.subr.bf16.mxu0 %v3121
    %3210 = vmatpush1.bf16.msra.mxu0 %v3120
    %3211 = vmatprep.subr.bf16.mxu0 %v3119
    %3212 = vmatpush1.bf16.msra.mxu0 %v3118
    %3213 = vmatprep.subr.bf16.mxu0 %v3117
    %3214 = vmatpush1.bf16.msra.mxu0 %v3116
    %3215 = vmatprep.subr.bf16.mxu0 %v3115
    %3216 = vmatpush1.bf16.msra.mxu0 %v3114
    %3217 = vmatprep.subr.bf16.mxu0 %v3113
    %3218 = vmatpush1.bf16.msra.mxu0 %v3112
    %3219 = vmatprep.subr.bf16.mxu0 %v3143
    %3220 = vmatpush2.bf16.msra.mxu0 %v3142
    %3221 = vmatprep.subr.bf16.mxu0 %v3141
    %3222 = vmatpush2.bf16.msra.mxu0 %v3140
    %3223 = vmatprep.subr.bf16.mxu0 %v3139
    %3224 = vmatpush2.bf16.msra.mxu0 %v3138
    %3225 = vmatprep.subr.bf16.mxu0 %v3137
    %3226 = vmatpush2.bf16.msra.mxu0 %v3136
    %3227 = vmatprep.subr.bf16.mxu0 %v3135
    %3228 = vmatpush2.bf16.msra.mxu0 %v3134
    %3229 = vmatprep.subr.bf16.mxu0 %v3133
    %3230 = vmatpush2.bf16.msra.mxu0 %v3132
    %3231 = vmatprep.subr.bf16.mxu0 %v3131
    %3232 = vmatpush2.bf16.msra.mxu0 %v3130
    %3233 = vmatprep.subr.bf16.mxu0 %v3129
    %3234 = vmatpush2.bf16.msra.mxu0 %v3128
    %3235 = vmatprep.mubr.bf16.mxu0 %v2939
    %3236 = vmatmul.mubr.bf16.gmra.mxu0 %v2938
    %v3237 = vpop.f32.mrf.mxu0
    %v3238 = vadd.f32 0.0, %v3237
    %v3239 = vpop.f32.mrf.mxu0
    %v3240 = vadd.f32 0.0, %v3239
    %v3241 = vpop.f32.mrf.mxu0
    %v3242 = vadd.f32 0.0, %v3241
    %v3243 = vpop.f32.mrf.mxu0
    %v3244 = vadd.f32 0.0, %v3243
    %3245 = vmatprep.mubr.bf16.mxu0 %v2942
    %3246 = vmatmul.mubr.bf16.gmra.mxu0 %v2941
    %v3247 = vpop.f32.mrf.mxu0
    %v3248 = vadd.f32 0.0, %v3247
    %v3249 = vpop.f32.mrf.mxu0
    %v3250 = vadd.f32 0.0, %v3249
    %v3251 = vpop.f32.mrf.mxu0
    %v3252 = vadd.f32 0.0, %v3251
    %v3253 = vpop.f32.mrf.mxu0
    %v3254 = vadd.f32 0.0, %v3253
    %3255 = vdwg.mxu0
    %3256 = vmatprep.subr.bf16.mxu0 0
    %3257 = vmatpush1.bf16.msra.mxu0 0
    %3258 = vmatprep.subr.bf16.mxu0 0
    %3259 = vmatpush1.bf16.msra.mxu0 0
    %3260 = vmatprep.subr.bf16.mxu0 0
    %3261 = vmatpush1.bf16.msra.mxu0 0
    %3262 = vmatprep.subr.bf16.mxu0 %v3153
    %3263 = vmatpush1.bf16.msra.mxu0 %v3152
    %3264 = vmatprep.subr.bf16.mxu0 %v3151
    %3265 = vmatpush1.bf16.msra.mxu0 %v3150
    %3266 = vmatprep.subr.bf16.mxu0 %v3149
    %3267 = vmatpush1.bf16.msra.mxu0 %v3148
    %3268 = vmatprep.subr.bf16.mxu0 %v3147
    %3269 = vmatpush1.bf16.msra.mxu0 %v3146
    %3270 = vmatprep.subr.bf16.mxu0 %v3145
    %3271 = vmatpush1.bf16.msra.mxu0 %v3144
    %3272 = vmatprep.subr.bf16.mxu0 0
    %3273 = vmatpush2.bf16.msra.mxu0 0
    %3274 = vmatprep.subr.bf16.mxu0 0
    %3275 = vmatpush2.bf16.msra.mxu0 0
    %3276 = vmatprep.subr.bf16.mxu0 0
    %3277 = vmatpush2.bf16.msra.mxu0 0
    %3278 = vmatprep.subr.bf16.mxu0 0
    %3279 = vmatpush2.bf16.msra.mxu0 0
    %3280 = vmatprep.subr.bf16.mxu0 0
    %3281 = vmatpush2.bf16.msra.mxu0 0
    %3282 = vmatprep.subr.bf16.mxu0 0
    %3283 = vmatpush2.bf16.msra.mxu0 0
    %3284 = vmatprep.subr.bf16.mxu0 0
    %3285 = vmatpush2.bf16.msra.mxu0 0
    %3286 = vmatprep.subr.bf16.mxu0 0
    %3287 = vmatpush2.bf16.msra.mxu0 0
    %3288 = vmatprep.mubr.bf16.mxu0 0
    %3289 = vmatmul.mubr.bf16.gmra.mxu0 %v3198
    %v3290 = vpop.f32.mrf.mxu0
    %v3291 = vadd.f32 %v3238, %v3290
    %v3292 = vpop.f32.mrf.mxu0
    %v3293 = vadd.f32 %v3240, %v3292
    %v3294 = vpop.f32.mrf.mxu0
    %v3295 = vadd.f32 %v3242, %v3294
    %v3296 = vpop.f32.mrf.mxu0
    %v3297 = vadd.f32 %v3244, %v3296
    %3298 = vmatprep.mubr.bf16.mxu0 0
    %3299 = vmatmul.mubr.bf16.gmra.mxu0 %v3201
    %v3300 = vpop.f32.mrf.mxu0
    %v3301 = vadd.f32 %v3248, %v3300
    %v3302 = vpop.f32.mrf.mxu0
    %v3303 = vadd.f32 %v3250, %v3302
    %v3304 = vpop.f32.mrf.mxu0
    %v3305 = vadd.f32 %v3252, %v3304
    %v3306 = vpop.f32.mrf.mxu0
    %v3307 = vadd.f32 %v3254, %v3306
    %3308 = vdwg.mxu0
    %v3309 = vpack.c.bf16 %v3295, %v3291
    %v3310 = vpack.c.bf16 %v3297, %v3293
    %v3311 = vpack.c.bf16 %v3305, %v3301
    %v3312 = vpack.c.bf16 %v3307, %v3303
    %v3313 = vld [vmem:[%s4] sm:$0xff]
    %v3314 = vld [vmem:[%s4 + $0x8] sm:$0xff]
    %v3315 = vld [vmem:[%s4 + $0x10] sm:$0xff]
    %v3316 = vld [vmem:[%s4 + $0x18] sm:$0xff]
    %v3317 = vld [vmem:[%s4 + $0x20] sm:$0xff]
    %v3318 = vld [vmem:[%s4 + $0x28] sm:$0xff]
    %v3319 = vld [vmem:[%s4 + $0x30] sm:$0xff]
    %v3320 = vld [vmem:[%s4 + $0x38] sm:$0xff]
    %v3321 = vld [vmem:[%s4 + $0x40] sm:$0xff]
    %v3322 = vld [vmem:[%s4 + $0x48] sm:$0xff]
    %v3323 = vld [vmem:[%s4 + $0x50] sm:$0xff]
    %v3324 = vld [vmem:[%s4 + $0x58] sm:$0xff]
    %v3325 = vld [vmem:[%s4 + $0x60] sm:$0xff]
    %v3326 = vld [vmem:[%s4 + $0x68] sm:$0xff]
    %v3327 = vld [vmem:[%s4 + $0x70] sm:$0xff]
    %v3328 = vld [vmem:[%s4 + $0x78] sm:$0xff]
    %v3329 = vld [vmem:[%s4 + $0x80] sm:$0xff]
    %v3330 = vld [vmem:[%s4 + $0x88] sm:$0xff]
    %v3331 = vld [vmem:[%s4 + $0x90] sm:$0xff]
    %v3332 = vld [vmem:[%s4 + $0x98] sm:$0xff]
    %v3333 = vld [vmem:[%s4 + $0xa0] sm:$0xff]
    %v3334 = vld [vmem:[%s4 + $0xa8] sm:$0xff]
    %v3335 = vld [vmem:[%s4 + $0xb0] sm:$0xff]
    %v3336 = vld [vmem:[%s4 + $0xb8] sm:$0xff]
    %v3337 = vld [vmem:[%s4 + $0xc0] sm:$0xff]
    %v3338 = vld [vmem:[%s4 + $0xc8] sm:$0xff]
    %v3339 = vld [vmem:[%s4 + $0xd0] sm:$0xff]
    %v3340 = vld [vmem:[%s4 + $0xd8] sm:$0xff]
    %v3341 = vld [vmem:[%s4 + $0xe0] sm:$0xff]
    %v3342 = vld [vmem:[%s4 + $0xe8] sm:$0xff]
    %v3343 = vld [vmem:[%s4 + $0xf0] sm:$0xff]
    %v3344 = vld [vmem:[%s4 + $0xf8] sm:$0xff]
    %v3345 = vld [vmem:[%s4 + $0x100] sm:$0xff]
    %v3346 = vld [vmem:[%s4 + $0x108] sm:$0xff]
    %v3347 = vld [vmem:[%s4 + $0x110] sm:$0xff]
    %v3348 = vld [vmem:[%s4 + $0x118] sm:$0xff]
    %v3349 = vld [vmem:[%s4 + $0x120] sm:$0xff]
    %v3350 = vld [vmem:[%s4 + $0x128] sm:$0xff]
    %v3351 = vld [vmem:[%s4 + $0x130] sm:$0xff]
    %v3352 = vld [vmem:[%s4 + $0x138] sm:$0xff]
    %v3353 = vld [vmem:[%s4 + $0x140] sm:$0xff]
    %v3354 = vld [vmem:[%s4 + $0x148] sm:$0xff]
    %s3355 = scalar_lea.vmem %s4, 336
    %v3356 = vld [vmem:[%s3355] sm:$0xff]
    %v3357 = vld [vmem:[%s3355 + $0x8] sm:$0xff]
    %v3358 = vld [vmem:[%s3355 + $0x10] sm:$0xff]
    %v3359 = vld [vmem:[%s3355 + $0x18] sm:$0xff]
    %v3360 = vld [vmem:[%s3355 + $0x20] sm:$0xff]
    %v3361 = vld [vmem:[%s3355 + $0x28] sm:$0xff]
    %v3362 = vld [vmem:[%s3355 + $0x30] sm:$0xff]
    %v3363 = vld [vmem:[%s3355 + $0x38] sm:$0xff]
    %v3364 = vld [vmem:[%s3355 + $0x40] sm:$0xff]
    %v3365 = vld [vmem:[%s3355 + $0x48] sm:$0xff]
    %v3366 = vld [vmem:[%s3355 + $0x50] sm:$0xff]
    %v3367 = vld [vmem:[%s3355 + $0x58] sm:$0xff]
    %v3368 = vld [vmem:[%s3355 + $0x60] sm:$0xff]
    %v3369 = vld [vmem:[%s3355 + $0x68] sm:$0xff]
    %v3370 = vld [vmem:[%s3355 + $0x70] sm:$0xff]
    %v3371 = vld [vmem:[%s3355 + $0x78] sm:$0xff]
    %v3372 = vld [vmem:[%s3355 + $0x80] sm:$0xff]
    %v3373 = vld [vmem:[%s3355 + $0x88] sm:$0xff]
    %v3374 = vld [vmem:[%s3355 + $0x90] sm:$0xff]
    %v3375 = vld [vmem:[%s3355 + $0x98] sm:$0xff]
    %v3376 = vld [vmem:[%s3355 + $0xa0] sm:$0xff]
    %v3377 = vld [vmem:[%s3355 + $0xa8] sm:$0xff]
    %v3378 = vld [vmem:[%s3355 + $0xb0] sm:$0xff]
    %v3379 = vld [vmem:[%s3355 + $0xb8] sm:$0xff]
    %v3380 = vld [vmem:[%s3355 + $0xc0] sm:$0xff]
    %v3381 = vld [vmem:[%s3355 + $0xc8] sm:$0xff]
    %v3382 = vld [vmem:[%s3355 + $0xd0] sm:$0xff]
    %v3383 = vld [vmem:[%s3355 + $0xd8] sm:$0xff]
    %v3384 = vld [vmem:[%s3355 + $0xe0] sm:$0xff]
    %v3385 = vld [vmem:[%s3355 + $0xe8] sm:$0xff]
    %v3386 = vld [vmem:[%s3355 + $0xf0] sm:$0xff]
    %v3387 = vld [vmem:[%s3355 + $0xf8] sm:$0xff]
    %v3388 = vld [vmem:[%s3355 + $0x100] sm:$0xff]
    %v3389 = vld [vmem:[%s3355 + $0x108] sm:$0xff]
    %v3390 = vld [vmem:[%s3355 + $0x110] sm:$0xff]
    %v3391 = vld [vmem:[%s3355 + $0x118] sm:$0xff]
    %v3392 = vld [vmem:[%s3355 + $0x120] sm:$0xff]
    %v3393 = vld [vmem:[%s3355 + $0x128] sm:$0xff]
    %v3394 = vld [vmem:[%s3355 + $0x130] sm:$0xff]
    %v3395 = vld [vmem:[%s3355 + $0x138] sm:$0xff]
    %v3396 = vld [vmem:[%s3355 + $0x140] sm:$0xff]
    %v3397 = vld [vmem:[%s3355 + $0x148] sm:$0xff]
    %v3399 = vshrl.u32 %v3309, 16
    %v3401 = vshll.u32 %v3309, 16
    %v3403 = vrot.slane %v3401, 1
    %v3404 = vor.u32 %v3399, %v3403
    %v3406 = vshll.u32 %v3311, 16
    %v3408 = vrot.slane %v3406, 1
    %v3409 = vsel %vm259, %v3404, %v3408
    %v3411 = vshrl.u32 %v3310, 16
    %v3413 = vshll.u32 %v3310, 16
    %v3415 = vrot.slane %v3413, 1
    %v3416 = vor.u32 %v3411, %v3415
    %v3418 = vshll.u32 %v3312, 16
    %v3420 = vrot.slane %v3418, 1
    %v3421 = vsel %vm259, %v3416, %v3420
    %v3422 = vshrl.u32 %v3311, 16
    %v3424 = vor.u32 %v3422, %v3408
    %v3425 = vshrl.u32 %v3312, 16
    %v3427 = vor.u32 %v3425, %v3420
    %v3472 = vunpack.c.l.b16 %v3356
    %v3473 = vunpack.c.h.b16 %v3356
    %v3474 = vunpack.c.l.b16 %v3357
    %v3475 = vunpack.c.h.b16 %v3357
    %v3476 = vunpack.c.l.b16 %v3358
    %v3477 = vunpack.c.h.b16 %v3358
    %v3478 = vunpack.c.l.b16 %v3359
    %v3479 = vunpack.c.h.b16 %v3359
    %v3480 = vunpack.c.l.b16 %v3360
    %v3481 = vunpack.c.h.b16 %v3360
    %v3482 = vunpack.c.l.b16 %v3361
    %v3483 = vunpack.c.h.b16 %v3361
    %v3484 = vunpack.c.l.b16 %v3362
    %v3485 = vunpack.c.h.b16 %v3362
    %v3486 = vunpack.c.l.b16 %v3363
    %v3487 = vunpack.c.h.b16 %v3363
    %v3488 = vunpack.c.l.b16 %v3364
    %v3489 = vunpack.c.h.b16 %v3364
    %v3490 = vunpack.c.l.b16 %v3365
    %v3491 = vunpack.c.h.b16 %v3365
    %v3492 = vunpack.c.l.b16 %v3366
    %v3493 = vunpack.c.h.b16 %v3366
    %v3494 = vunpack.c.l.b16 %v3367
    %v3495 = vunpack.c.h.b16 %v3367
    %v3496 = vunpack.c.l.b16 %v3368
    %v3497 = vunpack.c.h.b16 %v3368
    %v3498 = vunpack.c.l.b16 %v3369
    %v3499 = vunpack.c.h.b16 %v3369
    %v3500 = vunpack.c.l.b16 %v3370
    %v3501 = vunpack.c.h.b16 %v3370
    %v3502 = vunpack.c.l.b16 %v3371
    %v3503 = vunpack.c.h.b16 %v3371
    %v3504 = vunpack.c.l.b16 %v3372
    %v3505 = vunpack.c.h.b16 %v3372
    %v3506 = vunpack.c.l.b16 %v3373
    %v3507 = vunpack.c.h.b16 %v3373
    %v3508 = vunpack.c.l.b16 %v3374
    %v3509 = vunpack.c.h.b16 %v3374
    %v3510 = vunpack.c.l.b16 %v3375
    %v3511 = vunpack.c.h.b16 %v3375
    %v3512 = vunpack.c.l.b16 %v3376
    %v3513 = vunpack.c.h.b16 %v3376
    %v3514 = vunpack.c.l.b16 %v3377
    %v3515 = vunpack.c.h.b16 %v3377
    %v3516 = vunpack.c.l.b16 %v3378
    %v3517 = vunpack.c.h.b16 %v3378
    %v3518 = vunpack.c.l.b16 %v3379
    %v3519 = vunpack.c.h.b16 %v3379
    %v3520 = vunpack.c.l.b16 %v3380
    %v3521 = vunpack.c.h.b16 %v3380
    %v3522 = vunpack.c.l.b16 %v3381
    %v3523 = vunpack.c.h.b16 %v3381
    %v3524 = vunpack.c.l.b16 %v3382
    %v3525 = vunpack.c.h.b16 %v3382
    %v3526 = vunpack.c.l.b16 %v3383
    %v3527 = vunpack.c.h.b16 %v3383
    %v3528 = vunpack.c.l.b16 %v3384
    %v3529 = vunpack.c.h.b16 %v3384
    %v3530 = vunpack.c.l.b16 %v3385
    %v3531 = vunpack.c.h.b16 %v3385
    %v3532 = vunpack.c.l.b16 %v3386
    %v3533 = vunpack.c.h.b16 %v3386
    %v3534 = vunpack.c.l.b16 %v3387
    %v3535 = vunpack.c.h.b16 %v3387
    %v3536 = vunpack.c.l.b16 %v3388
    %v3537 = vunpack.c.h.b16 %v3388
    %v3538 = vunpack.c.l.b16 %v3389
    %v3539 = vunpack.c.h.b16 %v3389
    %v3540 = vunpack.c.l.b16 %v3390
    %v3541 = vunpack.c.h.b16 %v3390
    %v3542 = vunpack.c.l.b16 %v3391
    %v3543 = vunpack.c.h.b16 %v3391
    %v3544 = vunpack.c.l.b16 %v3392
    %v3545 = vunpack.c.h.b16 %v3392
    %v3546 = vunpack.c.l.b16 %v3393
    %v3547 = vunpack.c.h.b16 %v3393
    %v3548 = vunpack.c.l.b16 %v3394
    %v3549 = vunpack.c.h.b16 %v3394
    %v3550 = vunpack.c.l.b16 %v3395
    %v3551 = vunpack.c.h.b16 %v3395
    %v3552 = vunpack.c.l.b16 %v3396
    %v3553 = vunpack.c.h.b16 %v3396
    %v3554 = vunpack.c.l.b16 %v3397
    %v3555 = vunpack.c.h.b16 %v3397
    %v3556 = vpack.c.b16 %v3476, %v3472
    %v3557 = vpack.c.b16 %v3477, %v3473
    %v3558 = vpack.c.b16 %v3478, %v3474
    %v3559 = vpack.c.b16 %v3479, %v3475
    %v3560 = vpack.c.b16 %v3484, %v3480
    %v3561 = vpack.c.b16 %v3485, %v3481
    %v3562 = vpack.c.b16 %v3486, %v3482
    %v3563 = vpack.c.b16 %v3487, %v3483
    %v3564 = vpack.c.b16 %v3492, %v3488
    %v3565 = vpack.c.b16 %v3493, %v3489
    %v3566 = vpack.c.b16 %v3494, %v3490
    %v3567 = vpack.c.b16 %v3495, %v3491
    %v3568 = vpack.c.b16 %v3500, %v3496
    %v3569 = vpack.c.b16 %v3501, %v3497
    %v3570 = vpack.c.b16 %v3502, %v3498
    %v3571 = vpack.c.b16 %v3503, %v3499
    %v3572 = vpack.c.b16 %v3508, %v3504
    %v3573 = vpack.c.b16 %v3509, %v3505
    %v3574 = vpack.c.b16 %v3510, %v3506
    %v3575 = vpack.c.b16 %v3511, %v3507
    %v3576 = vpack.c.b16 %v3516, %v3512
    %v3577 = vpack.c.b16 %v3517, %v3513
    %v3578 = vpack.c.b16 %v3518, %v3514
    %v3579 = vpack.c.b16 %v3519, %v3515
    %v3580 = vpack.c.b16 %v3524, %v3520
    %v3581 = vpack.c.b16 %v3525, %v3521
    %v3582 = vpack.c.b16 %v3526, %v3522
    %v3583 = vpack.c.b16 %v3527, %v3523
    %v3584 = vpack.c.b16 %v3532, %v3528
    %v3585 = vpack.c.b16 %v3533, %v3529
    %v3586 = vpack.c.b16 %v3534, %v3530
    %v3587 = vpack.c.b16 %v3535, %v3531
    %v3588 = vpack.c.b16 %v3540, %v3536
    %v3589 = vpack.c.b16 %v3541, %v3537
    %v3590 = vpack.c.b16 %v3542, %v3538
    %v3591 = vpack.c.b16 %v3543, %v3539
    %v3592 = vpack.c.b16 %v3548, %v3544
    %v3593 = vpack.c.b16 %v3549, %v3545
    %v3594 = vpack.c.b16 %v3550, %v3546
    %v3595 = vpack.c.b16 %v3551, %v3547
    %v3596 = vpack.c.b16 %v3552, %v3552
    %v3597 = vpack.c.b16 %v3553, %v3553
    %v3598 = vpack.c.b16 %v3554, %v3554
    %v3599 = vpack.c.b16 %v3555, %v3555
    %vm3640 = vcmask 326656
    %v3642 = vsel %vm3640, %v3421, 0
    %v3645 = vsel %vm3640, %v3427, 0
    %vm3647 = vcmask 1043456
    %v3649 = vsel %vm3647, %v3596, 0
    %v3652 = vsel %vm3647, %v3597, 0
    %v3655 = vsel %vm3647, %v3598, 0
    %v3658 = vsel %vm3647, %v3599, 0
    %3660 = vmatprep.subr.bf16.mxu0 %v3585
    %3661 = vmatpush1.bf16.msra.mxu0 %v3584
    %3662 = vmatprep.subr.bf16.mxu0 %v3581
    %3663 = vmatpush1.bf16.msra.mxu0 %v3580
    %3664 = vmatprep.subr.bf16.mxu0 %v3577
    %3665 = vmatpush1.bf16.msra.mxu0 %v3576
    %3666 = vmatprep.subr.bf16.mxu0 %v3573
    %3667 = vmatpush1.bf16.msra.mxu0 %v3572
    %3668 = vmatprep.subr.bf16.mxu0 %v3569
    %3669 = vmatpush1.bf16.msra.mxu0 %v3568
    %3670 = vmatprep.subr.bf16.mxu0 %v3565
    %3671 = vmatpush1.bf16.msra.mxu0 %v3564
    %3672 = vmatprep.subr.bf16.mxu0 %v3561
    %3673 = vmatpush1.bf16.msra.mxu0 %v3560
    %3674 = vmatprep.subr.bf16.mxu0 %v3557
    %3675 = vmatpush1.bf16.msra.mxu0 %v3556
    %3676 = vmatprep.subr.bf16.mxu0 0
    %3677 = vmatpush2.bf16.msra.mxu0 0
    %3678 = vmatprep.subr.bf16.mxu0 0
    %3679 = vmatpush2.bf16.msra.mxu0 0
    %3680 = vmatprep.subr.bf16.mxu0 0
    %3681 = vmatpush2.bf16.msra.mxu0 0
    %3682 = vmatprep.subr.bf16.mxu0 0
    %3683 = vmatpush2.bf16.msra.mxu0 0
    %3684 = vmatprep.subr.bf16.mxu0 0
    %3685 = vmatpush2.bf16.msra.mxu0 0
    %3686 = vmatprep.subr.bf16.mxu0 %v3652
    %3687 = vmatpush2.bf16.msra.mxu0 %v3649
    %3688 = vmatprep.subr.bf16.mxu0 %v3593
    %3689 = vmatpush2.bf16.msra.mxu0 %v3592
    %3690 = vmatprep.subr.bf16.mxu0 %v3589
    %3691 = vmatpush2.bf16.msra.mxu0 %v3588
    %3692 = vmatprep.mubr.bf16.mxu0 %v3642
    %3693 = vmatmul.mubr.bf16.gmra.mxu0 %v3409
    %v3694 = vpop.f32.mrf.mxu0
    %v3695 = vadd.f32 0.0, %v3694
    %v3696 = vpop.f32.mrf.mxu0
    %v3697 = vadd.f32 0.0, %v3696
    %v3698 = vpop.f32.mrf.mxu0
    %v3699 = vadd.f32 0.0, %v3698
    %v3700 = vpop.f32.mrf.mxu0
    %v3701 = vadd.f32 0.0, %v3700
    %3702 = vmatprep.mubr.bf16.mxu0 %v3645
    %3703 = vmatmul.mubr.bf16.gmra.mxu0 %v3424
    %v3704 = vpop.f32.mrf.mxu0
    %v3705 = vadd.f32 0.0, %v3704
    %v3706 = vpop.f32.mrf.mxu0
    %v3707 = vadd.f32 0.0, %v3706
    %v3708 = vpop.f32.mrf.mxu0
    %v3709 = vadd.f32 0.0, %v3708
    %v3710 = vpop.f32.mrf.mxu0
    %v3711 = vadd.f32 0.0, %v3710
    %3712 = vdwg.mxu0
    %3713 = vmatprep.subr.bf16.mxu0 %v3587
    %3714 = vmatpush1.bf16.msra.mxu0 %v3586
    %3715 = vmatprep.subr.bf16.mxu0 %v3583
    %3716 = vmatpush1.bf16.msra.mxu0 %v3582
    %3717 = vmatprep.subr.bf16.mxu0 %v3579
    %3718 = vmatpush1.bf16.msra.mxu0 %v3578
    %3719 = vmatprep.subr.bf16.mxu0 %v3575
    %3720 = vmatpush1.bf16.msra.mxu0 %v3574
    %3721 = vmatprep.subr.bf16.mxu0 %v3571
    %3722 = vmatpush1.bf16.msra.mxu0 %v3570
    %3723 = vmatprep.subr.bf16.mxu0 %v3567
    %3724 = vmatpush1.bf16.msra.mxu0 %v3566
    %3725 = vmatprep.subr.bf16.mxu0 %v3563
    %3726 = vmatpush1.bf16.msra.mxu0 %v3562
    %3727 = vmatprep.subr.bf16.mxu0 %v3559
    %3728 = vmatpush1.bf16.msra.mxu0 %v3558
    %3729 = vmatprep.subr.bf16.mxu0 0
    %3730 = vmatpush2.bf16.msra.mxu0 0
    %3731 = vmatprep.subr.bf16.mxu0 0
    %3732 = vmatpush2.bf16.msra.mxu0 0
    %3733 = vmatprep.subr.bf16.mxu0 0
    %3734 = vmatpush2.bf16.msra.mxu0 0
    %3735 = vmatprep.subr.bf16.mxu0 0
    %3736 = vmatpush2.bf16.msra.mxu0 0
    %3737 = vmatprep.subr.bf16.mxu0 0
    %3738 = vmatpush2.bf16.msra.mxu0 0
    %3739 = vmatprep.subr.bf16.mxu0 %v3658
    %3740 = vmatpush2.bf16.msra.mxu0 %v3655
    %3741 = vmatprep.subr.bf16.mxu0 %v3595
    %3742 = vmatpush2.bf16.msra.mxu0 %v3594
    %3743 = vmatprep.subr.bf16.mxu0 %v3591
    %3744 = vmatpush2.bf16.msra.mxu0 %v3590
    %3745 = vmatprep.mubr.bf16.mxu0 %v3642
    %3746 = vmatmul.mubr.bf16.gmra.mxu0 %v3409
    %v3747 = vpop.f32.mrf.mxu0
    %v3748 = vadd.f32 0.0, %v3747
    %v3749 = vpop.f32.mrf.mxu0
    %v3750 = vadd.f32 0.0, %v3749
    %v3751 = vpop.f32.mrf.mxu0
    %v3752 = vadd.f32 0.0, %v3751
    %v3753 = vpop.f32.mrf.mxu0
    %v3754 = vadd.f32 0.0, %v3753
    %3755 = vmatprep.mubr.bf16.mxu0 %v3645
    %3756 = vmatmul.mubr.bf16.gmra.mxu0 %v3424
    %v3757 = vpop.f32.mrf.mxu0
    %v3758 = vadd.f32 0.0, %v3757
    %v3759 = vpop.f32.mrf.mxu0
    %v3760 = vadd.f32 0.0, %v3759
    %v3761 = vpop.f32.mrf.mxu0
    %v3762 = vadd.f32 0.0, %v3761
    %v3763 = vpop.f32.mrf.mxu0
    %v3764 = vadd.f32 0.0, %v3763
    %3765 = vdwg.mxu0
    %v3808 = vunpack.c.l.b16 %v3313
    %v3809 = vunpack.c.h.b16 %v3313
    %v3810 = vunpack.c.l.b16 %v3314
    %v3811 = vunpack.c.h.b16 %v3314
    %v3812 = vunpack.c.l.b16 %v3315
    %v3813 = vunpack.c.h.b16 %v3315
    %v3814 = vunpack.c.l.b16 %v3316
    %v3815 = vunpack.c.h.b16 %v3316
    %v3816 = vunpack.c.l.b16 %v3317
    %v3817 = vunpack.c.h.b16 %v3317
    %v3818 = vunpack.c.l.b16 %v3318
    %v3819 = vunpack.c.h.b16 %v3318
    %v3820 = vunpack.c.l.b16 %v3319
    %v3821 = vunpack.c.h.b16 %v3319
    %v3822 = vunpack.c.l.b16 %v3320
    %v3823 = vunpack.c.h.b16 %v3320
    %v3824 = vunpack.c.l.b16 %v3321
    %v3825 = vunpack.c.h.b16 %v3321
    %v3826 = vunpack.c.l.b16 %v3322
    %v3827 = vunpack.c.h.b16 %v3322
    %v3828 = vunpack.c.l.b16 %v3323
    %v3829 = vunpack.c.h.b16 %v3323
    %v3830 = vunpack.c.l.b16 %v3324
    %v3831 = vunpack.c.h.b16 %v3324
    %v3832 = vunpack.c.l.b16 %v3325
    %v3833 = vunpack.c.h.b16 %v3325
    %v3834 = vunpack.c.l.b16 %v3326
    %v3835 = vunpack.c.h.b16 %v3326
    %v3836 = vunpack.c.l.b16 %v3327
    %v3837 = vunpack.c.h.b16 %v3327
    %v3838 = vunpack.c.l.b16 %v3328
    %v3839 = vunpack.c.h.b16 %v3328
    %v3840 = vunpack.c.l.b16 %v3329
    %v3841 = vunpack.c.h.b16 %v3329
    %v3842 = vunpack.c.l.b16 %v3330
    %v3843 = vunpack.c.h.b16 %v3330
    %v3844 = vunpack.c.l.b16 %v3331
    %v3845 = vunpack.c.h.b16 %v3331
    %v3846 = vunpack.c.l.b16 %v3332
    %v3847 = vunpack.c.h.b16 %v3332
    %v3848 = vunpack.c.l.b16 %v3333
    %v3849 = vunpack.c.h.b16 %v3333
    %v3850 = vunpack.c.l.b16 %v3334
    %v3851 = vunpack.c.h.b16 %v3334
    %v3852 = vunpack.c.l.b16 %v3335
    %v3853 = vunpack.c.h.b16 %v3335
    %v3854 = vunpack.c.l.b16 %v3336
    %v3855 = vunpack.c.h.b16 %v3336
    %v3856 = vunpack.c.l.b16 %v3337
    %v3857 = vunpack.c.h.b16 %v3337
    %v3858 = vunpack.c.l.b16 %v3338
    %v3859 = vunpack.c.h.b16 %v3338
    %v3860 = vunpack.c.l.b16 %v3339
    %v3861 = vunpack.c.h.b16 %v3339
    %v3862 = vunpack.c.l.b16 %v3340
    %v3863 = vunpack.c.h.b16 %v3340
    %v3864 = vunpack.c.l.b16 %v3341
    %v3865 = vunpack.c.h.b16 %v3341
    %v3866 = vunpack.c.l.b16 %v3342
    %v3867 = vunpack.c.h.b16 %v3342
    %v3868 = vunpack.c.l.b16 %v3343
    %v3869 = vunpack.c.h.b16 %v3343
    %v3870 = vunpack.c.l.b16 %v3344
    %v3871 = vunpack.c.h.b16 %v3344
    %v3872 = vunpack.c.l.b16 %v3345
    %v3873 = vunpack.c.h.b16 %v3345
    %v3874 = vunpack.c.l.b16 %v3346
    %v3875 = vunpack.c.h.b16 %v3346
    %v3876 = vunpack.c.l.b16 %v3347
    %v3877 = vunpack.c.h.b16 %v3347
    %v3878 = vunpack.c.l.b16 %v3348
    %v3879 = vunpack.c.h.b16 %v3348
    %v3880 = vunpack.c.l.b16 %v3349
    %v3881 = vunpack.c.h.b16 %v3349
    %v3882 = vunpack.c.l.b16 %v3350
    %v3883 = vunpack.c.h.b16 %v3350
    %v3884 = vunpack.c.l.b16 %v3351
    %v3885 = vunpack.c.h.b16 %v3351
    %v3886 = vunpack.c.l.b16 %v3352
    %v3887 = vunpack.c.h.b16 %v3352
    %v3888 = vunpack.c.l.b16 %v3353
    %v3889 = vunpack.c.h.b16 %v3353
    %v3890 = vunpack.c.l.b16 %v3354
    %v3891 = vunpack.c.h.b16 %v3354
    %v3892 = vpack.c.b16 %v3812, %v3808
    %v3893 = vpack.c.b16 %v3813, %v3809
    %v3894 = vpack.c.b16 %v3814, %v3810
    %v3895 = vpack.c.b16 %v3815, %v3811
    %v3896 = vpack.c.b16 %v3820, %v3816
    %v3897 = vpack.c.b16 %v3821, %v3817
    %v3898 = vpack.c.b16 %v3822, %v3818
    %v3899 = vpack.c.b16 %v3823, %v3819
    %v3900 = vpack.c.b16 %v3828, %v3824
    %v3901 = vpack.c.b16 %v3829, %v3825
    %v3902 = vpack.c.b16 %v3830, %v3826
    %v3903 = vpack.c.b16 %v3831, %v3827
    %v3904 = vpack.c.b16 %v3836, %v3832
    %v3905 = vpack.c.b16 %v3837, %v3833
    %v3906 = vpack.c.b16 %v3838, %v3834
    %v3907 = vpack.c.b16 %v3839, %v3835
    %v3908 = vpack.c.b16 %v3844, %v3840
    %v3909 = vpack.c.b16 %v3845, %v3841
    %v3910 = vpack.c.b16 %v3846, %v3842
    %v3911 = vpack.c.b16 %v3847, %v3843
    %v3912 = vpack.c.b16 %v3852, %v3848
    %v3913 = vpack.c.b16 %v3853, %v3849
    %v3914 = vpack.c.b16 %v3854, %v3850
    %v3915 = vpack.c.b16 %v3855, %v3851
    %v3916 = vpack.c.b16 %v3860, %v3856
    %v3917 = vpack.c.b16 %v3861, %v3857
    %v3918 = vpack.c.b16 %v3862, %v3858
    %v3919 = vpack.c.b16 %v3863, %v3859
    %v3920 = vpack.c.b16 %v3868, %v3864
    %v3921 = vpack.c.b16 %v3869, %v3865
    %v3922 = vpack.c.b16 %v3870, %v3866
    %v3923 = vpack.c.b16 %v3871, %v3867
    %v3924 = vpack.c.b16 %v3876, %v3872
    %v3925 = vpack.c.b16 %v3877, %v3873
    %v3926 = vpack.c.b16 %v3878, %v3874
    %v3927 = vpack.c.b16 %v3879, %v3875
    %v3928 = vpack.c.b16 %v3884, %v3880
    %v3929 = vpack.c.b16 %v3885, %v3881
    %v3930 = vpack.c.b16 %v3886, %v3882
    %v3931 = vpack.c.b16 %v3887, %v3883
    %v3932 = vpack.c.b16 %v3888, %v3888
    %v3933 = vpack.c.b16 %v3889, %v3889
    %v3934 = vpack.c.b16 %v3890, %v3890
    %v3935 = vpack.c.b16 %v3891, %v3891
    %v3976 = vsel %vm3640, %v3310, 0
    %v3978 = vsel %vm3640, %v3312, 0
    %v3981 = vsel %vm3647, %v3932, 0
    %v3984 = vsel %vm3647, %v3933, 0
    %v3987 = vsel %vm3647, %v3934, 0
    %v3990 = vsel %vm3647, %v3935, 0
    %3992 = vmatprep.subr.bf16.mxu0 %v3921
    %3993 = vmatpush1.bf16.msra.mxu0 %v3920
    %3994 = vmatprep.subr.bf16.mxu0 %v3917
    %3995 = vmatpush1.bf16.msra.mxu0 %v3916
    %3996 = vmatprep.subr.bf16.mxu0 %v3913
    %3997 = vmatpush1.bf16.msra.mxu0 %v3912
    %3998 = vmatprep.subr.bf16.mxu0 %v3909
    %3999 = vmatpush1.bf16.msra.mxu0 %v3908
    %4000 = vmatprep.subr.bf16.mxu0 %v3905
    %4001 = vmatpush1.bf16.msra.mxu0 %v3904
    %4002 = vmatprep.subr.bf16.mxu0 %v3901
    %4003 = vmatpush1.bf16.msra.mxu0 %v3900
    %4004 = vmatprep.subr.bf16.mxu0 %v3897
    %4005 = vmatpush1.bf16.msra.mxu0 %v3896
    %4006 = vmatprep.subr.bf16.mxu0 %v3893
    %4007 = vmatpush1.bf16.msra.mxu0 %v3892
    %4008 = vmatprep.subr.bf16.mxu0 0
    %4009 = vmatpush2.bf16.msra.mxu0 0
    %4010 = vmatprep.subr.bf16.mxu0 0
    %4011 = vmatpush2.bf16.msra.mxu0 0
    %4012 = vmatprep.subr.bf16.mxu0 0
    %4013 = vmatpush2.bf16.msra.mxu0 0
    %4014 = vmatprep.subr.bf16.mxu0 0
    %4015 = vmatpush2.bf16.msra.mxu0 0
    %4016 = vmatprep.subr.bf16.mxu0 0
    %4017 = vmatpush2.bf16.msra.mxu0 0
    %4018 = vmatprep.subr.bf16.mxu0 %v3984
    %4019 = vmatpush2.bf16.msra.mxu0 %v3981
    %4020 = vmatprep.subr.bf16.mxu0 %v3929
    %4021 = vmatpush2.bf16.msra.mxu0 %v3928
    %4022 = vmatprep.subr.bf16.mxu0 %v3925
    %4023 = vmatpush2.bf16.msra.mxu0 %v3924
    %4024 = vmatprep.mubr.bf16.mxu0 %v3976
    %4025 = vmatmul.mubr.bf16.gmra.mxu0 %v3309
    %v4026 = vpop.f32.mrf.mxu0
    %v4027 = vadd.f32 %v3695, %v4026
    %v4028 = vpop.f32.mrf.mxu0
    %v4029 = vadd.f32 %v3697, %v4028
    %v4030 = vpop.f32.mrf.mxu0
    %v4031 = vadd.f32 %v3699, %v4030
    %v4032 = vpop.f32.mrf.mxu0
    %v4033 = vadd.f32 %v3701, %v4032
    %4034 = vmatprep.mubr.bf16.mxu0 %v3978
    %4035 = vmatmul.mubr.bf16.gmra.mxu0 %v3311
    %v4036 = vpop.f32.mrf.mxu0
    %v4037 = vadd.f32 %v3705, %v4036
    %v4038 = vpop.f32.mrf.mxu0
    %v4039 = vadd.f32 %v3707, %v4038
    %v4040 = vpop.f32.mrf.mxu0
    %v4041 = vadd.f32 %v3709, %v4040
    %v4042 = vpop.f32.mrf.mxu0
    %v4043 = vadd.f32 %v3711, %v4042
    %4044 = vdwg.mxu0
    %4045 = vmatprep.subr.bf16.mxu0 %v3923
    %4046 = vmatpush1.bf16.msra.mxu0 %v3922
    %4047 = vmatprep.subr.bf16.mxu0 %v3919
    %4048 = vmatpush1.bf16.msra.mxu0 %v3918
    %4049 = vmatprep.subr.bf16.mxu0 %v3915
    %4050 = vmatpush1.bf16.msra.mxu0 %v3914
    %4051 = vmatprep.subr.bf16.mxu0 %v3911
    %4052 = vmatpush1.bf16.msra.mxu0 %v3910
    %4053 = vmatprep.subr.bf16.mxu0 %v3907
    %4054 = vmatpush1.bf16.msra.mxu0 %v3906
    %4055 = vmatprep.subr.bf16.mxu0 %v3903
    %4056 = vmatpush1.bf16.msra.mxu0 %v3902
    %4057 = vmatprep.subr.bf16.mxu0 %v3899
    %4058 = vmatpush1.bf16.msra.mxu0 %v3898
    %4059 = vmatprep.subr.bf16.mxu0 %v3895
    %4060 = vmatpush1.bf16.msra.mxu0 %v3894
    %4061 = vmatprep.subr.bf16.mxu0 0
    %4062 = vmatpush2.bf16.msra.mxu0 0
    %4063 = vmatprep.subr.bf16.mxu0 0
    %4064 = vmatpush2.bf16.msra.mxu0 0
    %4065 = vmatprep.subr.bf16.mxu0 0
    %4066 = vmatpush2.bf16.msra.mxu0 0
    %4067 = vmatprep.subr.bf16.mxu0 0
    %4068 = vmatpush2.bf16.msra.mxu0 0
    %4069 = vmatprep.subr.bf16.mxu0 0
    %4070 = vmatpush2.bf16.msra.mxu0 0
    %4071 = vmatprep.subr.bf16.mxu0 %v3990
    %4072 = vmatpush2.bf16.msra.mxu0 %v3987
    %4073 = vmatprep.subr.bf16.mxu0 %v3931
    %4074 = vmatpush2.bf16.msra.mxu0 %v3930
    %4075 = vmatprep.subr.bf16.mxu0 %v3927
    %4076 = vmatpush2.bf16.msra.mxu0 %v3926
    %4077 = vmatprep.mubr.bf16.mxu0 %v3976
    %4078 = vmatmul.mubr.bf16.gmra.mxu0 %v3309
    %v4079 = vpop.f32.mrf.mxu0
    %v4080 = vadd.f32 %v3748, %v4079
    %v4081 = vpop.f32.mrf.mxu0
    %v4082 = vadd.f32 %v3750, %v4081
    %v4083 = vpop.f32.mrf.mxu0
    %v4084 = vadd.f32 %v3752, %v4083
    %v4085 = vpop.f32.mrf.mxu0
    %v4086 = vadd.f32 %v3754, %v4085
    %4087 = vmatprep.mubr.bf16.mxu0 %v3978
    %4088 = vmatmul.mubr.bf16.gmra.mxu0 %v3311
    %v4089 = vpop.f32.mrf.mxu0
    %v4090 = vadd.f32 %v3758, %v4089
    %v4091 = vpop.f32.mrf.mxu0
    %v4092 = vadd.f32 %v3760, %v4091
    %v4093 = vpop.f32.mrf.mxu0
    %v4094 = vadd.f32 %v3762, %v4093
    %v4095 = vpop.f32.mrf.mxu0
    %v4096 = vadd.f32 %v3764, %v4095
    %4097 = vdwg.mxu0
    %s4098 = scalar_lea.vmem %s4, 672
    %v4099 = vld [vmem:[%s4098] sm:$0xff]
    %v4100 = vld [vmem:[%s4098 + $0x8] sm:$0xff]
    %v4101 = vld [vmem:[%s4098 + $0x10] sm:$0xff]
    %v4102 = vld [vmem:[%s4098 + $0x18] sm:$0xff]
    %v4103 = vld [vmem:[%s4098 + $0x20] sm:$0xff]
    %v4104 = vld [vmem:[%s4098 + $0x28] sm:$0xff]
    %v4105 = vld [vmem:[%s4098 + $0x30] sm:$0xff]
    %v4106 = vld [vmem:[%s4098 + $0x38] sm:$0xff]
    %v4107 = vld [vmem:[%s4098 + $0x40] sm:$0xff]
    %v4108 = vld [vmem:[%s4098 + $0x48] sm:$0xff]
    %v4109 = vld [vmem:[%s4098 + $0x50] sm:$0xff]
    %v4110 = vld [vmem:[%s4098 + $0x58] sm:$0xff]
    %v4111 = vld [vmem:[%s4098 + $0x60] sm:$0xff]
    %v4112 = vld [vmem:[%s4098 + $0x68] sm:$0xff]
    %v4113 = vld [vmem:[%s4098 + $0x70] sm:$0xff]
    %v4114 = vld [vmem:[%s4098 + $0x78] sm:$0xff]
    %v4115 = vld [vmem:[%s4098 + $0x80] sm:$0xff]
    %v4116 = vld [vmem:[%s4098 + $0x88] sm:$0xff]
    %v4117 = vld [vmem:[%s4098 + $0x90] sm:$0xff]
    %v4118 = vld [vmem:[%s4098 + $0x98] sm:$0xff]
    %v4119 = vld [vmem:[%s4098 + $0xa0] sm:$0xff]
    %v4120 = vld [vmem:[%s4098 + $0xa8] sm:$0xff]
    %v4121 = vld [vmem:[%s4098 + $0xb0] sm:$0xff]
    %v4122 = vld [vmem:[%s4098 + $0xb8] sm:$0xff]
    %v4123 = vld [vmem:[%s4098 + $0xc0] sm:$0xff]
    %v4124 = vld [vmem:[%s4098 + $0xc8] sm:$0xff]
    %v4125 = vld [vmem:[%s4098 + $0xd0] sm:$0xff]
    %v4126 = vld [vmem:[%s4098 + $0xd8] sm:$0xff]
    %v4127 = vld [vmem:[%s4098 + $0xe0] sm:$0xff]
    %v4128 = vld [vmem:[%s4098 + $0xe8] sm:$0xff]
    %v4129 = vld [vmem:[%s4098 + $0xf0] sm:$0xff]
    %v4130 = vld [vmem:[%s4098 + $0xf8] sm:$0xff]
    %v4131 = vld [vmem:[%s4098 + $0x100] sm:$0xff]
    %v4132 = vld [vmem:[%s4098 + $0x108] sm:$0xff]
    %v4133 = vld [vmem:[%s4098 + $0x110] sm:$0xff]
    %v4134 = vld [vmem:[%s4098 + $0x118] sm:$0xff]
    %v4135 = vld [vmem:[%s4098 + $0x120] sm:$0xff]
    %v4136 = vld [vmem:[%s4098 + $0x128] sm:$0xff]
    %v4137 = vld [vmem:[%s4098 + $0x130] sm:$0xff]
    %v4138 = vld [vmem:[%s4098 + $0x138] sm:$0xff]
    %v4139 = vld [vmem:[%s4098 + $0x140] sm:$0xff]
    %v4140 = vld [vmem:[%s4098 + $0x148] sm:$0xff]
    %v4145 = vrot.slane %v3309, 1
    %v4146 = vrot.slane %v3311, 1
    %v4147 = vsel %vm1118, %v4145, %v4146
    %v4148 = vrot.slane %v3310, 1
    %v4149 = vrot.slane %v3312, 1
    %v4150 = vsel %vm1118, %v4148, %v4149
    %v4195 = vunpack.c.l.b16 %v4099
    %v4196 = vunpack.c.h.b16 %v4099
    %v4197 = vunpack.c.l.b16 %v4100
    %v4198 = vunpack.c.h.b16 %v4100
    %v4199 = vunpack.c.l.b16 %v4101
    %v4200 = vunpack.c.h.b16 %v4101
    %v4201 = vunpack.c.l.b16 %v4102
    %v4202 = vunpack.c.h.b16 %v4102
    %v4203 = vunpack.c.l.b16 %v4103
    %v4204 = vunpack.c.h.b16 %v4103
    %v4205 = vunpack.c.l.b16 %v4104
    %v4206 = vunpack.c.h.b16 %v4104
    %v4207 = vunpack.c.l.b16 %v4105
    %v4208 = vunpack.c.h.b16 %v4105
    %v4209 = vunpack.c.l.b16 %v4106
    %v4210 = vunpack.c.h.b16 %v4106
    %v4211 = vunpack.c.l.b16 %v4107
    %v4212 = vunpack.c.h.b16 %v4107
    %v4213 = vunpack.c.l.b16 %v4108
    %v4214 = vunpack.c.h.b16 %v4108
    %v4215 = vunpack.c.l.b16 %v4109
    %v4216 = vunpack.c.h.b16 %v4109
    %v4217 = vunpack.c.l.b16 %v4110
    %v4218 = vunpack.c.h.b16 %v4110
    %v4219 = vunpack.c.l.b16 %v4111
    %v4220 = vunpack.c.h.b16 %v4111
    %v4221 = vunpack.c.l.b16 %v4112
    %v4222 = vunpack.c.h.b16 %v4112
    %v4223 = vunpack.c.l.b16 %v4113
    %v4224 = vunpack.c.h.b16 %v4113
    %v4225 = vunpack.c.l.b16 %v4114
    %v4226 = vunpack.c.h.b16 %v4114
    %v4227 = vunpack.c.l.b16 %v4115
    %v4228 = vunpack.c.h.b16 %v4115
    %v4229 = vunpack.c.l.b16 %v4116
    %v4230 = vunpack.c.h.b16 %v4116
    %v4231 = vunpack.c.l.b16 %v4117
    %v4232 = vunpack.c.h.b16 %v4117
    %v4233 = vunpack.c.l.b16 %v4118
    %v4234 = vunpack.c.h.b16 %v4118
    %v4235 = vunpack.c.l.b16 %v4119
    %v4236 = vunpack.c.h.b16 %v4119
    %v4237 = vunpack.c.l.b16 %v4120
    %v4238 = vunpack.c.h.b16 %v4120
    %v4239 = vunpack.c.l.b16 %v4121
    %v4240 = vunpack.c.h.b16 %v4121
    %v4241 = vunpack.c.l.b16 %v4122
    %v4242 = vunpack.c.h.b16 %v4122
    %v4243 = vunpack.c.l.b16 %v4123
    %v4244 = vunpack.c.h.b16 %v4123
    %v4245 = vunpack.c.l.b16 %v4124
    %v4246 = vunpack.c.h.b16 %v4124
    %v4247 = vunpack.c.l.b16 %v4125
    %v4248 = vunpack.c.h.b16 %v4125
    %v4249 = vunpack.c.l.b16 %v4126
    %v4250 = vunpack.c.h.b16 %v4126
    %v4251 = vunpack.c.l.b16 %v4127
    %v4252 = vunpack.c.h.b16 %v4127
    %v4253 = vunpack.c.l.b16 %v4128
    %v4254 = vunpack.c.h.b16 %v4128
    %v4255 = vunpack.c.l.b16 %v4129
    %v4256 = vunpack.c.h.b16 %v4129
    %v4257 = vunpack.c.l.b16 %v4130
    %v4258 = vunpack.c.h.b16 %v4130
    %v4259 = vunpack.c.l.b16 %v4131
    %v4260 = vunpack.c.h.b16 %v4131
    %v4261 = vunpack.c.l.b16 %v4132
    %v4262 = vunpack.c.h.b16 %v4132
    %v4263 = vunpack.c.l.b16 %v4133
    %v4264 = vunpack.c.h.b16 %v4133
    %v4265 = vunpack.c.l.b16 %v4134
    %v4266 = vunpack.c.h.b16 %v4134
    %v4267 = vunpack.c.l.b16 %v4135
    %v4268 = vunpack.c.h.b16 %v4135
    %v4269 = vunpack.c.l.b16 %v4136
    %v4270 = vunpack.c.h.b16 %v4136
    %v4271 = vunpack.c.l.b16 %v4137
    %v4272 = vunpack.c.h.b16 %v4137
    %v4273 = vunpack.c.l.b16 %v4138
    %v4274 = vunpack.c.h.b16 %v4138
    %v4275 = vunpack.c.l.b16 %v4139
    %v4276 = vunpack.c.h.b16 %v4139
    %v4277 = vunpack.c.l.b16 %v4140
    %v4278 = vunpack.c.h.b16 %v4140
    %v4279 = vpack.c.b16 %v4199, %v4195
    %v4280 = vpack.c.b16 %v4200, %v4196
    %v4281 = vpack.c.b16 %v4201, %v4197
    %v4282 = vpack.c.b16 %v4202, %v4198
    %v4283 = vpack.c.b16 %v4207, %v4203
    %v4284 = vpack.c.b16 %v4208, %v4204
    %v4285 = vpack.c.b16 %v4209, %v4205
    %v4286 = vpack.c.b16 %v4210, %v4206
    %v4287 = vpack.c.b16 %v4215, %v4211
    %v4288 = vpack.c.b16 %v4216, %v4212
    %v4289 = vpack.c.b16 %v4217, %v4213
    %v4290 = vpack.c.b16 %v4218, %v4214
    %v4291 = vpack.c.b16 %v4223, %v4219
    %v4292 = vpack.c.b16 %v4224, %v4220
    %v4293 = vpack.c.b16 %v4225, %v4221
    %v4294 = vpack.c.b16 %v4226, %v4222
    %v4295 = vpack.c.b16 %v4231, %v4227
    %v4296 = vpack.c.b16 %v4232, %v4228
    %v4297 = vpack.c.b16 %v4233, %v4229
    %v4298 = vpack.c.b16 %v4234, %v4230
    %v4299 = vpack.c.b16 %v4239, %v4235
    %v4300 = vpack.c.b16 %v4240, %v4236
    %v4301 = vpack.c.b16 %v4241, %v4237
    %v4302 = vpack.c.b16 %v4242, %v4238
    %v4303 = vpack.c.b16 %v4247, %v4243
    %v4304 = vpack.c.b16 %v4248, %v4244
    %v4305 = vpack.c.b16 %v4249, %v4245
    %v4306 = vpack.c.b16 %v4250, %v4246
    %v4307 = vpack.c.b16 %v4255, %v4251
    %v4308 = vpack.c.b16 %v4256, %v4252
    %v4309 = vpack.c.b16 %v4257, %v4253
    %v4310 = vpack.c.b16 %v4258, %v4254
    %v4311 = vpack.c.b16 %v4263, %v4259
    %v4312 = vpack.c.b16 %v4264, %v4260
    %v4313 = vpack.c.b16 %v4265, %v4261
    %v4314 = vpack.c.b16 %v4266, %v4262
    %v4315 = vpack.c.b16 %v4271, %v4267
    %v4316 = vpack.c.b16 %v4272, %v4268
    %v4317 = vpack.c.b16 %v4273, %v4269
    %v4318 = vpack.c.b16 %v4274, %v4270
    %v4319 = vpack.c.b16 %v4275, %v4275
    %v4320 = vpack.c.b16 %v4276, %v4276
    %v4321 = vpack.c.b16 %v4277, %v4277
    %v4322 = vpack.c.b16 %v4278, %v4278
    %v4364 = vsel %vm3640, %v4150, 0
    %v4367 = vsel %vm3640, %v4149, 0
    %v4370 = vsel %vm3647, %v4319, 0
    %v4373 = vsel %vm3647, %v4320, 0
    %v4376 = vsel %vm3647, %v4321, 0
    %v4379 = vsel %vm3647, %v4322, 0
    %4381 = vmatprep.subr.bf16.mxu0 %v4308
    %4382 = vmatpush1.bf16.msra.mxu0 %v4307
    %4383 = vmatprep.subr.bf16.mxu0 %v4304
    %4384 = vmatpush1.bf16.msra.mxu0 %v4303
    %4385 = vmatprep.subr.bf16.mxu0 %v4300
    %4386 = vmatpush1.bf16.msra.mxu0 %v4299
    %4387 = vmatprep.subr.bf16.mxu0 %v4296
    %4388 = vmatpush1.bf16.msra.mxu0 %v4295
    %4389 = vmatprep.subr.bf16.mxu0 %v4292
    %4390 = vmatpush1.bf16.msra.mxu0 %v4291
    %4391 = vmatprep.subr.bf16.mxu0 %v4288
    %4392 = vmatpush1.bf16.msra.mxu0 %v4287
    %4393 = vmatprep.subr.bf16.mxu0 %v4284
    %4394 = vmatpush1.bf16.msra.mxu0 %v4283
    %4395 = vmatprep.subr.bf16.mxu0 %v4280
    %4396 = vmatpush1.bf16.msra.mxu0 %v4279
    %4397 = vmatprep.subr.bf16.mxu0 0
    %4398 = vmatpush2.bf16.msra.mxu0 0
    %4399 = vmatprep.subr.bf16.mxu0 0
    %4400 = vmatpush2.bf16.msra.mxu0 0
    %4401 = vmatprep.subr.bf16.mxu0 0
    %4402 = vmatpush2.bf16.msra.mxu0 0
    %4403 = vmatprep.subr.bf16.mxu0 0
    %4404 = vmatpush2.bf16.msra.mxu0 0
    %4405 = vmatprep.subr.bf16.mxu0 0
    %4406 = vmatpush2.bf16.msra.mxu0 0
    %4407 = vmatprep.subr.bf16.mxu0 %v4373
    %4408 = vmatpush2.bf16.msra.mxu0 %v4370
    %4409 = vmatprep.subr.bf16.mxu0 %v4316
    %4410 = vmatpush2.bf16.msra.mxu0 %v4315
    %4411 = vmatprep.subr.bf16.mxu0 %v4312
    %4412 = vmatpush2.bf16.msra.mxu0 %v4311
    %4413 = vmatprep.mubr.bf16.mxu0 %v4364
    %4414 = vmatmul.mubr.bf16.gmra.mxu0 %v4147
    %v4415 = vpop.f32.mrf.mxu0
    %v4416 = vadd.f32 0.0, %v4415
    %v4417 = vpop.f32.mrf.mxu0
    %v4418 = vadd.f32 0.0, %v4417
    %v4419 = vpop.f32.mrf.mxu0
    %v4420 = vadd.f32 0.0, %v4419
    %v4421 = vpop.f32.mrf.mxu0
    %v4422 = vadd.f32 0.0, %v4421
    %4423 = vmatprep.mubr.bf16.mxu0 %v4367
    %4424 = vmatmul.mubr.bf16.gmra.mxu0 %v4146
    %v4425 = vpop.f32.mrf.mxu0
    %v4426 = vadd.f32 0.0, %v4425
    %v4427 = vpop.f32.mrf.mxu0
    %v4428 = vadd.f32 0.0, %v4427
    %v4429 = vpop.f32.mrf.mxu0
    %v4430 = vadd.f32 0.0, %v4429
    %v4431 = vpop.f32.mrf.mxu0
    %v4432 = vadd.f32 0.0, %v4431
    %4433 = vdwg.mxu0
    %4434 = vmatprep.subr.bf16.mxu0 %v4310
    %4435 = vmatpush1.bf16.msra.mxu0 %v4309
    %4436 = vmatprep.subr.bf16.mxu0 %v4306
    %4437 = vmatpush1.bf16.msra.mxu0 %v4305
    %4438 = vmatprep.subr.bf16.mxu0 %v4302
    %4439 = vmatpush1.bf16.msra.mxu0 %v4301
    %4440 = vmatprep.subr.bf16.mxu0 %v4298
    %4441 = vmatpush1.bf16.msra.mxu0 %v4297
    %4442 = vmatprep.subr.bf16.mxu0 %v4294
    %4443 = vmatpush1.bf16.msra.mxu0 %v4293
    %4444 = vmatprep.subr.bf16.mxu0 %v4290
    %4445 = vmatpush1.bf16.msra.mxu0 %v4289
    %4446 = vmatprep.subr.bf16.mxu0 %v4286
    %4447 = vmatpush1.bf16.msra.mxu0 %v4285
    %4448 = vmatprep.subr.bf16.mxu0 %v4282
    %4449 = vmatpush1.bf16.msra.mxu0 %v4281
    %4450 = vmatprep.subr.bf16.mxu0 0
    %4451 = vmatpush2.bf16.msra.mxu0 0
    %4452 = vmatprep.subr.bf16.mxu0 0
    %4453 = vmatpush2.bf16.msra.mxu0 0
    %4454 = vmatprep.subr.bf16.mxu0 0
    %4455 = vmatpush2.bf16.msra.mxu0 0
    %4456 = vmatprep.subr.bf16.mxu0 0
    %4457 = vmatpush2.bf16.msra.mxu0 0
    %4458 = vmatprep.subr.bf16.mxu0 0
    %4459 = vmatpush2.bf16.msra.mxu0 0
    %4460 = vmatprep.subr.bf16.mxu0 %v4379
    %4461 = vmatpush2.bf16.msra.mxu0 %v4376
    %4462 = vmatprep.subr.bf16.mxu0 %v4318
    %4463 = vmatpush2.bf16.msra.mxu0 %v4317
    %4464 = vmatprep.subr.bf16.mxu0 %v4314
    %4465 = vmatpush2.bf16.msra.mxu0 %v4313
    %4466 = vmatprep.mubr.bf16.mxu0 %v4364
    %4467 = vmatmul.mubr.bf16.gmra.mxu0 %v4147
    %v4468 = vpop.f32.mrf.mxu0
    %v4469 = vadd.f32 0.0, %v4468
    %v4470 = vpop.f32.mrf.mxu0
    %v4471 = vadd.f32 0.0, %v4470
    %v4472 = vpop.f32.mrf.mxu0
    %v4473 = vadd.f32 0.0, %v4472
    %v4474 = vpop.f32.mrf.mxu0
    %v4475 = vadd.f32 0.0, %v4474
    %4476 = vmatprep.mubr.bf16.mxu0 %v4367
    %4477 = vmatmul.mubr.bf16.gmra.mxu0 %v4146
    %v4478 = vpop.f32.mrf.mxu0
    %v4479 = vadd.f32 0.0, %v4478
    %v4480 = vpop.f32.mrf.mxu0
    %v4481 = vadd.f32 0.0, %v4480
    %v4482 = vpop.f32.mrf.mxu0
    %v4483 = vadd.f32 0.0, %v4482
    %v4484 = vpop.f32.mrf.mxu0
    %v4485 = vadd.f32 0.0, %v4484
    %4486 = vdwg.mxu0
    %v4487 = vadd.f32 %v4027, %v4416
    %v4488 = vadd.f32 %v4029, %v4418
    %v4489 = vadd.f32 %v4080, %v4469
    %v4490 = vadd.f32 %v4082, %v4471
    %v4491 = vadd.f32 %v4031, %v4420
    %v4492 = vadd.f32 %v4033, %v4422
    %v4493 = vadd.f32 %v4084, %v4473
    %v4494 = vadd.f32 %v4086, %v4475
    %v4495 = vadd.f32 %v4037, %v4426
    %v4496 = vadd.f32 %v4039, %v4428
    %v4497 = vadd.f32 %v4090, %v4479
    %v4498 = vadd.f32 %v4092, %v4481
    %v4499 = vadd.f32 %v4041, %v4430
    %v4500 = vadd.f32 %v4043, %v4432
    %v4501 = vadd.f32 %v4094, %v4483
    %v4502 = vadd.f32 %v4096, %v4485
    %v4503 = vld [vmem:[%s5] sm:$0xf]
    %v4505 = vlaneseq
    %v4506 = vshrl.u32 %v4505, 7
    %v4507 = vsub.s32 0, %v4506
    %v4508 = vrot.slane %v4503, %v4507
    %v4509 = vlaneseq
    %v4510 = vshrl.u32 %v4509, 7
    %v4511 = vsub.s32 1, %v4510
    %v4512 = vrot.slane %v4503, %v4511
    %v4513 = vlaneseq
    %v4514 = vshrl.u32 %v4513, 7
    %v4515 = vsub.s32 2, %v4514
    %v4516 = vrot.slane %v4503, %v4515
    %v4517 = vlaneseq
    %v4518 = vshrl.u32 %v4517, 7
    %v4519 = vsub.s32 3, %v4518
    %v4520 = vrot.slane %v4503, %v4519
    %v4525 = vadd.f32 %v4487, %v4508
    %v4526 = vadd.f32 %v4488, %v4512
    %v4527 = vadd.f32 %v4489, %v4516
    %v4528 = vadd.f32 %v4490, %v4520
    %v4529 = vadd.f32 %v4491, %v4508
    %v4530 = vadd.f32 %v4492, %v4512
    %v4531 = vadd.f32 %v4493, %v4516
    %v4532 = vadd.f32 %v4494, %v4520
    %v4533 = vadd.f32 %v4495, %v4508
    %v4534 = vadd.f32 %v4496, %v4512
    %v4535 = vadd.f32 %v4497, %v4516
    %v4536 = vadd.f32 %v4498, %v4520
    %v4537 = vadd.f32 %v4499, %v4508
    %v4538 = vadd.f32 %v4500, %v4512
    %v4539 = vadd.f32 %v4501, %v4516
    %v4540 = vadd.f32 %v4502, %v4520
    %v4541 = vmax.f32 %v4525, 0.0
    %v4542 = vmax.f32 %v4526, 0.0
    %v4543 = vmax.f32 %v4527, 0.0
    %v4544 = vmax.f32 %v4528, 0.0
    %v4545 = vmax.f32 %v4529, 0.0
    %v4546 = vmax.f32 %v4530, 0.0
    %v4547 = vmax.f32 %v4531, 0.0
    %v4548 = vmax.f32 %v4532, 0.0
    %v4549 = vmax.f32 %v4533, 0.0
    %v4550 = vmax.f32 %v4534, 0.0
    %v4551 = vmax.f32 %v4535, 0.0
    %v4552 = vmax.f32 %v4536, 0.0
    %v4553 = vmax.f32 %v4537, 0.0
    %v4554 = vmax.f32 %v4538, 0.0
    %v4555 = vmax.f32 %v4539, 0.0
    %v4556 = vmax.f32 %v4540, 0.0
    %v4573 = vrot.slane %v4541, 1
    %v4574 = vrot.slane %v4545, 1
    %v4575 = vsel %vm2567, %v4573, %v4574
    %v4576 = vrot.slane %v4542, 1
    %v4577 = vrot.slane %v4546, 1
    %v4578 = vsel %vm2567, %v4576, %v4577
    %v4579 = vrot.slane %v4543, 1
    %v4580 = vrot.slane %v4547, 1
    %v4581 = vsel %vm2567, %v4579, %v4580
    %v4582 = vrot.slane %v4544, 1
    %v4583 = vrot.slane %v4548, 1
    %v4584 = vsel %vm2567, %v4582, %v4583
    %v4585 = vrot.slane %v4549, 1
    %v4586 = vsel %vm2567, %v4574, %v4585
    %v4587 = vrot.slane %v4550, 1
    %v4588 = vsel %vm2567, %v4577, %v4587
    %v4589 = vrot.slane %v4551, 1
    %v4590 = vsel %vm2567, %v4580, %v4589
    %v4591 = vrot.slane %v4552, 1
    %v4592 = vsel %vm2567, %v4583, %v4591
    %v4593 = vrot.slane %v4553, 1
    %v4594 = vsel %vm2567, %v4585, %v4593
    %v4595 = vrot.slane %v4554, 1
    %v4596 = vsel %vm2567, %v4587, %v4595
    %v4597 = vrot.slane %v4555, 1
    %v4598 = vsel %vm2567, %v4589, %v4597
    %v4599 = vrot.slane %v4556, 1
    %v4600 = vsel %vm2567, %v4591, %v4599
    %v4617 = vmax.f32 %v4541, %v4575
    %v4618 = vmax.f32 %v4542, %v4578
    %v4619 = vmax.f32 %v4543, %v4581
    %v4620 = vmax.f32 %v4544, %v4584
    %v4621 = vmax.f32 %v4545, %v4586
    %v4622 = vmax.f32 %v4546, %v4588
    %v4623 = vmax.f32 %v4547, %v4590
    %v4624 = vmax.f32 %v4548, %v4592
    %v4625 = vmax.f32 %v4549, %v4594
    %v4626 = vmax.f32 %v4550, %v4596
    %v4627 = vmax.f32 %v4551, %v4598
    %v4628 = vmax.f32 %v4552, %v4600
    %v4629 = vmax.f32 %v4553, %v4593
    %v4630 = vmax.f32 %v4554, %v4595
    %v4631 = vmax.f32 %v4555, %v4597
    %v4632 = vmax.f32 %v4556, %v4599
    %4649 = vrot.lane.b32.xlu0 %v4617, 96
    %v4650 = vpop.permute.xlu0 %4649
    %4651 = vrot.lane.b32.xlu0 %v4618, 96
    %v4652 = vpop.permute.xlu0 %4651
    %4653 = vrot.lane.b32.xlu0 %v4619, 96
    %v4654 = vpop.permute.xlu0 %4653
    %4655 = vrot.lane.b32.xlu0 %v4620, 96
    %v4656 = vpop.permute.xlu0 %4655
    %4657 = vrot.lane.b32.xlu0 %v4621, 96
    %v4658 = vpop.permute.xlu0 %4657
    %4659 = vrot.lane.b32.xlu0 %v4622, 96
    %v4660 = vpop.permute.xlu0 %4659
    %4661 = vrot.lane.b32.xlu0 %v4623, 96
    %v4662 = vpop.permute.xlu0 %4661
    %4663 = vrot.lane.b32.xlu0 %v4624, 96
    %v4664 = vpop.permute.xlu0 %4663
    %4665 = vrot.lane.b32.xlu0 %v4625, 96
    %v4666 = vpop.permute.xlu0 %4665
    %4667 = vrot.lane.b32.xlu0 %v4626, 96
    %v4668 = vpop.permute.xlu0 %4667
    %4669 = vrot.lane.b32.xlu0 %v4627, 96
    %v4670 = vpop.permute.xlu0 %4669
    %4671 = vrot.lane.b32.xlu0 %v4628, 96
    %v4672 = vpop.permute.xlu0 %4671
    %4673 = vrot.lane.b32.xlu0 %v4629, 96
    %v4674 = vpop.permute.xlu0 %4673
    %4675 = vrot.lane.b32.xlu0 %v4630, 96
    %v4676 = vpop.permute.xlu0 %4675
    %4677 = vrot.lane.b32.xlu0 %v4631, 96
    %v4678 = vpop.permute.xlu0 %4677
    %4679 = vrot.lane.b32.xlu0 %v4632, 96
    %v4680 = vpop.permute.xlu0 %4679
    %vm4681 = vcmask 785408
    %v4682 = vsel %vm4681, %v4650, %v4652
    %v4683 = vsel %vm4681, %v4652, %v4654
    %v4684 = vsel %vm4681, %v4654, %v4656
    %v4685 = vsel %vm4681, %v4658, %v4660
    %v4686 = vsel %vm4681, %v4660, %v4662
    %v4687 = vsel %vm4681, %v4662, %v4664
    %v4688 = vsel %vm4681, %v4666, %v4668
    %v4689 = vsel %vm4681, %v4668, %v4670
    %v4690 = vsel %vm4681, %v4670, %v4672
    %v4691 = vsel %vm4681, %v4674, %v4676
    %v4692 = vsel %vm4681, %v4676, %v4678
    %v4693 = vsel %vm4681, %v4678, %v4680
    %v4706 = vmax.f32 %v4617, %v4682
    %v4707 = vmax.f32 %v4618, %v4683
    %v4708 = vmax.f32 %v4619, %v4684
    %v4709 = vmax.f32 %v4621, %v4685
    %v4710 = vmax.f32 %v4622, %v4686
    %v4711 = vmax.f32 %v4623, %v4687
    %v4712 = vmax.f32 %v4625, %v4688
    %v4713 = vmax.f32 %v4626, %v4689
    %v4714 = vmax.f32 %v4627, %v4690
    %v4715 = vmax.f32 %v4629, %v4691
    %v4716 = vmax.f32 %v4630, %v4692
    %v4717 = vmax.f32 %v4631, %v4693
    %v4718 = vpack.c.bf16 %v4709, %v4706
    %v4719 = vpack.c.bf16 %v4710, %v4707
    %v4720 = vpack.c.bf16 %v4711, %v4708
    %v4721 = vpack.c.bf16 %v4715, %v4712
    %v4722 = vpack.c.bf16 %v4716, %v4713
    %v4723 = vpack.c.bf16 %v4717, %v4714
    %v4724 = vld [vmem:[%s8] sm:$0xf]
    %v4725 = vld [vmem:[%s8 + $0x4] sm:$0x3]
    %v4728 = vunpack.c.l.b16 %v4724
    %v4729 = vunpack.c.l.b16 %v4725
    %v4730 = vpack.c.b16 %v4729, %v4728
    %vm4731 = vcmask 228352
    %v4733 = vsel %vm4731, %v4730, 0
    %vm4735 = vcmask 1045504
    %v4737 = vsel %vm4735, %v4721, 0
    %v4740 = vsel %vm4735, %v4722, 0
    %v4743 = vsel %vm4735, %v4723, 0
    %4745 = vmatprep.subr.bf16.mxu0 0
    %4746 = vmatpush1.bf16.msra.mxu0 0
    %4747 = vmatprep.subr.bf16.mxu0 0
    %4748 = vmatpush1.bf16.msra.mxu0 0
    %4749 = vmatprep.subr.bf16.mxu0 0
    %4750 = vmatpush1.bf16.msra.mxu0 0
    %4751 = vmatprep.subr.bf16.mxu0 0
    %4752 = vmatpush1.bf16.msra.mxu0 0
    %4753 = vmatprep.subr.bf16.mxu0 0
    %4754 = vmatpush1.bf16.msra.mxu0 0
    %4755 = vmatprep.subr.bf16.mxu0 0
    %4756 = vmatpush1.bf16.msra.mxu0 0
    %4757 = vmatprep.subr.bf16.mxu0 %v4740
    %4758 = vmatpush1.bf16.msra.mxu0 %v4737
    %4759 = vmatprep.subr.bf16.mxu0 %v4719
    %4760 = vmatpush1.bf16.msra.mxu0 %v4718
    %4761 = vmatprep.subr.bf16.mxu0 0
    %4762 = vmatpush2.bf16.msra.mxu0 0
    %4763 = vmatprep.subr.bf16.mxu0 0
    %4764 = vmatpush2.bf16.msra.mxu0 0
    %4765 = vmatprep.subr.bf16.mxu0 0
    %4766 = vmatpush2.bf16.msra.mxu0 0
    %4767 = vmatprep.subr.bf16.mxu0 0
    %4768 = vmatpush2.bf16.msra.mxu0 0
    %4769 = vmatprep.subr.bf16.mxu0 0
    %4770 = vmatpush2.bf16.msra.mxu0 0
    %4771 = vmatprep.subr.bf16.mxu0 0
    %4772 = vmatpush2.bf16.msra.mxu0 0
    %4773 = vmatprep.subr.bf16.mxu0 0
    %4774 = vmatpush2.bf16.msra.mxu0 0
    %4775 = vmatprep.subr.bf16.mxu0 0
    %4776 = vmatpush2.bf16.msra.mxu0 0
    %4777 = vmatprep.mubr.bf16.mxu0 0
    %4778 = vmatmul.mubr.bf16.gmra.mxu0 %v4733
    %v4779 = vpop.f32.mrf.mxu0
    %v4780 = vadd.f32 0.0, %v4779
    %v4781 = vpop.f32.mrf.mxu0
    %v4782 = vadd.f32 0.0, %v4781
    %v4783 = vpop.f32.mrf.mxu0
    %v4784 = vadd.f32 0.0, %v4783
    %v4785 = vpop.f32.mrf.mxu0
    %v4786 = vadd.f32 0.0, %v4785
    %4787 = vdwg.mxu0
    %4788 = vmatprep.subr.bf16.mxu0 0
    %4789 = vmatpush1.bf16.msra.mxu0 0
    %4790 = vmatprep.subr.bf16.mxu0 0
    %4791 = vmatpush1.bf16.msra.mxu0 0
    %4792 = vmatprep.subr.bf16.mxu0 0
    %4793 = vmatpush1.bf16.msra.mxu0 0
    %4794 = vmatprep.subr.bf16.mxu0 0
    %4795 = vmatpush1.bf16.msra.mxu0 0
    %4796 = vmatprep.subr.bf16.mxu0 0
    %4797 = vmatpush1.bf16.msra.mxu0 0
    %4798 = vmatprep.subr.bf16.mxu0 0
    %4799 = vmatpush1.bf16.msra.mxu0 0
    %4800 = vmatprep.subr.bf16.mxu0 0
    %4801 = vmatpush1.bf16.msra.mxu0 %v4743
    %4802 = vmatprep.subr.bf16.mxu0 0
    %4803 = vmatpush1.bf16.msra.mxu0 %v4720
    %4804 = vmatprep.subr.bf16.mxu0 0
    %4805 = vmatpush2.bf16.msra.mxu0 0
    %4806 = vmatprep.subr.bf16.mxu0 0
    %4807 = vmatpush2.bf16.msra.mxu0 0
    %4808 = vmatprep.subr.bf16.mxu0 0
    %4809 = vmatpush2.bf16.msra.mxu0 0
    %4810 = vmatprep.subr.bf16.mxu0 0
    %4811 = vmatpush2.bf16.msra.mxu0 0
    %4812 = vmatprep.subr.bf16.mxu0 0
    %4813 = vmatpush2.bf16.msra.mxu0 0
    %4814 = vmatprep.subr.bf16.mxu0 0
    %4815 = vmatpush2.bf16.msra.mxu0 0
    %4816 = vmatprep.subr.bf16.mxu0 0
    %4817 = vmatpush2.bf16.msra.mxu0 0
    %4818 = vmatprep.subr.bf16.mxu0 0
    %4819 = vmatpush2.bf16.msra.mxu0 0
    %4820 = vmatprep.mubr.bf16.mxu0 0
    %4821 = vmatmul.mubr.bf16.gmra.mxu0 %v4733
    %v4822 = vpop.f32.mrf.mxu0
    %v4823 = vadd.f32 0.0, %v4822
    %v4824 = vpop.f32.mrf.mxu0
    %v4825 = vpop.f32.mrf.mxu0
    %v4826 = vadd.f32 0.0, %v4825
    %v4827 = vpop.f32.mrf.mxu0
    %4828 = vdwg.mxu0
    %v4829 = vpack.c.bf16 %v4784, %v4780
    %v4830 = vpack.c.bf16 %v4786, %v4782
    %v4831 = vpack.c.bf16 %v4826, %v4823
    %v4832 = vld [vmem:[%s9] sm:$0xff]
    %v4833 = vld [vmem:[%s9 + $0x8] sm:$0xff]
    %v4834 = vld [vmem:[%s9 + $0x10] sm:$0xff]
    %v4835 = vld [vmem:[%s9 + $0x18] sm:$0xff]
    %v4836 = vld [vmem:[%s9 + $0x20] sm:$0xff]
    %v4837 = vld [vmem:[%s9 + $0x28] sm:$0xff]
    %v4838 = vld [vmem:[%s9 + $0x30] sm:$0xff]
    %v4839 = vld [vmem:[%s9 + $0x38] sm:$0xff]
    %v4840 = vld [vmem:[%s9 + $0x40] sm:$0xff]
    %v4841 = vld [vmem:[%s9 + $0x48] sm:$0xff]
    %v4842 = vld [vmem:[%s9 + $0x50] sm:$0xff]
    %v4843 = vld [vmem:[%s9 + $0x58] sm:$0xff]
    %v4844 = vld [vmem:[%s9 + $0x60] sm:$0xff]
    %v4845 = vld [vmem:[%s9 + $0x68] sm:$0xff]
    %v4846 = vld [vmem:[%s9 + $0x70] sm:$0xff]
    %v4847 = vld [vmem:[%s9 + $0x78] sm:$0xff]
    %v4848 = vld [vmem:[%s9 + $0x80] sm:$0xff]
    %v4849 = vld [vmem:[%s9 + $0x88] sm:$0xff]
    %v4850 = vld [vmem:[%s9 + $0x90] sm:$0xff]
    %v4851 = vld [vmem:[%s9 + $0x98] sm:$0xff]
    %v4852 = vld [vmem:[%s9 + $0xa0] sm:$0xff]
    %v4853 = vld [vmem:[%s9 + $0xa8] sm:$0xff]
    %v4854 = vld [vmem:[%s9 + $0xb0] sm:$0xff]
    %v4855 = vld [vmem:[%s9 + $0xb8] sm:$0xff]
    %v4856 = vld [vmem:[%s9 + $0xc0] sm:$0xff]
    %v4857 = vld [vmem:[%s9 + $0xc8] sm:$0xff]
    %v4858 = vld [vmem:[%s9 + $0xd0] sm:$0xff]
    %v4859 = vld [vmem:[%s9 + $0xd8] sm:$0xff]
    %v4860 = vld [vmem:[%s9 + $0xe0] sm:$0xff]
    %v4861 = vld [vmem:[%s9 + $0xe8] sm:$0xff]
    %v4862 = vld [vmem:[%s9 + $0xf0] sm:$0xff]
    %v4863 = vld [vmem:[%s9 + $0xf8] sm:$0xff]
    %v4864 = vld [vmem:[%s9 + $0x100] sm:$0xff]
    %v4865 = vld [vmem:[%s9 + $0x108] sm:$0xff]
    %v4866 = vld [vmem:[%s9 + $0x110] sm:$0xff]
    %v4867 = vld [vmem:[%s9 + $0x118] sm:$0xff]
    %v4868 = vld [vmem:[%s9 + $0x120] sm:$0xff]
    %v4869 = vld [vmem:[%s9 + $0x128] sm:$0xff]
    %v4870 = vld [vmem:[%s9 + $0x130] sm:$0xff]
    %v4871 = vld [vmem:[%s9 + $0x138] sm:$0xff]
    %v4872 = vld [vmem:[%s9 + $0x140] sm:$0xff]
    %v4873 = vld [vmem:[%s9 + $0x148] sm:$0xff]
    %v4874 = vld [vmem:[%s9 + $0x150] sm:$0xff]
    %v4875 = vld [vmem:[%s9 + $0x158] sm:$0xff]
    %v4876 = vld [vmem:[%s9 + $0x160] sm:$0xff]
    %v4877 = vld [vmem:[%s9 + $0x168] sm:$0xff]
    %v4878 = vld [vmem:[%s9 + $0x170] sm:$0xff]
    %v4879 = vld [vmem:[%s9 + $0x178] sm:$0xff]
    %v4928 = vunpack.c.l.b16 %v4832
    %v4929 = vunpack.c.h.b16 %v4832
    %v4930 = vunpack.c.l.b16 %v4833
    %v4931 = vunpack.c.h.b16 %v4833
    %v4932 = vunpack.c.l.b16 %v4834
    %v4933 = vunpack.c.h.b16 %v4834
    %v4934 = vunpack.c.l.b16 %v4835
    %v4935 = vunpack.c.h.b16 %v4835
    %v4936 = vunpack.c.l.b16 %v4836
    %v4937 = vunpack.c.h.b16 %v4836
    %v4938 = vunpack.c.l.b16 %v4837
    %v4939 = vunpack.c.h.b16 %v4837
    %v4940 = vunpack.c.l.b16 %v4838
    %v4941 = vunpack.c.h.b16 %v4838
    %v4942 = vunpack.c.l.b16 %v4839
    %v4943 = vunpack.c.h.b16 %v4839
    %v4944 = vunpack.c.l.b16 %v4840
    %v4945 = vunpack.c.h.b16 %v4840
    %v4946 = vunpack.c.l.b16 %v4841
    %v4947 = vunpack.c.h.b16 %v4841
    %v4948 = vunpack.c.l.b16 %v4842
    %v4949 = vunpack.c.h.b16 %v4842
    %v4950 = vunpack.c.l.b16 %v4843
    %v4951 = vunpack.c.h.b16 %v4843
    %v4952 = vunpack.c.l.b16 %v4844
    %v4953 = vunpack.c.h.b16 %v4844
    %v4954 = vunpack.c.l.b16 %v4845
    %v4955 = vunpack.c.h.b16 %v4845
    %v4956 = vunpack.c.l.b16 %v4846
    %v4957 = vunpack.c.h.b16 %v4846
    %v4958 = vunpack.c.l.b16 %v4847
    %v4959 = vunpack.c.h.b16 %v4847
    %v4960 = vunpack.c.l.b16 %v4848
    %v4961 = vunpack.c.h.b16 %v4848
    %v4962 = vunpack.c.l.b16 %v4849
    %v4963 = vunpack.c.h.b16 %v4849
    %v4964 = vunpack.c.l.b16 %v4850
    %v4965 = vunpack.c.h.b16 %v4850
    %v4966 = vunpack.c.l.b16 %v4851
    %v4967 = vunpack.c.h.b16 %v4851
    %v4968 = vunpack.c.l.b16 %v4852
    %v4969 = vunpack.c.h.b16 %v4852
    %v4970 = vunpack.c.l.b16 %v4853
    %v4971 = vunpack.c.h.b16 %v4853
    %v4972 = vunpack.c.l.b16 %v4854
    %v4973 = vunpack.c.h.b16 %v4854
    %v4974 = vunpack.c.l.b16 %v4855
    %v4975 = vunpack.c.h.b16 %v4855
    %v4976 = vunpack.c.l.b16 %v4856
    %v4977 = vunpack.c.h.b16 %v4856
    %v4978 = vunpack.c.l.b16 %v4857
    %v4979 = vunpack.c.h.b16 %v4857
    %v4980 = vunpack.c.l.b16 %v4858
    %v4981 = vunpack.c.h.b16 %v4858
    %v4982 = vunpack.c.l.b16 %v4859
    %v4983 = vunpack.c.h.b16 %v4859
    %v4984 = vunpack.c.l.b16 %v4860
    %v4985 = vunpack.c.h.b16 %v4860
    %v4986 = vunpack.c.l.b16 %v4861
    %v4987 = vunpack.c.h.b16 %v4861
    %v4988 = vunpack.c.l.b16 %v4862
    %v4989 = vunpack.c.h.b16 %v4862
    %v4990 = vunpack.c.l.b16 %v4863
    %v4991 = vunpack.c.h.b16 %v4863
    %v4992 = vunpack.c.l.b16 %v4864
    %v4993 = vunpack.c.h.b16 %v4864
    %v4994 = vunpack.c.l.b16 %v4865
    %v4995 = vunpack.c.h.b16 %v4865
    %v4996 = vunpack.c.l.b16 %v4866
    %v4997 = vunpack.c.h.b16 %v4866
    %v4998 = vunpack.c.l.b16 %v4867
    %v4999 = vunpack.c.h.b16 %v4867
    %v5000 = vunpack.c.l.b16 %v4868
    %v5001 = vunpack.c.h.b16 %v4868
    %v5002 = vunpack.c.l.b16 %v4869
    %v5003 = vunpack.c.h.b16 %v4869
    %v5004 = vunpack.c.l.b16 %v4870
    %v5005 = vunpack.c.h.b16 %v4870
    %v5006 = vunpack.c.l.b16 %v4871
    %v5007 = vunpack.c.h.b16 %v4871
    %v5008 = vunpack.c.l.b16 %v4872
    %v5009 = vunpack.c.h.b16 %v4872
    %v5010 = vunpack.c.l.b16 %v4873
    %v5011 = vunpack.c.h.b16 %v4873
    %v5012 = vunpack.c.l.b16 %v4874
    %v5013 = vunpack.c.h.b16 %v4874
    %v5014 = vunpack.c.l.b16 %v4875
    %v5015 = vunpack.c.h.b16 %v4875
    %v5016 = vunpack.c.l.b16 %v4876
    %v5017 = vunpack.c.h.b16 %v4876
    %v5018 = vunpack.c.l.b16 %v4877
    %v5019 = vunpack.c.h.b16 %v4877
    %v5020 = vunpack.c.l.b16 %v4878
    %v5021 = vunpack.c.h.b16 %v4878
    %v5022 = vunpack.c.l.b16 %v4879
    %v5023 = vunpack.c.h.b16 %v4879
    %v5024 = vpack.c.b16 %v4930, %v4928
    %v5025 = vpack.c.b16 %v4931, %v4929
    %v5026 = vpack.c.b16 %v4934, %v4932
    %v5027 = vpack.c.b16 %v4935, %v4933
    %v5028 = vpack.c.b16 %v4938, %v4936
    %v5029 = vpack.c.b16 %v4939, %v4937
    %v5030 = vpack.c.b16 %v4942, %v4940
    %v5031 = vpack.c.b16 %v4943, %v4941
    %v5032 = vpack.c.b16 %v4946, %v4944
    %v5033 = vpack.c.b16 %v4947, %v4945
    %v5034 = vpack.c.b16 %v4950, %v4948
    %v5035 = vpack.c.b16 %v4951, %v4949
    %v5036 = vpack.c.b16 %v4954, %v4952
    %v5037 = vpack.c.b16 %v4955, %v4953
    %v5038 = vpack.c.b16 %v4958, %v4956
    %v5039 = vpack.c.b16 %v4959, %v4957
    %v5040 = vpack.c.b16 %v4962, %v4960
    %v5041 = vpack.c.b16 %v4963, %v4961
    %v5042 = vpack.c.b16 %v4966, %v4964
    %v5043 = vpack.c.b16 %v4967, %v4965
    %v5044 = vpack.c.b16 %v4970, %v4968
    %v5045 = vpack.c.b16 %v4971, %v4969
    %v5046 = vpack.c.b16 %v4974, %v4972
    %v5047 = vpack.c.b16 %v4975, %v4973
    %v5048 = vpack.c.b16 %v4978, %v4976
    %v5049 = vpack.c.b16 %v4979, %v4977
    %v5050 = vpack.c.b16 %v4982, %v4980
    %v5051 = vpack.c.b16 %v4983, %v4981
    %v5052 = vpack.c.b16 %v4986, %v4984
    %v5053 = vpack.c.b16 %v4987, %v4985
    %v5054 = vpack.c.b16 %v4990, %v4988
    %v5055 = vpack.c.b16 %v4991, %v4989
    %v5056 = vpack.c.b16 %v4994, %v4992
    %v5057 = vpack.c.b16 %v4995, %v4993
    %v5058 = vpack.c.b16 %v4998, %v4996
    %v5059 = vpack.c.b16 %v4999, %v4997
    %v5060 = vpack.c.b16 %v5002, %v5000
    %v5061 = vpack.c.b16 %v5003, %v5001
    %v5062 = vpack.c.b16 %v5006, %v5004
    %v5063 = vpack.c.b16 %v5007, %v5005
    %v5064 = vpack.c.b16 %v5010, %v5008
    %v5065 = vpack.c.b16 %v5011, %v5009
    %v5066 = vpack.c.b16 %v5014, %v5012
    %v5067 = vpack.c.b16 %v5015, %v5013
    %v5068 = vpack.c.b16 %v5018, %v5016
    %v5069 = vpack.c.b16 %v5019, %v5017
    %v5070 = vpack.c.b16 %v5022, %v5020
    %v5071 = vpack.c.b16 %v5023, %v5021
    %5120 = vmatprep.subr.bf16.mxu0 %v5039
    %5121 = vmatpush1.bf16.msra.mxu0 %v5038
    %5122 = vmatprep.subr.bf16.mxu0 %v5037
    %5123 = vmatpush1.bf16.msra.mxu0 %v5036
    %5124 = vmatprep.subr.bf16.mxu0 %v5035
    %5125 = vmatpush1.bf16.msra.mxu0 %v5034
    %5126 = vmatprep.subr.bf16.mxu0 %v5033
    %5127 = vmatpush1.bf16.msra.mxu0 %v5032
    %5128 = vmatprep.subr.bf16.mxu0 %v5031
    %5129 = vmatpush1.bf16.msra.mxu0 %v5030
    %5130 = vmatprep.subr.bf16.mxu0 %v5029
    %5131 = vmatpush1.bf16.msra.mxu0 %v5028
    %5132 = vmatprep.subr.bf16.mxu0 %v5027
    %5133 = vmatpush1.bf16.msra.mxu0 %v5026
    %5134 = vmatprep.subr.bf16.mxu0 %v5025
    %5135 = vmatpush1.bf16.msra.mxu0 %v5024
    %5136 = vmatprep.subr.bf16.mxu0 %v5055
    %5137 = vmatpush2.bf16.msra.mxu0 %v5054
    %5138 = vmatprep.subr.bf16.mxu0 %v5053
    %5139 = vmatpush2.bf16.msra.mxu0 %v5052
    %5140 = vmatprep.subr.bf16.mxu0 %v5051
    %5141 = vmatpush2.bf16.msra.mxu0 %v5050
    %5142 = vmatprep.subr.bf16.mxu0 %v5049
    %5143 = vmatpush2.bf16.msra.mxu0 %v5048
    %5144 = vmatprep.subr.bf16.mxu0 %v5047
    %5145 = vmatpush2.bf16.msra.mxu0 %v5046
    %5146 = vmatprep.subr.bf16.mxu0 %v5045
    %5147 = vmatpush2.bf16.msra.mxu0 %v5044
    %5148 = vmatprep.subr.bf16.mxu0 %v5043
    %5149 = vmatpush2.bf16.msra.mxu0 %v5042
    %5150 = vmatprep.subr.bf16.mxu0 %v5041
    %5151 = vmatpush2.bf16.msra.mxu0 %v5040
    %5152 = vmatprep.mubr.bf16.mxu0 %v4830
    %5153 = vmatmul.mubr.bf16.gmra.mxu0 %v4829
    %v5154 = vpop.f32.mrf.mxu0
    %v5155 = vadd.f32 0.0, %v5154
    %v5156 = vpop.f32.mrf.mxu0
    %v5157 = vadd.f32 0.0, %v5156
    %v5158 = vpop.f32.mrf.mxu0
    %v5159 = vadd.f32 0.0, %v5158
    %v5160 = vpop.f32.mrf.mxu0
    %v5161 = vadd.f32 0.0, %v5160
    %5162 = vdwg.mxu0
    %5163 = vmatprep.subr.bf16.mxu0 %v5071
    %5164 = vmatpush1.bf16.msra.mxu0 %v5070
    %5165 = vmatprep.subr.bf16.mxu0 %v5069
    %5166 = vmatpush1.bf16.msra.mxu0 %v5068
    %5167 = vmatprep.subr.bf16.mxu0 %v5067
    %5168 = vmatpush1.bf16.msra.mxu0 %v5066
    %5169 = vmatprep.subr.bf16.mxu0 %v5065
    %5170 = vmatpush1.bf16.msra.mxu0 %v5064
    %5171 = vmatprep.subr.bf16.mxu0 %v5063
    %5172 = vmatpush1.bf16.msra.mxu0 %v5062
    %5173 = vmatprep.subr.bf16.mxu0 %v5061
    %5174 = vmatpush1.bf16.msra.mxu0 %v5060
    %5175 = vmatprep.subr.bf16.mxu0 %v5059
    %5176 = vmatpush1.bf16.msra.mxu0 %v5058
    %5177 = vmatprep.subr.bf16.mxu0 %v5057
    %5178 = vmatpush1.bf16.msra.mxu0 %v5056
    %5179 = vmatprep.subr.bf16.mxu0 0
    %5180 = vmatpush2.bf16.msra.mxu0 0
    %5181 = vmatprep.subr.bf16.mxu0 0
    %5182 = vmatpush2.bf16.msra.mxu0 0
    %5183 = vmatprep.subr.bf16.mxu0 0
    %5184 = vmatpush2.bf16.msra.mxu0 0
    %5185 = vmatprep.subr.bf16.mxu0 0
    %5186 = vmatpush2.bf16.msra.mxu0 0
    %5187 = vmatprep.subr.bf16.mxu0 0
    %5188 = vmatpush2.bf16.msra.mxu0 0
    %5189 = vmatprep.subr.bf16.mxu0 0
    %5190 = vmatpush2.bf16.msra.mxu0 0
    %5191 = vmatprep.subr.bf16.mxu0 0
    %5192 = vmatpush2.bf16.msra.mxu0 0
    %5193 = vmatprep.subr.bf16.mxu0 0
    %5194 = vmatpush2.bf16.msra.mxu0 0
    %5195 = vmatprep.mubr.bf16.mxu0 0
    %5196 = vmatmul.mubr.bf16.gmra.mxu0 %v4831
    %v5197 = vpop.f32.mrf.mxu0
    %v5198 = vadd.f32 %v5155, %v5197
    %v5199 = vpop.f32.mrf.mxu0
    %v5200 = vadd.f32 %v5157, %v5199
    %v5201 = vpop.f32.mrf.mxu0
    %v5202 = vadd.f32 %v5159, %v5201
    %v5203 = vpop.f32.mrf.mxu0
    %v5204 = vadd.f32 %v5161, %v5203
    %5205 = vdwg.mxu0
    %v5206 = vpack.c.bf16 %v5198, %v5198
    %v5207 = vld [vmem:[%s10] sm:$0xff]
    %v5208 = vld [vmem:[%s10 + $0x8] sm:$0xff]
    %v5209 = vld [vmem:[%s10 + $0x10] sm:$0xff]
    %v5210 = vld [vmem:[%s10 + $0x18] sm:$0xff]
    %v5211 = vld [vmem:[%s10 + $0x20] sm:$0xff]
    %v5212 = vld [vmem:[%s10 + $0x28] sm:$0xff]
    %v5213 = vld [vmem:[%s10 + $0x30] sm:$0xff]
    %v5214 = vld [vmem:[%s10 + $0x38] sm:$0xff]
    %v5215 = vld [vmem:[%s10 + $0x40] sm:$0xff]
    %v5216 = vld [vmem:[%s10 + $0x48] sm:$0xff]
    %v5217 = vld [vmem:[%s10 + $0x50] sm:$0xff]
    %v5218 = vld [vmem:[%s10 + $0x58] sm:$0xff]
    %v5219 = vpack.c.bf16 %v5200, %v5200
    %v5220 = vld [vmem:[#allocation2] sm:$0xff]
    %v5221 = vld [vmem:[#allocation2 + $0x8] sm:$0xff]
    %v5222 = vld [vmem:[#allocation2 + $0x10] sm:$0xff]
    %v5223 = vld [vmem:[#allocation2 + $0x18] sm:$0xff]
    %v5224 = vld [vmem:[#allocation2 + $0x20] sm:$0xff]
    %v5225 = vld [vmem:[#allocation2 + $0x28] sm:$0xff]
    %v5226 = vld [vmem:[#allocation2 + $0x30] sm:$0xff]
    %v5227 = vld [vmem:[#allocation2 + $0x38] sm:$0xff]
    %v5228 = vld [vmem:[#allocation2 + $0x40] sm:$0xff]
    %v5229 = vld [vmem:[#allocation2 + $0x48] sm:$0xff]
    %v5230 = vld [vmem:[#allocation2 + $0x50] sm:$0xff]
    %v5231 = vld [vmem:[#allocation2 + $0x58] sm:$0xff]
    %s5232 = scalar_lea.vmem %s10, 96
    %v5233 = vld [vmem:[%s5232] sm:$0xff]
    %v5234 = vld [vmem:[%s5232 + $0x8] sm:$0xff]
    %v5235 = vld [vmem:[%s5232 + $0x10] sm:$0xff]
    %v5236 = vld [vmem:[%s5232 + $0x18] sm:$0xff]
    %v5237 = vld [vmem:[%s5232 + $0x20] sm:$0xff]
    %v5238 = vld [vmem:[%s5232 + $0x28] sm:$0xff]
    %v5239 = vld [vmem:[%s5232 + $0x30] sm:$0xff]
    %v5240 = vld [vmem:[%s5232 + $0x38] sm:$0xff]
    %v5241 = vld [vmem:[%s5232 + $0x40] sm:$0xff]
    %v5242 = vld [vmem:[%s5232 + $0x48] sm:$0xff]
    %v5243 = vld [vmem:[%s5232 + $0x50] sm:$0xff]
    %v5244 = vld [vmem:[%s5232 + $0x58] sm:$0xff]
    %v5246 = vrot.slane %v5206, 1
    %v5259 = vunpack.c.l.b16 %v5233
    %v5260 = vunpack.c.h.b16 %v5233
    %v5261 = vunpack.c.l.b16 %v5234
    %v5262 = vunpack.c.h.b16 %v5234
    %v5263 = vunpack.c.l.b16 %v5235
    %v5264 = vunpack.c.h.b16 %v5235
    %v5265 = vunpack.c.l.b16 %v5236
    %v5266 = vunpack.c.h.b16 %v5236
    %v5267 = vunpack.c.l.b16 %v5237
    %v5268 = vunpack.c.h.b16 %v5237
    %v5269 = vunpack.c.l.b16 %v5238
    %v5270 = vunpack.c.h.b16 %v5238
    %v5271 = vunpack.c.l.b16 %v5239
    %v5272 = vunpack.c.h.b16 %v5239
    %v5273 = vunpack.c.l.b16 %v5240
    %v5274 = vunpack.c.h.b16 %v5240
    %v5275 = vunpack.c.l.b16 %v5241
    %v5276 = vunpack.c.h.b16 %v5241
    %v5277 = vunpack.c.l.b16 %v5242
    %v5278 = vunpack.c.h.b16 %v5242
    %v5279 = vunpack.c.l.b16 %v5243
    %v5280 = vunpack.c.h.b16 %v5243
    %v5281 = vunpack.c.l.b16 %v5244
    %v5282 = vunpack.c.h.b16 %v5244
    %v5283 = vpack.c.b16 %v5261, %v5259
    %v5284 = vpack.c.b16 %v5262, %v5260
    %v5285 = vpack.c.b16 %v5265, %v5263
    %v5286 = vpack.c.b16 %v5266, %v5264
    %v5287 = vpack.c.b16 %v5269, %v5267
    %v5288 = vpack.c.b16 %v5270, %v5268
    %v5289 = vpack.c.b16 %v5273, %v5271
    %v5290 = vpack.c.b16 %v5274, %v5272
    %v5291 = vpack.c.b16 %v5277, %v5275
    %v5292 = vpack.c.b16 %v5278, %v5276
    %v5293 = vpack.c.b16 %v5281, %v5279
    %v5294 = vpack.c.b16 %v5282, %v5280
    %v5308 = vsel %vm4681, %v5246, 0
    %5310 = vmatprep.subr.bf16.mxu0 0
    %5311 = vmatpush1.bf16.msra.mxu0 0
    %5312 = vmatprep.subr.bf16.mxu0 0
    %5313 = vmatpush1.bf16.msra.mxu0 0
    %5314 = vmatprep.subr.bf16.mxu0 %v5294
    %5315 = vmatpush1.bf16.msra.mxu0 %v5293
    %5316 = vmatprep.subr.bf16.mxu0 %v5292
    %5317 = vmatpush1.bf16.msra.mxu0 %v5291
    %5318 = vmatprep.subr.bf16.mxu0 %v5290
    %5319 = vmatpush1.bf16.msra.mxu0 %v5289
    %5320 = vmatprep.subr.bf16.mxu0 %v5288
    %5321 = vmatpush1.bf16.msra.mxu0 %v5287
    %5322 = vmatprep.subr.bf16.mxu0 %v5286
    %5323 = vmatpush1.bf16.msra.mxu0 %v5285
    %5324 = vmatprep.subr.bf16.mxu0 %v5284
    %5325 = vmatpush1.bf16.msra.mxu0 %v5283
    %5326 = vmatprep.subr.bf16.mxu0 0
    %5327 = vmatpush2.bf16.msra.mxu0 0
    %5328 = vmatprep.subr.bf16.mxu0 0
    %5329 = vmatpush2.bf16.msra.mxu0 0
    %5330 = vmatprep.subr.bf16.mxu0 0
    %5331 = vmatpush2.bf16.msra.mxu0 0
    %5332 = vmatprep.subr.bf16.mxu0 0
    %5333 = vmatpush2.bf16.msra.mxu0 0
    %5334 = vmatprep.subr.bf16.mxu0 0
    %5335 = vmatpush2.bf16.msra.mxu0 0
    %5336 = vmatprep.subr.bf16.mxu0 0
    %5337 = vmatpush2.bf16.msra.mxu0 0
    %5338 = vmatprep.subr.bf16.mxu0 0
    %5339 = vmatpush2.bf16.msra.mxu0 0
    %5340 = vmatprep.subr.bf16.mxu0 0
    %5341 = vmatpush2.bf16.msra.mxu0 0
    %5342 = vmatprep.mubr.bf16.mxu0 0
    %5343 = vmatmul.mubr.bf16.gmra.mxu0 %v5308
    %v5344 = vpop.f32.mrf.mxu0
    %v5345 = vadd.f32 0.0, %v5344
    %v5346 = vpop.f32.mrf.mxu0
    %v5347 = vadd.f32 0.0, %v5346
    %v5348 = vpop.f32.mrf.mxu0
    %v5349 = vpop.f32.mrf.mxu0
    %5350 = vdwg.mxu0
    %v5363 = vunpack.c.l.b16 %v5207
    %v5364 = vunpack.c.h.b16 %v5207
    %v5365 = vunpack.c.l.b16 %v5208
    %v5366 = vunpack.c.h.b16 %v5208
    %v5367 = vunpack.c.l.b16 %v5209
    %v5368 = vunpack.c.h.b16 %v5209
    %v5369 = vunpack.c.l.b16 %v5210
    %v5370 = vunpack.c.h.b16 %v5210
    %v5371 = vunpack.c.l.b16 %v5211
    %v5372 = vunpack.c.h.b16 %v5211
    %v5373 = vunpack.c.l.b16 %v5212
    %v5374 = vunpack.c.h.b16 %v5212
    %v5375 = vunpack.c.l.b16 %v5213
    %v5376 = vunpack.c.h.b16 %v5213
    %v5377 = vunpack.c.l.b16 %v5214
    %v5378 = vunpack.c.h.b16 %v5214
    %v5379 = vunpack.c.l.b16 %v5215
    %v5380 = vunpack.c.h.b16 %v5215
    %v5381 = vunpack.c.l.b16 %v5216
    %v5382 = vunpack.c.h.b16 %v5216
    %v5383 = vunpack.c.l.b16 %v5217
    %v5384 = vunpack.c.h.b16 %v5217
    %v5385 = vunpack.c.l.b16 %v5218
    %v5386 = vunpack.c.h.b16 %v5218
    %v5387 = vpack.c.b16 %v5365, %v5363
    %v5388 = vpack.c.b16 %v5366, %v5364
    %v5389 = vpack.c.b16 %v5369, %v5367
    %v5390 = vpack.c.b16 %v5370, %v5368
    %v5391 = vpack.c.b16 %v5373, %v5371
    %v5392 = vpack.c.b16 %v5374, %v5372
    %v5393 = vpack.c.b16 %v5377, %v5375
    %v5394 = vpack.c.b16 %v5378, %v5376
    %v5395 = vpack.c.b16 %v5381, %v5379
    %v5396 = vpack.c.b16 %v5382, %v5380
    %v5397 = vpack.c.b16 %v5385, %v5383
    %v5398 = vpack.c.b16 %v5386, %v5384
    %v5412 = vsel %vm4681, %v5206, 0
    %5414 = vmatprep.subr.bf16.mxu0 0
    %5415 = vmatpush1.bf16.msra.mxu0 0
    %5416 = vmatprep.subr.bf16.mxu0 0
    %5417 = vmatpush1.bf16.msra.mxu0 0
    %5418 = vmatprep.subr.bf16.mxu0 %v5398
    %5419 = vmatpush1.bf16.msra.mxu0 %v5397
    %5420 = vmatprep.subr.bf16.mxu0 %v5396
    %5421 = vmatpush1.bf16.msra.mxu0 %v5395
    %5422 = vmatprep.subr.bf16.mxu0 %v5394
    %5423 = vmatpush1.bf16.msra.mxu0 %v5393
    %5424 = vmatprep.subr.bf16.mxu0 %v5392
    %5425 = vmatpush1.bf16.msra.mxu0 %v5391
    %5426 = vmatprep.subr.bf16.mxu0 %v5390
    %5427 = vmatpush1.bf16.msra.mxu0 %v5389
    %5428 = vmatprep.subr.bf16.mxu0 %v5388
    %5429 = vmatpush1.bf16.msra.mxu0 %v5387
    %5430 = vmatprep.subr.bf16.mxu0 0
    %5431 = vmatpush2.bf16.msra.mxu0 0
    %5432 = vmatprep.subr.bf16.mxu0 0
    %5433 = vmatpush2.bf16.msra.mxu0 0
    %5434 = vmatprep.subr.bf16.mxu0 0
    %5435 = vmatpush2.bf16.msra.mxu0 0
    %5436 = vmatprep.subr.bf16.mxu0 0
    %5437 = vmatpush2.bf16.msra.mxu0 0
    %5438 = vmatprep.subr.bf16.mxu0 0
    %5439 = vmatpush2.bf16.msra.mxu0 0
    %5440 = vmatprep.subr.bf16.mxu0 0
    %5441 = vmatpush2.bf16.msra.mxu0 0
    %5442 = vmatprep.subr.bf16.mxu0 0
    %5443 = vmatpush2.bf16.msra.mxu0 0
    %5444 = vmatprep.subr.bf16.mxu0 0
    %5445 = vmatpush2.bf16.msra.mxu0 0
    %5446 = vmatprep.mubr.bf16.mxu0 0
    %5447 = vmatmul.mubr.bf16.gmra.mxu0 %v5412
    %v5448 = vpop.f32.mrf.mxu0
    %v5449 = vadd.f32 %v5345, %v5448
    %v5450 = vpop.f32.mrf.mxu0
    %v5451 = vadd.f32 %v5347, %v5450
    %v5452 = vpop.f32.mrf.mxu0
    %v5453 = vpop.f32.mrf.mxu0
    %5454 = vdwg.mxu0
    %s5455 = scalar_lea.vmem [#allocation2], 96
    %v5456 = vld [vmem:[%s5455] sm:$0xff]
    %v5457 = vld [vmem:[%s5455 + $0x8] sm:$0xff]
    %v5458 = vld [vmem:[%s5455 + $0x10] sm:$0xff]
    %v5459 = vld [vmem:[%s5455 + $0x18] sm:$0xff]
    %v5460 = vld [vmem:[%s5455 + $0x20] sm:$0xff]
    %v5461 = vld [vmem:[%s5455 + $0x28] sm:$0xff]
    %v5462 = vld [vmem:[%s5455 + $0x30] sm:$0xff]
    %v5463 = vld [vmem:[%s5455 + $0x38] sm:$0xff]
    %v5464 = vld [vmem:[%s5455 + $0x40] sm:$0xff]
    %v5465 = vld [vmem:[%s5455 + $0x48] sm:$0xff]
    %v5466 = vld [vmem:[%s5455 + $0x50] sm:$0xff]
    %v5467 = vld [vmem:[%s5455 + $0x58] sm:$0xff]
    %v5469 = vrot.slane %v5219, 1
    %5470 = vrot.lane.b32.xlu0 %v5246, 32
    %v5471 = vpop.permute.xlu0 %5470
    %5472 = vrot.lane.b32.xlu0 %v5469, 32
    %v5473 = vpop.permute.xlu0 %5472
    %vm5474 = vcmask 261120
    %v5475 = vsel %vm5474, %v5471, %v5473
    %v5488 = vunpack.c.l.b16 %v5456
    %v5489 = vunpack.c.h.b16 %v5456
    %v5490 = vunpack.c.l.b16 %v5457
    %v5491 = vunpack.c.h.b16 %v5457
    %v5492 = vunpack.c.l.b16 %v5458
    %v5493 = vunpack.c.h.b16 %v5458
    %v5494 = vunpack.c.l.b16 %v5459
    %v5495 = vunpack.c.h.b16 %v5459
    %v5496 = vunpack.c.l.b16 %v5460
    %v5497 = vunpack.c.h.b16 %v5460
    %v5498 = vunpack.c.l.b16 %v5461
    %v5499 = vunpack.c.h.b16 %v5461
    %v5500 = vunpack.c.l.b16 %v5462
    %v5501 = vunpack.c.h.b16 %v5462
    %v5502 = vunpack.c.l.b16 %v5463
    %v5503 = vunpack.c.h.b16 %v5463
    %v5504 = vunpack.c.l.b16 %v5464
    %v5505 = vunpack.c.h.b16 %v5464
    %v5506 = vunpack.c.l.b16 %v5465
    %v5507 = vunpack.c.h.b16 %v5465
    %v5508 = vunpack.c.l.b16 %v5466
    %v5509 = vunpack.c.h.b16 %v5466
    %v5510 = vunpack.c.l.b16 %v5467
    %v5511 = vunpack.c.h.b16 %v5467
    %v5512 = vpack.c.b16 %v5490, %v5488
    %v5513 = vpack.c.b16 %v5491, %v5489
    %v5514 = vpack.c.b16 %v5494, %v5492
    %v5515 = vpack.c.b16 %v5495, %v5493
    %v5516 = vpack.c.b16 %v5498, %v5496
    %v5517 = vpack.c.b16 %v5499, %v5497
    %v5518 = vpack.c.b16 %v5502, %v5500
    %v5519 = vpack.c.b16 %v5503, %v5501
    %v5520 = vpack.c.b16 %v5506, %v5504
    %v5521 = vpack.c.b16 %v5507, %v5505
    %v5522 = vpack.c.b16 %v5510, %v5508
    %v5523 = vpack.c.b16 %v5511, %v5509
    %v5537 = vsel %vm4681, %v5475, 0
    %5539 = vmatprep.subr.bf16.mxu0 0
    %5540 = vmatpush1.bf16.msra.mxu0 0
    %5541 = vmatprep.subr.bf16.mxu0 0
    %5542 = vmatpush1.bf16.msra.mxu0 0
    %5543 = vmatprep.subr.bf16.mxu0 %v5523
    %5544 = vmatpush1.bf16.msra.mxu0 %v5522
    %5545 = vmatprep.subr.bf16.mxu0 %v5521
    %5546 = vmatpush1.bf16.msra.mxu0 %v5520
    %5547 = vmatprep.subr.bf16.mxu0 %v5519
    %5548 = vmatpush1.bf16.msra.mxu0 %v5518
    %5549 = vmatprep.subr.bf16.mxu0 %v5517
    %5550 = vmatpush1.bf16.msra.mxu0 %v5516
    %5551 = vmatprep.subr.bf16.mxu0 %v5515
    %5552 = vmatpush1.bf16.msra.mxu0 %v5514
    %5553 = vmatprep.subr.bf16.mxu0 %v5513
    %5554 = vmatpush1.bf16.msra.mxu0 %v5512
    %5555 = vmatprep.subr.bf16.mxu0 0
    %5556 = vmatpush2.bf16.msra.mxu0 0
    %5557 = vmatprep.subr.bf16.mxu0 0
    %5558 = vmatpush2.bf16.msra.mxu0 0
    %5559 = vmatprep.subr.bf16.mxu0 0
    %5560 = vmatpush2.bf16.msra.mxu0 0
    %5561 = vmatprep.subr.bf16.mxu0 0
    %5562 = vmatpush2.bf16.msra.mxu0 0
    %5563 = vmatprep.subr.bf16.mxu0 0
    %5564 = vmatpush2.bf16.msra.mxu0 0
    %5565 = vmatprep.subr.bf16.mxu0 0
    %5566 = vmatpush2.bf16.msra.mxu0 0
    %5567 = vmatprep.subr.bf16.mxu0 0
    %5568 = vmatpush2.bf16.msra.mxu0 0
    %5569 = vmatprep.subr.bf16.mxu0 0
    %5570 = vmatpush2.bf16.msra.mxu0 0
    %5571 = vmatprep.mubr.bf16.mxu0 0
    %5572 = vmatmul.mubr.bf16.gmra.mxu0 %v5537
    %v5573 = vpop.f32.mrf.mxu0
    %v5574 = vadd.f32 0.0, %v5573
    %v5575 = vpop.f32.mrf.mxu0
    %v5576 = vadd.f32 0.0, %v5575
    %v5577 = vpop.f32.mrf.mxu0
    %v5578 = vpop.f32.mrf.mxu0
    %5579 = vdwg.mxu0
    %5580 = vrot.lane.b32.xlu0 %v5206, 32
    %v5581 = vpop.permute.xlu0 %5580
    %5582 = vrot.lane.b32.xlu0 %v5219, 32
    %v5583 = vpop.permute.xlu0 %5582
    %v5584 = vsel %vm5474, %v5581, %v5583
    %v5597 = vunpack.c.l.b16 %v5220
    %v5598 = vunpack.c.h.b16 %v5220
    %v5599 = vunpack.c.l.b16 %v5221
    %v5600 = vunpack.c.h.b16 %v5221
    %v5601 = vunpack.c.l.b16 %v5222
    %v5602 = vunpack.c.h.b16 %v5222
    %v5603 = vunpack.c.l.b16 %v5223
    %v5604 = vunpack.c.h.b16 %v5223
    %v5605 = vunpack.c.l.b16 %v5224
    %v5606 = vunpack.c.h.b16 %v5224
    %v5607 = vunpack.c.l.b16 %v5225
    %v5608 = vunpack.c.h.b16 %v5225
    %v5609 = vunpack.c.l.b16 %v5226
    %v5610 = vunpack.c.h.b16 %v5226
    %v5611 = vunpack.c.l.b16 %v5227
    %v5612 = vunpack.c.h.b16 %v5227
    %v5613 = vunpack.c.l.b16 %v5228
    %v5614 = vunpack.c.h.b16 %v5228
    %v5615 = vunpack.c.l.b16 %v5229
    %v5616 = vunpack.c.h.b16 %v5229
    %v5617 = vunpack.c.l.b16 %v5230
    %v5618 = vunpack.c.h.b16 %v5230
    %v5619 = vunpack.c.l.b16 %v5231
    %v5620 = vunpack.c.h.b16 %v5231
    %v5621 = vpack.c.b16 %v5599, %v5597
    %v5622 = vpack.c.b16 %v5600, %v5598
    %v5623 = vpack.c.b16 %v5603, %v5601
    %v5624 = vpack.c.b16 %v5604, %v5602
    %v5625 = vpack.c.b16 %v5607, %v5605
    %v5626 = vpack.c.b16 %v5608, %v5606
    %v5627 = vpack.c.b16 %v5611, %v5609
    %v5628 = vpack.c.b16 %v5612, %v5610
    %v5629 = vpack.c.b16 %v5615, %v5613
    %v5630 = vpack.c.b16 %v5616, %v5614
    %v5631 = vpack.c.b16 %v5619, %v5617
    %v5632 = vpack.c.b16 %v5620, %v5618
    %v5646 = vsel %vm4681, %v5584, 0
    %5648 = vmatprep.subr.bf16.mxu0 0
    %5649 = vmatpush1.bf16.msra.mxu0 0
    %5650 = vmatprep.subr.bf16.mxu0 0
    %5651 = vmatpush1.bf16.msra.mxu0 0
    %5652 = vmatprep.subr.bf16.mxu0 %v5632
    %5653 = vmatpush1.bf16.msra.mxu0 %v5631
    %5654 = vmatprep.subr.bf16.mxu0 %v5630
    %5655 = vmatpush1.bf16.msra.mxu0 %v5629
    %5656 = vmatprep.subr.bf16.mxu0 %v5628
    %5657 = vmatpush1.bf16.msra.mxu0 %v5627
    %5658 = vmatprep.subr.bf16.mxu0 %v5626
    %5659 = vmatpush1.bf16.msra.mxu0 %v5625
    %5660 = vmatprep.subr.bf16.mxu0 %v5624
    %5661 = vmatpush1.bf16.msra.mxu0 %v5623
    %5662 = vmatprep.subr.bf16.mxu0 %v5622
    %5663 = vmatpush1.bf16.msra.mxu0 %v5621
    %5664 = vmatprep.subr.bf16.mxu0 0
    %5665 = vmatpush2.bf16.msra.mxu0 0
    %5666 = vmatprep.subr.bf16.mxu0 0
    %5667 = vmatpush2.bf16.msra.mxu0 0
    %5668 = vmatprep.subr.bf16.mxu0 0
    %5669 = vmatpush2.bf16.msra.mxu0 0
    %5670 = vmatprep.subr.bf16.mxu0 0
    %5671 = vmatpush2.bf16.msra.mxu0 0
    %5672 = vmatprep.subr.bf16.mxu0 0
    %5673 = vmatpush2.bf16.msra.mxu0 0
    %5674 = vmatprep.subr.bf16.mxu0 0
    %5675 = vmatpush2.bf16.msra.mxu0 0
    %5676 = vmatprep.subr.bf16.mxu0 0
    %5677 = vmatpush2.bf16.msra.mxu0 0
    %5678 = vmatprep.subr.bf16.mxu0 0
    %5679 = vmatpush2.bf16.msra.mxu0 0
    %5680 = vmatprep.mubr.bf16.mxu0 0
    %5681 = vmatmul.mubr.bf16.gmra.mxu0 %v5646
    %v5682 = vpop.f32.mrf.mxu0
    %v5683 = vadd.f32 %v5574, %v5682
    %v5684 = vpop.f32.mrf.mxu0
    %v5685 = vadd.f32 %v5576, %v5684
    %v5686 = vpop.f32.mrf.mxu0
    %v5687 = vpop.f32.mrf.mxu0
    %5688 = vdwg.mxu0
    %s5689 = scalar_lea.vmem %s10, 192
    %v5690 = vld [vmem:[%s5689] sm:$0xff]
    %v5691 = vld [vmem:[%s5689 + $0x8] sm:$0xff]
    %v5692 = vld [vmem:[%s5689 + $0x10] sm:$0xff]
    %v5693 = vld [vmem:[%s5689 + $0x18] sm:$0xff]
    %v5694 = vld [vmem:[%s5689 + $0x20] sm:$0xff]
    %v5695 = vld [vmem:[%s5689 + $0x28] sm:$0xff]
    %v5696 = vld [vmem:[%s5689 + $0x30] sm:$0xff]
    %v5697 = vld [vmem:[%s5689 + $0x38] sm:$0xff]
    %v5698 = vld [vmem:[%s5689 + $0x40] sm:$0xff]
    %v5699 = vld [vmem:[%s5689 + $0x48] sm:$0xff]
    %v5700 = vld [vmem:[%s5689 + $0x50] sm:$0xff]
    %v5701 = vld [vmem:[%s5689 + $0x58] sm:$0xff]
    %v5702 = vrot.slane %v5206, 2
    %v5715 = vunpack.c.l.b16 %v5690
    %v5716 = vunpack.c.h.b16 %v5690
    %v5717 = vunpack.c.l.b16 %v5691
    %v5718 = vunpack.c.h.b16 %v5691
    %v5719 = vunpack.c.l.b16 %v5692
    %v5720 = vunpack.c.h.b16 %v5692
    %v5721 = vunpack.c.l.b16 %v5693
    %v5722 = vunpack.c.h.b16 %v5693
    %v5723 = vunpack.c.l.b16 %v5694
    %v5724 = vunpack.c.h.b16 %v5694
    %v5725 = vunpack.c.l.b16 %v5695
    %v5726 = vunpack.c.h.b16 %v5695
    %v5727 = vunpack.c.l.b16 %v5696
    %v5728 = vunpack.c.h.b16 %v5696
    %v5729 = vunpack.c.l.b16 %v5697
    %v5730 = vunpack.c.h.b16 %v5697
    %v5731 = vunpack.c.l.b16 %v5698
    %v5732 = vunpack.c.h.b16 %v5698
    %v5733 = vunpack.c.l.b16 %v5699
    %v5734 = vunpack.c.h.b16 %v5699
    %v5735 = vunpack.c.l.b16 %v5700
    %v5736 = vunpack.c.h.b16 %v5700
    %v5737 = vunpack.c.l.b16 %v5701
    %v5738 = vunpack.c.h.b16 %v5701
    %v5739 = vpack.c.b16 %v5717, %v5715
    %v5740 = vpack.c.b16 %v5718, %v5716
    %v5741 = vpack.c.b16 %v5721, %v5719
    %v5742 = vpack.c.b16 %v5722, %v5720
    %v5743 = vpack.c.b16 %v5725, %v5723
    %v5744 = vpack.c.b16 %v5726, %v5724
    %v5745 = vpack.c.b16 %v5729, %v5727
    %v5746 = vpack.c.b16 %v5730, %v5728
    %v5747 = vpack.c.b16 %v5733, %v5731
    %v5748 = vpack.c.b16 %v5734, %v5732
    %v5749 = vpack.c.b16 %v5737, %v5735
    %v5750 = vpack.c.b16 %v5738, %v5736
    %v5764 = vsel %vm4681, %v5702, 0
    %5766 = vmatprep.subr.bf16.mxu0 0
    %5767 = vmatpush1.bf16.msra.mxu0 0
    %5768 = vmatprep.subr.bf16.mxu0 0
    %5769 = vmatpush1.bf16.msra.mxu0 0
    %5770 = vmatprep.subr.bf16.mxu0 %v5750
    %5771 = vmatpush1.bf16.msra.mxu0 %v5749
    %5772 = vmatprep.subr.bf16.mxu0 %v5748
    %5773 = vmatpush1.bf16.msra.mxu0 %v5747
    %5774 = vmatprep.subr.bf16.mxu0 %v5746
    %5775 = vmatpush1.bf16.msra.mxu0 %v5745
    %5776 = vmatprep.subr.bf16.mxu0 %v5744
    %5777 = vmatpush1.bf16.msra.mxu0 %v5743
    %5778 = vmatprep.subr.bf16.mxu0 %v5742
    %5779 = vmatpush1.bf16.msra.mxu0 %v5741
    %5780 = vmatprep.subr.bf16.mxu0 %v5740
    %5781 = vmatpush1.bf16.msra.mxu0 %v5739
    %5782 = vmatprep.subr.bf16.mxu0 0
    %5783 = vmatpush2.bf16.msra.mxu0 0
    %5784 = vmatprep.subr.bf16.mxu0 0
    %5785 = vmatpush2.bf16.msra.mxu0 0
    %5786 = vmatprep.subr.bf16.mxu0 0
    %5787 = vmatpush2.bf16.msra.mxu0 0
    %5788 = vmatprep.subr.bf16.mxu0 0
    %5789 = vmatpush2.bf16.msra.mxu0 0
    %5790 = vmatprep.subr.bf16.mxu0 0
    %5791 = vmatpush2.bf16.msra.mxu0 0
    %5792 = vmatprep.subr.bf16.mxu0 0
    %5793 = vmatpush2.bf16.msra.mxu0 0
    %5794 = vmatprep.subr.bf16.mxu0 0
    %5795 = vmatpush2.bf16.msra.mxu0 0
    %5796 = vmatprep.subr.bf16.mxu0 0
    %5797 = vmatpush2.bf16.msra.mxu0 0
    %5798 = vmatprep.mubr.bf16.mxu0 0
    %5799 = vmatmul.mubr.bf16.gmra.mxu0 %v5764
    %v5800 = vpop.f32.mrf.mxu0
    %v5801 = vadd.f32 0.0, %v5800
    %v5802 = vpop.f32.mrf.mxu0
    %v5803 = vadd.f32 0.0, %v5802
    %v5804 = vpop.f32.mrf.mxu0
    %v5805 = vpop.f32.mrf.mxu0
    %5806 = vdwg.mxu0
    %v5807 = vadd.f32 %v5449, %v5801
    %v5808 = vadd.f32 %v5451, %v5803
    %s5809 = scalar_lea.vmem [#allocation2], 192
    %v5810 = vld [vmem:[%s5809] sm:$0xff]
    %v5811 = vld [vmem:[%s5809 + $0x8] sm:$0xff]
    %v5812 = vld [vmem:[%s5809 + $0x10] sm:$0xff]
    %v5813 = vld [vmem:[%s5809 + $0x18] sm:$0xff]
    %v5814 = vld [vmem:[%s5809 + $0x20] sm:$0xff]
    %v5815 = vld [vmem:[%s5809 + $0x28] sm:$0xff]
    %v5816 = vld [vmem:[%s5809 + $0x30] sm:$0xff]
    %v5817 = vld [vmem:[%s5809 + $0x38] sm:$0xff]
    %v5818 = vld [vmem:[%s5809 + $0x40] sm:$0xff]
    %v5819 = vld [vmem:[%s5809 + $0x48] sm:$0xff]
    %v5820 = vld [vmem:[%s5809 + $0x50] sm:$0xff]
    %v5821 = vld [vmem:[%s5809 + $0x58] sm:$0xff]
    %v5822 = vrot.slane %v5219, 2
    %5823 = vrot.lane.b32.xlu0 %v5702, 32
    %v5824 = vpop.permute.xlu0 %5823
    %5825 = vrot.lane.b32.xlu0 %v5822, 32
    %v5826 = vpop.permute.xlu0 %5825
    %v5827 = vsel %vm5474, %v5824, %v5826
    %v5840 = vunpack.c.l.b16 %v5810
    %v5841 = vunpack.c.h.b16 %v5810
    %v5842 = vunpack.c.l.b16 %v5811
    %v5843 = vunpack.c.h.b16 %v5811
    %v5844 = vunpack.c.l.b16 %v5812
    %v5845 = vunpack.c.h.b16 %v5812
    %v5846 = vunpack.c.l.b16 %v5813
    %v5847 = vunpack.c.h.b16 %v5813
    %v5848 = vunpack.c.l.b16 %v5814
    %v5849 = vunpack.c.h.b16 %v5814
    %v5850 = vunpack.c.l.b16 %v5815
    %v5851 = vunpack.c.h.b16 %v5815
    %v5852 = vunpack.c.l.b16 %v5816
    %v5853 = vunpack.c.h.b16 %v5816
    %v5854 = vunpack.c.l.b16 %v5817
    %v5855 = vunpack.c.h.b16 %v5817
    %v5856 = vunpack.c.l.b16 %v5818
    %v5857 = vunpack.c.h.b16 %v5818
    %v5858 = vunpack.c.l.b16 %v5819
    %v5859 = vunpack.c.h.b16 %v5819
    %v5860 = vunpack.c.l.b16 %v5820
    %v5861 = vunpack.c.h.b16 %v5820
    %v5862 = vunpack.c.l.b16 %v5821
    %v5863 = vunpack.c.h.b16 %v5821
    %v5864 = vpack.c.b16 %v5842, %v5840
    %v5865 = vpack.c.b16 %v5843, %v5841
    %v5866 = vpack.c.b16 %v5846, %v5844
    %v5867 = vpack.c.b16 %v5847, %v5845
    %v5868 = vpack.c.b16 %v5850, %v5848
    %v5869 = vpack.c.b16 %v5851, %v5849
    %v5870 = vpack.c.b16 %v5854, %v5852
    %v5871 = vpack.c.b16 %v5855, %v5853
    %v5872 = vpack.c.b16 %v5858, %v5856
    %v5873 = vpack.c.b16 %v5859, %v5857
    %v5874 = vpack.c.b16 %v5862, %v5860
    %v5875 = vpack.c.b16 %v5863, %v5861
    %v5889 = vsel %vm4681, %v5827, 0
    %5891 = vmatprep.subr.bf16.mxu0 0
    %5892 = vmatpush1.bf16.msra.mxu0 0
    %5893 = vmatprep.subr.bf16.mxu0 0
    %5894 = vmatpush1.bf16.msra.mxu0 0
    %5895 = vmatprep.subr.bf16.mxu0 %v5875
    %5896 = vmatpush1.bf16.msra.mxu0 %v5874
    %5897 = vmatprep.subr.bf16.mxu0 %v5873
    %5898 = vmatpush1.bf16.msra.mxu0 %v5872
    %5899 = vmatprep.subr.bf16.mxu0 %v5871
    %5900 = vmatpush1.bf16.msra.mxu0 %v5870
    %5901 = vmatprep.subr.bf16.mxu0 %v5869
    %5902 = vmatpush1.bf16.msra.mxu0 %v5868
    %5903 = vmatprep.subr.bf16.mxu0 %v5867
    %5904 = vmatpush1.bf16.msra.mxu0 %v5866
    %5905 = vmatprep.subr.bf16.mxu0 %v5865
    %5906 = vmatpush1.bf16.msra.mxu0 %v5864
    %5907 = vmatprep.subr.bf16.mxu0 0
    %5908 = vmatpush2.bf16.msra.mxu0 0
    %5909 = vmatprep.subr.bf16.mxu0 0
    %5910 = vmatpush2.bf16.msra.mxu0 0
    %5911 = vmatprep.subr.bf16.mxu0 0
    %5912 = vmatpush2.bf16.msra.mxu0 0
    %5913 = vmatprep.subr.bf16.mxu0 0
    %5914 = vmatpush2.bf16.msra.mxu0 0
    %5915 = vmatprep.subr.bf16.mxu0 0
    %5916 = vmatpush2.bf16.msra.mxu0 0
    %5917 = vmatprep.subr.bf16.mxu0 0
    %5918 = vmatpush2.bf16.msra.mxu0 0
    %5919 = vmatprep.subr.bf16.mxu0 0
    %5920 = vmatpush2.bf16.msra.mxu0 0
    %5921 = vmatprep.subr.bf16.mxu0 0
    %5922 = vmatpush2.bf16.msra.mxu0 0
    %5923 = vmatprep.mubr.bf16.mxu0 0
    %5924 = vmatmul.mubr.bf16.gmra.mxu0 %v5889
    %v5925 = vpop.f32.mrf.mxu0
    %v5926 = vadd.f32 0.0, %v5925
    %v5927 = vpop.f32.mrf.mxu0
    %v5928 = vadd.f32 0.0, %v5927
    %v5929 = vpop.f32.mrf.mxu0
    %v5930 = vpop.f32.mrf.mxu0
    %5931 = vdwg.mxu0
    %v5932 = vadd.f32 %v5683, %v5926
    %v5933 = vadd.f32 %v5685, %v5928
    %s5934 = scalar_lea.vmem %s10, 288
    %v5935 = vld [vmem:[%s5934] sm:$0xff]
    %v5936 = vld [vmem:[%s5934 + $0x8] sm:$0xff]
    %v5937 = vld [vmem:[%s5934 + $0x10] sm:$0xff]
    %v5938 = vld [vmem:[%s5934 + $0x18] sm:$0xff]
    %v5939 = vld [vmem:[%s5934 + $0x20] sm:$0xff]
    %v5940 = vld [vmem:[%s5934 + $0x28] sm:$0xff]
    %v5941 = vld [vmem:[%s5934 + $0x30] sm:$0xff]
    %v5942 = vld [vmem:[%s5934 + $0x38] sm:$0xff]
    %v5943 = vld [vmem:[%s5934 + $0x40] sm:$0xff]
    %v5944 = vld [vmem:[%s5934 + $0x48] sm:$0xff]
    %v5945 = vld [vmem:[%s5934 + $0x50] sm:$0xff]
    %v5946 = vld [vmem:[%s5934 + $0x58] sm:$0xff]
    %v5947 = vrot.slane %v5206, 3
    %v5960 = vunpack.c.l.b16 %v5935
    %v5961 = vunpack.c.h.b16 %v5935
    %v5962 = vunpack.c.l.b16 %v5936
    %v5963 = vunpack.c.h.b16 %v5936
    %v5964 = vunpack.c.l.b16 %v5937
    %v5965 = vunpack.c.h.b16 %v5937
    %v5966 = vunpack.c.l.b16 %v5938
    %v5967 = vunpack.c.h.b16 %v5938
    %v5968 = vunpack.c.l.b16 %v5939
    %v5969 = vunpack.c.h.b16 %v5939
    %v5970 = vunpack.c.l.b16 %v5940
    %v5971 = vunpack.c.h.b16 %v5940
    %v5972 = vunpack.c.l.b16 %v5941
    %v5973 = vunpack.c.h.b16 %v5941
    %v5974 = vunpack.c.l.b16 %v5942
    %v5975 = vunpack.c.h.b16 %v5942
    %v5976 = vunpack.c.l.b16 %v5943
    %v5977 = vunpack.c.h.b16 %v5943
    %v5978 = vunpack.c.l.b16 %v5944
    %v5979 = vunpack.c.h.b16 %v5944
    %v5980 = vunpack.c.l.b16 %v5945
    %v5981 = vunpack.c.h.b16 %v5945
    %v5982 = vunpack.c.l.b16 %v5946
    %v5983 = vunpack.c.h.b16 %v5946
    %v5984 = vpack.c.b16 %v5962, %v5960
    %v5985 = vpack.c.b16 %v5963, %v5961
    %v5986 = vpack.c.b16 %v5966, %v5964
    %v5987 = vpack.c.b16 %v5967, %v5965
    %v5988 = vpack.c.b16 %v5970, %v5968
    %v5989 = vpack.c.b16 %v5971, %v5969
    %v5990 = vpack.c.b16 %v5974, %v5972
    %v5991 = vpack.c.b16 %v5975, %v5973
    %v5992 = vpack.c.b16 %v5978, %v5976
    %v5993 = vpack.c.b16 %v5979, %v5977
    %v5994 = vpack.c.b16 %v5982, %v5980
    %v5995 = vpack.c.b16 %v5983, %v5981
    %v6009 = vsel %vm4681, %v5947, 0
    %6011 = vmatprep.subr.bf16.mxu0 0
    %6012 = vmatpush1.bf16.msra.mxu0 0
    %6013 = vmatprep.subr.bf16.mxu0 0
    %6014 = vmatpush1.bf16.msra.mxu0 0
    %6015 = vmatprep.subr.bf16.mxu0 %v5995
    %6016 = vmatpush1.bf16.msra.mxu0 %v5994
    %6017 = vmatprep.subr.bf16.mxu0 %v5993
    %6018 = vmatpush1.bf16.msra.mxu0 %v5992
    %6019 = vmatprep.subr.bf16.mxu0 %v5991
    %6020 = vmatpush1.bf16.msra.mxu0 %v5990
    %6021 = vmatprep.subr.bf16.mxu0 %v5989
    %6022 = vmatpush1.bf16.msra.mxu0 %v5988
    %6023 = vmatprep.subr.bf16.mxu0 %v5987
    %6024 = vmatpush1.bf16.msra.mxu0 %v5986
    %6025 = vmatprep.subr.bf16.mxu0 %v5985
    %6026 = vmatpush1.bf16.msra.mxu0 %v5984
    %6027 = vmatprep.subr.bf16.mxu0 0
    %6028 = vmatpush2.bf16.msra.mxu0 0
    %6029 = vmatprep.subr.bf16.mxu0 0
    %6030 = vmatpush2.bf16.msra.mxu0 0
    %6031 = vmatprep.subr.bf16.mxu0 0
    %6032 = vmatpush2.bf16.msra.mxu0 0
    %6033 = vmatprep.subr.bf16.mxu0 0
    %6034 = vmatpush2.bf16.msra.mxu0 0
    %6035 = vmatprep.subr.bf16.mxu0 0
    %6036 = vmatpush2.bf16.msra.mxu0 0
    %6037 = vmatprep.subr.bf16.mxu0 0
    %6038 = vmatpush2.bf16.msra.mxu0 0
    %6039 = vmatprep.subr.bf16.mxu0 0
    %6040 = vmatpush2.bf16.msra.mxu0 0
    %6041 = vmatprep.subr.bf16.mxu0 0
    %6042 = vmatpush2.bf16.msra.mxu0 0
    %6043 = vmatprep.mubr.bf16.mxu0 0
    %6044 = vmatmul.mubr.bf16.gmra.mxu0 %v6009
    %v6045 = vpop.f32.mrf.mxu0
    %v6046 = vadd.f32 0.0, %v6045
    %v6047 = vpop.f32.mrf.mxu0
    %v6048 = vadd.f32 0.0, %v6047
    %v6049 = vpop.f32.mrf.mxu0
    %v6050 = vpop.f32.mrf.mxu0
    %6051 = vdwg.mxu0
    %v6052 = vadd.f32 %v5807, %v6046
    %v6053 = vadd.f32 %v5808, %v6048
    %s6054 = scalar_lea.vmem [#allocation2], 288
    %v6055 = vld [vmem:[%s6054] sm:$0xff]
    %v6056 = vld [vmem:[%s6054 + $0x8] sm:$0xff]
    %v6057 = vld [vmem:[%s6054 + $0x10] sm:$0xff]
    %v6058 = vld [vmem:[%s6054 + $0x18] sm:$0xff]
    %v6059 = vld [vmem:[%s6054 + $0x20] sm:$0xff]
    %v6060 = vld [vmem:[%s6054 + $0x28] sm:$0xff]
    %v6061 = vld [vmem:[%s6054 + $0x30] sm:$0xff]
    %v6062 = vld [vmem:[%s6054 + $0x38] sm:$0xff]
    %v6063 = vld [vmem:[%s6054 + $0x40] sm:$0xff]
    %v6064 = vld [vmem:[%s6054 + $0x48] sm:$0xff]
    %v6065 = vld [vmem:[%s6054 + $0x50] sm:$0xff]
    %v6066 = vld [vmem:[%s6054 + $0x58] sm:$0xff]
    %v6067 = vrot.slane %v5219, 3
    %6068 = vrot.lane.b32.xlu0 %v5947, 32
    %v6069 = vpop.permute.xlu0 %6068
    %6070 = vrot.lane.b32.xlu0 %v6067, 32
    %v6071 = vpop.permute.xlu0 %6070
    %v6072 = vsel %vm5474, %v6069, %v6071
    %v6085 = vunpack.c.l.b16 %v6055
    %v6086 = vunpack.c.h.b16 %v6055
    %v6087 = vunpack.c.l.b16 %v6056
    %v6088 = vunpack.c.h.b16 %v6056
    %v6089 = vunpack.c.l.b16 %v6057
    %v6090 = vunpack.c.h.b16 %v6057
    %v6091 = vunpack.c.l.b16 %v6058
    %v6092 = vunpack.c.h.b16 %v6058
    %v6093 = vunpack.c.l.b16 %v6059
    %v6094 = vunpack.c.h.b16 %v6059
    %v6095 = vunpack.c.l.b16 %v6060
    %v6096 = vunpack.c.h.b16 %v6060
    %v6097 = vunpack.c.l.b16 %v6061
    %v6098 = vunpack.c.h.b16 %v6061
    %v6099 = vunpack.c.l.b16 %v6062
    %v6100 = vunpack.c.h.b16 %v6062
    %v6101 = vunpack.c.l.b16 %v6063
    %v6102 = vunpack.c.h.b16 %v6063
    %v6103 = vunpack.c.l.b16 %v6064
    %v6104 = vunpack.c.h.b16 %v6064
    %v6105 = vunpack.c.l.b16 %v6065
    %v6106 = vunpack.c.h.b16 %v6065
    %v6107 = vunpack.c.l.b16 %v6066
    %v6108 = vunpack.c.h.b16 %v6066
    %v6109 = vpack.c.b16 %v6087, %v6085
    %v6110 = vpack.c.b16 %v6088, %v6086
    %v6111 = vpack.c.b16 %v6091, %v6089
    %v6112 = vpack.c.b16 %v6092, %v6090
    %v6113 = vpack.c.b16 %v6095, %v6093
    %v6114 = vpack.c.b16 %v6096, %v6094
    %v6115 = vpack.c.b16 %v6099, %v6097
    %v6116 = vpack.c.b16 %v6100, %v6098
    %v6117 = vpack.c.b16 %v6103, %v6101
    %v6118 = vpack.c.b16 %v6104, %v6102
    %v6119 = vpack.c.b16 %v6107, %v6105
    %v6120 = vpack.c.b16 %v6108, %v6106
    %v6134 = vsel %vm4681, %v6072, 0
    %6136 = vmatprep.subr.bf16.mxu0 0
    %6137 = vmatpush1.bf16.msra.mxu0 0
    %6138 = vmatprep.subr.bf16.mxu0 0
    %6139 = vmatpush1.bf16.msra.mxu0 0
    %6140 = vmatprep.subr.bf16.mxu0 %v6120
    %6141 = vmatpush1.bf16.msra.mxu0 %v6119
    %6142 = vmatprep.subr.bf16.mxu0 %v6118
    %6143 = vmatpush1.bf16.msra.mxu0 %v6117
    %6144 = vmatprep.subr.bf16.mxu0 %v6116
    %6145 = vmatpush1.bf16.msra.mxu0 %v6115
    %6146 = vmatprep.subr.bf16.mxu0 %v6114
    %6147 = vmatpush1.bf16.msra.mxu0 %v6113
    %6148 = vmatprep.subr.bf16.mxu0 %v6112
    %6149 = vmatpush1.bf16.msra.mxu0 %v6111
    %6150 = vmatprep.subr.bf16.mxu0 %v6110
    %6151 = vmatpush1.bf16.msra.mxu0 %v6109
    %6152 = vmatprep.subr.bf16.mxu0 0
    %6153 = vmatpush2.bf16.msra.mxu0 0
    %6154 = vmatprep.subr.bf16.mxu0 0
    %6155 = vmatpush2.bf16.msra.mxu0 0
    %6156 = vmatprep.subr.bf16.mxu0 0
    %6157 = vmatpush2.bf16.msra.mxu0 0
    %6158 = vmatprep.subr.bf16.mxu0 0
    %6159 = vmatpush2.bf16.msra.mxu0 0
    %6160 = vmatprep.subr.bf16.mxu0 0
    %6161 = vmatpush2.bf16.msra.mxu0 0
    %6162 = vmatprep.subr.bf16.mxu0 0
    %6163 = vmatpush2.bf16.msra.mxu0 0
    %6164 = vmatprep.subr.bf16.mxu0 0
    %6165 = vmatpush2.bf16.msra.mxu0 0
    %6166 = vmatprep.subr.bf16.mxu0 0
    %6167 = vmatpush2.bf16.msra.mxu0 0
    %6168 = vmatprep.mubr.bf16.mxu0 0
    %6169 = vmatmul.mubr.bf16.gmra.mxu0 %v6134
    %v6170 = vpop.f32.mrf.mxu0
    %v6171 = vadd.f32 0.0, %v6170
    %v6172 = vpop.f32.mrf.mxu0
    %v6173 = vadd.f32 0.0, %v6172
    %v6174 = vpop.f32.mrf.mxu0
    %v6175 = vpop.f32.mrf.mxu0
    %6176 = vdwg.mxu0
    %v6177 = vadd.f32 %v5932, %v6171
    %v6178 = vadd.f32 %v5933, %v6173
    %v6179 = vpack.c.bf16 %v5202, %v5202
    %s6180 = scalar_lea.vmem %s10, 384
    %v6181 = vld [vmem:[%s6180] sm:$0xff]
    %v6182 = vld [vmem:[%s6180 + $0x8] sm:$0xff]
    %v6183 = vld [vmem:[%s6180 + $0x10] sm:$0xff]
    %v6184 = vld [vmem:[%s6180 + $0x18] sm:$0xff]
    %v6185 = vld [vmem:[%s6180 + $0x20] sm:$0xff]
    %v6186 = vld [vmem:[%s6180 + $0x28] sm:$0xff]
    %v6187 = vld [vmem:[%s6180 + $0x30] sm:$0xff]
    %v6188 = vld [vmem:[%s6180 + $0x38] sm:$0xff]
    %v6189 = vld [vmem:[%s6180 + $0x40] sm:$0xff]
    %v6190 = vld [vmem:[%s6180 + $0x48] sm:$0xff]
    %v6191 = vld [vmem:[%s6180 + $0x50] sm:$0xff]
    %v6192 = vld [vmem:[%s6180 + $0x58] sm:$0xff]
    %v6205 = vunpack.c.l.b16 %v6181
    %v6206 = vunpack.c.h.b16 %v6181
    %v6207 = vunpack.c.l.b16 %v6182
    %v6208 = vunpack.c.h.b16 %v6182
    %v6209 = vunpack.c.l.b16 %v6183
    %v6210 = vunpack.c.h.b16 %v6183
    %v6211 = vunpack.c.l.b16 %v6184
    %v6212 = vunpack.c.h.b16 %v6184
    %v6213 = vunpack.c.l.b16 %v6185
    %v6214 = vunpack.c.h.b16 %v6185
    %v6215 = vunpack.c.l.b16 %v6186
    %v6216 = vunpack.c.h.b16 %v6186
    %v6217 = vunpack.c.l.b16 %v6187
    %v6218 = vunpack.c.h.b16 %v6187
    %v6219 = vunpack.c.l.b16 %v6188
    %v6220 = vunpack.c.h.b16 %v6188
    %v6221 = vunpack.c.l.b16 %v6189
    %v6222 = vunpack.c.h.b16 %v6189
    %v6223 = vunpack.c.l.b16 %v6190
    %v6224 = vunpack.c.h.b16 %v6190
    %v6225 = vunpack.c.l.b16 %v6191
    %v6226 = vunpack.c.h.b16 %v6191
    %v6227 = vunpack.c.l.b16 %v6192
    %v6228 = vunpack.c.h.b16 %v6192
    %v6229 = vpack.c.b16 %v6207, %v6205
    %v6230 = vpack.c.b16 %v6208, %v6206
    %v6231 = vpack.c.b16 %v6211, %v6209
    %v6232 = vpack.c.b16 %v6212, %v6210
    %v6233 = vpack.c.b16 %v6215, %v6213
    %v6234 = vpack.c.b16 %v6216, %v6214
    %v6235 = vpack.c.b16 %v6219, %v6217
    %v6236 = vpack.c.b16 %v6220, %v6218
    %v6237 = vpack.c.b16 %v6223, %v6221
    %v6238 = vpack.c.b16 %v6224, %v6222
    %v6239 = vpack.c.b16 %v6227, %v6225
    %v6240 = vpack.c.b16 %v6228, %v6226
    %v6254 = vsel %vm4681, %v6179, 0
    %6256 = vmatprep.subr.bf16.mxu0 0
    %6257 = vmatpush1.bf16.msra.mxu0 0
    %6258 = vmatprep.subr.bf16.mxu0 0
    %6259 = vmatpush1.bf16.msra.mxu0 0
    %6260 = vmatprep.subr.bf16.mxu0 %v6240
    %6261 = vmatpush1.bf16.msra.mxu0 %v6239
    %6262 = vmatprep.subr.bf16.mxu0 %v6238
    %6263 = vmatpush1.bf16.msra.mxu0 %v6237
    %6264 = vmatprep.subr.bf16.mxu0 %v6236
    %6265 = vmatpush1.bf16.msra.mxu0 %v6235
    %6266 = vmatprep.subr.bf16.mxu0 %v6234
    %6267 = vmatpush1.bf16.msra.mxu0 %v6233
    %6268 = vmatprep.subr.bf16.mxu0 %v6232
    %6269 = vmatpush1.bf16.msra.mxu0 %v6231
    %6270 = vmatprep.subr.bf16.mxu0 %v6230
    %6271 = vmatpush1.bf16.msra.mxu0 %v6229
    %6272 = vmatprep.subr.bf16.mxu0 0
    %6273 = vmatpush2.bf16.msra.mxu0 0
    %6274 = vmatprep.subr.bf16.mxu0 0
    %6275 = vmatpush2.bf16.msra.mxu0 0
    %6276 = vmatprep.subr.bf16.mxu0 0
    %6277 = vmatpush2.bf16.msra.mxu0 0
    %6278 = vmatprep.subr.bf16.mxu0 0
    %6279 = vmatpush2.bf16.msra.mxu0 0
    %6280 = vmatprep.subr.bf16.mxu0 0
    %6281 = vmatpush2.bf16.msra.mxu0 0
    %6282 = vmatprep.subr.bf16.mxu0 0
    %6283 = vmatpush2.bf16.msra.mxu0 0
    %6284 = vmatprep.subr.bf16.mxu0 0
    %6285 = vmatpush2.bf16.msra.mxu0 0
    %6286 = vmatprep.subr.bf16.mxu0 0
    %6287 = vmatpush2.bf16.msra.mxu0 0
    %6288 = vmatprep.mubr.bf16.mxu0 0
    %6289 = vmatmul.mubr.bf16.gmra.mxu0 %v6254
    %v6290 = vpop.f32.mrf.mxu0
    %v6291 = vadd.f32 0.0, %v6290
    %v6292 = vpop.f32.mrf.mxu0
    %v6293 = vadd.f32 0.0, %v6292
    %v6294 = vpop.f32.mrf.mxu0
    %v6295 = vpop.f32.mrf.mxu0
    %6296 = vdwg.mxu0
    %v6297 = vadd.f32 %v6052, %v6291
    %v6298 = vadd.f32 %v6053, %v6293
    %v6299 = vpack.c.bf16 %v5204, %v5204
    %s6300 = scalar_lea.vmem [#allocation2], 384
    %v6301 = vld [vmem:[%s6300] sm:$0xff]
    %v6302 = vld [vmem:[%s6300 + $0x8] sm:$0xff]
    %v6303 = vld [vmem:[%s6300 + $0x10] sm:$0xff]
    %v6304 = vld [vmem:[%s6300 + $0x18] sm:$0xff]
    %v6305 = vld [vmem:[%s6300 + $0x20] sm:$0xff]
    %v6306 = vld [vmem:[%s6300 + $0x28] sm:$0xff]
    %v6307 = vld [vmem:[%s6300 + $0x30] sm:$0xff]
    %v6308 = vld [vmem:[%s6300 + $0x38] sm:$0xff]
    %v6309 = vld [vmem:[%s6300 + $0x40] sm:$0xff]
    %v6310 = vld [vmem:[%s6300 + $0x48] sm:$0xff]
    %v6311 = vld [vmem:[%s6300 + $0x50] sm:$0xff]
    %v6312 = vld [vmem:[%s6300 + $0x58] sm:$0xff]
    %6315 = vrot.lane.b32.xlu0 %v6179, 32
    %v6316 = vpop.permute.xlu0 %6315
    %6317 = vrot.lane.b32.xlu0 %v6299, 32
    %v6318 = vpop.permute.xlu0 %6317
    %v6319 = vsel %vm5474, %v6316, %v6318
    %v6332 = vunpack.c.l.b16 %v6301
    %v6333 = vunpack.c.h.b16 %v6301
    %v6334 = vunpack.c.l.b16 %v6302
    %v6335 = vunpack.c.h.b16 %v6302
    %v6336 = vunpack.c.l.b16 %v6303
    %v6337 = vunpack.c.h.b16 %v6303
    %v6338 = vunpack.c.l.b16 %v6304
    %v6339 = vunpack.c.h.b16 %v6304
    %v6340 = vunpack.c.l.b16 %v6305
    %v6341 = vunpack.c.h.b16 %v6305
    %v6342 = vunpack.c.l.b16 %v6306
    %v6343 = vunpack.c.h.b16 %v6306
    %v6344 = vunpack.c.l.b16 %v6307
    %v6345 = vunpack.c.h.b16 %v6307
    %v6346 = vunpack.c.l.b16 %v6308
    %v6347 = vunpack.c.h.b16 %v6308
    %v6348 = vunpack.c.l.b16 %v6309
    %v6349 = vunpack.c.h.b16 %v6309
    %v6350 = vunpack.c.l.b16 %v6310
    %v6351 = vunpack.c.h.b16 %v6310
    %v6352 = vunpack.c.l.b16 %v6311
    %v6353 = vunpack.c.h.b16 %v6311
    %v6354 = vunpack.c.l.b16 %v6312
    %v6355 = vunpack.c.h.b16 %v6312
    %v6356 = vpack.c.b16 %v6334, %v6332
    %v6357 = vpack.c.b16 %v6335, %v6333
    %v6358 = vpack.c.b16 %v6338, %v6336
    %v6359 = vpack.c.b16 %v6339, %v6337
    %v6360 = vpack.c.b16 %v6342, %v6340
    %v6361 = vpack.c.b16 %v6343, %v6341
    %v6362 = vpack.c.b16 %v6346, %v6344
    %v6363 = vpack.c.b16 %v6347, %v6345
    %v6364 = vpack.c.b16 %v6350, %v6348
    %v6365 = vpack.c.b16 %v6351, %v6349
    %v6366 = vpack.c.b16 %v6354, %v6352
    %v6367 = vpack.c.b16 %v6355, %v6353
    %v6381 = vsel %vm4681, %v6319, 0
    %6383 = vmatprep.subr.bf16.mxu0 0
    %6384 = vmatpush1.bf16.msra.mxu0 0
    %6385 = vmatprep.subr.bf16.mxu0 0
    %6386 = vmatpush1.bf16.msra.mxu0 0
    %6387 = vmatprep.subr.bf16.mxu0 %v6367
    %6388 = vmatpush1.bf16.msra.mxu0 %v6366
    %6389 = vmatprep.subr.bf16.mxu0 %v6365
    %6390 = vmatpush1.bf16.msra.mxu0 %v6364
    %6391 = vmatprep.subr.bf16.mxu0 %v6363
    %6392 = vmatpush1.bf16.msra.mxu0 %v6362
    %6393 = vmatprep.subr.bf16.mxu0 %v6361
    %6394 = vmatpush1.bf16.msra.mxu0 %v6360
    %6395 = vmatprep.subr.bf16.mxu0 %v6359
    %6396 = vmatpush1.bf16.msra.mxu0 %v6358
    %6397 = vmatprep.subr.bf16.mxu0 %v6357
    %6398 = vmatpush1.bf16.msra.mxu0 %v6356
    %6399 = vmatprep.subr.bf16.mxu0 0
    %6400 = vmatpush2.bf16.msra.mxu0 0
    %6401 = vmatprep.subr.bf16.mxu0 0
    %6402 = vmatpush2.bf16.msra.mxu0 0
    %6403 = vmatprep.subr.bf16.mxu0 0
    %6404 = vmatpush2.bf16.msra.mxu0 0
    %6405 = vmatprep.subr.bf16.mxu0 0
    %6406 = vmatpush2.bf16.msra.mxu0 0
    %6407 = vmatprep.subr.bf16.mxu0 0
    %6408 = vmatpush2.bf16.msra.mxu0 0
    %6409 = vmatprep.subr.bf16.mxu0 0
    %6410 = vmatpush2.bf16.msra.mxu0 0
    %6411 = vmatprep.subr.bf16.mxu0 0
    %6412 = vmatpush2.bf16.msra.mxu0 0
    %6413 = vmatprep.subr.bf16.mxu0 0
    %6414 = vmatpush2.bf16.msra.mxu0 0
    %6415 = vmatprep.mubr.bf16.mxu0 0
    %6416 = vmatmul.mubr.bf16.gmra.mxu0 %v6381
    %v6417 = vpop.f32.mrf.mxu0
    %v6418 = vadd.f32 0.0, %v6417
    %v6419 = vpop.f32.mrf.mxu0
    %v6420 = vadd.f32 0.0, %v6419
    %v6421 = vpop.f32.mrf.mxu0
    %v6422 = vpop.f32.mrf.mxu0
    %6423 = vdwg.mxu0
    %v6424 = vadd.f32 %v6177, %v6418
    %v6425 = vadd.f32 %v6178, %v6420
    %s6426 = scalar_lea.vmem %s10, 480
    %v6427 = vld [vmem:[%s6426] sm:$0xff]
    %v6428 = vld [vmem:[%s6426 + $0x8] sm:$0xff]
    %v6429 = vld [vmem:[%s6426 + $0x10] sm:$0xff]
    %v6430 = vld [vmem:[%s6426 + $0x18] sm:$0xff]
    %v6431 = vld [vmem:[%s6426 + $0x20] sm:$0xff]
    %v6432 = vld [vmem:[%s6426 + $0x28] sm:$0xff]
    %v6433 = vld [vmem:[%s6426 + $0x30] sm:$0xff]
    %v6434 = vld [vmem:[%s6426 + $0x38] sm:$0xff]
    %v6435 = vld [vmem:[%s6426 + $0x40] sm:$0xff]
    %v6436 = vld [vmem:[%s6426 + $0x48] sm:$0xff]
    %v6437 = vld [vmem:[%s6426 + $0x50] sm:$0xff]
    %v6438 = vld [vmem:[%s6426 + $0x58] sm:$0xff]
    %v6439 = vrot.slane %v6179, 1
    %v6452 = vunpack.c.l.b16 %v6427
    %v6453 = vunpack.c.h.b16 %v6427
    %v6454 = vunpack.c.l.b16 %v6428
    %v6455 = vunpack.c.h.b16 %v6428
    %v6456 = vunpack.c.l.b16 %v6429
    %v6457 = vunpack.c.h.b16 %v6429
    %v6458 = vunpack.c.l.b16 %v6430
    %v6459 = vunpack.c.h.b16 %v6430
    %v6460 = vunpack.c.l.b16 %v6431
    %v6461 = vunpack.c.h.b16 %v6431
    %v6462 = vunpack.c.l.b16 %v6432
    %v6463 = vunpack.c.h.b16 %v6432
    %v6464 = vunpack.c.l.b16 %v6433
    %v6465 = vunpack.c.h.b16 %v6433
    %v6466 = vunpack.c.l.b16 %v6434
    %v6467 = vunpack.c.h.b16 %v6434
    %v6468 = vunpack.c.l.b16 %v6435
    %v6469 = vunpack.c.h.b16 %v6435
    %v6470 = vunpack.c.l.b16 %v6436
    %v6471 = vunpack.c.h.b16 %v6436
    %v6472 = vunpack.c.l.b16 %v6437
    %v6473 = vunpack.c.h.b16 %v6437
    %v6474 = vunpack.c.l.b16 %v6438
    %v6475 = vunpack.c.h.b16 %v6438
    %v6476 = vpack.c.b16 %v6454, %v6452
    %v6477 = vpack.c.b16 %v6455, %v6453
    %v6478 = vpack.c.b16 %v6458, %v6456
    %v6479 = vpack.c.b16 %v6459, %v6457
    %v6480 = vpack.c.b16 %v6462, %v6460
    %v6481 = vpack.c.b16 %v6463, %v6461
    %v6482 = vpack.c.b16 %v6466, %v6464
    %v6483 = vpack.c.b16 %v6467, %v6465
    %v6484 = vpack.c.b16 %v6470, %v6468
    %v6485 = vpack.c.b16 %v6471, %v6469
    %v6486 = vpack.c.b16 %v6474, %v6472
    %v6487 = vpack.c.b16 %v6475, %v6473
    %v6501 = vsel %vm4681, %v6439, 0
    %6503 = vmatprep.subr.bf16.mxu0 0
    %6504 = vmatpush1.bf16.msra.mxu0 0
    %6505 = vmatprep.subr.bf16.mxu0 0
    %6506 = vmatpush1.bf16.msra.mxu0 0
    %6507 = vmatprep.subr.bf16.mxu0 %v6487
    %6508 = vmatpush1.bf16.msra.mxu0 %v6486
    %6509 = vmatprep.subr.bf16.mxu0 %v6485
    %6510 = vmatpush1.bf16.msra.mxu0 %v6484
    %6511 = vmatprep.subr.bf16.mxu0 %v6483
    %6512 = vmatpush1.bf16.msra.mxu0 %v6482
    %6513 = vmatprep.subr.bf16.mxu0 %v6481
    %6514 = vmatpush1.bf16.msra.mxu0 %v6480
    %6515 = vmatprep.subr.bf16.mxu0 %v6479
    %6516 = vmatpush1.bf16.msra.mxu0 %v6478
    %6517 = vmatprep.subr.bf16.mxu0 %v6477
    %6518 = vmatpush1.bf16.msra.mxu0 %v6476
    %6519 = vmatprep.subr.bf16.mxu0 0
    %6520 = vmatpush2.bf16.msra.mxu0 0
    %6521 = vmatprep.subr.bf16.mxu0 0
    %6522 = vmatpush2.bf16.msra.mxu0 0
    %6523 = vmatprep.subr.bf16.mxu0 0
    %6524 = vmatpush2.bf16.msra.mxu0 0
    %6525 = vmatprep.subr.bf16.mxu0 0
    %6526 = vmatpush2.bf16.msra.mxu0 0
    %6527 = vmatprep.subr.bf16.mxu0 0
    %6528 = vmatpush2.bf16.msra.mxu0 0
    %6529 = vmatprep.subr.bf16.mxu0 0
    %6530 = vmatpush2.bf16.msra.mxu0 0
    %6531 = vmatprep.subr.bf16.mxu0 0
    %6532 = vmatpush2.bf16.msra.mxu0 0
    %6533 = vmatprep.subr.bf16.mxu0 0
    %6534 = vmatpush2.bf16.msra.mxu0 0
    %6535 = vmatprep.mubr.bf16.mxu0 0
    %6536 = vmatmul.mubr.bf16.gmra.mxu0 %v6501
    %v6537 = vpop.f32.mrf.mxu0
    %v6538 = vadd.f32 0.0, %v6537
    %v6539 = vpop.f32.mrf.mxu0
    %v6540 = vadd.f32 0.0, %v6539
    %v6541 = vpop.f32.mrf.mxu0
    %v6542 = vpop.f32.mrf.mxu0
    %6543 = vdwg.mxu0
    %v6544 = vadd.f32 %v6297, %v6538
    %v6545 = vadd.f32 %v6298, %v6540
    %s6546 = scalar_lea.vmem [#allocation2], 480
    %v6547 = vld [vmem:[%s6546] sm:$0xff]
    %v6548 = vld [vmem:[%s6546 + $0x8] sm:$0xff]
    %v6549 = vld [vmem:[%s6546 + $0x10] sm:$0xff]
    %v6550 = vld [vmem:[%s6546 + $0x18] sm:$0xff]
    %v6551 = vld [vmem:[%s6546 + $0x20] sm:$0xff]
    %v6552 = vld [vmem:[%s6546 + $0x28] sm:$0xff]
    %v6553 = vld [vmem:[%s6546 + $0x30] sm:$0xff]
    %v6554 = vld [vmem:[%s6546 + $0x38] sm:$0xff]
    %v6555 = vld [vmem:[%s6546 + $0x40] sm:$0xff]
    %v6556 = vld [vmem:[%s6546 + $0x48] sm:$0xff]
    %v6557 = vld [vmem:[%s6546 + $0x50] sm:$0xff]
    %v6558 = vld [vmem:[%s6546 + $0x58] sm:$0xff]
    %v6559 = vrot.slane %v6299, 1
    %6560 = vrot.lane.b32.xlu0 %v6439, 32
    %v6561 = vpop.permute.xlu0 %6560
    %6562 = vrot.lane.b32.xlu0 %v6559, 32
    %v6563 = vpop.permute.xlu0 %6562
    %v6564 = vsel %vm5474, %v6561, %v6563
    %v6577 = vunpack.c.l.b16 %v6547
    %v6578 = vunpack.c.h.b16 %v6547
    %v6579 = vunpack.c.l.b16 %v6548
    %v6580 = vunpack.c.h.b16 %v6548
    %v6581 = vunpack.c.l.b16 %v6549
    %v6582 = vunpack.c.h.b16 %v6549
    %v6583 = vunpack.c.l.b16 %v6550
    %v6584 = vunpack.c.h.b16 %v6550
    %v6585 = vunpack.c.l.b16 %v6551
    %v6586 = vunpack.c.h.b16 %v6551
    %v6587 = vunpack.c.l.b16 %v6552
    %v6588 = vunpack.c.h.b16 %v6552
    %v6589 = vunpack.c.l.b16 %v6553
    %v6590 = vunpack.c.h.b16 %v6553
    %v6591 = vunpack.c.l.b16 %v6554
    %v6592 = vunpack.c.h.b16 %v6554
    %v6593 = vunpack.c.l.b16 %v6555
    %v6594 = vunpack.c.h.b16 %v6555
    %v6595 = vunpack.c.l.b16 %v6556
    %v6596 = vunpack.c.h.b16 %v6556
    %v6597 = vunpack.c.l.b16 %v6557
    %v6598 = vunpack.c.h.b16 %v6557
    %v6599 = vunpack.c.l.b16 %v6558
    %v6600 = vunpack.c.h.b16 %v6558
    %v6601 = vpack.c.b16 %v6579, %v6577
    %v6602 = vpack.c.b16 %v6580, %v6578
    %v6603 = vpack.c.b16 %v6583, %v6581
    %v6604 = vpack.c.b16 %v6584, %v6582
    %v6605 = vpack.c.b16 %v6587, %v6585
    %v6606 = vpack.c.b16 %v6588, %v6586
    %v6607 = vpack.c.b16 %v6591, %v6589
    %v6608 = vpack.c.b16 %v6592, %v6590
    %v6609 = vpack.c.b16 %v6595, %v6593
    %v6610 = vpack.c.b16 %v6596, %v6594
    %v6611 = vpack.c.b16 %v6599, %v6597
    %v6612 = vpack.c.b16 %v6600, %v6598
    %v6626 = vsel %vm4681, %v6564, 0
    %6628 = vmatprep.subr.bf16.mxu0 0
    %6629 = vmatpush1.bf16.msra.mxu0 0
    %6630 = vmatprep.subr.bf16.mxu0 0
    %6631 = vmatpush1.bf16.msra.mxu0 0
    %6632 = vmatprep.subr.bf16.mxu0 %v6612
    %6633 = vmatpush1.bf16.msra.mxu0 %v6611
    %6634 = vmatprep.subr.bf16.mxu0 %v6610
    %6635 = vmatpush1.bf16.msra.mxu0 %v6609
    %6636 = vmatprep.subr.bf16.mxu0 %v6608
    %6637 = vmatpush1.bf16.msra.mxu0 %v6607
    %6638 = vmatprep.subr.bf16.mxu0 %v6606
    %6639 = vmatpush1.bf16.msra.mxu0 %v6605
    %6640 = vmatprep.subr.bf16.mxu0 %v6604
    %6641 = vmatpush1.bf16.msra.mxu0 %v6603
    %6642 = vmatprep.subr.bf16.mxu0 %v6602
    %6643 = vmatpush1.bf16.msra.mxu0 %v6601
    %6644 = vmatprep.subr.bf16.mxu0 0
    %6645 = vmatpush2.bf16.msra.mxu0 0
    %6646 = vmatprep.subr.bf16.mxu0 0
    %6647 = vmatpush2.bf16.msra.mxu0 0
    %6648 = vmatprep.subr.bf16.mxu0 0
    %6649 = vmatpush2.bf16.msra.mxu0 0
    %6650 = vmatprep.subr.bf16.mxu0 0
    %6651 = vmatpush2.bf16.msra.mxu0 0
    %6652 = vmatprep.subr.bf16.mxu0 0
    %6653 = vmatpush2.bf16.msra.mxu0 0
    %6654 = vmatprep.subr.bf16.mxu0 0
    %6655 = vmatpush2.bf16.msra.mxu0 0
    %6656 = vmatprep.subr.bf16.mxu0 0
    %6657 = vmatpush2.bf16.msra.mxu0 0
    %6658 = vmatprep.subr.bf16.mxu0 0
    %6659 = vmatpush2.bf16.msra.mxu0 0
    %6660 = vmatprep.mubr.bf16.mxu0 0
    %6661 = vmatmul.mubr.bf16.gmra.mxu0 %v6626
    %v6662 = vpop.f32.mrf.mxu0
    %v6663 = vadd.f32 0.0, %v6662
    %v6664 = vpop.f32.mrf.mxu0
    %v6665 = vadd.f32 0.0, %v6664
    %v6666 = vpop.f32.mrf.mxu0
    %v6667 = vpop.f32.mrf.mxu0
    %6668 = vdwg.mxu0
    %v6669 = vadd.f32 %v6424, %v6663
    %v6670 = vadd.f32 %v6425, %v6665
    %v6671 = vld [vmem:[%s11] sm:$0x3]
    %v6673 = vlaneseq
    %v6674 = vshrl.u32 %v6673, 7
    %v6675 = vsub.s32 0, %v6674
    %v6676 = vrot.slane %v6671, %v6675
    %v6677 = vlaneseq
    %v6678 = vshrl.u32 %v6677, 7
    %v6679 = vsub.s32 1, %v6678
    %v6680 = vrot.slane %v6671, %v6679
    %v6683 = vadd.f32 %v6544, %v6676
    %v6684 = vadd.f32 %v6545, %v6680
    %v6685 = vmax.f32 %v6683, 0.0
    %v6686 = vmax.f32 %v6684, 0.0
    %v6687 = vld [vmem:[%s13] sm:$0x3]
    %v6689 = vlaneseq
    %v6690 = vshrl.u32 %v6689, 7
    %v6691 = vsub.s32 0, %v6690
    %v6692 = vrot.slane %v6687, %v6691
    %v6693 = vlaneseq
    %v6694 = vshrl.u32 %v6693, 7
    %v6695 = vsub.s32 1, %v6694
    %v6696 = vrot.slane %v6687, %v6695
    %v6699 = vadd.f32 %v6669, %v6692
    %v6700 = vadd.f32 %v6670, %v6696
    %v6701 = vmax.f32 %v6699, 0.0
    %v6702 = vmax.f32 %v6700, 0.0
    %v6703 = vld [vmem:[%s0] sm:$0x1]
    %v6704 = vld [vmem:[%s14] sm:$0xff]
    %v6705 = vld [vmem:[%s14 + $0x8] sm:$0x11]
    %v6706 = vpack.c.bf16 %v6685, %v6685
    %v6707 = vpack.c.bf16 %v6686, %v6686
    %v6708 = vld [vmem:[#allocation4] sm:$0xff]
    %v6709 = vld [vmem:[#allocation4 + $0x8] sm:$0xff]
    %v6710 = vld [vmem:[#allocation4 + $0x10] sm:$0xff]
    %v6711 = vld [vmem:[#allocation4 + $0x18] sm:$0xff]
    %v6712 = vld [vmem:[#allocation4 + $0x20] sm:$0xff]
    %v6713 = vld [vmem:[#allocation4 + $0x28] sm:$0xff]
    %v6714 = vld [vmem:[#allocation4 + $0x30] sm:$0xff]
    %v6715 = vld [vmem:[#allocation4 + $0x38] sm:$0xff]
    %v6716 = vld [vmem:[#allocation4 + $0x40] sm:$0xff]
    %v6717 = vld [vmem:[#allocation4 + $0x48] sm:$0xff]
    %v6718 = vld [vmem:[#allocation4 + $0x50] sm:$0xff]
    %v6719 = vld [vmem:[#allocation4 + $0x58] sm:$0xff]
    %v6720 = vld [vmem:[#allocation4 + $0x60] sm:$0xff]
    %v6721 = vld [vmem:[#allocation4 + $0x68] sm:$0xff]
    %v6722 = vld [vmem:[#allocation4 + $0x70] sm:$0xff]
    %v6723 = vld [vmem:[#allocation4 + $0x78] sm:$0xff]
    %v6724 = vld [vmem:[#allocation4 + $0x80] sm:$0xff]
    %v6725 = vld [vmem:[#allocation4 + $0x88] sm:$0xff]
    %v6726 = vld [vmem:[#allocation4 + $0x90] sm:$0xff]
    %v6727 = vld [vmem:[#allocation4 + $0x98] sm:$0xff]
    %v6728 = vld [vmem:[#allocation4 + $0xa0] sm:$0xff]
    %v6729 = vld [vmem:[#allocation4 + $0xa8] sm:$0xff]
    %v6730 = vld [vmem:[#allocation4 + $0xb0] sm:$0xff]
    %v6731 = vld [vmem:[#allocation4 + $0xb8] sm:$0xff]
    %v6732 = vld [vmem:[#allocation4 + $0xc0] sm:$0xff]
    %v6733 = vld [vmem:[#allocation4 + $0xc8] sm:$0xff]
    %v6734 = vld [vmem:[#allocation4 + $0xd0] sm:$0xff]
    %v6735 = vld [vmem:[#allocation4 + $0xd8] sm:$0xff]
    %v6736 = vld [vmem:[#allocation4 + $0xe0] sm:$0xff]
    %v6737 = vld [vmem:[#allocation4 + $0xe8] sm:$0xff]
    %v6738 = vld [vmem:[#allocation4 + $0xf0] sm:$0xff]
    %v6739 = vld [vmem:[#allocation4 + $0xf8] sm:$0xff]
    %v6772 = vunpack.c.l.b16 %v6708
    %v6773 = vunpack.c.h.b16 %v6708
    %v6774 = vunpack.c.l.b16 %v6709
    %v6775 = vunpack.c.h.b16 %v6709
    %v6776 = vunpack.c.l.b16 %v6710
    %v6777 = vunpack.c.h.b16 %v6710
    %v6778 = vunpack.c.l.b16 %v6711
    %v6779 = vunpack.c.h.b16 %v6711
    %v6780 = vunpack.c.l.b16 %v6712
    %v6781 = vunpack.c.h.b16 %v6712
    %v6782 = vunpack.c.l.b16 %v6713
    %v6783 = vunpack.c.h.b16 %v6713
    %v6784 = vunpack.c.l.b16 %v6714
    %v6785 = vunpack.c.h.b16 %v6714
    %v6786 = vunpack.c.l.b16 %v6715
    %v6787 = vunpack.c.h.b16 %v6715
    %v6788 = vunpack.c.l.b16 %v6716
    %v6789 = vunpack.c.h.b16 %v6716
    %v6790 = vunpack.c.l.b16 %v6717
    %v6791 = vunpack.c.h.b16 %v6717
    %v6792 = vunpack.c.l.b16 %v6718
    %v6793 = vunpack.c.h.b16 %v6718
    %v6794 = vunpack.c.l.b16 %v6719
    %v6795 = vunpack.c.h.b16 %v6719
    %v6796 = vunpack.c.l.b16 %v6720
    %v6797 = vunpack.c.h.b16 %v6720
    %v6798 = vunpack.c.l.b16 %v6721
    %v6799 = vunpack.c.h.b16 %v6721
    %v6800 = vunpack.c.l.b16 %v6722
    %v6801 = vunpack.c.h.b16 %v6722
    %v6802 = vunpack.c.l.b16 %v6723
    %v6803 = vunpack.c.h.b16 %v6723
    %v6804 = vunpack.c.l.b16 %v6724
    %v6805 = vunpack.c.h.b16 %v6724
    %v6806 = vunpack.c.l.b16 %v6725
    %v6807 = vunpack.c.h.b16 %v6725
    %v6808 = vunpack.c.l.b16 %v6726
    %v6809 = vunpack.c.h.b16 %v6726
    %v6810 = vunpack.c.l.b16 %v6727
    %v6811 = vunpack.c.h.b16 %v6727
    %v6812 = vunpack.c.l.b16 %v6728
    %v6813 = vunpack.c.h.b16 %v6728
    %v6814 = vunpack.c.l.b16 %v6729
    %v6815 = vunpack.c.h.b16 %v6729
    %v6816 = vunpack.c.l.b16 %v6730
    %v6817 = vunpack.c.h.b16 %v6730
    %v6818 = vunpack.c.l.b16 %v6731
    %v6819 = vunpack.c.h.b16 %v6731
    %v6820 = vunpack.c.l.b16 %v6732
    %v6821 = vunpack.c.h.b16 %v6732
    %v6822 = vunpack.c.l.b16 %v6733
    %v6823 = vunpack.c.h.b16 %v6733
    %v6824 = vunpack.c.l.b16 %v6734
    %v6825 = vunpack.c.h.b16 %v6734
    %v6826 = vunpack.c.l.b16 %v6735
    %v6827 = vunpack.c.h.b16 %v6735
    %v6828 = vunpack.c.l.b16 %v6736
    %v6829 = vunpack.c.h.b16 %v6736
    %v6830 = vunpack.c.l.b16 %v6737
    %v6831 = vunpack.c.h.b16 %v6737
    %v6832 = vunpack.c.l.b16 %v6738
    %v6833 = vunpack.c.h.b16 %v6738
    %v6834 = vunpack.c.l.b16 %v6739
    %v6835 = vunpack.c.h.b16 %v6739
    %v6836 = vpack.c.b16 %v6774, %v6772
    %v6837 = vpack.c.b16 %v6775, %v6773
    %v6838 = vpack.c.b16 %v6778, %v6776
    %v6839 = vpack.c.b16 %v6779, %v6777
    %v6840 = vpack.c.b16 %v6782, %v6780
    %v6841 = vpack.c.b16 %v6783, %v6781
    %v6842 = vpack.c.b16 %v6786, %v6784
    %v6843 = vpack.c.b16 %v6787, %v6785
    %v6844 = vpack.c.b16 %v6790, %v6788
    %v6845 = vpack.c.b16 %v6791, %v6789
    %v6846 = vpack.c.b16 %v6794, %v6792
    %v6847 = vpack.c.b16 %v6795, %v6793
    %v6848 = vpack.c.b16 %v6798, %v6796
    %v6849 = vpack.c.b16 %v6799, %v6797
    %v6850 = vpack.c.b16 %v6802, %v6800
    %v6851 = vpack.c.b16 %v6803, %v6801
    %v6852 = vpack.c.b16 %v6806, %v6804
    %v6853 = vpack.c.b16 %v6807, %v6805
    %v6854 = vpack.c.b16 %v6810, %v6808
    %v6855 = vpack.c.b16 %v6811, %v6809
    %v6856 = vpack.c.b16 %v6814, %v6812
    %v6857 = vpack.c.b16 %v6815, %v6813
    %v6858 = vpack.c.b16 %v6818, %v6816
    %v6859 = vpack.c.b16 %v6819, %v6817
    %v6860 = vpack.c.b16 %v6822, %v6820
    %v6861 = vpack.c.b16 %v6823, %v6821
    %v6862 = vpack.c.b16 %v6826, %v6824
    %v6863 = vpack.c.b16 %v6827, %v6825
    %v6864 = vpack.c.b16 %v6830, %v6828
    %v6865 = vpack.c.b16 %v6831, %v6829
    %v6866 = vpack.c.b16 %v6834, %v6832
    %v6867 = vpack.c.b16 %v6835, %v6833
    %6900 = vmatprep.subr.bf16.mxu0 %v6851
    %6901 = vmatpush1.bf16.msra.mxu0 %v6850
    %6902 = vmatprep.subr.bf16.mxu0 %v6849
    %6903 = vmatpush1.bf16.msra.mxu0 %v6848
    %6904 = vmatprep.subr.bf16.mxu0 %v6847
    %6905 = vmatpush1.bf16.msra.mxu0 %v6846
    %6906 = vmatprep.subr.bf16.mxu0 %v6845
    %6907 = vmatpush1.bf16.msra.mxu0 %v6844
    %6908 = vmatprep.subr.bf16.mxu0 %v6843
    %6909 = vmatpush1.bf16.msra.mxu0 %v6842
    %6910 = vmatprep.subr.bf16.mxu0 %v6841
    %6911 = vmatpush1.bf16.msra.mxu0 %v6840
    %6912 = vmatprep.subr.bf16.mxu0 %v6839
    %6913 = vmatpush1.bf16.msra.mxu0 %v6838
    %6914 = vmatprep.subr.bf16.mxu0 %v6837
    %6915 = vmatpush1.bf16.msra.mxu0 %v6836
    %6916 = vmatprep.subr.bf16.mxu0 %v6867
    %6917 = vmatpush2.bf16.msra.mxu0 %v6866
    %6918 = vmatprep.subr.bf16.mxu0 %v6865
    %6919 = vmatpush2.bf16.msra.mxu0 %v6864
    %6920 = vmatprep.subr.bf16.mxu0 %v6863
    %6921 = vmatpush2.bf16.msra.mxu0 %v6862
    %6922 = vmatprep.subr.bf16.mxu0 %v6861
    %6923 = vmatpush2.bf16.msra.mxu0 %v6860
    %6924 = vmatprep.subr.bf16.mxu0 %v6859
    %6925 = vmatpush2.bf16.msra.mxu0 %v6858
    %6926 = vmatprep.subr.bf16.mxu0 %v6857
    %6927 = vmatpush2.bf16.msra.mxu0 %v6856
    %6928 = vmatprep.subr.bf16.mxu0 %v6855
    %6929 = vmatpush2.bf16.msra.mxu0 %v6854
    %6930 = vmatprep.subr.bf16.mxu0 %v6853
    %6931 = vmatpush2.bf16.msra.mxu0 %v6852
    %6932 = vmatprep.mubr.bf16.mxu0 %v6707
    %6933 = vmatmul.mubr.bf16.gmra.mxu0 %v6706
    %v6934 = vpop.f32.mrf.mxu0
    %v6935 = vadd.f32 0.0, %v6934
    %v6936 = vpop.f32.mrf.mxu0
    %v6937 = vadd.f32 0.0, %v6936
    %v6938 = vpop.f32.mrf.mxu0
    %v6939 = vpop.f32.mrf.mxu0
    %6940 = vdwg.mxu0
    %v6943 = vunpack.c.l.b16 %v6704
    %v6944 = vunpack.c.h.b16 %v6704
    %v6945 = vunpack.c.l.b16 %v6705
    %v6946 = vunpack.c.h.b16 %v6705
    %v6947 = vpack.c.b16 %v6945, %v6943
    %v6948 = vpack.c.b16 %v6946, %v6944
    %vm6949 = vcmask 72704
    %v6951 = vsel %vm6949, %v6703, 0
    %vm6953 = vcmask 1044480
    %v6954 = vsel %vm3647, 4294967295, 65535
    %v6955 = vsel %vm6953, %v6954, 0
    %v6957 = vand.u32 %v6947, %v6955
    %v6960 = vand.u32 %v6948, %v6955
    %6962 = vmatprep.subr.bf16.mxu0 0
    %6963 = vmatpush1.bf16.msra.mxu0 0
    %6964 = vmatprep.subr.bf16.mxu0 0
    %6965 = vmatpush1.bf16.msra.mxu0 0
    %6966 = vmatprep.subr.bf16.mxu0 0
    %6967 = vmatpush1.bf16.msra.mxu0 0
    %6968 = vmatprep.subr.bf16.mxu0 0
    %6969 = vmatpush1.bf16.msra.mxu0 0
    %6970 = vmatprep.subr.bf16.mxu0 0
    %6971 = vmatpush1.bf16.msra.mxu0 0
    %6972 = vmatprep.subr.bf16.mxu0 0
    %6973 = vmatpush1.bf16.msra.mxu0 0
    %6974 = vmatprep.subr.bf16.mxu0 0
    %6975 = vmatpush1.bf16.msra.mxu0 0
    %6976 = vmatprep.subr.bf16.mxu0 %v6960
    %6977 = vmatpush1.bf16.msra.mxu0 %v6957
    %6978 = vmatprep.subr.bf16.mxu0 0
    %6979 = vmatpush2.bf16.msra.mxu0 0
    %6980 = vmatprep.subr.bf16.mxu0 0
    %6981 = vmatpush2.bf16.msra.mxu0 0
    %6982 = vmatprep.subr.bf16.mxu0 0
    %6983 = vmatpush2.bf16.msra.mxu0 0
    %6984 = vmatprep.subr.bf16.mxu0 0
    %6985 = vmatpush2.bf16.msra.mxu0 0
    %6986 = vmatprep.subr.bf16.mxu0 0
    %6987 = vmatpush2.bf16.msra.mxu0 0
    %6988 = vmatprep.subr.bf16.mxu0 0
    %6989 = vmatpush2.bf16.msra.mxu0 0
    %6990 = vmatprep.subr.bf16.mxu0 0
    %6991 = vmatpush2.bf16.msra.mxu0 0
    %6992 = vmatprep.subr.bf16.mxu0 0
    %6993 = vmatpush2.bf16.msra.mxu0 0
    %6994 = vmatprep.mubr.bf16.mxu0 0
    %6995 = vmatmul.mubr.bf16.gmra.mxu0 %v6951
    %v6996 = vpop.f32.mrf.mxu0
    %v6997 = vadd.f32 %v6935, %v6996
    %v6998 = vpop.f32.mrf.mxu0
    %v6999 = vadd.f32 %v6937, %v6998
    %v7000 = vpop.f32.mrf.mxu0
    %v7001 = vpop.f32.mrf.mxu0
    %7002 = vdwg.mxu0
    %v7003 = vpack.c.bf16 %v6701, %v6701
    %v7004 = vpack.c.bf16 %v6702, %v6702
    %v7005 = vld [vmem:[#allocation6] sm:$0xff]
    %v7006 = vld [vmem:[#allocation6 + $0x8] sm:$0xff]
    %v7007 = vld [vmem:[#allocation6 + $0x10] sm:$0xff]
    %v7008 = vld [vmem:[#allocation6 + $0x18] sm:$0xff]
    %v7009 = vld [vmem:[#allocation6 + $0x20] sm:$0xff]
    %v7010 = vld [vmem:[#allocation6 + $0x28] sm:$0xff]
    %v7011 = vld [vmem:[#allocation6 + $0x30] sm:$0xff]
    %v7012 = vld [vmem:[#allocation6 + $0x38] sm:$0xff]
    %v7013 = vld [vmem:[#allocation6 + $0x40] sm:$0xff]
    %v7014 = vld [vmem:[#allocation6 + $0x48] sm:$0xff]
    %v7015 = vld [vmem:[#allocation6 + $0x50] sm:$0xff]
    %v7016 = vld [vmem:[#allocation6 + $0x58] sm:$0xff]
    %v7017 = vld [vmem:[#allocation6 + $0x60] sm:$0xff]
    %v7018 = vld [vmem:[#allocation6 + $0x68] sm:$0xff]
    %v7019 = vld [vmem:[#allocation6 + $0x70] sm:$0xff]
    %v7020 = vld [vmem:[#allocation6 + $0x78] sm:$0xff]
    %v7021 = vld [vmem:[#allocation6 + $0x80] sm:$0xff]
    %v7022 = vld [vmem:[#allocation6 + $0x88] sm:$0xff]
    %v7023 = vld [vmem:[#allocation6 + $0x90] sm:$0xff]
    %v7024 = vld [vmem:[#allocation6 + $0x98] sm:$0xff]
    %v7025 = vld [vmem:[#allocation6 + $0xa0] sm:$0xff]
    %v7026 = vld [vmem:[#allocation6 + $0xa8] sm:$0xff]
    %v7027 = vld [vmem:[#allocation6 + $0xb0] sm:$0xff]
    %v7028 = vld [vmem:[#allocation6 + $0xb8] sm:$0xff]
    %v7029 = vld [vmem:[#allocation6 + $0xc0] sm:$0xff]
    %v7030 = vld [vmem:[#allocation6 + $0xc8] sm:$0xff]
    %v7031 = vld [vmem:[#allocation6 + $0xd0] sm:$0xff]
    %v7032 = vld [vmem:[#allocation6 + $0xd8] sm:$0xff]
    %v7033 = vld [vmem:[#allocation6 + $0xe0] sm:$0xff]
    %v7034 = vld [vmem:[#allocation6 + $0xe8] sm:$0xff]
    %v7035 = vld [vmem:[#allocation6 + $0xf0] sm:$0xff]
    %v7036 = vld [vmem:[#allocation6 + $0xf8] sm:$0xff]
    %v7069 = vunpack.c.l.b16 %v7005
    %v7070 = vunpack.c.h.b16 %v7005
    %v7071 = vunpack.c.l.b16 %v7006
    %v7072 = vunpack.c.h.b16 %v7006
    %v7073 = vunpack.c.l.b16 %v7007
    %v7074 = vunpack.c.h.b16 %v7007
    %v7075 = vunpack.c.l.b16 %v7008
    %v7076 = vunpack.c.h.b16 %v7008
    %v7077 = vunpack.c.l.b16 %v7009
    %v7078 = vunpack.c.h.b16 %v7009
    %v7079 = vunpack.c.l.b16 %v7010
    %v7080 = vunpack.c.h.b16 %v7010
    %v7081 = vunpack.c.l.b16 %v7011
    %v7082 = vunpack.c.h.b16 %v7011
    %v7083 = vunpack.c.l.b16 %v7012
    %v7084 = vunpack.c.h.b16 %v7012
    %v7085 = vunpack.c.l.b16 %v7013
    %v7086 = vunpack.c.h.b16 %v7013
    %v7087 = vunpack.c.l.b16 %v7014
    %v7088 = vunpack.c.h.b16 %v7014
    %v7089 = vunpack.c.l.b16 %v7015
    %v7090 = vunpack.c.h.b16 %v7015
    %v7091 = vunpack.c.l.b16 %v7016
    %v7092 = vunpack.c.h.b16 %v7016
    %v7093 = vunpack.c.l.b16 %v7017
    %v7094 = vunpack.c.h.b16 %v7017
    %v7095 = vunpack.c.l.b16 %v7018
    %v7096 = vunpack.c.h.b16 %v7018
    %v7097 = vunpack.c.l.b16 %v7019
    %v7098 = vunpack.c.h.b16 %v7019
    %v7099 = vunpack.c.l.b16 %v7020
    %v7100 = vunpack.c.h.b16 %v7020
    %v7101 = vunpack.c.l.b16 %v7021
    %v7102 = vunpack.c.h.b16 %v7021
    %v7103 = vunpack.c.l.b16 %v7022
    %v7104 = vunpack.c.h.b16 %v7022
    %v7105 = vunpack.c.l.b16 %v7023
    %v7106 = vunpack.c.h.b16 %v7023
    %v7107 = vunpack.c.l.b16 %v7024
    %v7108 = vunpack.c.h.b16 %v7024
    %v7109 = vunpack.c.l.b16 %v7025
    %v7110 = vunpack.c.h.b16 %v7025
    %v7111 = vunpack.c.l.b16 %v7026
    %v7112 = vunpack.c.h.b16 %v7026
    %v7113 = vunpack.c.l.b16 %v7027
    %v7114 = vunpack.c.h.b16 %v7027
    %v7115 = vunpack.c.l.b16 %v7028
    %v7116 = vunpack.c.h.b16 %v7028
    %v7117 = vunpack.c.l.b16 %v7029
    %v7118 = vunpack.c.h.b16 %v7029
    %v7119 = vunpack.c.l.b16 %v7030
    %v7120 = vunpack.c.h.b16 %v7030
    %v7121 = vunpack.c.l.b16 %v7031
    %v7122 = vunpack.c.h.b16 %v7031
    %v7123 = vunpack.c.l.b16 %v7032
    %v7124 = vunpack.c.h.b16 %v7032
    %v7125 = vunpack.c.l.b16 %v7033
    %v7126 = vunpack.c.h.b16 %v7033
    %v7127 = vunpack.c.l.b16 %v7034
    %v7128 = vunpack.c.h.b16 %v7034
    %v7129 = vunpack.c.l.b16 %v7035
    %v7130 = vunpack.c.h.b16 %v7035
    %v7131 = vunpack.c.l.b16 %v7036
    %v7132 = vunpack.c.h.b16 %v7036
    %v7133 = vpack.c.b16 %v7071, %v7069
    %v7134 = vpack.c.b16 %v7072, %v7070
    %v7135 = vpack.c.b16 %v7075, %v7073
    %v7136 = vpack.c.b16 %v7076, %v7074
    %v7137 = vpack.c.b16 %v7079, %v7077
    %v7138 = vpack.c.b16 %v7080, %v7078
    %v7139 = vpack.c.b16 %v7083, %v7081
    %v7140 = vpack.c.b16 %v7084, %v7082
    %v7141 = vpack.c.b16 %v7087, %v7085
    %v7142 = vpack.c.b16 %v7088, %v7086
    %v7143 = vpack.c.b16 %v7091, %v7089
    %v7144 = vpack.c.b16 %v7092, %v7090
    %v7145 = vpack.c.b16 %v7095, %v7093
    %v7146 = vpack.c.b16 %v7096, %v7094
    %v7147 = vpack.c.b16 %v7099, %v7097
    %v7148 = vpack.c.b16 %v7100, %v7098
    %v7149 = vpack.c.b16 %v7103, %v7101
    %v7150 = vpack.c.b16 %v7104, %v7102
    %v7151 = vpack.c.b16 %v7107, %v7105
    %v7152 = vpack.c.b16 %v7108, %v7106
    %v7153 = vpack.c.b16 %v7111, %v7109
    %v7154 = vpack.c.b16 %v7112, %v7110
    %v7155 = vpack.c.b16 %v7115, %v7113
    %v7156 = vpack.c.b16 %v7116, %v7114
    %v7157 = vpack.c.b16 %v7119, %v7117
    %v7158 = vpack.c.b16 %v7120, %v7118
    %v7159 = vpack.c.b16 %v7123, %v7121
    %v7160 = vpack.c.b16 %v7124, %v7122
    %v7161 = vpack.c.b16 %v7127, %v7125
    %v7162 = vpack.c.b16 %v7128, %v7126
    %v7163 = vpack.c.b16 %v7131, %v7129
    %v7164 = vpack.c.b16 %v7132, %v7130
    %7197 = vmatprep.subr.bf16.mxu0 %v7148
    %7198 = vmatpush1.bf16.msra.mxu0 %v7147
    %7199 = vmatprep.subr.bf16.mxu0 %v7146
    %7200 = vmatpush1.bf16.msra.mxu0 %v7145
    %7201 = vmatprep.subr.bf16.mxu0 %v7144
    %7202 = vmatpush1.bf16.msra.mxu0 %v7143
    %7203 = vmatprep.subr.bf16.mxu0 %v7142
    %7204 = vmatpush1.bf16.msra.mxu0 %v7141
    %7205 = vmatprep.subr.bf16.mxu0 %v7140
    %7206 = vmatpush1.bf16.msra.mxu0 %v7139
    %7207 = vmatprep.subr.bf16.mxu0 %v7138
    %7208 = vmatpush1.bf16.msra.mxu0 %v7137
    %7209 = vmatprep.subr.bf16.mxu0 %v7136
    %7210 = vmatpush1.bf16.msra.mxu0 %v7135
    %7211 = vmatprep.subr.bf16.mxu0 %v7134
    %7212 = vmatpush1.bf16.msra.mxu0 %v7133
    %7213 = vmatprep.subr.bf16.mxu0 %v7164
    %7214 = vmatpush2.bf16.msra.mxu0 %v7163
    %7215 = vmatprep.subr.bf16.mxu0 %v7162
    %7216 = vmatpush2.bf16.msra.mxu0 %v7161
    %7217 = vmatprep.subr.bf16.mxu0 %v7160
    %7218 = vmatpush2.bf16.msra.mxu0 %v7159
    %7219 = vmatprep.subr.bf16.mxu0 %v7158
    %7220 = vmatpush2.bf16.msra.mxu0 %v7157
    %7221 = vmatprep.subr.bf16.mxu0 %v7156
    %7222 = vmatpush2.bf16.msra.mxu0 %v7155
    %7223 = vmatprep.subr.bf16.mxu0 %v7154
    %7224 = vmatpush2.bf16.msra.mxu0 %v7153
    %7225 = vmatprep.subr.bf16.mxu0 %v7152
    %7226 = vmatpush2.bf16.msra.mxu0 %v7151
    %7227 = vmatprep.subr.bf16.mxu0 %v7150
    %7228 = vmatpush2.bf16.msra.mxu0 %v7149
    %7229 = vmatprep.mubr.bf16.mxu0 %v7004
    %7230 = vmatmul.mubr.bf16.gmra.mxu0 %v7003
    %v7231 = vpop.f32.mrf.mxu0
    %v7232 = vadd.f32 0.0, %v7231
    %v7233 = vpop.f32.mrf.mxu0
    %v7234 = vadd.f32 0.0, %v7233
    %v7235 = vpop.f32.mrf.mxu0
    %v7236 = vpop.f32.mrf.mxu0
    %7237 = vdwg.mxu0
    %v7238 = vadd.f32 %v6997, %v7232
    %v7239 = vadd.f32 %v6999, %v7234
    %v7240 = vld [vmem:[%s17] sm:$0x3]
    %v7242 = vlaneseq
    %v7243 = vshrl.u32 %v7242, 7
    %v7244 = vsub.s32 0, %v7243
    %v7245 = vrot.slane %v7240, %v7244
    %v7246 = vlaneseq
    %v7247 = vshrl.u32 %v7246, 7
    %v7248 = vsub.s32 1, %v7247
    %v7249 = vrot.slane %v7240, %v7248
    %v7252 = vadd.f32 %v7238, %v7245
    %v7253 = vadd.f32 %v7239, %v7249
    %v7254 = vmax.f32 %v7252, 0.0
    %v7255 = vmax.f32 %v7253, 0.0
    %v7256 = vpack.c.bf16 %v7254, %v7254
    %v7257 = vpack.c.bf16 %v7255, %v7255
    %v7258 = vld [vmem:[%s18] sm:$0xf]
    %v7259 = vld [vmem:[%s18 + $0x4] sm:$0xf]
    %v7260 = vld [vmem:[%s18 + $0x8] sm:$0xf]
    %v7261 = vld [vmem:[%s18 + $0xc] sm:$0xf]
    %v7262 = vld [vmem:[%s18 + $0x10] sm:$0xf]
    %v7263 = vld [vmem:[%s18 + $0x14] sm:$0xf]
    %v7264 = vld [vmem:[%s18 + $0x18] sm:$0xf]
    %v7265 = vld [vmem:[%s18 + $0x1c] sm:$0xf]
    %v7266 = vld [vmem:[%s18 + $0x20] sm:$0xf]
    %v7267 = vld [vmem:[%s18 + $0x24] sm:$0xf]
    %v7268 = vld [vmem:[%s18 + $0x28] sm:$0xf]
    %v7269 = vld [vmem:[%s18 + $0x2c] sm:$0xf]
    %v7270 = vld [vmem:[%s18 + $0x30] sm:$0xf]
    %v7271 = vld [vmem:[%s18 + $0x34] sm:$0xf]
    %v7272 = vld [vmem:[%s18 + $0x38] sm:$0xf]
    %v7273 = vld [vmem:[%s18 + $0x3c] sm:$0xf]
    %v7274 = vld [vmem:[%s18 + $0x40] sm:$0xf]
    %v7275 = vld [vmem:[%s18 + $0x44] sm:$0xf]
    %v7276 = vld [vmem:[%s18 + $0x48] sm:$0xf]
    %v7277 = vld [vmem:[%s18 + $0x4c] sm:$0xf]
    %v7278 = vld [vmem:[%s18 + $0x50] sm:$0xf]
    %v7279 = vld [vmem:[%s18 + $0x54] sm:$0xf]
    %v7280 = vld [vmem:[%s18 + $0x58] sm:$0xf]
    %v7281 = vld [vmem:[%s18 + $0x5c] sm:$0xf]
    %v7282 = vld [vmem:[%s18 + $0x60] sm:$0xf]
    %v7283 = vld [vmem:[%s18 + $0x64] sm:$0xf]
    %v7284 = vld [vmem:[%s18 + $0x68] sm:$0xf]
    %v7285 = vld [vmem:[%s18 + $0x6c] sm:$0xf]
    %v7286 = vld [vmem:[%s18 + $0x70] sm:$0xf]
    %v7287 = vld [vmem:[%s18 + $0x74] sm:$0xf]
    %v7288 = vld [vmem:[%s18 + $0x78] sm:$0xf]
    %v7289 = vld [vmem:[%s18 + $0x7c] sm:$0xf]
    %v7290 = vld [vmem:[%s19] sm:$0x1]
    %v7292 = vlaneseq
    %v7293 = vshrl.u32 %v7292, 7
    %v7294 = vsub.s32 0, %v7293
    %v7295 = vrot.slane %v7290, %v7294
    %v7329 = vunpack.c.l.b16 %v7258
    %v7330 = vunpack.c.l.b16 %v7259
    %v7331 = vunpack.c.l.b16 %v7260
    %v7332 = vunpack.c.l.b16 %v7261
    %v7333 = vunpack.c.l.b16 %v7262
    %v7334 = vunpack.c.l.b16 %v7263
    %v7335 = vunpack.c.l.b16 %v7264
    %v7336 = vunpack.c.l.b16 %v7265
    %v7337 = vunpack.c.l.b16 %v7266
    %v7338 = vunpack.c.l.b16 %v7267
    %v7339 = vunpack.c.l.b16 %v7268
    %v7340 = vunpack.c.l.b16 %v7269
    %v7341 = vunpack.c.l.b16 %v7270
    %v7342 = vunpack.c.l.b16 %v7271
    %v7343 = vunpack.c.l.b16 %v7272
    %v7344 = vunpack.c.l.b16 %v7273
    %v7345 = vunpack.c.l.b16 %v7274
    %v7346 = vunpack.c.l.b16 %v7275
    %v7347 = vunpack.c.l.b16 %v7276
    %v7348 = vunpack.c.l.b16 %v7277
    %v7349 = vunpack.c.l.b16 %v7278
    %v7350 = vunpack.c.l.b16 %v7279
    %v7351 = vunpack.c.l.b16 %v7280
    %v7352 = vunpack.c.l.b16 %v7281
    %v7353 = vunpack.c.l.b16 %v7282
    %v7354 = vunpack.c.l.b16 %v7283
    %v7355 = vunpack.c.l.b16 %v7284
    %v7356 = vunpack.c.l.b16 %v7285
    %v7357 = vunpack.c.l.b16 %v7286
    %v7358 = vunpack.c.l.b16 %v7287
    %v7359 = vunpack.c.l.b16 %v7288
    %v7360 = vunpack.c.l.b16 %v7289
    %v7361 = vpack.c.b16 %v7330, %v7329
    %v7362 = vpack.c.b16 %v7332, %v7331
    %v7363 = vpack.c.b16 %v7334, %v7333
    %v7364 = vpack.c.b16 %v7336, %v7335
    %v7365 = vpack.c.b16 %v7338, %v7337
    %v7366 = vpack.c.b16 %v7340, %v7339
    %v7367 = vpack.c.b16 %v7342, %v7341
    %v7368 = vpack.c.b16 %v7344, %v7343
    %v7369 = vpack.c.b16 %v7346, %v7345
    %v7370 = vpack.c.b16 %v7348, %v7347
    %v7371 = vpack.c.b16 %v7350, %v7349
    %v7372 = vpack.c.b16 %v7352, %v7351
    %v7373 = vpack.c.b16 %v7354, %v7353
    %v7374 = vpack.c.b16 %v7356, %v7355
    %v7375 = vpack.c.b16 %v7358, %v7357
    %v7376 = vpack.c.b16 %v7360, %v7359
    %7393 = vmatprep.subr.bf16.mxu0 0
    %7394 = vmatpush1.bf16.msra.mxu0 %v7368
    %7395 = vmatprep.subr.bf16.mxu0 0
    %7396 = vmatpush1.bf16.msra.mxu0 %v7367
    %7397 = vmatprep.subr.bf16.mxu0 0
    %7398 = vmatpush1.bf16.msra.mxu0 %v7366
    %7399 = vmatprep.subr.bf16.mxu0 0
    %7400 = vmatpush1.bf16.msra.mxu0 %v7365
    %7401 = vmatprep.subr.bf16.mxu0 0
    %7402 = vmatpush1.bf16.msra.mxu0 %v7364
    %7403 = vmatprep.subr.bf16.mxu0 0
    %7404 = vmatpush1.bf16.msra.mxu0 %v7363
    %7405 = vmatprep.subr.bf16.mxu0 0
    %7406 = vmatpush1.bf16.msra.mxu0 %v7362
    %7407 = vmatprep.subr.bf16.mxu0 0
    %7408 = vmatpush1.bf16.msra.mxu0 %v7361
    %7409 = vmatprep.subr.bf16.mxu0 0
    %7410 = vmatpush2.bf16.msra.mxu0 %v7376
    %7411 = vmatprep.subr.bf16.mxu0 0
    %7412 = vmatpush2.bf16.msra.mxu0 %v7375
    %7413 = vmatprep.subr.bf16.mxu0 0
    %7414 = vmatpush2.bf16.msra.mxu0 %v7374
    %7415 = vmatprep.subr.bf16.mxu0 0
    %7416 = vmatpush2.bf16.msra.mxu0 %v7373
    %7417 = vmatprep.subr.bf16.mxu0 0
    %7418 = vmatpush2.bf16.msra.mxu0 %v7372
    %7419 = vmatprep.subr.bf16.mxu0 0
    %7420 = vmatpush2.bf16.msra.mxu0 %v7371
    %7421 = vmatprep.subr.bf16.mxu0 0
    %7422 = vmatpush2.bf16.msra.mxu0 %v7370
    %7423 = vmatprep.subr.bf16.mxu0 0
    %7424 = vmatpush2.bf16.msra.mxu0 %v7369
    %7425 = vmatprep.mubr.bf16.mxu0 %v7257
    %7426 = vmatmul.mubr.bf16.gmra.mxu0 %v7256
    %v7427 = vpop.f32.mrf.mxu0
    %v7428 = vadd.f32 %v7295, %v7427
    %v7429 = vpop.f32.mrf.mxu0
    %v7430 = vpop.f32.mrf.mxu0
    %v7431 = vpop.f32.mrf.mxu0
    %7432 = vdwg.mxu0
    %v7433 = vmax.f32 %v7428, 0.0
    %v7434 = vpack.c.bf16 %v7433, %v7433
    %v7435 = vld [vmem:[%s20] sm:$0xf]
    %v7436 = vld [vmem:[%s20 + $0x4] sm:$0xf]
    %v7437 = vld [vmem:[%s20 + $0x8] sm:$0xf]
    %v7438 = vld [vmem:[%s20 + $0xc] sm:$0xf]
    %v7439 = vld [vmem:[#allocation7] sm:$0x1]
    %v7441 = vlaneseq
    %v7442 = vshrl.u32 %v7441, 7
    %v7443 = vsub.s32 0, %v7442
    %v7444 = vrot.slane %v7439, %v7443
    %v7450 = vunpack.c.l.b16 %v7435
    %v7451 = vunpack.c.l.b16 %v7436
    %v7452 = vunpack.c.l.b16 %v7437
    %v7453 = vunpack.c.l.b16 %v7438
    %v7454 = vpack.c.b16 %v7451, %v7450
    %v7455 = vpack.c.b16 %v7453, %v7452
    %vm7458 = vcmask 261120
    %v7460 = vsel %vm7458, %v7434, 0
    %7462 = vmatprep.subr.bf16.mxu0 0
    %7463 = vmatpush1.bf16.msra.mxu0 0
    %7464 = vmatprep.subr.bf16.mxu0 0
    %7465 = vmatpush1.bf16.msra.mxu0 0
    %7466 = vmatprep.subr.bf16.mxu0 0
    %7467 = vmatpush1.bf16.msra.mxu0 0
    %7468 = vmatprep.subr.bf16.mxu0 0
    %7469 = vmatpush1.bf16.msra.mxu0 0
    %7470 = vmatprep.subr.bf16.mxu0 0
    %7471 = vmatpush1.bf16.msra.mxu0 0
    %7472 = vmatprep.subr.bf16.mxu0 0
    %7473 = vmatpush1.bf16.msra.mxu0 0
    %7474 = vmatprep.subr.bf16.mxu0 0
    %7475 = vmatpush1.bf16.msra.mxu0 %v7455
    %7476 = vmatprep.subr.bf16.mxu0 0
    %7477 = vmatpush1.bf16.msra.mxu0 %v7454
    %7478 = vmatprep.subr.bf16.mxu0 0
    %7479 = vmatpush2.bf16.msra.mxu0 0
    %7480 = vmatprep.subr.bf16.mxu0 0
    %7481 = vmatpush2.bf16.msra.mxu0 0
    %7482 = vmatprep.subr.bf16.mxu0 0
    %7483 = vmatpush2.bf16.msra.mxu0 0
    %7484 = vmatprep.subr.bf16.mxu0 0
    %7485 = vmatpush2.bf16.msra.mxu0 0
    %7486 = vmatprep.subr.bf16.mxu0 0
    %7487 = vmatpush2.bf16.msra.mxu0 0
    %7488 = vmatprep.subr.bf16.mxu0 0
    %7489 = vmatpush2.bf16.msra.mxu0 0
    %7490 = vmatprep.subr.bf16.mxu0 0
    %7491 = vmatpush2.bf16.msra.mxu0 0
    %7492 = vmatprep.subr.bf16.mxu0 0
    %7493 = vmatpush2.bf16.msra.mxu0 0
    %7494 = vmatprep.mubr.bf16.mxu0 0
    %7495 = vmatmul.mubr.bf16.gmra.mxu0 %v7460
    %v7496 = vpop.f32.mrf.mxu0
    %v7497 = vadd.f32 %v7444, %v7496
    %v7498 = vpop.f32.mrf.mxu0
    %v7499 = vpop.f32.mrf.mxu0
    %v7500 = vpop.f32.mrf.mxu0
    %7501 = vdwg.mxu0
    %vm7502 = vcmask 17408
    %7503 = vst.msk [vmem:[%s22] sm:$0x3] %vm7502, %v7497
    %vm7504 = vcmask 23552
    %7505 = vst.msk [vmem:[%s22 + $0x2] sm:$0xff] %vm7504, 0.0
    %vm7506 = vcmask 21504
    %7507 = vst.msk [vmem:[%s22 + $0xa] sm:$0x3f] %vm7506, 0.0
    // Predicated region
    $region106: #{net_forward_pallas.1} parent=1 // pred_check
      _
    $region107: #{net_forward_pallas.1} parent=1 // pred_check_branch
      %7509 = sbr.rel (0) target = $region109
    $region108: #{net_forward_pallas.1} parent=1 // pred_region
      _
    $region109: #{net_forward_pallas.1} parent=1 // pred_fallthru
      _
    // Predicated region
    $region110: #{net_forward_pallas.1} parent=1 // pred_check
      _
    $region111: #{net_forward_pallas.1} parent=1 // pred_check_branch
      %7511 = sbr.rel (0) target = $region113
    $region112: #{net_forward_pallas.1} parent=1 // pred_region
      _
    $region113: #{net_forward_pallas.1} parent=1 // pred_fallthru
      _
    %7512 = vsyncpa [#allocation3], 1
    %7513 = vsyncpa [#allocation5], 1
    %7514 = vsyncpa [#allocation8], 1

</llo_original>
